<compile_context>
chip_gen: v7x
topology: tpu7x:2x2x1
jax: 0.10.0
libtpu: 0.0.40
codegen_flags: <defaults>
</compile_context>

<pallas_src>
import math
import functools

import jax
import jax.numpy as jnp
from jax.experimental import pallas as pl
from jax.experimental.pallas import tpu as pltpu


# ----------------------------------------------------------------------------
# Pallas kernel: fused per-pillar single-head cross attention
# ----------------------------------------------------------------------------
def _fused_mha_kernel(q_ref, kv_ref, mask_ref,
                      wq_ref, bq_ref, wkv_ref, bkv_ref,
                      wo_ref, bo_ref,
                      o_ref, *, scale):
    # q_ref   : (T, D)      one lidar query per pillar
    # kv_ref  : (T, L, C)   sampled image features (K == V source)
    # mask_ref: (T, L)      1.0 = attend, 0.0 = masked
    T, L, C = kv_ref.shape
    D = q_ref.shape[-1]

    q = q_ref[...].astype(jnp.float32)
    kv = kv_ref[...].astype(jnp.float32).reshape(T * L, C)   # L % 8 == 0 (padded)
    m = mask_ref[...]

    # Query in-projection (small matmul over the tile).
    qp = jnp.dot(q, wq_ref[...], preferred_element_type=jnp.float32) + bq_ref[...]

    # Fused K/V in-projection: single (T*L, C) @ (C, 2D) MXU pass, no HBM
    # round trips; slice at lane offset D (multiple of 128) is free.
    kvp = (jnp.dot(kv, wkv_ref[...], preferred_element_type=jnp.float32)
           + bkv_ref[...])                                     # (T*L, 2D)
    kp = kvp[:, :D].reshape(T, L, D)
    vp = kvp[:, D:].reshape(T, L, D)

    # Scores: each pillar's single query against its own L keys (VPU + XLU).
    s = jnp.sum(qp[:, None, :] * kp, axis=-1) * scale            # (T, L)
    s = jnp.where(m > 0.0, s, jnp.float32(-1e30))

    # Masked softmax over keys. Fully-masked rows stay finite (uniform weights)
    # and are zeroed by `valid` below, matching the reference `valid` gate.
    s_max = jnp.max(s, axis=-1, keepdims=True)                   # (T, 1)
    p = jnp.exp(s - s_max)                                       # (T, L)
    denom = jnp.sum(p, axis=-1, keepdims=True)                   # (T, 1)
    w = p * pl.reciprocal(denom, approx=True)                    # EUP slot

    ctx = jnp.sum(w[:, :, None] * vp, axis=1)                    # (T, D)
    out = jnp.dot(ctx, wo_ref[...], preferred_element_type=jnp.float32) + bo_ref[...]

    valid = (jnp.sum(m, axis=-1, keepdims=True) > 0.0).astype(jnp.float32)
    o_ref[...] = (out * valid).astype(o_ref.dtype)


def masked_cross_attention(q, kv, mask, params, *, tile=128):
    """Fused single-head cross attention, one query per row.

    q    : (P, D)    float32
    kv   : (P, L, C) float32 (keys == values source features)
    mask : (P, L)    float32 (1 = attend, 0 = masked)
    returns (P, D) float32 (zero rows where no key is valid)
    """
    P, D = q.shape
    L, C = kv.shape[1], kv.shape[2]

    # Pad the key axis to a sublane multiple so the in-kernel
    # (T, L, C) <-> (T*L, C) reshapes are layout-free; padded keys are masked.
    L_pad = ((L + 7) // 8) * 8
    if L_pad != L:
        kv = jnp.pad(kv, ((0, 0), (0, L_pad - L), (0, 0)))
        mask = jnp.pad(mask, ((0, 0), (0, L_pad - L)))
        L = L_pad

    # Tile the pillar axis; pad to a multiple of the tile (padded pillars are
    # fully masked -> zero output, sliced off below).
    T = max(8, min(tile, P))
    T = ((T + 7) // 8) * 8
    P_pad = pl.cdiv(P, T) * T
    if P_pad != P:
        q = jnp.pad(q, ((0, P_pad - P), (0, 0)))
        kv = jnp.pad(kv, ((0, P_pad - P), (0, 0), (0, 0)))
        mask = jnp.pad(mask, ((0, P_pad - P), (0, 0)))

    # Fuse K and V projection weights into one (C, 2D) matrix (single MXU pass).
    wkv = jnp.concatenate([params["wk"], params["wv"]], axis=1)   # (C, 2D)
    bkv = jnp.concatenate([params["bk"], params["bv"]], axis=1)   # (1, 2D)

    scale = 1.0 / math.sqrt(D)
    kernel = functools.partial(_fused_mha_kernel, scale=scale)

    out = pl.pallas_call(
        kernel,
        out_shape=jax.ShapeDtypeStruct((P_pad, D), jnp.float32),
        grid_spec=pltpu.PrefetchScalarGridSpec(
            num_scalar_prefetch=0,
            grid=(P_pad // T,),
            in_specs=[
                pl.BlockSpec((T, D), lambda i: (i, 0)),
                pl.BlockSpec((T, L, C), lambda i: (i, 0, 0)),
                pl.BlockSpec((T, L), lambda i: (i, 0)),
                pl.BlockSpec((D, D), lambda i: (0, 0)),       # wq
                pl.BlockSpec((1, D), lambda i: (0, 0)),       # bq
                pl.BlockSpec((C, 2 * D), lambda i: (0, 0)),   # wkv (fused k|v)
                pl.BlockSpec((1, 2 * D), lambda i: (0, 0)),   # bkv
                pl.BlockSpec((D, D), lambda i: (0, 0)),       # wo
                pl.BlockSpec((1, D), lambda i: (0, 0)),       # bo
            ],
            out_specs=pl.BlockSpec((T, D), lambda i: (i, 0)),
        ),
        compiler_params=pltpu.CompilerParams(
            dimension_semantics=("parallel",)),
    )(q, kv, mask,
      params["wq"], params["bq"], wkv, bkv,
      params["wo"], params["bo"])
    return out[:P]


# ----------------------------------------------------------------------------
# Geometry + grid_sample preprocessing (XLA; data-dependent gathers)
# ----------------------------------------------------------------------------
def _project_and_sample(pillars, pillar_batch, pillars_num_points,
                        lidar2img, img_feat_nhwc, input_shape):
    """Project pillar points into every camera and bilinearly sample features.

    Returns kv (P, L, C_img) and mask (P, L), L = max_points * num_cam,
    key order (point-major, camera-minor) matching the PyTorch reference.
    """
    P, M, _ = pillars.shape
    B, num_cam, H_f, W_f, C_img = img_feat_nhwc.shape
    H_img, W_img = input_shape

    # TODO(synk): apply_3d_transformation reversal assumed identity (no aug).
    pts = pillars[..., :3]                                            # (P, M, 3)
    pts_h = jnp.concatenate([pts, jnp.ones_like(pts[..., :1])], -1)   # (P, M, 4)
    proj = lidar2img[pillar_batch]                                    # (P, cam, 4, 4)
    xyz_cams = jnp.einsum('pcij,pmj->pcmi', proj, pts_h)              # (P, cam, M, 4)

    eps = 1e-5
    z = xyz_cams[..., 2]
    in_front = z > eps
    xy = xyz_cams[..., 0:2] / jnp.maximum(z, eps)[..., None]
    x_n = (xy[..., 0] / W_img - 0.5) * 2.0
    y_n = (xy[..., 1] / H_img - 0.5) * 2.0
    mask = (in_front & (x_n > -1.0) & (x_n < 1.0)
            & (y_n > -1.0) & (y_n < 1.0))                             # (P, cam, M)

    # F.grid_sample: bilinear, padding_mode='zeros', align_corners=False.
    xf = (x_n + 1.0) * 0.5 * W_f - 0.5
    yf = (y_n + 1.0) * 0.5 * H_f - 0.5
    x0 = jnp.floor(xf)
    y0 = jnp.floor(yf)
    bi = jnp.broadcast_to(pillar_batch[:, None, None], (P, num_cam, M))
    ci = jnp.broadcast_to(jnp.arange(num_cam, dtype=jnp.int32)[None, :, None],
                          (P, num_cam, M))

    def corner(yi, xi):
        ok = ((yi >= 0) & (yi < H_f) & (xi >= 0) & (xi < W_f)).astype(jnp.float32)
        yc = jnp.clip(yi, 0, H_f - 1).astype(jnp.int32)
        xc = jnp.clip(xi, 0, W_f - 1).astype(jnp.int32)
        vals = img_feat_nhwc[bi, ci, yc, xc]                          # (P, cam, M, C)
        return vals * ok[..., None]

    wx1 = xf - x0
    wy1 = yf - y0
    wx0 = 1.0 - wx1
    wy0 = 1.0 - wy1
    sampled = ((wy0 * wx0)[..., None] * corner(y0, x0)
               + (wy0 * wx1)[..., None] * corner(y0, x0 + 1.0)
               + (wy1 * wx0)[..., None] * corner(y0 + 1.0, x0)
               + (wy1 * wx1)[..., None] * corner(y0 + 1.0, x0 + 1.0))  # (P,cam,M,C)

    # Points beyond pillars_num_points are padding (cumsum trick equivalent).
    point_valid = (jnp.arange(M, dtype=jnp.int32)[None, :]
                   < pillars_num_points[:, None])                     # (P, M)

    sampled = jnp.transpose(sampled, (0, 2, 1, 3))                    # (P, M, cam, C)
    mask = jnp.transpose(mask, (0, 2, 1)) & point_valid[:, :, None]   # (P, M, cam)
    kv = sampled.reshape(P, M * num_cam, C_img)
    mask = mask.reshape(P, M * num_cam).astype(jnp.float32)
    return kv, mask


# ----------------------------------------------------------------------------
# MMRI_I2P forward
# ----------------------------------------------------------------------------
def mmri_i2p_forward(lidar_feat, img_feat, lidar2img, input_shape,
                     pillars, pillar_coors, pillars_num_points, params,
                     *, tile=128):
    """
    lidar_feat : (B, pts_channels, H_l, W_l)
    img_feat   : (B, num_cam, img_channels, H_f, W_f)
    lidar2img  : (B, num_cam, 4, 4)
    input_shape: (H_img, W_img) python ints (raw image size)
    pillars    : (P, max_points, p_dim)   (first 3 features = xyz)
    pillar_coors: (P, 4) int [batch, z, y, x]
    pillars_num_points: (P,) int
    """
    pillar_batch = pillar_coors[:, 0].astype(jnp.int32)
    ys = pillar_coors[:, 2].astype(jnp.int32)
    xs = pillar_coors[:, 3].astype(jnp.int32)

    img_feat_nhwc = jnp.transpose(img_feat, (0, 1, 3, 4, 2))          # (B,cam,H,W,C)
    kv, mask = _project_and_sample(pillars, pillar_batch, pillars_num_points,
                                   lidar2img, img_feat_nhwc, input_shape)

    lidar_nhwc = jnp.transpose(lidar_feat, (0, 2, 3, 1))              # (B,H,W,D)
    q = lidar_nhwc[pillar_batch, ys, xs]                              # (P, D)

    attn = masked_cross_attention(q, kv, mask, params, tile=tile)     # (P, D)

    decorated = jnp.zeros_like(lidar_nhwc)
    decorated = decorated.at[pillar_batch, ys, xs].set(attn)
    return jnp.transpose(decorated, (0, 3, 1, 2))                     # (B,D,H,W)


def init_params(key, pts_channels, img_channels):
    """nn.MultiheadAttention(pts, 1, kdim=vdim=img): xavier in-proj, zero bias."""
    def xavier(k, fan_in, fan_out):
        a = math.sqrt(6.0 / (fan_in + fan_out))
        return jax.random.uniform(k, (fan_in, fan_out), jnp.float32, -a, a)

    D, C = pts_channels, img_channels
    ks = jax.random.split(key, 4)
    zD = jnp.zeros((1, D), jnp.float32)
    return {
        "wq": xavier(ks[0], D, D), "bq": zD,
        "wk": xavier(ks[1], C, D), "bk": zD,
        "wv": xavier(ks[2], C, D), "bv": zD,
        "wo": xavier(ks[3], D, D), "bo": zD,
    }


def _make_lidar2img(yaw, fx, fy, cx, cy):
    c, s = math.cos(yaw), math.sin(yaw)
    rz = jnp.array([[c, -s, 0.0], [s, c, 0.0], [0.0, 0.0, 1.0]], jnp.float32)
    r_l2c = jnp.array([[0.0, -1.0, 0.0],
                       [0.0, 0.0, -1.0],
                       [1.0, 0.0, 0.0]], jnp.float32) @ rz
    k = jnp.array([[fx, 0.0, cx], [0.0, fy, cy], [0.0, 0.0, 1.0]], jnp.float32)
    p3x4 = k @ jnp.concatenate([r_l2c, jnp.zeros((3, 1), jnp.float32)], axis=1)
    return jnp.concatenate(
        [p3x4, jnp.array([[0.0, 0.0, 0.0, 1.0]], jnp.float32)], axis=0)


if __name__ == "__main__":
    # Small but layout-realistic shapes (lane-dense channels).
    B = 2
    pts_channels = 128
    img_channels = 128
    num_cam = 2
    H_l = W_l = 32          # lidar BEV map
    H_f = W_f = 16          # image feature map
    input_shape = (256, 448)  # raw image (H, W)
    max_points = 8
    P = 200                 # total pillars across the batch

    root = jax.random.PRNGKey(0)
    k = jax.random.split(root, 9)

    lidar_feat = jax.random.normal(k[0], (B, pts_channels, H_l, W_l), jnp.float32)
    img_feat = jax.random.normal(k[1], (B, num_cam, img_channels, H_f, W_f),
                                 jnp.float32)

    b_ids = jax.random.randint(k[2], (P,), 0, B)
    ys = jax.random.randint(k[3], (P,), 0, H_l)
    xs = jax.random.randint(k[4], (P,), 0, W_l)
    pillar_coors = jnp.stack(
        [b_ids, jnp.zeros_like(b_ids), ys, xs], axis=1).astype(jnp.int32)
    pillars_num_points = jax.random.randint(k[5], (P,), 1, max_points + 1)

    # Lidar points: x forward in [2,30], y lateral in [-8,8], z in [-2,2].
    u = jax.random.uniform(k[6], (P, max_points, 3))
    pts_xyz = jnp.stack([2.0 + 28.0 * u[..., 0],
                         -8.0 + 16.0 * u[..., 1],
                         -2.0 + 4.0 * u[..., 2]], axis=-1)
    extra = jax.random.normal(k[7], (P, max_points, 2))
    pillars = jnp.concatenate([pts_xyz, extra], axis=-1)   # p_dim = 5

    cams = jnp.stack([
        _make_lidar2img(0.0, 200.0, 200.0, input_shape[1] / 2.0, input_shape[0] / 2.0),
        _make_lidar2img(0.35, 200.0, 200.0, input_shape[1] / 2.0, input_shape[0] / 2.0),
    ])
    lidar2img = jnp.broadcast_to(cams[None], (B, num_cam, 4, 4))

    params = init_params(k[8], pts_channels, img_channels)

    out = mmri_i2p_forward(lidar_feat, img_feat, lidar2img, input_shape,
                           pillars, pillar_coors, pillars_num_points, params)
    out = jax.block_until_ready(out)

    assert out.shape == lidar_feat.shape, out.shape
    assert bool(jnp.all(jnp.isfinite(out)))
    assert bool(jnp.any(jnp.abs(out) > 0.0))   # some pillars project into view
    print("KERNEL_OK")
</pallas_src>

<mosaic_0001>
module attributes {stable_mosaic.version = 11 : i64} {
  func.func @_fused_mha_kernel(%arg0: i32, %arg1: memref<128x128xf32, #tpu.memory_space<vmem>>, %arg2: memref<128x16x128xf32, #tpu.memory_space<vmem>>, %arg3: memref<128x16xf32, #tpu.memory_space<vmem>>, %arg4: memref<128x128xf32, #tpu.memory_space<vmem>>, %arg5: memref<1x128xf32, #tpu.memory_space<vmem>>, %arg6: memref<128x256xf32, #tpu.memory_space<vmem>>, %arg7: memref<1x256xf32, #tpu.memory_space<vmem>>, %arg8: memref<128x128xf32, #tpu.memory_space<vmem>>, %arg9: memref<1x128xf32, #tpu.memory_space<vmem>>, %arg10: memref<128x128xf32, #tpu.memory_space<vmem>>) attributes {dimension_semantics = [#tpu.dimension_semantics<parallel>], iteration_bounds = array<i64: 2>, scalar_prefetch = 0 : i64, scratch_operands = 0 : i64, tpu.core_type = #tpu.core_type<tc>, window_params = [{transform_indices = @transform_0, window_bounds = array<i64: 128, 128>}, {transform_indices = @transform_1, window_bounds = array<i64: 128, 16, 128>}, {transform_indices = @transform_2, window_bounds = array<i64: 128, 16>}, {pipeline_mode = #tpu.pipeline_mode<synchronous>, transform_indices = @transform_3, window_bounds = array<i64: 128, 128>}, {pipeline_mode = #tpu.pipeline_mode<synchronous>, transform_indices = @transform_4, window_bounds = array<i64: 1, 128>}, {pipeline_mode = #tpu.pipeline_mode<synchronous>, transform_indices = @transform_5, window_bounds = array<i64: 128, 256>}, {pipeline_mode = #tpu.pipeline_mode<synchronous>, transform_indices = @transform_6, window_bounds = array<i64: 1, 256>}, {pipeline_mode = #tpu.pipeline_mode<synchronous>, transform_indices = @transform_7, window_bounds = array<i64: 128, 128>}, {pipeline_mode = #tpu.pipeline_mode<synchronous>, transform_indices = @transform_8, window_bounds = array<i64: 1, 128>}, {transform_indices = @transform_9, window_bounds = array<i64: 128, 128>}]} {
    %c0 = arith.constant 0 : index
    %c0_0 = arith.constant 0 : index
    %0 = vector.load %arg1[%c0, %c0_0] : memref<128x128xf32, #tpu.memory_space<vmem>>, vector<128x128xf32>
    %c0_1 = arith.constant 0 : index
    %c0_2 = arith.constant 0 : index
    %c0_3 = arith.constant 0 : index
    %1 = vector.load %arg2[%c0_1, %c0_2, %c0_3] : memref<128x16x128xf32, #tpu.memory_space<vmem>>, vector<128x16x128xf32>
    %2 = vector.shape_cast %1 : vector<128x16x128xf32> to vector<2048x128xf32>
    %c0_4 = arith.constant 0 : index
    %c0_5 = arith.constant 0 : index
    %3 = vector.load %arg3[%c0_4, %c0_5] : memref<128x16xf32, #tpu.memory_space<vmem>>, vector<128x16xf32>
    %c0_6 = arith.constant 0 : index
    %c0_7 = arith.constant 0 : index
    %4 = vector.load %arg4[%c0_6, %c0_7] : memref<128x128xf32, #tpu.memory_space<vmem>>, vector<128x128xf32>
    %cst = arith.constant dense<0.000000e+00> : vector<128x128xf32>
    %5 = tpu.matmul %0, %4, %cst {dimension_numbers = #tpu.dot_dimension_numbers<[1], [0], [0], [1], [0, 0, 1, 1], [], []>} : vector<128x128xf32>, vector<128x128xf32>, vector<128x128xf32> -> vector<128x128xf32>
    %c0_8 = arith.constant 0 : index
    %c0_9 = arith.constant 0 : index
    %6 = vector.load %arg5[%c0_8, %c0_9] : memref<1x128xf32, #tpu.memory_space<vmem>>, vector<1x128xf32>
    %7 = vector.broadcast %6 : vector<1x128xf32> to vector<128x128xf32>
    %8 = arith.addf %5, %7 : vector<128x128xf32>
    %c0_10 = arith.constant 0 : index
    %c0_11 = arith.constant 0 : index
    %9 = vector.load %arg6[%c0_10, %c0_11] : memref<128x256xf32, #tpu.memory_space<vmem>>, vector<128x256xf32>
    %cst_12 = arith.constant dense<0.000000e+00> : vector<2048x256xf32>
    %10 = tpu.matmul %2, %9, %cst_12 {dimension_numbers = #tpu.dot_dimension_numbers<[1], [0], [0], [1], [0, 0, 1, 1], [], []>} : vector<2048x128xf32>, vector<128x256xf32>, vector<2048x256xf32> -> vector<2048x256xf32>
    %c0_13 = arith.constant 0 : index
    %c0_14 = arith.constant 0 : index
    %11 = vector.load %arg7[%c0_13, %c0_14] : memref<1x256xf32, #tpu.memory_space<vmem>>, vector<1x256xf32>
    %12 = vector.broadcast %11 : vector<1x256xf32> to vector<2048x256xf32>
    %13 = arith.addf %10, %12 : vector<2048x256xf32>
    %14 = vector.extract_strided_slice %13 {offsets = [0, 0], sizes = [2048, 128], strides = [1, 1]} : vector<2048x256xf32> to vector<2048x128xf32>
    %15 = vector.shape_cast %14 : vector<2048x128xf32> to vector<128x16x128xf32>
    %16 = vector.extract_strided_slice %13 {offsets = [0, 128], sizes = [2048, 128], strides = [1, 1]} : vector<2048x256xf32> to vector<2048x128xf32>
    %17 = vector.shape_cast %16 : vector<2048x128xf32> to vector<128x16x128xf32>
    %18 = vector.shape_cast %8 : vector<128x128xf32> to vector<128x1x128xf32>
    %19 = vector.broadcast %18 : vector<128x1x128xf32> to vector<128x16x128xf32>
    %20 = arith.mulf %19, %15 : vector<128x16x128xf32>
    %cst_15 = arith.constant dense<0.000000e+00> : vector<128x16xf32>
    %21 = vector.multi_reduction <add>, %20, %cst_15 [2] : vector<128x16x128xf32> to vector<128x16xf32>
    %cst_16 = arith.constant 0.0883883461 : f32
    %22 = vector.broadcast %cst_16 : f32 to vector<128x16xf32>
    %23 = arith.mulf %21, %22 : vector<128x16xf32>
    %cst_17 = arith.constant 0.000000e+00 : f32
    %24 = vector.broadcast %cst_17 : f32 to vector<128x16xf32>
    %25 = arith.cmpf ogt, %3, %24 : vector<128x16xf32>
    %cst_18 = arith.constant -1.000000e+30 : f32
    %26 = vector.broadcast %cst_18 : f32 to vector<128x16xf32>
    %27 = arith.select %25, %23, %26 : vector<128x16xi1>, vector<128x16xf32>
    %cst_19 = arith.constant dense<0xFF800000> : vector<128xf32>
    %28 = vector.multi_reduction <maximumf>, %27, %cst_19 [1] : vector<128x16xf32> to vector<128xf32>
    %29 = vector.shape_cast %28 : vector<128xf32> to vector<128x1xf32>
    %30 = vector.broadcast %29 : vector<128x1xf32> to vector<128x16xf32>
    %31 = arith.subf %27, %30 : vector<128x16xf32>
    %32 = math.exp %31 : vector<128x16xf32>
    %cst_20 = arith.constant dense<0.000000e+00> : vector<128xf32>
    %33 = vector.multi_reduction <add>, %32, %cst_20 [1] : vector<128x16xf32> to vector<128xf32>
    %34 = vector.shape_cast %33 : vector<128xf32> to vector<128x1xf32>
    %35 = tpu.reciprocal %34 {approx = true} : vector<128x1xf32> -> vector<128x1xf32>
    %36 = vector.broadcast %35 : vector<128x1xf32> to vector<128x16xf32>
    %37 = arith.mulf %32, %36 : vector<128x16xf32>
    %38 = vector.shape_cast %37 : vector<128x16xf32> to vector<128x16x1xf32>
    %39 = vector.broadcast %38 : vector<128x16x1xf32> to vector<128x16x128xf32>
    %40 = arith.mulf %39, %17 : vector<128x16x128xf32>
    %cst_21 = arith.constant dense<0.000000e+00> : vector<128x128xf32>
    %41 = vector.multi_reduction <add>, %40, %cst_21 [1] : vector<128x16x128xf32> to vector<128x128xf32>
    %c0_22 = arith.constant 0 : index
    %c0_23 = arith.constant 0 : index
    %42 = vector.load %arg8[%c0_22, %c0_23] : memref<128x128xf32, #tpu.memory_space<vmem>>, vector<128x128xf32>
    %cst_24 = arith.constant dense<0.000000e+00> : vector<128x128xf32>
    %43 = tpu.matmul %41, %42, %cst_24 {dimension_numbers = #tpu.dot_dimension_numbers<[1], [0], [0], [1], [0, 0, 1, 1], [], []>} : vector<128x128xf32>, vector<128x128xf32>, vector<128x128xf32> -> vector<128x128xf32>
    %c0_25 = arith.constant 0 : index
    %c0_26 = arith.constant 0 : index
    %44 = vector.load %arg9[%c0_25, %c0_26] : memref<1x128xf32, #tpu.memory_space<vmem>>, vector<1x128xf32>
    %45 = vector.broadcast %44 : vector<1x128xf32> to vector<128x128xf32>
    %46 = arith.addf %43, %45 : vector<128x128xf32>
    %cst_27 = arith.constant dense<0.000000e+00> : vector<128xf32>
    %47 = vector.multi_reduction <add>, %3, %cst_27 [1] : vector<128x16xf32> to vector<128xf32>
    %48 = vector.shape_cast %47 : vector<128xf32> to vector<128x1xf32>
    %cst_28 = arith.constant 0.000000e+00 : f32
    %49 = vector.broadcast %cst_28 : f32 to vector<128x1xf32>
    %50 = arith.cmpf ogt, %48, %49 : vector<128x1xf32>
    %51 = arith.extui %50 : vector<128x1xi1> to vector<128x1xi32>
    %52 = arith.sitofp %51 : vector<128x1xi32> to vector<128x1xf32>
    %53 = vector.broadcast %52 : vector<128x1xf32> to vector<128x128xf32>
    %54 = arith.mulf %46, %53 : vector<128x128xf32>
    %c0_29 = arith.constant 0 : index
    %c0_30 = arith.constant 0 : index
    %55 = vector.load %arg10[%c0_29, %c0_30] : memref<128x128xf32, #tpu.memory_space<vmem>>, vector<128x128xf32>
    tpu.vector_store %arg10[%c0_29, %c0_30], %54 {strides = array<i32>} : memref<128x128xf32, #tpu.memory_space<vmem>>, vector<128x128xf32>,
    return
  }
  func.func @transform_0(%arg0: i32) -> (i32, i32) {
    %c0_i32 = arith.constant 0 : i32
    %c0_i32_0 = arith.constant 0 : i32
    return %arg0, %c0_i32 : i32, i32
  }
  func.func @transform_1(%arg0: i32) -> (i32, i32, i32) {
    %c0_i32 = arith.constant 0 : i32
    %c0_i32_0 = arith.constant 0 : i32
    %c0_i32_1 = arith.constant 0 : i32
    return %arg0, %c0_i32, %c0_i32_0 : i32, i32, i32
  }
  func.func @transform_2(%arg0: i32) -> (i32, i32) {
    %c0_i32 = arith.constant 0 : i32
    %c0_i32_0 = arith.constant 0 : i32
    return %arg0, %c0_i32 : i32, i32
  }
  func.func @transform_3(%arg0: i32) -> (i32, i32) {
    %c0_i32 = arith.constant 0 : i32
    %c0_i32_0 = arith.constant 0 : i32
    %c0_i32_1 = arith.constant 0 : i32
    return %c0_i32, %c0_i32_0 : i32, i32
  }
  func.func @transform_4(%arg0: i32) -> (i32, i32) {
    %c0_i32 = arith.constant 0 : i32
    %c0_i32_0 = arith.constant 0 : i32
    %c0_i32_1 = arith.constant 0 : i32
    return %c0_i32, %c0_i32_0 : i32, i32
  }
  func.func @transform_5(%arg0: i32) -> (i32, i32) {
    %c0_i32 = arith.constant 0 : i32
    %c0_i32_0 = arith.constant 0 : i32
    %c0_i32_1 = arith.constant 0 : i32
    return %c0_i32, %c0_i32_0 : i32, i32
  }
  func.func @transform_6(%arg0: i32) -> (i32, i32) {
    %c0_i32 = arith.constant 0 : i32
    %c0_i32_0 = arith.constant 0 : i32
    %c0_i32_1 = arith.constant 0 : i32
    return %c0_i32, %c0_i32_0 : i32, i32
  }
  func.func @transform_7(%arg0: i32) -> (i32, i32) {
    %c0_i32 = arith.constant 0 : i32
    %c0_i32_0 = arith.constant 0 : i32
    %c0_i32_1 = arith.constant 0 : i32
    return %c0_i32, %c0_i32_0 : i32, i32
  }
  func.func @transform_8(%arg0: i32) -> (i32, i32) {
    %c0_i32 = arith.constant 0 : i32
    %c0_i32_0 = arith.constant 0 : i32
    %c0_i32_1 = arith.constant 0 : i32
    return %c0_i32, %c0_i32_0 : i32, i32
  }
  func.func @transform_9(%arg0: i32) -> (i32, i32) {
    %c0_i32 = arith.constant 0 : i32
    %c0_i32_0 = arith.constant 0 : i32
    return %arg0, %c0_i32 : i32, i32
  }
}

</mosaic_0001>

<llo_original>
// kernel: tpu_custom_call.1
$region0: #{tpu_custom_call.1}
  #allocation0 [shape = 'u32[]', space=smem, size = 0x4, offset = 0x4, fixed_abs, tag = 'smem constant byte address 0x4 - core index']
  #allocation1 [shape = 'u32[144,128]{1,0:T(1,128)}', space=vmem, size = 0x12000, scoped, tag = 'internal scratch']
  %s0 = inlined_call_operand.hbm [shape: f32[256,128], index: 0, kind: input, shape index: {}]
  %s1 = inlined_call_operand.hbm [shape: f32[256,16,128], index: 1, kind: input, shape index: {}]
  %s2 = inlined_call_operand.vmem [shape: f32[256,16], index: 2, kind: input, shape index: {}]
  %s3 = inlined_call_operand.hbm [shape: f32[128,128], index: 3, kind: input, shape index: {}]
  %s4 = inlined_call_operand.hbm [shape: f32[1,128], index: 4, kind: input, shape index: {}]
  %s5 = inlined_call_operand.hbm [shape: f32[128,256], index: 5, kind: input, shape index: {}]
  %s6 = inlined_call_operand.hbm [shape: f32[1,256], index: 6, kind: input, shape index: {}]
  %s7 = inlined_call_operand.hbm [shape: f32[128,128], index: 7, kind: input, shape index: {}]
  %s8 = inlined_call_operand.hbm [shape: f32[1,128], index: 8, kind: input, shape index: {}]
  %s9 = inlined_call_operand.hbm [shape: f32[256,128], index: 9, kind: output, shape index: {}]
  %s10 = sld [smem:[#allocation0]]
  $region101: #{tpu_custom_call.1} parent=0
    _
  %s12 = ssub.s32 1, %s10
  %s13 = scalar_select 0, %s12, %s10
  $region1: #{tpu_custom_call.1} parent=0
    #allocation2 [shape = 'u8[131072]{0}', space=vmem, size = 0x20000, scoped, tag = 'input window, operand 0']
    #allocation3 [shape = 's32[2]{0}', space=sflag, size = 0x8, scoped, tag = 'scoped memory for tpu_custom_call.1']
    #allocation4 [shape = 's32[2]{0}', space=sflag, size = 0x8, scoped, tag = 'scoped memory for tpu_custom_call.1']
    #allocation5 [shape = 'u8[2097152]{0}', space=vmem, size = 0x200000, scoped, tag = 'input window, operand 1']
    #allocation6 [shape = 's32[2]{0}', space=sflag, size = 0x8, scoped, tag = 'scoped memory for tpu_custom_call.1']
    #allocation7 [shape = 'u8[65536]{0}', space=vmem, size = 0x10000, scoped, tag = 'input window, operand 3, single buffered']
    #allocation8 [shape = 'u8[512]{0}', space=vmem, size = 0x400, scoped, tag = 'input window, operand 4, single buffered']
    #allocation9 [shape = 's32[1]{0}', space=sflag, size = 0x4, scoped, tag = 'scoped memory for tpu_custom_call.1']
    #allocation10 [shape = 'u8[131072]{0}', space=vmem, size = 0x20000, scoped, tag = 'input window, operand 5, single buffered']
    #allocation11 [shape = 'u8[1024]{0}', space=vmem, size = 0x400, scoped, tag = 'input window, operand 6, single buffered']
    #allocation12 [shape = 's32[1]{0}', space=sflag, size = 0x4, scoped, tag = 'scoped memory for tpu_custom_call.1']
    #allocation13 [shape = 'u8[65536]{0}', space=vmem, size = 0x10000, scoped, tag = 'input window, operand 7, single buffered']
    #allocation14 [shape = 'u8[512]{0}', space=vmem, size = 0x400, scoped, tag = 'input window, operand 8, single buffered']
    #allocation15 [shape = 's32[1]{0}', space=sflag, size = 0x4, scoped, tag = 'scoped memory for tpu_custom_call.1']
    #allocation16 [shape = 'u8[131072]{0}', space=vmem, size = 0x20000, scoped, tag = 'output window, operand 0']
    %14 = vsyncpa [#allocation3], 0
    %s15 = scalar_lea.sflag [#allocation3], 1
    %16 = vsyncpa %s15, 0
    %17 = vsyncpa [#allocation6], 0
    %s18 = scalar_lea.sflag [#allocation6], 1
    %19 = vsyncpa %s18, 0
    %20 = vsyncpa [#allocation9], 0
    %21 = vsyncpa [#allocation12], 0
    %22 = vsyncpa [#allocation15], 0
    %23 = vsyncpa [#allocation4], 0
    %s24 = scalar_lea.sflag [#allocation4], 1
    %25 = vsyncpa %s24, 0
    loop: start=0, step=1, limit=4
    $region2: #{tpu_custom_call.1} parent=1 // loop_pre_header
      _
    $region3: #{tpu_custom_call.1} parent=1 // loop_header
      %s27 = sphi 0, %s31
      %p28 = scmp.ge.s32.totalorder %s27, 4
      %s37 = sphi 0, %s39
      %s40 = sphi 0, %s37
      %s41 = sphi 0, %s40
      %s57 = sphi 0, %s41
      %s63 = sphi 0, %s65
      %s66 = sphi 0, %s63
      %s67 = sphi 0, %s66
      %s83 = sphi 0, %s67
      %s89 = sphi 0, %s91
      %s92 = sphi 0, %s89
      %s93 = sphi 0, %s92
      %s109 = sphi 0, %s93
      %s113 = sphi 0, %s113
      %s115 = sphi 0, %s113
      %s116 = sphi 0, %s115
      %s130 = sphi 0, %s116
      %s134 = sphi 0, %s134
      %s136 = sphi 0, %s134
      %s137 = sphi 0, %s136
      %s151 = sphi 0, %s137
      %s155 = sphi 0, %s155
      %s157 = sphi 0, %s155
      %s158 = sphi 0, %s157
      %s172 = sphi 0, %s158
      %s176 = sphi 0, %s176
      %s178 = sphi 0, %s176
      %s179 = sphi 0, %s178
      %s193 = sphi 0, %s179
      %s197 = sphi 0, %s197
      %s199 = sphi 0, %s197
      %s200 = sphi 0, %s199
      %s214 = sphi 0, %s200
      %s218 = sphi 0, %s218
      %s220 = sphi 0, %s218
      %s221 = sphi 0, %s220
      %s235 = sphi 0, %s221
      %s241 = sphi 0, %s243
      %s244 = sphi 0, %s241
      %s245 = sphi 0, %s244
      %s261 = sphi 0, %s245
    $region4: #{tpu_custom_call.1} parent=1 // loop_header_branch
      %30 = sbr.rel (%p28) target = $region8
    $region5: #{tpu_custom_call.1} parent=1 // loop_body
      %s32 = ssub.s32 %s27, 1
      %s33 = ssub.s32 %s27, 2
      %s34 = sadd.s32 %s27, 1
      %s35 = ssub.s32 %s27, %s34
      %p36 = scmp.eq.s32.totalorder %s35, 0
      %s38 = sadd.s32 %s37, 1
      %s39 = scalar_select %p36, %s37, %s38
      %p42 = pneg %p36
      %p43 = scmp.eq.s32.totalorder %s27, 1
      %p44 = por %p42, %p43
      %p45 = scmp.ne.s32.totalorder %s37, %s40
      %p46 = scmp.eq.s32.totalorder %s27, 0
      %p47 = por %p45, %p46
      %p48 = scmp.ne.s32.totalorder %s37, %s40
      %p49 = scmp.eq.s32.totalorder %s32, 1
      %p50 = por %p48, %p49
      %p51 = scmp.ne.s32.totalorder %s40, %s41
      %p52 = scmp.eq.s32.totalorder %s32, 0
      %p53 = por %p51, %p52
      %p54 = scmp.ne.s32.totalorder %s40, %s41
      %p55 = scmp.eq.s32.totalorder %s33, 1
      %p56 = por %p54, %p55
      %p58 = scmp.ne.s32.totalorder %s41, %s57
      %p59 = scmp.eq.s32.totalorder %s33, 0
      %p60 = por %p58, %p59
      %s61 = ssub.s32 %s27, %s34
      %p62 = scmp.eq.s32.totalorder %s61, 0
      %s64 = sadd.s32 %s63, 1
      %s65 = scalar_select %p62, %s63, %s64
      %p68 = pneg %p62
      %p69 = scmp.eq.s32.totalorder %s27, 1
      %p70 = por %p68, %p69
      %p71 = scmp.ne.s32.totalorder %s63, %s66
      %p72 = scmp.eq.s32.totalorder %s27, 0
      %p73 = por %p71, %p72
      %p74 = scmp.ne.s32.totalorder %s63, %s66
      %p75 = scmp.eq.s32.totalorder %s32, 1
      %p76 = por %p74, %p75
      %p77 = scmp.ne.s32.totalorder %s66, %s67
      %p78 = scmp.eq.s32.totalorder %s32, 0
      %p79 = por %p77, %p78
      %p80 = scmp.ne.s32.totalorder %s66, %s67
      %p81 = scmp.eq.s32.totalorder %s33, 1
      %p82 = por %p80, %p81
      %p84 = scmp.ne.s32.totalorder %s67, %s83
      %p85 = scmp.eq.s32.totalorder %s33, 0
      %p86 = por %p84, %p85
      %s87 = ssub.s32 %s27, %s34
      %p88 = scmp.eq.s32.totalorder %s87, 0
      %s90 = sadd.s32 %s89, 1
      %s91 = scalar_select %p88, %s89, %s90
      %p94 = pneg %p88
      %p95 = scmp.eq.s32.totalorder %s27, 1
      %p96 = por %p94, %p95
      %p97 = scmp.ne.s32.totalorder %s89, %s92
      %p98 = scmp.eq.s32.totalorder %s27, 0
      %p99 = por %p97, %p98
      %p100 = scmp.ne.s32.totalorder %s89, %s92
      %p101 = scmp.eq.s32.totalorder %s32, 1
      %p102 = por %p100, %p101
      %p103 = scmp.ne.s32.totalorder %s92, %s93
      %p104 = scmp.eq.s32.totalorder %s32, 0
      %p105 = por %p103, %p104
      %p106 = scmp.ne.s32.totalorder %s92, %s93
      %p107 = scmp.eq.s32.totalorder %s33, 1
      %p108 = por %p106, %p107
      %p110 = scmp.ne.s32.totalorder %s93, %s109
      %p111 = scmp.eq.s32.totalorder %s33, 0
      %p112 = por %p110, %p111
      %s114 = sadd.s32 %s113, 1
      %p117 = scmp.eq.s32.totalorder %s27, 1
      %p118 = scmp.ne.s32.totalorder %s113, %s115
      %p119 = scmp.eq.s32.totalorder %s27, 0
      %p120 = por %p118, %p119
      %p121 = scmp.ne.s32.totalorder %s113, %s115
      %p122 = scmp.eq.s32.totalorder %s32, 1
      %p123 = por %p121, %p122
      %p124 = scmp.ne.s32.totalorder %s115, %s116
      %p125 = scmp.eq.s32.totalorder %s32, 0
      %p126 = por %p124, %p125
      %p127 = scmp.ne.s32.totalorder %s115, %s116
      %p128 = scmp.eq.s32.totalorder %s33, 1
      %p129 = por %p127, %p128
      %p131 = scmp.ne.s32.totalorder %s116, %s130
      %p132 = scmp.eq.s32.totalorder %s33, 0
      %p133 = por %p131, %p132
      %s135 = sadd.s32 %s134, 1
      %p138 = scmp.eq.s32.totalorder %s27, 1
      %p139 = scmp.ne.s32.totalorder %s134, %s136
      %p140 = scmp.eq.s32.totalorder %s27, 0
      %p141 = por %p139, %p140
      %p142 = scmp.ne.s32.totalorder %s134, %s136
      %p143 = scmp.eq.s32.totalorder %s32, 1
      %p144 = por %p142, %p143
      %p145 = scmp.ne.s32.totalorder %s136, %s137
      %p146 = scmp.eq.s32.totalorder %s32, 0
      %p147 = por %p145, %p146
      %p148 = scmp.ne.s32.totalorder %s136, %s137
      %p149 = scmp.eq.s32.totalorder %s33, 1
      %p150 = por %p148, %p149
      %p152 = scmp.ne.s32.totalorder %s137, %s151
      %p153 = scmp.eq.s32.totalorder %s33, 0
      %p154 = por %p152, %p153
      %s156 = sadd.s32 %s155, 1
      %p159 = scmp.eq.s32.totalorder %s27, 1
      %p160 = scmp.ne.s32.totalorder %s155, %s157
      %p161 = scmp.eq.s32.totalorder %s27, 0
      %p162 = por %p160, %p161
      %p163 = scmp.ne.s32.totalorder %s155, %s157
      %p164 = scmp.eq.s32.totalorder %s32, 1
      %p165 = por %p163, %p164
      %p166 = scmp.ne.s32.totalorder %s157, %s158
      %p167 = scmp.eq.s32.totalorder %s32, 0
      %p168 = por %p166, %p167
      %p169 = scmp.ne.s32.totalorder %s157, %s158
      %p170 = scmp.eq.s32.totalorder %s33, 1
      %p171 = por %p169, %p170
      %p173 = scmp.ne.s32.totalorder %s158, %s172
      %p174 = scmp.eq.s32.totalorder %s33, 0
      %p175 = por %p173, %p174
      %s177 = sadd.s32 %s176, 1
      %p180 = scmp.eq.s32.totalorder %s27, 1
      %p181 = scmp.ne.s32.totalorder %s176, %s178
      %p182 = scmp.eq.s32.totalorder %s27, 0
      %p183 = por %p181, %p182
      %p184 = scmp.ne.s32.totalorder %s176, %s178
      %p185 = scmp.eq.s32.totalorder %s32, 1
      %p186 = por %p184, %p185
      %p187 = scmp.ne.s32.totalorder %s178, %s179
      %p188 = scmp.eq.s32.totalorder %s32, 0
      %p189 = por %p187, %p188
      %p190 = scmp.ne.s32.totalorder %s178, %s179
      %p191 = scmp.eq.s32.totalorder %s33, 1
      %p192 = por %p190, %p191
      %p194 = scmp.ne.s32.totalorder %s179, %s193
      %p195 = scmp.eq.s32.totalorder %s33, 0
      %p196 = por %p194, %p195
      %s198 = sadd.s32 %s197, 1
      %p201 = scmp.eq.s32.totalorder %s27, 1
      %p202 = scmp.ne.s32.totalorder %s197, %s199
      %p203 = scmp.eq.s32.totalorder %s27, 0
      %p204 = por %p202, %p203
      %p205 = scmp.ne.s32.totalorder %s197, %s199
      %p206 = scmp.eq.s32.totalorder %s32, 1
      %p207 = por %p205, %p206
      %p208 = scmp.ne.s32.totalorder %s199, %s200
      %p209 = scmp.eq.s32.totalorder %s32, 0
      %p210 = por %p208, %p209
      %p211 = scmp.ne.s32.totalorder %s199, %s200
      %p212 = scmp.eq.s32.totalorder %s33, 1
      %p213 = por %p211, %p212
      %p215 = scmp.ne.s32.totalorder %s200, %s214
      %p216 = scmp.eq.s32.totalorder %s33, 0
      %p217 = por %p215, %p216
      %s219 = sadd.s32 %s218, 1
      %p222 = scmp.eq.s32.totalorder %s27, 1
      %p223 = scmp.ne.s32.totalorder %s218, %s220
      %p224 = scmp.eq.s32.totalorder %s27, 0
      %p225 = por %p223, %p224
      %p226 = scmp.ne.s32.totalorder %s218, %s220
      %p227 = scmp.eq.s32.totalorder %s32, 1
      %p228 = por %p226, %p227
      %p229 = scmp.ne.s32.totalorder %s220, %s221
      %p230 = scmp.eq.s32.totalorder %s32, 0
      %p231 = por %p229, %p230
      %p232 = scmp.ne.s32.totalorder %s220, %s221
      %p233 = scmp.eq.s32.totalorder %s33, 1
      %p234 = por %p232, %p233
      %p236 = scmp.ne.s32.totalorder %s221, %s235
      %p237 = scmp.eq.s32.totalorder %s33, 0
      %p238 = por %p236, %p237
      %s239 = ssub.s32 %s27, %s34
      %p240 = scmp.eq.s32.totalorder %s239, 0
      %s242 = sadd.s32 %s241, 1
      %s243 = scalar_select %p240, %s241, %s242
      %p246 = pneg %p240
      %p247 = scmp.eq.s32.totalorder %s27, 1
      %p248 = por %p246, %p247
      %p249 = scmp.ne.s32.totalorder %s241, %s244
      %p250 = scmp.eq.s32.totalorder %s27, 0
      %p251 = por %p249, %p250
      %p252 = scmp.ne.s32.totalorder %s241, %s244
      %p253 = scmp.eq.s32.totalorder %s32, 1
      %p254 = por %p252, %p253
      %p255 = scmp.ne.s32.totalorder %s244, %s245
      %p256 = scmp.eq.s32.totalorder %s32, 0
      %p257 = por %p255, %p256
      %p258 = scmp.ne.s32.totalorder %s244, %s245
      %p259 = scmp.eq.s32.totalorder %s33, 1
      %p260 = por %p258, %p259
      %p262 = scmp.ne.s32.totalorder %s245, %s261
      %p263 = scmp.eq.s32.totalorder %s33, 0
      %p264 = por %p262, %p263
      %p265 = scmp.le.s32.totalorder 1, %s27
      %p266 = scmp.lt.s32.totalorder %s27, 3
      %p267 = pnand %p265, %p266
      %p268 = pneg %p267
      // Predicated region
      $region9: #{tpu_custom_call.1} parent=5 // pred_check
        _
      $region10: #{tpu_custom_call.1} parent=5 // pred_check_branch
        %270 = sbr.rel (%p267) target = $region12
      $region11: #{tpu_custom_call.1} parent=5 // pred_region
        %s271 = ssub.s32 %s27, 1
        // Predicated region
        $region13: #{tpu_custom_call.1} parent=11 // pred_check
          %p272 = pneg %p126
        $region14: #{tpu_custom_call.1} parent=11 // pred_check_branch
          %274 = sbr.rel (%p272) target = $region16
        $region15: #{tpu_custom_call.1} parent=11 // pred_region
          %s276 = ssub.s32 2048, 2048
          %277 = vsyncadd [#allocation6], %s276
          %s278 = sshll.u32 [#allocation7], 4
          %s279 = int_to_ptr.vmem [resolvable:$true] %s278
          %284 = dma.hbm_to_vmem [thread:$0]  %s3, 2048, %s279, [#allocation6], 128, 128, 8
        $region16: #{tpu_custom_call.1} parent=11 // pred_fallthru
          _
        // Predicated region
        $region17: #{tpu_custom_call.1} parent=11 // pred_check
          %p285 = pneg %p147
        $region18: #{tpu_custom_call.1} parent=11 // pred_check_branch
          %287 = sbr.rel (%p285) target = $region20
        $region19: #{tpu_custom_call.1} parent=11 // pred_region
          %s289 = ssub.s32 16, 16
          %290 = vsyncadd [#allocation9], %s289
          %s292 = sshll.u32 [#allocation8], 4
          %s293 = int_to_ptr.vmem [resolvable:$true] %s292
          %295 = dma.hbm_to_vmem [thread:$0]  %s4, 16, %s293, [#allocation9]
        $region20: #{tpu_custom_call.1} parent=11 // pred_fallthru
          _
        // Predicated region
        $region21: #{tpu_custom_call.1} parent=11 // pred_check
          %p296 = pneg %p168
        $region22: #{tpu_custom_call.1} parent=11 // pred_check_branch
          %298 = sbr.rel (%p296) target = $region24
        $region23: #{tpu_custom_call.1} parent=11 // pred_region
          %s300 = ssub.s32 4096, 4096
          %301 = vsyncadd [#allocation9], %s300
          %s302 = sshll.u32 [#allocation10], 4
          %s303 = int_to_ptr.vmem [resolvable:$true] %s302
          %308 = dma.hbm_to_vmem [thread:$0]  %s5, 4096, %s303, [#allocation9], 256, 256, 16
        $region24: #{tpu_custom_call.1} parent=11 // pred_fallthru
          _
        // Predicated region
        $region25: #{tpu_custom_call.1} parent=11 // pred_check
          %p309 = pneg %p189
        $region26: #{tpu_custom_call.1} parent=11 // pred_check_branch
          %311 = sbr.rel (%p309) target = $region28
        $region27: #{tpu_custom_call.1} parent=11 // pred_region
          %s313 = ssub.s32 32, 32
          %314 = vsyncadd [#allocation12], %s313
          %s316 = sshll.u32 [#allocation11], 4
          %s317 = int_to_ptr.vmem [resolvable:$true] %s316
          %319 = dma.hbm_to_vmem [thread:$0]  %s6, 32, %s317, [#allocation12]
        $region28: #{tpu_custom_call.1} parent=11 // pred_fallthru
          _
        // Predicated region
        $region29: #{tpu_custom_call.1} parent=11 // pred_check
          %p320 = pneg %p210
        $region30: #{tpu_custom_call.1} parent=11 // pred_check_branch
          %322 = sbr.rel (%p320) target = $region32
        $region31: #{tpu_custom_call.1} parent=11 // pred_region
          %s324 = ssub.s32 2048, 2048
          %325 = vsyncadd [#allocation12], %s324
          %s326 = sshll.u32 [#allocation13], 4
          %s327 = int_to_ptr.vmem [resolvable:$true] %s326
          %332 = dma.hbm_to_vmem [thread:$0]  %s7, 2048, %s327, [#allocation12], 128, 128, 8
        $region32: #{tpu_custom_call.1} parent=11 // pred_fallthru
          _
        // Predicated region
        $region33: #{tpu_custom_call.1} parent=11 // pred_check
          %p333 = pneg %p231
        $region34: #{tpu_custom_call.1} parent=11 // pred_check_branch
          %335 = sbr.rel (%p333) target = $region36
        $region35: #{tpu_custom_call.1} parent=11 // pred_region
          %s337 = ssub.s32 16, 16
          %338 = vsyncadd [#allocation15], %s337
          %s340 = sshll.u32 [#allocation14], 4
          %s341 = int_to_ptr.vmem [resolvable:$true] %s340
          %343 = dma.hbm_to_vmem [thread:$0]  %s8, 16, %s341, [#allocation15]
        $region36: #{tpu_custom_call.1} parent=11 // pred_fallthru
          _
      $region12: #{tpu_custom_call.1} parent=5 // pred_fallthru
        _
      %p344 = scmp.lt.s32.totalorder %s27, 2
      // Predicated region
      $region37: #{tpu_custom_call.1} parent=5 // pred_check
        %p345 = pneg %p344
      $region38: #{tpu_custom_call.1} parent=5 // pred_check_branch
        %347 = sbr.rel (%p345) target = $region40
      $region39: #{tpu_custom_call.1} parent=5 // pred_region
        // Predicated region
        $region41: #{tpu_custom_call.1} parent=39 // pred_check
          %p348 = pneg %p47
        $region42: #{tpu_custom_call.1} parent=39 // pred_check_branch
          %350 = sbr.rel (%p348) target = $region44
        $region43: #{tpu_custom_call.1} parent=39 // pred_region
          %s351 = sand.u32 %s37, 1
          %s352 = scalar_lea.sflag [#allocation3], %s351
          %s353 = sand.u32 %s37, 1
          %s354 = smul.addr %s353, 128
          %s355 = scalar_lea.vmem [#allocation2], %s354
          %s356 = smul.u32 16, %s27
          %s358 = ssub.s32 2048, 2048
          %359 = vsyncadd %s352, %s358
          %s360 = smul.addr %s356, 128
          %s361 = scalar_lea.hbm %s0, %s360
          %s362 = sshll.u32 %s355, 4
          %s363 = int_to_ptr.vmem [resolvable:$true] %s362
          %368 = dma.hbm_to_vmem [thread:$0]  %s361, 2048, %s363, %s352, 128, 128, 8
        $region44: #{tpu_custom_call.1} parent=39 // pred_fallthru
          _
        // Predicated region
        $region45: #{tpu_custom_call.1} parent=39 // pred_check
          %p369 = pneg %p73
        $region46: #{tpu_custom_call.1} parent=39 // pred_check_branch
          %371 = sbr.rel (%p369) target = $region48
        $region47: #{tpu_custom_call.1} parent=39 // pred_region
          %s372 = sand.u32 %s27, 1
          %s373 = scalar_lea.sflag [#allocation6], %s372
          %s374 = sand.u32 %s63, 1
          %s375 = smul.addr %s374, 2048
          %s376 = scalar_lea.vmem [#allocation5], %s375
          %s377 = smul.u32 128, %s27
          %s379 = ssub.s32 32768, 32768
          %380 = vsyncadd %s373, %s379
          %s381 = smul.addr %s377, 2
          %s382 = smul.addr %s381, 128
          %s383 = scalar_lea.hbm %s1, %s382
          %s384 = sshll.u32 %s376, 4
          %s385 = int_to_ptr.vmem [resolvable:$true] %s384
          %390 = dma.hbm_to_vmem [thread:$0]  %s383, 32768, %s385, %s373, 128, 128, 8
        $region48: #{tpu_custom_call.1} parent=39 // pred_fallthru
          _
        // Predicated region
        $region49: #{tpu_custom_call.1} parent=39 // pred_check
          %p391 = pneg %p99
        $region50: #{tpu_custom_call.1} parent=39 // pred_check_branch
          %393 = sbr.rel (%p391) target = $region52
        $region51: #{tpu_custom_call.1} parent=39 // pred_region
          %s394 = smul.u32 16, %s27
          %p395 = scmp.lt.s32.totalorder %s394, 31
          %s396 = scalar_select %p395, %s394, 31
          %s397 = smul.addr %s396, 8
          %s398 = scalar_lea.vmem %s2, %s397
          %s399 = smul.u32 16, %s27
        $region52: #{tpu_custom_call.1} parent=39 // pred_fallthru
          _
      $region40: #{tpu_custom_call.1} parent=5 // pred_fallthru
        _
      %p400 = scmp.le.s32.totalorder 1, %s27
      %p401 = scmp.lt.s32.totalorder %s27, 3
      %p402 = pnand %p400, %p401
      %p403 = pneg %p402
      // Predicated region
      $region53: #{tpu_custom_call.1} parent=5 // pred_check
        _
      $region54: #{tpu_custom_call.1} parent=5 // pred_check_branch
        %405 = sbr.rel (%p402) target = $region56
      $region55: #{tpu_custom_call.1} parent=5 // pred_region
        %s406 = ssub.s32 %s27, 1
        %s407 = sand.u32 %s40, 1
        %s408 = scalar_lea.sflag [#allocation3], %s407
        %s409 = sand.u32 %s40, 1
        %s410 = smul.addr %s409, 128
        %s411 = scalar_lea.vmem [#allocation2], %s410
        // Predicated region
        $region57: #{tpu_custom_call.1} parent=55 // pred_check
          %p412 = pneg %p53
        $region58: #{tpu_custom_call.1} parent=55 // pred_check_branch
          %414 = sbr.rel (%p412) target = $region60
        $region59: #{tpu_custom_call.1} parent=55 // pred_region
          %415 = dma.done %s408, 2048
        $region60: #{tpu_custom_call.1} parent=55 // pred_fallthru
          _
        %s416 = sand.u32 %s32, 1
        %s417 = scalar_lea.sflag [#allocation6], %s416
        %s418 = sand.u32 %s66, 1
        %s419 = smul.addr %s418, 2048
        %s420 = scalar_lea.vmem [#allocation5], %s419
        // Predicated region
        $region61: #{tpu_custom_call.1} parent=55 // pred_check
          %p421 = pneg %p79
        $region62: #{tpu_custom_call.1} parent=55 // pred_check_branch
          %423 = sbr.rel (%p421) target = $region64
        $region63: #{tpu_custom_call.1} parent=55 // pred_region
          %424 = dma.done %s417, 32768
        $region64: #{tpu_custom_call.1} parent=55 // pred_fallthru
          _
        // Predicated region
        $region65: #{tpu_custom_call.1} parent=55 // pred_check
          %p425 = pneg %p126
        $region66: #{tpu_custom_call.1} parent=55 // pred_check_branch
          %427 = sbr.rel (%p425) target = $region68
        $region67: #{tpu_custom_call.1} parent=55 // pred_region
          %428 = dma.done [#allocation6], 2048
        $region68: #{tpu_custom_call.1} parent=55 // pred_fallthru
          _
        // Predicated region
        $region69: #{tpu_custom_call.1} parent=55 // pred_check
          %p429 = pneg %p147
        $region70: #{tpu_custom_call.1} parent=55 // pred_check_branch
          %431 = sbr.rel (%p429) target = $region72
        $region71: #{tpu_custom_call.1} parent=55 // pred_region
          %432 = dma.done [#allocation9], 16
        $region72: #{tpu_custom_call.1} parent=55 // pred_fallthru
          _
        // Predicated region
        $region73: #{tpu_custom_call.1} parent=55 // pred_check
          %p433 = pneg %p168
        $region74: #{tpu_custom_call.1} parent=55 // pred_check_branch
          %435 = sbr.rel (%p433) target = $region76
        $region75: #{tpu_custom_call.1} parent=55 // pred_region
          %436 = dma.done [#allocation9], 4096
        $region76: #{tpu_custom_call.1} parent=55 // pred_fallthru
          _
        // Predicated region
        $region77: #{tpu_custom_call.1} parent=55 // pred_check
          %p437 = pneg %p189
        $region78: #{tpu_custom_call.1} parent=55 // pred_check_branch
          %439 = sbr.rel (%p437) target = $region80
        $region79: #{tpu_custom_call.1} parent=55 // pred_region
          %440 = dma.done [#allocation12], 32
        $region80: #{tpu_custom_call.1} parent=55 // pred_fallthru
          _
        // Predicated region
        $region81: #{tpu_custom_call.1} parent=55 // pred_check
          %p441 = pneg %p210
        $region82: #{tpu_custom_call.1} parent=55 // pred_check_branch
          %443 = sbr.rel (%p441) target = $region84
        $region83: #{tpu_custom_call.1} parent=55 // pred_region
          %444 = dma.done [#allocation12], 2048
        $region84: #{tpu_custom_call.1} parent=55 // pred_fallthru
          _
        // Predicated region
        $region85: #{tpu_custom_call.1} parent=55 // pred_check
          %p445 = pneg %p231
        $region86: #{tpu_custom_call.1} parent=55 // pred_check_branch
          %447 = sbr.rel (%p445) target = $region88
        $region87: #{tpu_custom_call.1} parent=55 // pred_region
          %448 = dma.done [#allocation15], 16
        $region88: #{tpu_custom_call.1} parent=55 // pred_fallthru
          _
        %s449 = sand.u32 %s40, 1
        %s450 = scalar_lea.sflag [#allocation3], %s449
        %s451 = sand.u32 %s40, 1
        %s452 = smul.addr %s451, 128
        %s453 = scalar_lea.vmem [#allocation2], %s452
        %p454 = pneg %p53
        %p455 = pneg %p50
        %s456 = sand.u32 %s32, 1
        %s457 = scalar_lea.sflag [#allocation6], %s456
        %s458 = sand.u32 %s66, 1
        %s459 = smul.addr %s458, 2048
        %s460 = scalar_lea.vmem [#allocation5], %s459
        %p461 = pneg %p79
        %p462 = pneg %p76
        %s463 = smul.u32 16, %s32
        %p464 = scmp.lt.s32.totalorder %s463, 31
        %s465 = scalar_select %p464, %s463, 31
        %s466 = smul.addr %s465, 8
        %s467 = scalar_lea.vmem %s2, %s466
        %p468 = pneg %p105
        %p469 = pneg %p102
        %p470 = pneg %p126
        %p471 = pneg %p123
        %p472 = pneg %p147
        %p473 = pneg %p144
        %p474 = pneg %p168
        %p475 = pneg %p165
        %p476 = pneg %p189
        %p477 = pneg %p186
        %p478 = pneg %p210
        %p479 = pneg %p207
        %p480 = pneg %p231
        %p481 = pneg %p228
        %p482 = pneg %p257
        %p483 = pneg %p254
        %s484 = sand.u32 %s244, 1
        %s485 = scalar_lea.sflag [#allocation4], %s484
        %s486 = sand.u32 %s244, 1
        %s487 = smul.addr %s486, 128
        %s488 = scalar_lea.vmem [#allocation16], %s487
        %s489 = smul.u32 16, %s32
        %s490 = smul.u32 128, %s32
        %s491 = smul.u32 16, %s32
        %p492 = scmp.lt.s32.totalorder %s491, 31
        %s493 = scalar_select %p492, %s491, 31
        %s494 = smul.addr %s493, 8
        %s495 = scalar_lea.vmem %s2, %s494
        %s496 = smul.u32 16, %s32
        %s497 = smul.u32 16, %s32
        %v498 = vld [vmem:[%s411] sm:$0xff]
        %v499 = vld [vmem:[%s411 + $0x8] sm:$0xff]
        %v500 = vld [vmem:[%s411 + $0x10] sm:$0xff]
        %v501 = vld [vmem:[%s411 + $0x18] sm:$0xff]
        %v502 = vld [vmem:[%s411 + $0x20] sm:$0xff]
        %v503 = vld [vmem:[%s411 + $0x28] sm:$0xff]
        %v504 = vld [vmem:[%s411 + $0x30] sm:$0xff]
        %v505 = vld [vmem:[%s411 + $0x38] sm:$0xff]
        %v506 = vld [vmem:[%s411 + $0x40] sm:$0xff]
        %v507 = vld [vmem:[%s411 + $0x48] sm:$0xff]
        %v508 = vld [vmem:[%s411 + $0x50] sm:$0xff]
        %v509 = vld [vmem:[%s411 + $0x58] sm:$0xff]
        %v510 = vld [vmem:[%s411 + $0x60] sm:$0xff]
        %v511 = vld [vmem:[%s411 + $0x68] sm:$0xff]
        %v512 = vld [vmem:[%s411 + $0x70] sm:$0xff]
        %v513 = vld [vmem:[%s411 + $0x78] sm:$0xff]
        %v514 = vld [vmem:[%s420] sm:$0xff]
        %v515 = vld [vmem:[%s420 + $0x8] sm:$0xff]
        %v516 = vld [vmem:[%s420 + $0x10] sm:$0xff]
        %v517 = vld [vmem:[%s420 + $0x18] sm:$0xff]
        %v518 = vld [vmem:[%s420 + $0x20] sm:$0xff]
        %v519 = vld [vmem:[%s420 + $0x28] sm:$0xff]
        %v520 = vld [vmem:[%s420 + $0x30] sm:$0xff]
        %v521 = vld [vmem:[%s420 + $0x38] sm:$0xff]
        %v522 = vld [vmem:[%s420 + $0x40] sm:$0xff]
        %v523 = vld [vmem:[%s420 + $0x48] sm:$0xff]
        %v524 = vld [vmem:[%s420 + $0x50] sm:$0xff]
        %v525 = vld [vmem:[%s420 + $0x58] sm:$0xff]
        %v526 = vld [vmem:[%s420 + $0x60] sm:$0xff]
        %v527 = vld [vmem:[%s420 + $0x68] sm:$0xff]
        %v528 = vld [vmem:[%s420 + $0x70] sm:$0xff]
        %v529 = vld [vmem:[%s420 + $0x78] sm:$0xff]
        %v530 = vld [vmem:[%s420 + $0x80] sm:$0xff]
        %v531 = vld [vmem:[%s420 + $0x88] sm:$0xff]
        %v532 = vld [vmem:[%s420 + $0x90] sm:$0xff]
        %v533 = vld [vmem:[%s420 + $0x98] sm:$0xff]
        %v534 = vld [vmem:[%s420 + $0xa0] sm:$0xff]
        %v535 = vld [vmem:[%s420 + $0xa8] sm:$0xff]
        %v536 = vld [vmem:[%s420 + $0xb0] sm:$0xff]
        %v537 = vld [vmem:[%s420 + $0xb8] sm:$0xff]
        %v538 = vld [vmem:[%s420 + $0xc0] sm:$0xff]
        %v539 = vld [vmem:[%s420 + $0xc8] sm:$0xff]
        %v540 = vld [vmem:[%s420 + $0xd0] sm:$0xff]
        %v541 = vld [vmem:[%s420 + $0xd8] sm:$0xff]
        %v542 = vld [vmem:[%s420 + $0xe0] sm:$0xff]
        %v543 = vld [vmem:[%s420 + $0xe8] sm:$0xff]
        %v544 = vld [vmem:[%s420 + $0xf0] sm:$0xff]
        %v545 = vld [vmem:[%s420 + $0xf8] sm:$0xff]
        %v546 = vld [vmem:[%s420 + $0x100] sm:$0xff]
        %v547 = vld [vmem:[%s420 + $0x108] sm:$0xff]
        %v548 = vld [vmem:[%s420 + $0x110] sm:$0xff]
        %v549 = vld [vmem:[%s420 + $0x118] sm:$0xff]
        %v550 = vld [vmem:[%s420 + $0x120] sm:$0xff]
        %v551 = vld [vmem:[%s420 + $0x128] sm:$0xff]
        %v552 = vld [vmem:[%s420 + $0x130] sm:$0xff]
        %v553 = vld [vmem:[%s420 + $0x138] sm:$0xff]
        %v554 = vld [vmem:[%s420 + $0x140] sm:$0xff]
        %v555 = vld [vmem:[%s420 + $0x148] sm:$0xff]
        %v556 = vld [vmem:[%s420 + $0x150] sm:$0xff]
        %v557 = vld [vmem:[%s420 + $0x158] sm:$0xff]
        %v558 = vld [vmem:[%s420 + $0x160] sm:$0xff]
        %v559 = vld [vmem:[%s420 + $0x168] sm:$0xff]
        %v560 = vld [vmem:[%s420 + $0x170] sm:$0xff]
        %v561 = vld [vmem:[%s420 + $0x178] sm:$0xff]
        %v562 = vld [vmem:[%s420 + $0x180] sm:$0xff]
        %v563 = vld [vmem:[%s420 + $0x188] sm:$0xff]
        %v564 = vld [vmem:[%s420 + $0x190] sm:$0xff]
        %v565 = vld [vmem:[%s420 + $0x198] sm:$0xff]
        %v566 = vld [vmem:[%s420 + $0x1a0] sm:$0xff]
        %v567 = vld [vmem:[%s420 + $0x1a8] sm:$0xff]
        %v568 = vld [vmem:[%s420 + $0x1b0] sm:$0xff]
        %v569 = vld [vmem:[%s420 + $0x1b8] sm:$0xff]
        %v570 = vld [vmem:[%s420 + $0x1c0] sm:$0xff]
        %v571 = vld [vmem:[%s420 + $0x1c8] sm:$0xff]
        %v572 = vld [vmem:[%s420 + $0x1d0] sm:$0xff]
        %v573 = vld [vmem:[%s420 + $0x1d8] sm:$0xff]
        %v574 = vld [vmem:[%s420 + $0x1e0] sm:$0xff]
        %v575 = vld [vmem:[%s420 + $0x1e8] sm:$0xff]
        %v576 = vld [vmem:[%s420 + $0x1f0] sm:$0xff]
        %v577 = vld [vmem:[%s420 + $0x1f8] sm:$0xff]
        %v578 = vld [vmem:[%s420 + $0x200] sm:$0xff]
        %v579 = vld [vmem:[%s420 + $0x208] sm:$0xff]
        %v580 = vld [vmem:[%s420 + $0x210] sm:$0xff]
        %v581 = vld [vmem:[%s420 + $0x218] sm:$0xff]
        %v582 = vld [vmem:[%s420 + $0x220] sm:$0xff]
        %v583 = vld [vmem:[%s420 + $0x228] sm:$0xff]
        %v584 = vld [vmem:[%s420 + $0x230] sm:$0xff]
        %v585 = vld [vmem:[%s420 + $0x238] sm:$0xff]
        %v586 = vld [vmem:[%s420 + $0x240] sm:$0xff]
        %v587 = vld [vmem:[%s420 + $0x248] sm:$0xff]
        %v588 = vld [vmem:[%s420 + $0x250] sm:$0xff]
        %v589 = vld [vmem:[%s420 + $0x258] sm:$0xff]
        %v590 = vld [vmem:[%s420 + $0x260] sm:$0xff]
        %v591 = vld [vmem:[%s420 + $0x268] sm:$0xff]
        %v592 = vld [vmem:[%s420 + $0x270] sm:$0xff]
        %v593 = vld [vmem:[%s420 + $0x278] sm:$0xff]
        %v594 = vld [vmem:[%s420 + $0x280] sm:$0xff]
        %v595 = vld [vmem:[%s420 + $0x288] sm:$0xff]
        %v596 = vld [vmem:[%s420 + $0x290] sm:$0xff]
        %v597 = vld [vmem:[%s420 + $0x298] sm:$0xff]
        %v598 = vld [vmem:[%s420 + $0x2a0] sm:$0xff]
        %v599 = vld [vmem:[%s420 + $0x2a8] sm:$0xff]
        %v600 = vld [vmem:[%s420 + $0x2b0] sm:$0xff]
        %v601 = vld [vmem:[%s420 + $0x2b8] sm:$0xff]
        %v602 = vld [vmem:[%s420 + $0x2c0] sm:$0xff]
        %v603 = vld [vmem:[%s420 + $0x2c8] sm:$0xff]
        %v604 = vld [vmem:[%s420 + $0x2d0] sm:$0xff]
        %v605 = vld [vmem:[%s420 + $0x2d8] sm:$0xff]
        %v606 = vld [vmem:[%s420 + $0x2e0] sm:$0xff]
        %v607 = vld [vmem:[%s420 + $0x2e8] sm:$0xff]
        %v608 = vld [vmem:[%s420 + $0x2f0] sm:$0xff]
        %v609 = vld [vmem:[%s420 + $0x2f8] sm:$0xff]
        %v610 = vld [vmem:[%s420 + $0x300] sm:$0xff]
        %v611 = vld [vmem:[%s420 + $0x308] sm:$0xff]
        %v612 = vld [vmem:[%s420 + $0x310] sm:$0xff]
        %v613 = vld [vmem:[%s420 + $0x318] sm:$0xff]
        %v614 = vld [vmem:[%s420 + $0x320] sm:$0xff]
        %v615 = vld [vmem:[%s420 + $0x328] sm:$0xff]
        %v616 = vld [vmem:[%s420 + $0x330] sm:$0xff]
        %v617 = vld [vmem:[%s420 + $0x338] sm:$0xff]
        %v618 = vld [vmem:[%s420 + $0x340] sm:$0xff]
        %v619 = vld [vmem:[%s420 + $0x348] sm:$0xff]
        %v620 = vld [vmem:[%s420 + $0x350] sm:$0xff]
        %v621 = vld [vmem:[%s420 + $0x358] sm:$0xff]
        %v622 = vld [vmem:[%s420 + $0x360] sm:$0xff]
        %v623 = vld [vmem:[%s420 + $0x368] sm:$0xff]
        %v624 = vld [vmem:[%s420 + $0x370] sm:$0xff]
        %v625 = vld [vmem:[%s420 + $0x378] sm:$0xff]
        %v626 = vld [vmem:[%s420 + $0x380] sm:$0xff]
        %v627 = vld [vmem:[%s420 + $0x388] sm:$0xff]
        %v628 = vld [vmem:[%s420 + $0x390] sm:$0xff]
        %v629 = vld [vmem:[%s420 + $0x398] sm:$0xff]
        %v630 = vld [vmem:[%s420 + $0x3a0] sm:$0xff]
        %v631 = vld [vmem:[%s420 + $0x3a8] sm:$0xff]
        %v632 = vld [vmem:[%s420 + $0x3b0] sm:$0xff]
        %v633 = vld [vmem:[%s420 + $0x3b8] sm:$0xff]
        %v634 = vld [vmem:[%s420 + $0x3c0] sm:$0xff]
        %v635 = vld [vmem:[%s420 + $0x3c8] sm:$0xff]
        %v636 = vld [vmem:[%s420 + $0x3d0] sm:$0xff]
        %v637 = vld [vmem:[%s420 + $0x3d8] sm:$0xff]
        %v638 = vld [vmem:[%s420 + $0x3e0] sm:$0xff]
        %v639 = vld [vmem:[%s420 + $0x3e8] sm:$0xff]
        %v640 = vld [vmem:[%s420 + $0x3f0] sm:$0xff]
        %v641 = vld [vmem:[%s420 + $0x3f8] sm:$0xff]
        %v642 = vld [vmem:[%s420 + $0x400] sm:$0xff]
        %v643 = vld [vmem:[%s420 + $0x408] sm:$0xff]
        %v644 = vld [vmem:[%s420 + $0x410] sm:$0xff]
        %v645 = vld [vmem:[%s420 + $0x418] sm:$0xff]
        %v646 = vld [vmem:[%s420 + $0x420] sm:$0xff]
        %v647 = vld [vmem:[%s420 + $0x428] sm:$0xff]
        %v648 = vld [vmem:[%s420 + $0x430] sm:$0xff]
        %v649 = vld [vmem:[%s420 + $0x438] sm:$0xff]
        %v650 = vld [vmem:[%s420 + $0x440] sm:$0xff]
        %v651 = vld [vmem:[%s420 + $0x448] sm:$0xff]
        %v652 = vld [vmem:[%s420 + $0x450] sm:$0xff]
        %v653 = vld [vmem:[%s420 + $0x458] sm:$0xff]
        %v654 = vld [vmem:[%s420 + $0x460] sm:$0xff]
        %v655 = vld [vmem:[%s420 + $0x468] sm:$0xff]
        %v656 = vld [vmem:[%s420 + $0x470] sm:$0xff]
        %v657 = vld [vmem:[%s420 + $0x478] sm:$0xff]
        %v658 = vld [vmem:[%s420 + $0x480] sm:$0xff]
        %v659 = vld [vmem:[%s420 + $0x488] sm:$0xff]
        %v660 = vld [vmem:[%s420 + $0x490] sm:$0xff]
        %v661 = vld [vmem:[%s420 + $0x498] sm:$0xff]
        %v662 = vld [vmem:[%s420 + $0x4a0] sm:$0xff]
        %v663 = vld [vmem:[%s420 + $0x4a8] sm:$0xff]
        %v664 = vld [vmem:[%s420 + $0x4b0] sm:$0xff]
        %v665 = vld [vmem:[%s420 + $0x4b8] sm:$0xff]
        %v666 = vld [vmem:[%s420 + $0x4c0] sm:$0xff]
        %v667 = vld [vmem:[%s420 + $0x4c8] sm:$0xff]
        %v668 = vld [vmem:[%s420 + $0x4d0] sm:$0xff]
        %v669 = vld [vmem:[%s420 + $0x4d8] sm:$0xff]
        %v670 = vld [vmem:[%s420 + $0x4e0] sm:$0xff]
        %v671 = vld [vmem:[%s420 + $0x4e8] sm:$0xff]
        %v672 = vld [vmem:[%s420 + $0x4f0] sm:$0xff]
        %v673 = vld [vmem:[%s420 + $0x4f8] sm:$0xff]
        %v674 = vld [vmem:[%s420 + $0x500] sm:$0xff]
        %v675 = vld [vmem:[%s420 + $0x508] sm:$0xff]
        %v676 = vld [vmem:[%s420 + $0x510] sm:$0xff]
        %v677 = vld [vmem:[%s420 + $0x518] sm:$0xff]
        %v678 = vld [vmem:[%s420 + $0x520] sm:$0xff]
        %v679 = vld [vmem:[%s420 + $0x528] sm:$0xff]
        %v680 = vld [vmem:[%s420 + $0x530] sm:$0xff]
        %v681 = vld [vmem:[%s420 + $0x538] sm:$0xff]
        %v682 = vld [vmem:[%s420 + $0x540] sm:$0xff]
        %v683 = vld [vmem:[%s420 + $0x548] sm:$0xff]
        %v684 = vld [vmem:[%s420 + $0x550] sm:$0xff]
        %v685 = vld [vmem:[%s420 + $0x558] sm:$0xff]
        %v686 = vld [vmem:[%s420 + $0x560] sm:$0xff]
        %v687 = vld [vmem:[%s420 + $0x568] sm:$0xff]
        %v688 = vld [vmem:[%s420 + $0x570] sm:$0xff]
        %v689 = vld [vmem:[%s420 + $0x578] sm:$0xff]
        %v690 = vld [vmem:[%s420 + $0x580] sm:$0xff]
        %v691 = vld [vmem:[%s420 + $0x588] sm:$0xff]
        %v692 = vld [vmem:[%s420 + $0x590] sm:$0xff]
        %v693 = vld [vmem:[%s420 + $0x598] sm:$0xff]
        %v694 = vld [vmem:[%s420 + $0x5a0] sm:$0xff]
        %v695 = vld [vmem:[%s420 + $0x5a8] sm:$0xff]
        %v696 = vld [vmem:[%s420 + $0x5b0] sm:$0xff]
        %v697 = vld [vmem:[%s420 + $0x5b8] sm:$0xff]
        %v698 = vld [vmem:[%s420 + $0x5c0] sm:$0xff]
        %v699 = vld [vmem:[%s420 + $0x5c8] sm:$0xff]
        %v700 = vld [vmem:[%s420 + $0x5d0] sm:$0xff]
        %v701 = vld [vmem:[%s420 + $0x5d8] sm:$0xff]
        %v702 = vld [vmem:[%s420 + $0x5e0] sm:$0xff]
        %v703 = vld [vmem:[%s420 + $0x5e8] sm:$0xff]
        %v704 = vld [vmem:[%s420 + $0x5f0] sm:$0xff]
        %v705 = vld [vmem:[%s420 + $0x5f8] sm:$0xff]
        %v706 = vld [vmem:[%s420 + $0x600] sm:$0xff]
        %v707 = vld [vmem:[%s420 + $0x608] sm:$0xff]
        %v708 = vld [vmem:[%s420 + $0x610] sm:$0xff]
        %v709 = vld [vmem:[%s420 + $0x618] sm:$0xff]
        %v710 = vld [vmem:[%s420 + $0x620] sm:$0xff]
        %v711 = vld [vmem:[%s420 + $0x628] sm:$0xff]
        %v712 = vld [vmem:[%s420 + $0x630] sm:$0xff]
        %v713 = vld [vmem:[%s420 + $0x638] sm:$0xff]
        %v714 = vld [vmem:[%s420 + $0x640] sm:$0xff]
        %v715 = vld [vmem:[%s420 + $0x648] sm:$0xff]
        %v716 = vld [vmem:[%s420 + $0x650] sm:$0xff]
        %v717 = vld [vmem:[%s420 + $0x658] sm:$0xff]
        %v718 = vld [vmem:[%s420 + $0x660] sm:$0xff]
        %v719 = vld [vmem:[%s420 + $0x668] sm:$0xff]
        %v720 = vld [vmem:[%s420 + $0x670] sm:$0xff]
        %v721 = vld [vmem:[%s420 + $0x678] sm:$0xff]
        %v722 = vld [vmem:[%s420 + $0x680] sm:$0xff]
        %v723 = vld [vmem:[%s420 + $0x688] sm:$0xff]
        %v724 = vld [vmem:[%s420 + $0x690] sm:$0xff]
        %v725 = vld [vmem:[%s420 + $0x698] sm:$0xff]
        %v726 = vld [vmem:[%s420 + $0x6a0] sm:$0xff]
        %v727 = vld [vmem:[%s420 + $0x6a8] sm:$0xff]
        %v728 = vld [vmem:[%s420 + $0x6b0] sm:$0xff]
        %v729 = vld [vmem:[%s420 + $0x6b8] sm:$0xff]
        %v730 = vld [vmem:[%s420 + $0x6c0] sm:$0xff]
        %v731 = vld [vmem:[%s420 + $0x6c8] sm:$0xff]
        %v732 = vld [vmem:[%s420 + $0x6d0] sm:$0xff]
        %v733 = vld [vmem:[%s420 + $0x6d8] sm:$0xff]
        %v734 = vld [vmem:[%s420 + $0x6e0] sm:$0xff]
        %v735 = vld [vmem:[%s420 + $0x6e8] sm:$0xff]
        %v736 = vld [vmem:[%s420 + $0x6f0] sm:$0xff]
        %v737 = vld [vmem:[%s420 + $0x6f8] sm:$0xff]
        %v738 = vld [vmem:[%s420 + $0x700] sm:$0xff]
        %v739 = vld [vmem:[%s420 + $0x708] sm:$0xff]
        %v740 = vld [vmem:[%s420 + $0x710] sm:$0xff]
        %v741 = vld [vmem:[%s420 + $0x718] sm:$0xff]
        %v742 = vld [vmem:[%s420 + $0x720] sm:$0xff]
        %v743 = vld [vmem:[%s420 + $0x728] sm:$0xff]
        %v744 = vld [vmem:[%s420 + $0x730] sm:$0xff]
        %v745 = vld [vmem:[%s420 + $0x738] sm:$0xff]
        %v746 = vld [vmem:[%s420 + $0x740] sm:$0xff]
        %v747 = vld [vmem:[%s420 + $0x748] sm:$0xff]
        %v748 = vld [vmem:[%s420 + $0x750] sm:$0xff]
        %v749 = vld [vmem:[%s420 + $0x758] sm:$0xff]
        %v750 = vld [vmem:[%s420 + $0x760] sm:$0xff]
        %v751 = vld [vmem:[%s420 + $0x768] sm:$0xff]
        %v752 = vld [vmem:[%s420 + $0x770] sm:$0xff]
        %v753 = vld [vmem:[%s420 + $0x778] sm:$0xff]
        %v754 = vld [vmem:[%s420 + $0x780] sm:$0xff]
        %v755 = vld [vmem:[%s420 + $0x788] sm:$0xff]
        %v756 = vld [vmem:[%s420 + $0x790] sm:$0xff]
        %v757 = vld [vmem:[%s420 + $0x798] sm:$0xff]
        %v758 = vld [vmem:[%s420 + $0x7a0] sm:$0xff]
        %v759 = vld [vmem:[%s420 + $0x7a8] sm:$0xff]
        %v760 = vld [vmem:[%s420 + $0x7b0] sm:$0xff]
        %v761 = vld [vmem:[%s420 + $0x7b8] sm:$0xff]
        %v762 = vld [vmem:[%s420 + $0x7c0] sm:$0xff]
        %v763 = vld [vmem:[%s420 + $0x7c8] sm:$0xff]
        %v764 = vld [vmem:[%s420 + $0x7d0] sm:$0xff]
        %v765 = vld [vmem:[%s420 + $0x7d8] sm:$0xff]
        %v766 = vld [vmem:[%s420 + $0x7e0] sm:$0xff]
        %v767 = vld [vmem:[%s420 + $0x7e8] sm:$0xff]
        %v768 = vld [vmem:[%s420 + $0x7f0] sm:$0xff]
        %v769 = vld [vmem:[%s420 + $0x7f8] sm:$0xff]
        %v770 = vld [vmem:[%s495] sm:$0xff]
        %v771 = vld [vmem:[%s495 + $0x8] sm:$0xff]
        %v772 = vld [vmem:[%s495 + $0x10] sm:$0xff]
        %v773 = vld [vmem:[%s495 + $0x18] sm:$0xff]
        %v774 = vld [vmem:[%s495 + $0x20] sm:$0xff]
        %v775 = vld [vmem:[%s495 + $0x28] sm:$0xff]
        %v776 = vld [vmem:[%s495 + $0x30] sm:$0xff]
        %v777 = vld [vmem:[%s495 + $0x38] sm:$0xff]
        %v778 = vld [vmem:[%s495 + $0x40] sm:$0xff]
        %v779 = vld [vmem:[%s495 + $0x48] sm:$0xff]
        %v780 = vld [vmem:[%s495 + $0x50] sm:$0xff]
        %v781 = vld [vmem:[%s495 + $0x58] sm:$0xff]
        %v782 = vld [vmem:[%s495 + $0x60] sm:$0xff]
        %v783 = vld [vmem:[%s495 + $0x68] sm:$0xff]
        %v784 = vld [vmem:[%s495 + $0x70] sm:$0xff]
        %v785 = vld [vmem:[%s495 + $0x78] sm:$0xff]
        %v786 = vld [vmem:[#allocation7] sm:$0xff]
        %v787 = vld [vmem:[#allocation7 + $0x8] sm:$0xff]
        %v788 = vld [vmem:[#allocation7 + $0x10] sm:$0xff]
        %v789 = vld [vmem:[#allocation7 + $0x18] sm:$0xff]
        %v790 = vld [vmem:[#allocation7 + $0x20] sm:$0xff]
        %v791 = vld [vmem:[#allocation7 + $0x28] sm:$0xff]
        %v792 = vld [vmem:[#allocation7 + $0x30] sm:$0xff]
        %v793 = vld [vmem:[#allocation7 + $0x38] sm:$0xff]
        %v794 = vld [vmem:[#allocation7 + $0x40] sm:$0xff]
        %v795 = vld [vmem:[#allocation7 + $0x48] sm:$0xff]
        %v796 = vld [vmem:[#allocation7 + $0x50] sm:$0xff]
        %v797 = vld [vmem:[#allocation7 + $0x58] sm:$0xff]
        %v798 = vld [vmem:[#allocation7 + $0x60] sm:$0xff]
        %v799 = vld [vmem:[#allocation7 + $0x68] sm:$0xff]
        %v800 = vld [vmem:[#allocation7 + $0x70] sm:$0xff]
        %v801 = vld [vmem:[#allocation7 + $0x78] sm:$0xff]
        %v802 = vld [vmem:[#allocation8] sm:$0x1]
        %v804 = vlaneseq
        %v805 = vshrl.u32 %v804, 7
        %v806 = vsub.s32 0, %v805
        %v807 = vrot.slane %v802, %v806
        %809 = vmatprep.subr.mxu0 0.0
        %810 = vmatpush1.msra.mxu0 %v786
        %811 = vmatprep.subr.mxu0 0.0
        %812 = vmatpush1.msra.mxu0 %v787
        %813 = vmatprep.subr.mxu0 0.0
        %814 = vmatpush1.msra.mxu0 %v788
        %815 = vmatprep.subr.mxu0 0.0
        %816 = vmatpush1.msra.mxu0 %v789
        %817 = vmatprep.subr.mxu0 0.0
        %818 = vmatpush1.msra.mxu0 %v790
        %819 = vmatprep.subr.mxu0 0.0
        %820 = vmatpush1.msra.mxu0 %v791
        %821 = vmatprep.subr.mxu0 0.0
        %822 = vmatpush1.msra.mxu0 %v792
        %823 = vmatprep.subr.mxu0 0.0
        %824 = vmatpush1.msra.mxu0 %v793
        %825 = vmatprep.subr.mxu0 0.0
        %826 = vmatpush1.msra.mxu0 %v794
        %827 = vmatprep.subr.mxu0 0.0
        %828 = vmatpush1.msra.mxu0 %v795
        %829 = vmatprep.subr.mxu0 0.0
        %830 = vmatpush1.msra.mxu0 %v796
        %831 = vmatprep.subr.mxu0 0.0
        %832 = vmatpush1.msra.mxu0 %v797
        %833 = vmatprep.subr.mxu0 0.0
        %834 = vmatpush1.msra.mxu0 %v798
        %835 = vmatprep.subr.mxu0 0.0
        %836 = vmatpush1.msra.mxu0 %v799
        %837 = vmatprep.subr.mxu0 0.0
        %838 = vmatpush1.msra.mxu0 %v800
        %839 = vmatprep.subr.mxu0 0.0
        %840 = vmatpush1.msra.mxu0 %v801
        %841 = vmatprep.subr.mxu0 0.0
        %842 = vmatpush1.msra.mxu0 0.0
        %843 = vmatprep.subr.mxu0 0.0
        %844 = vmatpush1.msra.mxu0 0.0
        %845 = vmatprep.subr.mxu0 0.0
        %846 = vmatpush1.msra.mxu0 0.0
        %847 = vmatprep.subr.mxu0 0.0
        %848 = vmatpush1.msra.mxu0 0.0
        %849 = vmatprep.subr.mxu0 0.0
        %850 = vmatpush1.msra.mxu0 0.0
        %851 = vmatprep.subr.mxu0 0.0
        %852 = vmatpush1.msra.mxu0 0.0
        %853 = vmatprep.subr.mxu0 0.0
        %854 = vmatpush1.msra.mxu0 0.0
        %855 = vmatprep.subr.mxu0 0.0
        %856 = vmatpush1.msra.mxu0 0.0
        %857 = vmatprep.subr.mxu0 0.0
        %858 = vmatpush1.msra.mxu0 0.0
        %859 = vmatprep.subr.mxu0 0.0
        %860 = vmatpush1.msra.mxu0 0.0
        %861 = vmatprep.subr.mxu0 0.0
        %862 = vmatpush1.msra.mxu0 0.0
        %863 = vmatprep.subr.mxu0 0.0
        %864 = vmatpush1.msra.mxu0 0.0
        %865 = vmatprep.subr.mxu0 0.0
        %866 = vmatpush1.msra.mxu0 0.0
        %867 = vmatprep.subr.mxu0 0.0
        %868 = vmatpush1.msra.mxu0 0.0
        %869 = vmatprep.subr.mxu0 0.0
        %870 = vmatpush1.msra.mxu0 0.0
        %871 = vmatprep.subr.mxu0 0.0
        %872 = vmatpush1.msra.mxu0 0.0
        %873 = vmatprep.mubr.f32.mxu0 0.0
        %874 = vmatmul.mubr.f32.gmra.mrb[0].mxu0 %v498
        %v875 = vpop.f32.mrb[0].mxu0
        %v876 = vadd.f32 %v807, %v875
        %v877 = vpop.f32.mrb[0].mxu0
        %878 = vmatprep.mubr.f32.mxu0 0.0
        %879 = vmatmul.mubr.f32.gmra.mrb[0].mxu0 %v499
        %v880 = vpop.f32.mrb[0].mxu0
        %v881 = vadd.f32 %v807, %v880
        %v882 = vpop.f32.mrb[0].mxu0
        %883 = vmatprep.mubr.f32.mxu0 0.0
        %884 = vmatmul.mubr.f32.gmra.mrb[0].mxu0 %v500
        %v885 = vpop.f32.mrb[0].mxu0
        %v886 = vadd.f32 %v807, %v885
        %v887 = vpop.f32.mrb[0].mxu0
        %888 = vmatprep.mubr.f32.mxu0 0.0
        %889 = vmatmul.mubr.f32.gmra.mrb[0].mxu0 %v501
        %v890 = vpop.f32.mrb[0].mxu0
        %v891 = vadd.f32 %v807, %v890
        %v892 = vpop.f32.mrb[0].mxu0
        %893 = vmatprep.mubr.f32.mxu0 0.0
        %894 = vmatmul.mubr.f32.gmra.mrb[0].mxu0 %v502
        %v895 = vpop.f32.mrb[0].mxu0
        %v896 = vadd.f32 %v807, %v895
        %v897 = vpop.f32.mrb[0].mxu0
        %898 = vmatprep.mubr.f32.mxu0 0.0
        %899 = vmatmul.mubr.f32.gmra.mrb[0].mxu0 %v503
        %v900 = vpop.f32.mrb[0].mxu0
        %v901 = vadd.f32 %v807, %v900
        %v902 = vpop.f32.mrb[0].mxu0
        %903 = vmatprep.mubr.f32.mxu0 0.0
        %904 = vmatmul.mubr.f32.gmra.mrb[0].mxu0 %v504
        %v905 = vpop.f32.mrb[0].mxu0
        %v906 = vadd.f32 %v807, %v905
        %v907 = vpop.f32.mrb[0].mxu0
        %908 = vmatprep.mubr.f32.mxu0 0.0
        %909 = vmatmul.mubr.f32.gmra.mrb[0].mxu0 %v505
        %v910 = vpop.f32.mrb[0].mxu0
        %v911 = vadd.f32 %v807, %v910
        %v912 = vpop.f32.mrb[0].mxu0
        %913 = vmatprep.mubr.f32.mxu0 0.0
        %914 = vmatmul.mubr.f32.gmra.mrb[0].mxu0 %v506
        %v915 = vpop.f32.mrb[0].mxu0
        %v916 = vadd.f32 %v807, %v915
        %v917 = vpop.f32.mrb[0].mxu0
        %918 = vmatprep.mubr.f32.mxu0 0.0
        %919 = vmatmul.mubr.f32.gmra.mrb[0].mxu0 %v507
        %v920 = vpop.f32.mrb[0].mxu0
        %v921 = vadd.f32 %v807, %v920
        %v922 = vpop.f32.mrb[0].mxu0
        %923 = vmatprep.mubr.f32.mxu0 0.0
        %924 = vmatmul.mubr.f32.gmra.mrb[0].mxu0 %v508
        %v925 = vpop.f32.mrb[0].mxu0
        %v926 = vadd.f32 %v807, %v925
        %v927 = vpop.f32.mrb[0].mxu0
        %928 = vmatprep.mubr.f32.mxu0 0.0
        %929 = vmatmul.mubr.f32.gmra.mrb[0].mxu0 %v509
        %v930 = vpop.f32.mrb[0].mxu0
        %v931 = vadd.f32 %v807, %v930
        %v932 = vpop.f32.mrb[0].mxu0
        %933 = vmatprep.mubr.f32.mxu0 0.0
        %934 = vmatmul.mubr.f32.gmra.mrb[0].mxu0 %v510
        %v935 = vpop.f32.mrb[0].mxu0
        %v936 = vadd.f32 %v807, %v935
        %v937 = vpop.f32.mrb[0].mxu0
        %938 = vmatprep.mubr.f32.mxu0 0.0
        %939 = vmatmul.mubr.f32.gmra.mrb[0].mxu0 %v511
        %v940 = vpop.f32.mrb[0].mxu0
        %v941 = vadd.f32 %v807, %v940
        %v942 = vpop.f32.mrb[0].mxu0
        %943 = vmatprep.mubr.f32.mxu0 0.0
        %944 = vmatmul.mubr.f32.gmra.mrb[0].mxu0 %v512
        %v945 = vpop.f32.mrb[0].mxu0
        %v946 = vadd.f32 %v807, %v945
        %v947 = vpop.f32.mrb[0].mxu0
        %948 = vmatprep.mubr.f32.mxu0 0.0
        %949 = vmatmul.mubr.f32.gmra.mrb[0].mxu0 %v513
        %v950 = vpop.f32.mrb[0].mxu0
        %v951 = vadd.f32 %v807, %v950
        %v952 = vpop.f32.mrb[0].mxu0
        %953 = vdwg.mxu0
        %v954 = vld [vmem:[#allocation10] sm:$0xff]
        %v955 = vld [vmem:[#allocation10 + $0x8] sm:$0xff]
        %v956 = vld [vmem:[#allocation10 + $0x10] sm:$0xff]
        %v957 = vld [vmem:[#allocation10 + $0x18] sm:$0xff]
        %v958 = vld [vmem:[#allocation10 + $0x20] sm:$0xff]
        %v959 = vld [vmem:[#allocation10 + $0x28] sm:$0xff]
        %v960 = vld [vmem:[#allocation10 + $0x30] sm:$0xff]
        %v961 = vld [vmem:[#allocation10 + $0x38] sm:$0xff]
        %v962 = vld [vmem:[#allocation10 + $0x40] sm:$0xff]
        %v963 = vld [vmem:[#allocation10 + $0x48] sm:$0xff]
        %v964 = vld [vmem:[#allocation10 + $0x50] sm:$0xff]
        %v965 = vld [vmem:[#allocation10 + $0x58] sm:$0xff]
        %v966 = vld [vmem:[#allocation10 + $0x60] sm:$0xff]
        %v967 = vld [vmem:[#allocation10 + $0x68] sm:$0xff]
        %v968 = vld [vmem:[#allocation10 + $0x70] sm:$0xff]
        %v969 = vld [vmem:[#allocation10 + $0x78] sm:$0xff]
        %v970 = vld [vmem:[#allocation10 + $0x80] sm:$0xff]
        %v971 = vld [vmem:[#allocation10 + $0x88] sm:$0xff]
        %v972 = vld [vmem:[#allocation10 + $0x90] sm:$0xff]
        %v973 = vld [vmem:[#allocation10 + $0x98] sm:$0xff]
        %v974 = vld [vmem:[#allocation10 + $0xa0] sm:$0xff]
        %v975 = vld [vmem:[#allocation10 + $0xa8] sm:$0xff]
        %v976 = vld [vmem:[#allocation10 + $0xb0] sm:$0xff]
        %v977 = vld [vmem:[#allocation10 + $0xb8] sm:$0xff]
        %v978 = vld [vmem:[#allocation10 + $0xc0] sm:$0xff]
        %v979 = vld [vmem:[#allocation10 + $0xc8] sm:$0xff]
        %v980 = vld [vmem:[#allocation10 + $0xd0] sm:$0xff]
        %v981 = vld [vmem:[#allocation10 + $0xd8] sm:$0xff]
        %v982 = vld [vmem:[#allocation10 + $0xe0] sm:$0xff]
        %v983 = vld [vmem:[#allocation10 + $0xe8] sm:$0xff]
        %v984 = vld [vmem:[#allocation10 + $0xf0] sm:$0xff]
        %v985 = vld [vmem:[#allocation10 + $0xf8] sm:$0xff]
        %v986 = vld [vmem:[#allocation11] sm:$0x3]
        %v988 = vlaneseq
        %v989 = vshrl.u32 %v988, 7
        %v990 = vsub.s32 0, %v989
        %v991 = vrot.slane %v986, %v990
        %v992 = vlaneseq
        %v993 = vshrl.u32 %v992, 7
        %v994 = vsub.s32 1, %v993
        %v995 = vrot.slane %v986, %v994
        %998 = vmatprep.subr.mxu0 %v955
        %999 = vmatpush1.msra.mxu0 %v954
        %1000 = vmatprep.subr.mxu0 %v957
        %1001 = vmatpush1.msra.mxu0 %v956
        %1002 = vmatprep.subr.mxu0 %v959
        %1003 = vmatpush1.msra.mxu0 %v958
        %1004 = vmatprep.subr.mxu0 %v961
        %1005 = vmatpush1.msra.mxu0 %v960
        %1006 = vmatprep.subr.mxu0 %v963
        %1007 = vmatpush1.msra.mxu0 %v962
        %1008 = vmatprep.subr.mxu0 %v965
        %1009 = vmatpush1.msra.mxu0 %v964
        %1010 = vmatprep.subr.mxu0 %v967
        %1011 = vmatpush1.msra.mxu0 %v966
        %1012 = vmatprep.subr.mxu0 %v969
        %1013 = vmatpush1.msra.mxu0 %v968
        %1014 = vmatprep.subr.mxu0 %v971
        %1015 = vmatpush1.msra.mxu0 %v970
        %1016 = vmatprep.subr.mxu0 %v973
        %1017 = vmatpush1.msra.mxu0 %v972
        %1018 = vmatprep.subr.mxu0 %v975
        %1019 = vmatpush1.msra.mxu0 %v974
        %1020 = vmatprep.subr.mxu0 %v977
        %1021 = vmatpush1.msra.mxu0 %v976
        %1022 = vmatprep.subr.mxu0 %v979
        %1023 = vmatpush1.msra.mxu0 %v978
        %1024 = vmatprep.subr.mxu0 %v981
        %1025 = vmatpush1.msra.mxu0 %v980
        %1026 = vmatprep.subr.mxu0 %v983
        %1027 = vmatpush1.msra.mxu0 %v982
        %1028 = vmatprep.subr.mxu0 %v985
        %1029 = vmatpush1.msra.mxu0 %v984
        %1030 = vmatprep.subr.mxu0 0.0
        %1031 = vmatpush1.msra.mxu0 0.0
        %1032 = vmatprep.subr.mxu0 0.0
        %1033 = vmatpush1.msra.mxu0 0.0
        %1034 = vmatprep.subr.mxu0 0.0
        %1035 = vmatpush1.msra.mxu0 0.0
        %1036 = vmatprep.subr.mxu0 0.0
        %1037 = vmatpush1.msra.mxu0 0.0
        %1038 = vmatprep.subr.mxu0 0.0
        %1039 = vmatpush1.msra.mxu0 0.0
        %1040 = vmatprep.subr.mxu0 0.0
        %1041 = vmatpush1.msra.mxu0 0.0
        %1042 = vmatprep.subr.mxu0 0.0
        %1043 = vmatpush1.msra.mxu0 0.0
        %1044 = vmatprep.subr.mxu0 0.0
        %1045 = vmatpush1.msra.mxu0 0.0
        %1046 = vmatprep.subr.mxu0 0.0
        %1047 = vmatpush1.msra.mxu0 0.0
        %1048 = vmatprep.subr.mxu0 0.0
        %1049 = vmatpush1.msra.mxu0 0.0
        %1050 = vmatprep.subr.mxu0 0.0
        %1051 = vmatpush1.msra.mxu0 0.0
        %1052 = vmatprep.subr.mxu0 0.0
        %1053 = vmatpush1.msra.mxu0 0.0
        %1054 = vmatprep.subr.mxu0 0.0
        %1055 = vmatpush1.msra.mxu0 0.0
        %1056 = vmatprep.subr.mxu0 0.0
        %1057 = vmatpush1.msra.mxu0 0.0
        %1058 = vmatprep.subr.mxu0 0.0
        %1059 = vmatpush1.msra.mxu0 0.0
        %1060 = vmatprep.subr.mxu0 0.0
        %1061 = vmatpush1.msra.mxu0 0.0
        %1062 = vmatprep.mubr.f32.mxu0 0.0
        %1063 = vmatmul.mubr.f32.gmra.mrb[0].mxu0 %v514
        %v1064 = vpop.f32.mrb[0].mxu0
        %v1065 = vadd.f32 %v991, %v1064
        %v1066 = vpop.f32.mrb[0].mxu0
        %v1067 = vadd.f32 %v995, %v1066
        %1068 = vmatprep.mubr.f32.mxu0 0.0
        %1069 = vmatmul.mubr.f32.gmra.mrb[0].mxu0 %v515
        %v1070 = vpop.f32.mrb[0].mxu0
        %v1071 = vadd.f32 %v991, %v1070
        %v1072 = vpop.f32.mrb[0].mxu0
        %v1073 = vadd.f32 %v995, %v1072
        %1074 = vmatprep.mubr.f32.mxu0 0.0
        %1075 = vmatmul.mubr.f32.gmra.mrb[0].mxu0 %v516
        %v1076 = vpop.f32.mrb[0].mxu0
        %v1077 = vadd.f32 %v991, %v1076
        %v1078 = vpop.f32.mrb[0].mxu0
        %v1079 = vadd.f32 %v995, %v1078
        %1080 = vmatprep.mubr.f32.mxu0 0.0
        %1081 = vmatmul.mubr.f32.gmra.mrb[0].mxu0 %v517
        %v1082 = vpop.f32.mrb[0].mxu0
        %v1083 = vadd.f32 %v991, %v1082
        %v1084 = vpop.f32.mrb[0].mxu0
        %v1085 = vadd.f32 %v995, %v1084
        %1086 = vmatprep.mubr.f32.mxu0 0.0
        %1087 = vmatmul.mubr.f32.gmra.mrb[0].mxu0 %v518
        %v1088 = vpop.f32.mrb[0].mxu0
        %v1089 = vadd.f32 %v991, %v1088
        %v1090 = vpop.f32.mrb[0].mxu0
        %v1091 = vadd.f32 %v995, %v1090
        %1092 = vmatprep.mubr.f32.mxu0 0.0
        %1093 = vmatmul.mubr.f32.gmra.mrb[0].mxu0 %v519
        %v1094 = vpop.f32.mrb[0].mxu0
        %v1095 = vadd.f32 %v991, %v1094
        %v1096 = vpop.f32.mrb[0].mxu0
        %v1097 = vadd.f32 %v995, %v1096
        %1098 = vmatprep.mubr.f32.mxu0 0.0
        %1099 = vmatmul.mubr.f32.gmra.mrb[0].mxu0 %v520
        %v1100 = vpop.f32.mrb[0].mxu0
        %v1101 = vadd.f32 %v991, %v1100
        %v1102 = vpop.f32.mrb[0].mxu0
        %v1103 = vadd.f32 %v995, %v1102
        %1104 = vmatprep.mubr.f32.mxu0 0.0
        %1105 = vmatmul.mubr.f32.gmra.mrb[0].mxu0 %v521
        %v1106 = vpop.f32.mrb[0].mxu0
        %v1107 = vadd.f32 %v991, %v1106
        %v1108 = vpop.f32.mrb[0].mxu0
        %v1109 = vadd.f32 %v995, %v1108
        %1110 = vmatprep.mubr.f32.mxu0 0.0
        %1111 = vmatmul.mubr.f32.gmra.mrb[0].mxu0 %v522
        %v1112 = vpop.f32.mrb[0].mxu0
        %v1113 = vadd.f32 %v991, %v1112
        %v1114 = vpop.f32.mrb[0].mxu0
        %v1115 = vadd.f32 %v995, %v1114
        %1116 = vmatprep.mubr.f32.mxu0 0.0
        %1117 = vmatmul.mubr.f32.gmra.mrb[0].mxu0 %v523
        %v1118 = vpop.f32.mrb[0].mxu0
        %v1119 = vadd.f32 %v991, %v1118
        %v1120 = vpop.f32.mrb[0].mxu0
        %v1121 = vadd.f32 %v995, %v1120
        %1122 = vmatprep.mubr.f32.mxu0 0.0
        %1123 = vmatmul.mubr.f32.gmra.mrb[0].mxu0 %v524
        %v1124 = vpop.f32.mrb[0].mxu0
        %v1125 = vadd.f32 %v991, %v1124
        %v1126 = vpop.f32.mrb[0].mxu0
        %v1127 = vadd.f32 %v995, %v1126
        %1128 = vmatprep.mubr.f32.mxu0 0.0
        %1129 = vmatmul.mubr.f32.gmra.mrb[0].mxu0 %v525
        %v1130 = vpop.f32.mrb[0].mxu0
        %v1131 = vadd.f32 %v991, %v1130
        %v1132 = vpop.f32.mrb[0].mxu0
        %v1133 = vadd.f32 %v995, %v1132
        %1134 = vmatprep.mubr.f32.mxu0 0.0
        %1135 = vmatmul.mubr.f32.gmra.mrb[0].mxu0 %v526
        %v1136 = vpop.f32.mrb[0].mxu0
        %v1137 = vadd.f32 %v991, %v1136
        %v1138 = vpop.f32.mrb[0].mxu0
        %v1139 = vadd.f32 %v995, %v1138
        %1140 = vmatprep.mubr.f32.mxu0 0.0
        %1141 = vmatmul.mubr.f32.gmra.mrb[0].mxu0 %v527
        %v1142 = vpop.f32.mrb[0].mxu0
        %v1143 = vadd.f32 %v991, %v1142
        %v1144 = vpop.f32.mrb[0].mxu0
        %v1145 = vadd.f32 %v995, %v1144
        %1146 = vmatprep.mubr.f32.mxu0 0.0
        %1147 = vmatmul.mubr.f32.gmra.mrb[0].mxu0 %v528
        %v1148 = vpop.f32.mrb[0].mxu0
        %v1149 = vadd.f32 %v991, %v1148
        %v1150 = vpop.f32.mrb[0].mxu0
        %v1151 = vadd.f32 %v995, %v1150
        %1152 = vmatprep.mubr.f32.mxu0 0.0
        %1153 = vmatmul.mubr.f32.gmra.mrb[0].mxu0 %v529
        %v1154 = vpop.f32.mrb[0].mxu0
        %v1155 = vadd.f32 %v991, %v1154
        %v1156 = vpop.f32.mrb[0].mxu0
        %v1157 = vadd.f32 %v995, %v1156
        %1158 = vmatprep.mubr.f32.mxu0 0.0
        %1159 = vmatmul.mubr.f32.gmra.mrb[0].mxu0 %v530
        %v1160 = vpop.f32.mrb[0].mxu0
        %v1161 = vadd.f32 %v991, %v1160
        %v1162 = vpop.f32.mrb[0].mxu0
        %v1163 = vadd.f32 %v995, %v1162
        %1164 = vmatprep.mubr.f32.mxu0 0.0
        %1165 = vmatmul.mubr.f32.gmra.mrb[0].mxu0 %v531
        %v1166 = vpop.f32.mrb[0].mxu0
        %v1167 = vadd.f32 %v991, %v1166
        %v1168 = vpop.f32.mrb[0].mxu0
        %v1169 = vadd.f32 %v995, %v1168
        %1170 = vmatprep.mubr.f32.mxu0 0.0
        %1171 = vmatmul.mubr.f32.gmra.mrb[0].mxu0 %v532
        %v1172 = vpop.f32.mrb[0].mxu0
        %v1173 = vadd.f32 %v991, %v1172
        %v1174 = vpop.f32.mrb[0].mxu0
        %v1175 = vadd.f32 %v995, %v1174
        %1176 = vmatprep.mubr.f32.mxu0 0.0
        %1177 = vmatmul.mubr.f32.gmra.mrb[0].mxu0 %v533
        %v1178 = vpop.f32.mrb[0].mxu0
        %v1179 = vadd.f32 %v991, %v1178
        %v1180 = vpop.f32.mrb[0].mxu0
        %v1181 = vadd.f32 %v995, %v1180
        %1182 = vmatprep.mubr.f32.mxu0 0.0
        %1183 = vmatmul.mubr.f32.gmra.mrb[0].mxu0 %v534
        %v1184 = vpop.f32.mrb[0].mxu0
        %v1185 = vadd.f32 %v991, %v1184
        %v1186 = vpop.f32.mrb[0].mxu0
        %v1187 = vadd.f32 %v995, %v1186
        %1188 = vmatprep.mubr.f32.mxu0 0.0
        %1189 = vmatmul.mubr.f32.gmra.mrb[0].mxu0 %v535
        %v1190 = vpop.f32.mrb[0].mxu0
        %v1191 = vadd.f32 %v991, %v1190
        %v1192 = vpop.f32.mrb[0].mxu0
        %v1193 = vadd.f32 %v995, %v1192
        %1194 = vmatprep.mubr.f32.mxu0 0.0
        %1195 = vmatmul.mubr.f32.gmra.mrb[0].mxu0 %v536
        %v1196 = vpop.f32.mrb[0].mxu0
        %v1197 = vadd.f32 %v991, %v1196
        %v1198 = vpop.f32.mrb[0].mxu0
        %v1199 = vadd.f32 %v995, %v1198
        %1200 = vmatprep.mubr.f32.mxu0 0.0
        %1201 = vmatmul.mubr.f32.gmra.mrb[0].mxu0 %v537
        %v1202 = vpop.f32.mrb[0].mxu0
        %v1203 = vadd.f32 %v991, %v1202
        %v1204 = vpop.f32.mrb[0].mxu0
        %v1205 = vadd.f32 %v995, %v1204
        %1206 = vmatprep.mubr.f32.mxu0 0.0
        %1207 = vmatmul.mubr.f32.gmra.mrb[0].mxu0 %v538
        %v1208 = vpop.f32.mrb[0].mxu0
        %v1209 = vadd.f32 %v991, %v1208
        %v1210 = vpop.f32.mrb[0].mxu0
        %v1211 = vadd.f32 %v995, %v1210
        %1212 = vmatprep.mubr.f32.mxu0 0.0
        %1213 = vmatmul.mubr.f32.gmra.mrb[0].mxu0 %v539
        %v1214 = vpop.f32.mrb[0].mxu0
        %v1215 = vadd.f32 %v991, %v1214
        %v1216 = vpop.f32.mrb[0].mxu0
        %v1217 = vadd.f32 %v995, %v1216
        %1218 = vmatprep.mubr.f32.mxu0 0.0
        %1219 = vmatmul.mubr.f32.gmra.mrb[0].mxu0 %v540
        %v1220 = vpop.f32.mrb[0].mxu0
        %v1221 = vadd.f32 %v991, %v1220
        %v1222 = vpop.f32.mrb[0].mxu0
        %v1223 = vadd.f32 %v995, %v1222
        %1224 = vmatprep.mubr.f32.mxu0 0.0
        %1225 = vmatmul.mubr.f32.gmra.mrb[0].mxu0 %v541
        %v1226 = vpop.f32.mrb[0].mxu0
        %v1227 = vadd.f32 %v991, %v1226
        %v1228 = vpop.f32.mrb[0].mxu0
        %v1229 = vadd.f32 %v995, %v1228
        %1230 = vmatprep.mubr.f32.mxu0 0.0
        %1231 = vmatmul.mubr.f32.gmra.mrb[0].mxu0 %v542
        %v1232 = vpop.f32.mrb[0].mxu0
        %v1233 = vadd.f32 %v991, %v1232
        %v1234 = vpop.f32.mrb[0].mxu0
        %v1235 = vadd.f32 %v995, %v1234
        %1236 = vmatprep.mubr.f32.mxu0 0.0
        %1237 = vmatmul.mubr.f32.gmra.mrb[0].mxu0 %v543
        %v1238 = vpop.f32.mrb[0].mxu0
        %v1239 = vadd.f32 %v991, %v1238
        %v1240 = vpop.f32.mrb[0].mxu0
        %v1241 = vadd.f32 %v995, %v1240
        %1242 = vmatprep.mubr.f32.mxu0 0.0
        %1243 = vmatmul.mubr.f32.gmra.mrb[0].mxu0 %v544
        %v1244 = vpop.f32.mrb[0].mxu0
        %v1245 = vadd.f32 %v991, %v1244
        %v1246 = vpop.f32.mrb[0].mxu0
        %v1247 = vadd.f32 %v995, %v1246
        %1248 = vmatprep.mubr.f32.mxu0 0.0
        %1249 = vmatmul.mubr.f32.gmra.mrb[0].mxu0 %v545
        %v1250 = vpop.f32.mrb[0].mxu0
        %v1251 = vadd.f32 %v991, %v1250
        %v1252 = vpop.f32.mrb[0].mxu0
        %v1253 = vadd.f32 %v995, %v1252
        %1254 = vmatprep.mubr.f32.mxu0 0.0
        %1255 = vmatmul.mubr.f32.gmra.mrb[0].mxu0 %v546
        %v1256 = vpop.f32.mrb[0].mxu0
        %v1257 = vadd.f32 %v991, %v1256
        %v1258 = vpop.f32.mrb[0].mxu0
        %v1259 = vadd.f32 %v995, %v1258
        %1260 = vmatprep.mubr.f32.mxu0 0.0
        %1261 = vmatmul.mubr.f32.gmra.mrb[0].mxu0 %v547
        %v1262 = vpop.f32.mrb[0].mxu0
        %v1263 = vadd.f32 %v991, %v1262
        %v1264 = vpop.f32.mrb[0].mxu0
        %v1265 = vadd.f32 %v995, %v1264
        %1266 = vmatprep.mubr.f32.mxu0 0.0
        %1267 = vmatmul.mubr.f32.gmra.mrb[0].mxu0 %v548
        %v1268 = vpop.f32.mrb[0].mxu0
        %v1269 = vadd.f32 %v991, %v1268
        %v1270 = vpop.f32.mrb[0].mxu0
        %v1271 = vadd.f32 %v995, %v1270
        %1272 = vmatprep.mubr.f32.mxu0 0.0
        %1273 = vmatmul.mubr.f32.gmra.mrb[0].mxu0 %v549
        %v1274 = vpop.f32.mrb[0].mxu0
        %v1275 = vadd.f32 %v991, %v1274
        %v1276 = vpop.f32.mrb[0].mxu0
        %v1277 = vadd.f32 %v995, %v1276
        %1278 = vmatprep.mubr.f32.mxu0 0.0
        %1279 = vmatmul.mubr.f32.gmra.mrb[0].mxu0 %v550
        %v1280 = vpop.f32.mrb[0].mxu0
        %v1281 = vadd.f32 %v991, %v1280
        %v1282 = vpop.f32.mrb[0].mxu0
        %v1283 = vadd.f32 %v995, %v1282
        %1284 = vmatprep.mubr.f32.mxu0 0.0
        %1285 = vmatmul.mubr.f32.gmra.mrb[0].mxu0 %v551
        %v1286 = vpop.f32.mrb[0].mxu0
        %v1287 = vadd.f32 %v991, %v1286
        %v1288 = vpop.f32.mrb[0].mxu0
        %v1289 = vadd.f32 %v995, %v1288
        %1290 = vmatprep.mubr.f32.mxu0 0.0
        %1291 = vmatmul.mubr.f32.gmra.mrb[0].mxu0 %v552
        %v1292 = vpop.f32.mrb[0].mxu0
        %v1293 = vadd.f32 %v991, %v1292
        %v1294 = vpop.f32.mrb[0].mxu0
        %v1295 = vadd.f32 %v995, %v1294
        %1296 = vmatprep.mubr.f32.mxu0 0.0
        %1297 = vmatmul.mubr.f32.gmra.mrb[0].mxu0 %v553
        %v1298 = vpop.f32.mrb[0].mxu0
        %v1299 = vadd.f32 %v991, %v1298
        %v1300 = vpop.f32.mrb[0].mxu0
        %v1301 = vadd.f32 %v995, %v1300
        %1302 = vmatprep.mubr.f32.mxu0 0.0
        %1303 = vmatmul.mubr.f32.gmra.mrb[0].mxu0 %v554
        %v1304 = vpop.f32.mrb[0].mxu0
        %v1305 = vadd.f32 %v991, %v1304
        %v1306 = vpop.f32.mrb[0].mxu0
        %v1307 = vadd.f32 %v995, %v1306
        %1308 = vmatprep.mubr.f32.mxu0 0.0
        %1309 = vmatmul.mubr.f32.gmra.mrb[0].mxu0 %v555
        %v1310 = vpop.f32.mrb[0].mxu0
        %v1311 = vadd.f32 %v991, %v1310
        %v1312 = vpop.f32.mrb[0].mxu0
        %v1313 = vadd.f32 %v995, %v1312
        %1314 = vmatprep.mubr.f32.mxu0 0.0
        %1315 = vmatmul.mubr.f32.gmra.mrb[0].mxu0 %v556
        %v1316 = vpop.f32.mrb[0].mxu0
        %v1317 = vadd.f32 %v991, %v1316
        %v1318 = vpop.f32.mrb[0].mxu0
        %v1319 = vadd.f32 %v995, %v1318
        %1320 = vmatprep.mubr.f32.mxu0 0.0
        %1321 = vmatmul.mubr.f32.gmra.mrb[0].mxu0 %v557
        %v1322 = vpop.f32.mrb[0].mxu0
        %v1323 = vadd.f32 %v991, %v1322
        %v1324 = vpop.f32.mrb[0].mxu0
        %v1325 = vadd.f32 %v995, %v1324
        %1326 = vmatprep.mubr.f32.mxu0 0.0
        %1327 = vmatmul.mubr.f32.gmra.mrb[0].mxu0 %v558
        %v1328 = vpop.f32.mrb[0].mxu0
        %v1329 = vadd.f32 %v991, %v1328
        %v1330 = vpop.f32.mrb[0].mxu0
        %v1331 = vadd.f32 %v995, %v1330
        %1332 = vmatprep.mubr.f32.mxu0 0.0
        %1333 = vmatmul.mubr.f32.gmra.mrb[0].mxu0 %v559
        %v1334 = vpop.f32.mrb[0].mxu0
        %v1335 = vadd.f32 %v991, %v1334
        %v1336 = vpop.f32.mrb[0].mxu0
        %v1337 = vadd.f32 %v995, %v1336
        %1338 = vmatprep.mubr.f32.mxu0 0.0
        %1339 = vmatmul.mubr.f32.gmra.mrb[0].mxu0 %v560
        %v1340 = vpop.f32.mrb[0].mxu0
        %v1341 = vadd.f32 %v991, %v1340
        %v1342 = vpop.f32.mrb[0].mxu0
        %v1343 = vadd.f32 %v995, %v1342
        %1344 = vmatprep.mubr.f32.mxu0 0.0
        %1345 = vmatmul.mubr.f32.gmra.mrb[0].mxu0 %v561
        %v1346 = vpop.f32.mrb[0].mxu0
        %v1347 = vadd.f32 %v991, %v1346
        %v1348 = vpop.f32.mrb[0].mxu0
        %v1349 = vadd.f32 %v995, %v1348
        %1350 = vmatprep.mubr.f32.mxu0 0.0
        %1351 = vmatmul.mubr.f32.gmra.mrb[0].mxu0 %v562
        %v1352 = vpop.f32.mrb[0].mxu0
        %v1353 = vadd.f32 %v991, %v1352
        %v1354 = vpop.f32.mrb[0].mxu0
        %v1355 = vadd.f32 %v995, %v1354
        %1356 = vmatprep.mubr.f32.mxu0 0.0
        %1357 = vmatmul.mubr.f32.gmra.mrb[0].mxu0 %v563
        %v1358 = vpop.f32.mrb[0].mxu0
        %v1359 = vadd.f32 %v991, %v1358
        %v1360 = vpop.f32.mrb[0].mxu0
        %v1361 = vadd.f32 %v995, %v1360
        %1362 = vmatprep.mubr.f32.mxu0 0.0
        %1363 = vmatmul.mubr.f32.gmra.mrb[0].mxu0 %v564
        %v1364 = vpop.f32.mrb[0].mxu0
        %v1365 = vadd.f32 %v991, %v1364
        %v1366 = vpop.f32.mrb[0].mxu0
        %v1367 = vadd.f32 %v995, %v1366
        %1368 = vmatprep.mubr.f32.mxu0 0.0
        %1369 = vmatmul.mubr.f32.gmra.mrb[0].mxu0 %v565
        %v1370 = vpop.f32.mrb[0].mxu0
        %v1371 = vadd.f32 %v991, %v1370
        %v1372 = vpop.f32.mrb[0].mxu0
        %v1373 = vadd.f32 %v995, %v1372
        %1374 = vmatprep.mubr.f32.mxu0 0.0
        %1375 = vmatmul.mubr.f32.gmra.mrb[0].mxu0 %v566
        %v1376 = vpop.f32.mrb[0].mxu0
        %v1377 = vadd.f32 %v991, %v1376
        %v1378 = vpop.f32.mrb[0].mxu0
        %v1379 = vadd.f32 %v995, %v1378
        %1380 = vmatprep.mubr.f32.mxu0 0.0
        %1381 = vmatmul.mubr.f32.gmra.mrb[0].mxu0 %v567
        %v1382 = vpop.f32.mrb[0].mxu0
        %v1383 = vadd.f32 %v991, %v1382
        %v1384 = vpop.f32.mrb[0].mxu0
        %v1385 = vadd.f32 %v995, %v1384
        %1386 = vmatprep.mubr.f32.mxu0 0.0
        %1387 = vmatmul.mubr.f32.gmra.mrb[0].mxu0 %v568
        %v1388 = vpop.f32.mrb[0].mxu0
        %v1389 = vadd.f32 %v991, %v1388
        %v1390 = vpop.f32.mrb[0].mxu0
        %v1391 = vadd.f32 %v995, %v1390
        %1392 = vmatprep.mubr.f32.mxu0 0.0
        %1393 = vmatmul.mubr.f32.gmra.mrb[0].mxu0 %v569
        %v1394 = vpop.f32.mrb[0].mxu0
        %v1395 = vadd.f32 %v991, %v1394
        %v1396 = vpop.f32.mrb[0].mxu0
        %v1397 = vadd.f32 %v995, %v1396
        %1398 = vmatprep.mubr.f32.mxu0 0.0
        %1399 = vmatmul.mubr.f32.gmra.mrb[0].mxu0 %v570
        %v1400 = vpop.f32.mrb[0].mxu0
        %v1401 = vadd.f32 %v991, %v1400
        %v1402 = vpop.f32.mrb[0].mxu0
        %v1403 = vadd.f32 %v995, %v1402
        %1404 = vmatprep.mubr.f32.mxu0 0.0
        %1405 = vmatmul.mubr.f32.gmra.mrb[0].mxu0 %v571
        %v1406 = vpop.f32.mrb[0].mxu0
        %v1407 = vadd.f32 %v991, %v1406
        %v1408 = vpop.f32.mrb[0].mxu0
        %v1409 = vadd.f32 %v995, %v1408
        %1410 = vmatprep.mubr.f32.mxu0 0.0
        %1411 = vmatmul.mubr.f32.gmra.mrb[0].mxu0 %v572
        %v1412 = vpop.f32.mrb[0].mxu0
        %v1413 = vadd.f32 %v991, %v1412
        %v1414 = vpop.f32.mrb[0].mxu0
        %v1415 = vadd.f32 %v995, %v1414
        %1416 = vmatprep.mubr.f32.mxu0 0.0
        %1417 = vmatmul.mubr.f32.gmra.mrb[0].mxu0 %v573
        %v1418 = vpop.f32.mrb[0].mxu0
        %v1419 = vadd.f32 %v991, %v1418
        %v1420 = vpop.f32.mrb[0].mxu0
        %v1421 = vadd.f32 %v995, %v1420
        %1422 = vmatprep.mubr.f32.mxu0 0.0
        %1423 = vmatmul.mubr.f32.gmra.mrb[0].mxu0 %v574
        %v1424 = vpop.f32.mrb[0].mxu0
        %v1425 = vadd.f32 %v991, %v1424
        %v1426 = vpop.f32.mrb[0].mxu0
        %v1427 = vadd.f32 %v995, %v1426
        %1428 = vmatprep.mubr.f32.mxu0 0.0
        %1429 = vmatmul.mubr.f32.gmra.mrb[0].mxu0 %v575
        %v1430 = vpop.f32.mrb[0].mxu0
        %v1431 = vadd.f32 %v991, %v1430
        %v1432 = vpop.f32.mrb[0].mxu0
        %v1433 = vadd.f32 %v995, %v1432
        %1434 = vmatprep.mubr.f32.mxu0 0.0
        %1435 = vmatmul.mubr.f32.gmra.mrb[0].mxu0 %v576
        %v1436 = vpop.f32.mrb[0].mxu0
        %v1437 = vadd.f32 %v991, %v1436
        %v1438 = vpop.f32.mrb[0].mxu0
        %v1439 = vadd.f32 %v995, %v1438
        %1440 = vmatprep.mubr.f32.mxu0 0.0
        %1441 = vmatmul.mubr.f32.gmra.mrb[0].mxu0 %v577
        %v1442 = vpop.f32.mrb[0].mxu0
        %v1443 = vadd.f32 %v991, %v1442
        %v1444 = vpop.f32.mrb[0].mxu0
        %v1445 = vadd.f32 %v995, %v1444
        %1446 = vmatprep.mubr.f32.mxu0 0.0
        %1447 = vmatmul.mubr.f32.gmra.mrb[0].mxu0 %v578
        %v1448 = vpop.f32.mrb[0].mxu0
        %v1449 = vadd.f32 %v991, %v1448
        %v1450 = vpop.f32.mrb[0].mxu0
        %v1451 = vadd.f32 %v995, %v1450
        %1452 = vmatprep.mubr.f32.mxu0 0.0
        %1453 = vmatmul.mubr.f32.gmra.mrb[0].mxu0 %v579
        %v1454 = vpop.f32.mrb[0].mxu0
        %v1455 = vadd.f32 %v991, %v1454
        %v1456 = vpop.f32.mrb[0].mxu0
        %v1457 = vadd.f32 %v995, %v1456
        %1458 = vmatprep.mubr.f32.mxu0 0.0
        %1459 = vmatmul.mubr.f32.gmra.mrb[0].mxu0 %v580
        %v1460 = vpop.f32.mrb[0].mxu0
        %v1461 = vadd.f32 %v991, %v1460
        %v1462 = vpop.f32.mrb[0].mxu0
        %v1463 = vadd.f32 %v995, %v1462
        %1464 = vmatprep.mubr.f32.mxu0 0.0
        %1465 = vmatmul.mubr.f32.gmra.mrb[0].mxu0 %v581
        %v1466 = vpop.f32.mrb[0].mxu0
        %v1467 = vadd.f32 %v991, %v1466
        %v1468 = vpop.f32.mrb[0].mxu0
        %v1469 = vadd.f32 %v995, %v1468
        %1470 = vmatprep.mubr.f32.mxu0 0.0
        %1471 = vmatmul.mubr.f32.gmra.mrb[0].mxu0 %v582
        %v1472 = vpop.f32.mrb[0].mxu0
        %v1473 = vadd.f32 %v991, %v1472
        %v1474 = vpop.f32.mrb[0].mxu0
        %v1475 = vadd.f32 %v995, %v1474
        %1476 = vmatprep.mubr.f32.mxu0 0.0
        %1477 = vmatmul.mubr.f32.gmra.mrb[0].mxu0 %v583
        %v1478 = vpop.f32.mrb[0].mxu0
        %v1479 = vadd.f32 %v991, %v1478
        %v1480 = vpop.f32.mrb[0].mxu0
        %v1481 = vadd.f32 %v995, %v1480
        %1482 = vmatprep.mubr.f32.mxu0 0.0
        %1483 = vmatmul.mubr.f32.gmra.mrb[0].mxu0 %v584
        %v1484 = vpop.f32.mrb[0].mxu0
        %v1485 = vadd.f32 %v991, %v1484
        %v1486 = vpop.f32.mrb[0].mxu0
        %v1487 = vadd.f32 %v995, %v1486
        %1488 = vmatprep.mubr.f32.mxu0 0.0
        %1489 = vmatmul.mubr.f32.gmra.mrb[0].mxu0 %v585
        %v1490 = vpop.f32.mrb[0].mxu0
        %v1491 = vadd.f32 %v991, %v1490
        %v1492 = vpop.f32.mrb[0].mxu0
        %v1493 = vadd.f32 %v995, %v1492
        %1494 = vmatprep.mubr.f32.mxu0 0.0
        %1495 = vmatmul.mubr.f32.gmra.mrb[0].mxu0 %v586
        %v1496 = vpop.f32.mrb[0].mxu0
        %v1497 = vadd.f32 %v991, %v1496
        %v1498 = vpop.f32.mrb[0].mxu0
        %v1499 = vadd.f32 %v995, %v1498
        %1500 = vmatprep.mubr.f32.mxu0 0.0
        %1501 = vmatmul.mubr.f32.gmra.mrb[0].mxu0 %v587
        %v1502 = vpop.f32.mrb[0].mxu0
        %v1503 = vadd.f32 %v991, %v1502
        %v1504 = vpop.f32.mrb[0].mxu0
        %v1505 = vadd.f32 %v995, %v1504
        %1506 = vmatprep.mubr.f32.mxu0 0.0
        %1507 = vmatmul.mubr.f32.gmra.mrb[0].mxu0 %v588
        %v1508 = vpop.f32.mrb[0].mxu0
        %v1509 = vadd.f32 %v991, %v1508
        %v1510 = vpop.f32.mrb[0].mxu0
        %v1511 = vadd.f32 %v995, %v1510
        %1512 = vmatprep.mubr.f32.mxu0 0.0
        %1513 = vmatmul.mubr.f32.gmra.mrb[0].mxu0 %v589
        %v1514 = vpop.f32.mrb[0].mxu0
        %v1515 = vadd.f32 %v991, %v1514
        %v1516 = vpop.f32.mrb[0].mxu0
        %v1517 = vadd.f32 %v995, %v1516
        %1518 = vmatprep.mubr.f32.mxu0 0.0
        %1519 = vmatmul.mubr.f32.gmra.mrb[0].mxu0 %v590
        %v1520 = vpop.f32.mrb[0].mxu0
        %v1521 = vadd.f32 %v991, %v1520
        %v1522 = vpop.f32.mrb[0].mxu0
        %v1523 = vadd.f32 %v995, %v1522
        %1524 = vmatprep.mubr.f32.mxu0 0.0
        %1525 = vmatmul.mubr.f32.gmra.mrb[0].mxu0 %v591
        %v1526 = vpop.f32.mrb[0].mxu0
        %v1527 = vadd.f32 %v991, %v1526
        %v1528 = vpop.f32.mrb[0].mxu0
        %v1529 = vadd.f32 %v995, %v1528
        %1530 = vmatprep.mubr.f32.mxu0 0.0
        %1531 = vmatmul.mubr.f32.gmra.mrb[0].mxu0 %v592
        %v1532 = vpop.f32.mrb[0].mxu0
        %v1533 = vadd.f32 %v991, %v1532
        %v1534 = vpop.f32.mrb[0].mxu0
        %v1535 = vadd.f32 %v995, %v1534
        %1536 = vmatprep.mubr.f32.mxu0 0.0
        %1537 = vmatmul.mubr.f32.gmra.mrb[0].mxu0 %v593
        %v1538 = vpop.f32.mrb[0].mxu0
        %v1539 = vadd.f32 %v991, %v1538
        %v1540 = vpop.f32.mrb[0].mxu0
        %v1541 = vadd.f32 %v995, %v1540
        %1542 = vmatprep.mubr.f32.mxu0 0.0
        %1543 = vmatmul.mubr.f32.gmra.mrb[0].mxu0 %v594
        %v1544 = vpop.f32.mrb[0].mxu0
        %v1545 = vadd.f32 %v991, %v1544
        %v1546 = vpop.f32.mrb[0].mxu0
        %v1547 = vadd.f32 %v995, %v1546
        %1548 = vmatprep.mubr.f32.mxu0 0.0
        %1549 = vmatmul.mubr.f32.gmra.mrb[0].mxu0 %v595
        %v1550 = vpop.f32.mrb[0].mxu0
        %v1551 = vadd.f32 %v991, %v1550
        %v1552 = vpop.f32.mrb[0].mxu0
        %v1553 = vadd.f32 %v995, %v1552
        %1554 = vmatprep.mubr.f32.mxu0 0.0
        %1555 = vmatmul.mubr.f32.gmra.mrb[0].mxu0 %v596
        %v1556 = vpop.f32.mrb[0].mxu0
        %v1557 = vadd.f32 %v991, %v1556
        %v1558 = vpop.f32.mrb[0].mxu0
        %v1559 = vadd.f32 %v995, %v1558
        %1560 = vmatprep.mubr.f32.mxu0 0.0
        %1561 = vmatmul.mubr.f32.gmra.mrb[0].mxu0 %v597
        %v1562 = vpop.f32.mrb[0].mxu0
        %v1563 = vadd.f32 %v991, %v1562
        %v1564 = vpop.f32.mrb[0].mxu0
        %v1565 = vadd.f32 %v995, %v1564
        %1566 = vmatprep.mubr.f32.mxu0 0.0
        %1567 = vmatmul.mubr.f32.gmra.mrb[0].mxu0 %v598
        %v1568 = vpop.f32.mrb[0].mxu0
        %v1569 = vadd.f32 %v991, %v1568
        %v1570 = vpop.f32.mrb[0].mxu0
        %v1571 = vadd.f32 %v995, %v1570
        %1572 = vmatprep.mubr.f32.mxu0 0.0
        %1573 = vmatmul.mubr.f32.gmra.mrb[0].mxu0 %v599
        %v1574 = vpop.f32.mrb[0].mxu0
        %v1575 = vadd.f32 %v991, %v1574
        %v1576 = vpop.f32.mrb[0].mxu0
        %v1577 = vadd.f32 %v995, %v1576
        %1578 = vmatprep.mubr.f32.mxu0 0.0
        %1579 = vmatmul.mubr.f32.gmra.mrb[0].mxu0 %v600
        %v1580 = vpop.f32.mrb[0].mxu0
        %v1581 = vadd.f32 %v991, %v1580
        %v1582 = vpop.f32.mrb[0].mxu0
        %v1583 = vadd.f32 %v995, %v1582
        %1584 = vmatprep.mubr.f32.mxu0 0.0
        %1585 = vmatmul.mubr.f32.gmra.mrb[0].mxu0 %v601
        %v1586 = vpop.f32.mrb[0].mxu0
        %v1587 = vadd.f32 %v991, %v1586
        %v1588 = vpop.f32.mrb[0].mxu0
        %v1589 = vadd.f32 %v995, %v1588
        %1590 = vmatprep.mubr.f32.mxu0 0.0
        %1591 = vmatmul.mubr.f32.gmra.mrb[0].mxu0 %v602
        %v1592 = vpop.f32.mrb[0].mxu0
        %v1593 = vadd.f32 %v991, %v1592
        %v1594 = vpop.f32.mrb[0].mxu0
        %v1595 = vadd.f32 %v995, %v1594
        %1596 = vmatprep.mubr.f32.mxu0 0.0
        %1597 = vmatmul.mubr.f32.gmra.mrb[0].mxu0 %v603
        %v1598 = vpop.f32.mrb[0].mxu0
        %v1599 = vadd.f32 %v991, %v1598
        %v1600 = vpop.f32.mrb[0].mxu0
        %v1601 = vadd.f32 %v995, %v1600
        %1602 = vmatprep.mubr.f32.mxu0 0.0
        %1603 = vmatmul.mubr.f32.gmra.mrb[0].mxu0 %v604
        %v1604 = vpop.f32.mrb[0].mxu0
        %v1605 = vadd.f32 %v991, %v1604
        %v1606 = vpop.f32.mrb[0].mxu0
        %v1607 = vadd.f32 %v995, %v1606
        %1608 = vmatprep.mubr.f32.mxu0 0.0
        %1609 = vmatmul.mubr.f32.gmra.mrb[0].mxu0 %v605
        %v1610 = vpop.f32.mrb[0].mxu0
        %v1611 = vadd.f32 %v991, %v1610
        %v1612 = vpop.f32.mrb[0].mxu0
        %v1613 = vadd.f32 %v995, %v1612
        %1614 = vmatprep.mubr.f32.mxu0 0.0
        %1615 = vmatmul.mubr.f32.gmra.mrb[0].mxu0 %v606
        %v1616 = vpop.f32.mrb[0].mxu0
        %v1617 = vadd.f32 %v991, %v1616
        %v1618 = vpop.f32.mrb[0].mxu0
        %v1619 = vadd.f32 %v995, %v1618
        %1620 = vmatprep.mubr.f32.mxu0 0.0
        %1621 = vmatmul.mubr.f32.gmra.mrb[0].mxu0 %v607
        %v1622 = vpop.f32.mrb[0].mxu0
        %v1623 = vadd.f32 %v991, %v1622
        %v1624 = vpop.f32.mrb[0].mxu0
        %v1625 = vadd.f32 %v995, %v1624
        %1626 = vmatprep.mubr.f32.mxu0 0.0
        %1627 = vmatmul.mubr.f32.gmra.mrb[0].mxu0 %v608
        %v1628 = vpop.f32.mrb[0].mxu0
        %v1629 = vadd.f32 %v991, %v1628
        %v1630 = vpop.f32.mrb[0].mxu0
        %v1631 = vadd.f32 %v995, %v1630
        %1632 = vmatprep.mubr.f32.mxu0 0.0
        %1633 = vmatmul.mubr.f32.gmra.mrb[0].mxu0 %v609
        %v1634 = vpop.f32.mrb[0].mxu0
        %v1635 = vadd.f32 %v991, %v1634
        %v1636 = vpop.f32.mrb[0].mxu0
        %v1637 = vadd.f32 %v995, %v1636
        %1638 = vmatprep.mubr.f32.mxu0 0.0
        %1639 = vmatmul.mubr.f32.gmra.mrb[0].mxu0 %v610
        %v1640 = vpop.f32.mrb[0].mxu0
        %v1641 = vadd.f32 %v991, %v1640
        %v1642 = vpop.f32.mrb[0].mxu0
        %v1643 = vadd.f32 %v995, %v1642
        %1644 = vmatprep.mubr.f32.mxu0 0.0
        %1645 = vmatmul.mubr.f32.gmra.mrb[0].mxu0 %v611
        %v1646 = vpop.f32.mrb[0].mxu0
        %v1647 = vadd.f32 %v991, %v1646
        %v1648 = vpop.f32.mrb[0].mxu0
        %v1649 = vadd.f32 %v995, %v1648
        %1650 = vmatprep.mubr.f32.mxu0 0.0
        %1651 = vmatmul.mubr.f32.gmra.mrb[0].mxu0 %v612
        %v1652 = vpop.f32.mrb[0].mxu0
        %v1653 = vadd.f32 %v991, %v1652
        %v1654 = vpop.f32.mrb[0].mxu0
        %v1655 = vadd.f32 %v995, %v1654
        %1656 = vmatprep.mubr.f32.mxu0 0.0
        %1657 = vmatmul.mubr.f32.gmra.mrb[0].mxu0 %v613
        %v1658 = vpop.f32.mrb[0].mxu0
        %v1659 = vadd.f32 %v991, %v1658
        %v1660 = vpop.f32.mrb[0].mxu0
        %v1661 = vadd.f32 %v995, %v1660
        %1662 = vmatprep.mubr.f32.mxu0 0.0
        %1663 = vmatmul.mubr.f32.gmra.mrb[0].mxu0 %v614
        %v1664 = vpop.f32.mrb[0].mxu0
        %v1665 = vadd.f32 %v991, %v1664
        %v1666 = vpop.f32.mrb[0].mxu0
        %v1667 = vadd.f32 %v995, %v1666
        %1668 = vmatprep.mubr.f32.mxu0 0.0
        %1669 = vmatmul.mubr.f32.gmra.mrb[0].mxu0 %v615
        %v1670 = vpop.f32.mrb[0].mxu0
        %v1671 = vadd.f32 %v991, %v1670
        %v1672 = vpop.f32.mrb[0].mxu0
        %v1673 = vadd.f32 %v995, %v1672
        %1674 = vmatprep.mubr.f32.mxu0 0.0
        %1675 = vmatmul.mubr.f32.gmra.mrb[0].mxu0 %v616
        %v1676 = vpop.f32.mrb[0].mxu0
        %v1677 = vadd.f32 %v991, %v1676
        %v1678 = vpop.f32.mrb[0].mxu0
        %v1679 = vadd.f32 %v995, %v1678
        %1680 = vmatprep.mubr.f32.mxu0 0.0
        %1681 = vmatmul.mubr.f32.gmra.mrb[0].mxu0 %v617
        %v1682 = vpop.f32.mrb[0].mxu0
        %v1683 = vadd.f32 %v991, %v1682
        %v1684 = vpop.f32.mrb[0].mxu0
        %v1685 = vadd.f32 %v995, %v1684
        %1686 = vmatprep.mubr.f32.mxu0 0.0
        %1687 = vmatmul.mubr.f32.gmra.mrb[0].mxu0 %v618
        %v1688 = vpop.f32.mrb[0].mxu0
        %v1689 = vadd.f32 %v991, %v1688
        %v1690 = vpop.f32.mrb[0].mxu0
        %v1691 = vadd.f32 %v995, %v1690
        %1692 = vmatprep.mubr.f32.mxu0 0.0
        %1693 = vmatmul.mubr.f32.gmra.mrb[0].mxu0 %v619
        %v1694 = vpop.f32.mrb[0].mxu0
        %v1695 = vadd.f32 %v991, %v1694
        %v1696 = vpop.f32.mrb[0].mxu0
        %v1697 = vadd.f32 %v995, %v1696
        %1698 = vmatprep.mubr.f32.mxu0 0.0
        %1699 = vmatmul.mubr.f32.gmra.mrb[0].mxu0 %v620
        %v1700 = vpop.f32.mrb[0].mxu0
        %v1701 = vadd.f32 %v991, %v1700
        %v1702 = vpop.f32.mrb[0].mxu0
        %v1703 = vadd.f32 %v995, %v1702
        %1704 = vmatprep.mubr.f32.mxu0 0.0
        %1705 = vmatmul.mubr.f32.gmra.mrb[0].mxu0 %v621
        %v1706 = vpop.f32.mrb[0].mxu0
        %v1707 = vadd.f32 %v991, %v1706
        %v1708 = vpop.f32.mrb[0].mxu0
        %v1709 = vadd.f32 %v995, %v1708
        %1710 = vmatprep.mubr.f32.mxu0 0.0
        %1711 = vmatmul.mubr.f32.gmra.mrb[0].mxu0 %v622
        %v1712 = vpop.f32.mrb[0].mxu0
        %v1713 = vadd.f32 %v991, %v1712
        %v1714 = vpop.f32.mrb[0].mxu0
        %v1715 = vadd.f32 %v995, %v1714
        %1716 = vmatprep.mubr.f32.mxu0 0.0
        %1717 = vmatmul.mubr.f32.gmra.mrb[0].mxu0 %v623
        %v1718 = vpop.f32.mrb[0].mxu0
        %v1719 = vadd.f32 %v991, %v1718
        %v1720 = vpop.f32.mrb[0].mxu0
        %v1721 = vadd.f32 %v995, %v1720
        %1722 = vmatprep.mubr.f32.mxu0 0.0
        %1723 = vmatmul.mubr.f32.gmra.mrb[0].mxu0 %v624
        %v1724 = vpop.f32.mrb[0].mxu0
        %v1725 = vadd.f32 %v991, %v1724
        %v1726 = vpop.f32.mrb[0].mxu0
        %v1727 = vadd.f32 %v995, %v1726
        %1728 = vmatprep.mubr.f32.mxu0 0.0
        %1729 = vmatmul.mubr.f32.gmra.mrb[0].mxu0 %v625
        %v1730 = vpop.f32.mrb[0].mxu0
        %v1731 = vadd.f32 %v991, %v1730
        %v1732 = vpop.f32.mrb[0].mxu0
        %v1733 = vadd.f32 %v995, %v1732
        %1734 = vmatprep.mubr.f32.mxu0 0.0
        %1735 = vmatmul.mubr.f32.gmra.mrb[0].mxu0 %v626
        %v1736 = vpop.f32.mrb[0].mxu0
        %v1737 = vadd.f32 %v991, %v1736
        %v1738 = vpop.f32.mrb[0].mxu0
        %v1739 = vadd.f32 %v995, %v1738
        %1740 = vmatprep.mubr.f32.mxu0 0.0
        %1741 = vmatmul.mubr.f32.gmra.mrb[0].mxu0 %v627
        %v1742 = vpop.f32.mrb[0].mxu0
        %v1743 = vadd.f32 %v991, %v1742
        %v1744 = vpop.f32.mrb[0].mxu0
        %v1745 = vadd.f32 %v995, %v1744
        %1746 = vmatprep.mubr.f32.mxu0 0.0
        %1747 = vmatmul.mubr.f32.gmra.mrb[0].mxu0 %v628
        %v1748 = vpop.f32.mrb[0].mxu0
        %v1749 = vadd.f32 %v991, %v1748
        %v1750 = vpop.f32.mrb[0].mxu0
        %v1751 = vadd.f32 %v995, %v1750
        %1752 = vmatprep.mubr.f32.mxu0 0.0
        %1753 = vmatmul.mubr.f32.gmra.mrb[0].mxu0 %v629
        %v1754 = vpop.f32.mrb[0].mxu0
        %v1755 = vadd.f32 %v991, %v1754
        %v1756 = vpop.f32.mrb[0].mxu0
        %v1757 = vadd.f32 %v995, %v1756
        %1758 = vmatprep.mubr.f32.mxu0 0.0
        %1759 = vmatmul.mubr.f32.gmra.mrb[0].mxu0 %v630
        %v1760 = vpop.f32.mrb[0].mxu0
        %v1761 = vadd.f32 %v991, %v1760
        %v1762 = vpop.f32.mrb[0].mxu0
        %v1763 = vadd.f32 %v995, %v1762
        %1764 = vmatprep.mubr.f32.mxu0 0.0
        %1765 = vmatmul.mubr.f32.gmra.mrb[0].mxu0 %v631
        %v1766 = vpop.f32.mrb[0].mxu0
        %v1767 = vadd.f32 %v991, %v1766
        %v1768 = vpop.f32.mrb[0].mxu0
        %v1769 = vadd.f32 %v995, %v1768
        %1770 = vmatprep.mubr.f32.mxu0 0.0
        %1771 = vmatmul.mubr.f32.gmra.mrb[0].mxu0 %v632
        %v1772 = vpop.f32.mrb[0].mxu0
        %v1773 = vadd.f32 %v991, %v1772
        %v1774 = vpop.f32.mrb[0].mxu0
        %v1775 = vadd.f32 %v995, %v1774
        %1776 = vmatprep.mubr.f32.mxu0 0.0
        %1777 = vmatmul.mubr.f32.gmra.mrb[0].mxu0 %v633
        %v1778 = vpop.f32.mrb[0].mxu0
        %v1779 = vadd.f32 %v991, %v1778
        %v1780 = vpop.f32.mrb[0].mxu0
        %v1781 = vadd.f32 %v995, %v1780
        %1782 = vmatprep.mubr.f32.mxu0 0.0
        %1783 = vmatmul.mubr.f32.gmra.mrb[0].mxu0 %v634
        %v1784 = vpop.f32.mrb[0].mxu0
        %v1785 = vadd.f32 %v991, %v1784
        %v1786 = vpop.f32.mrb[0].mxu0
        %v1787 = vadd.f32 %v995, %v1786
        %1788 = vmatprep.mubr.f32.mxu0 0.0
        %1789 = vmatmul.mubr.f32.gmra.mrb[0].mxu0 %v635
        %v1790 = vpop.f32.mrb[0].mxu0
        %v1791 = vadd.f32 %v991, %v1790
        %v1792 = vpop.f32.mrb[0].mxu0
        %v1793 = vadd.f32 %v995, %v1792
        %1794 = vmatprep.mubr.f32.mxu0 0.0
        %1795 = vmatmul.mubr.f32.gmra.mrb[0].mxu0 %v636
        %v1796 = vpop.f32.mrb[0].mxu0
        %v1797 = vadd.f32 %v991, %v1796
        %v1798 = vpop.f32.mrb[0].mxu0
        %v1799 = vadd.f32 %v995, %v1798
        %1800 = vmatprep.mubr.f32.mxu0 0.0
        %1801 = vmatmul.mubr.f32.gmra.mrb[0].mxu0 %v637
        %v1802 = vpop.f32.mrb[0].mxu0
        %v1803 = vadd.f32 %v991, %v1802
        %v1804 = vpop.f32.mrb[0].mxu0
        %v1805 = vadd.f32 %v995, %v1804
        %1806 = vmatprep.mubr.f32.mxu0 0.0
        %1807 = vmatmul.mubr.f32.gmra.mrb[0].mxu0 %v638
        %v1808 = vpop.f32.mrb[0].mxu0
        %v1809 = vadd.f32 %v991, %v1808
        %v1810 = vpop.f32.mrb[0].mxu0
        %v1811 = vadd.f32 %v995, %v1810
        %1812 = vmatprep.mubr.f32.mxu0 0.0
        %1813 = vmatmul.mubr.f32.gmra.mrb[0].mxu0 %v639
        %v1814 = vpop.f32.mrb[0].mxu0
        %v1815 = vadd.f32 %v991, %v1814
        %v1816 = vpop.f32.mrb[0].mxu0
        %v1817 = vadd.f32 %v995, %v1816
        %1818 = vmatprep.mubr.f32.mxu0 0.0
        %1819 = vmatmul.mubr.f32.gmra.mrb[0].mxu0 %v640
        %v1820 = vpop.f32.mrb[0].mxu0
        %v1821 = vadd.f32 %v991, %v1820
        %v1822 = vpop.f32.mrb[0].mxu0
        %v1823 = vadd.f32 %v995, %v1822
        %1824 = vmatprep.mubr.f32.mxu0 0.0
        %1825 = vmatmul.mubr.f32.gmra.mrb[0].mxu0 %v641
        %v1826 = vpop.f32.mrb[0].mxu0
        %v1827 = vadd.f32 %v991, %v1826
        %v1828 = vpop.f32.mrb[0].mxu0
        %v1829 = vadd.f32 %v995, %v1828
        %1830 = vmatprep.mubr.f32.mxu0 0.0
        %1831 = vmatmul.mubr.f32.gmra.mrb[0].mxu0 %v642
        %v1832 = vpop.f32.mrb[0].mxu0
        %v1833 = vadd.f32 %v991, %v1832
        %v1834 = vpop.f32.mrb[0].mxu0
        %v1835 = vadd.f32 %v995, %v1834
        %1836 = vmatprep.mubr.f32.mxu0 0.0
        %1837 = vmatmul.mubr.f32.gmra.mrb[0].mxu0 %v643
        %v1838 = vpop.f32.mrb[0].mxu0
        %v1839 = vadd.f32 %v991, %v1838
        %v1840 = vpop.f32.mrb[0].mxu0
        %v1841 = vadd.f32 %v995, %v1840
        %1842 = vmatprep.mubr.f32.mxu0 0.0
        %1843 = vmatmul.mubr.f32.gmra.mrb[0].mxu0 %v644
        %v1844 = vpop.f32.mrb[0].mxu0
        %v1845 = vadd.f32 %v991, %v1844
        %v1846 = vpop.f32.mrb[0].mxu0
        %v1847 = vadd.f32 %v995, %v1846
        %1848 = vmatprep.mubr.f32.mxu0 0.0
        %1849 = vmatmul.mubr.f32.gmra.mrb[0].mxu0 %v645
        %v1850 = vpop.f32.mrb[0].mxu0
        %v1851 = vadd.f32 %v991, %v1850
        %v1852 = vpop.f32.mrb[0].mxu0
        %v1853 = vadd.f32 %v995, %v1852
        %1854 = vmatprep.mubr.f32.mxu0 0.0
        %1855 = vmatmul.mubr.f32.gmra.mrb[0].mxu0 %v646
        %v1856 = vpop.f32.mrb[0].mxu0
        %v1857 = vadd.f32 %v991, %v1856
        %v1858 = vpop.f32.mrb[0].mxu0
        %v1859 = vadd.f32 %v995, %v1858
        %1860 = vmatprep.mubr.f32.mxu0 0.0
        %1861 = vmatmul.mubr.f32.gmra.mrb[0].mxu0 %v647
        %v1862 = vpop.f32.mrb[0].mxu0
        %v1863 = vadd.f32 %v991, %v1862
        %v1864 = vpop.f32.mrb[0].mxu0
        %v1865 = vadd.f32 %v995, %v1864
        %1866 = vmatprep.mubr.f32.mxu0 0.0
        %1867 = vmatmul.mubr.f32.gmra.mrb[0].mxu0 %v648
        %v1868 = vpop.f32.mrb[0].mxu0
        %v1869 = vadd.f32 %v991, %v1868
        %v1870 = vpop.f32.mrb[0].mxu0
        %v1871 = vadd.f32 %v995, %v1870
        %1872 = vmatprep.mubr.f32.mxu0 0.0
        %1873 = vmatmul.mubr.f32.gmra.mrb[0].mxu0 %v649
        %v1874 = vpop.f32.mrb[0].mxu0
        %v1875 = vadd.f32 %v991, %v1874
        %v1876 = vpop.f32.mrb[0].mxu0
        %v1877 = vadd.f32 %v995, %v1876
        %1878 = vmatprep.mubr.f32.mxu0 0.0
        %1879 = vmatmul.mubr.f32.gmra.mrb[0].mxu0 %v650
        %v1880 = vpop.f32.mrb[0].mxu0
        %v1881 = vadd.f32 %v991, %v1880
        %v1882 = vpop.f32.mrb[0].mxu0
        %v1883 = vadd.f32 %v995, %v1882
        %1884 = vmatprep.mubr.f32.mxu0 0.0
        %1885 = vmatmul.mubr.f32.gmra.mrb[0].mxu0 %v651
        %v1886 = vpop.f32.mrb[0].mxu0
        %v1887 = vadd.f32 %v991, %v1886
        %v1888 = vpop.f32.mrb[0].mxu0
        %v1889 = vadd.f32 %v995, %v1888
        %1890 = vmatprep.mubr.f32.mxu0 0.0
        %1891 = vmatmul.mubr.f32.gmra.mrb[0].mxu0 %v652
        %v1892 = vpop.f32.mrb[0].mxu0
        %v1893 = vadd.f32 %v991, %v1892
        %v1894 = vpop.f32.mrb[0].mxu0
        %v1895 = vadd.f32 %v995, %v1894
        %1896 = vmatprep.mubr.f32.mxu0 0.0
        %1897 = vmatmul.mubr.f32.gmra.mrb[0].mxu0 %v653
        %v1898 = vpop.f32.mrb[0].mxu0
        %v1899 = vadd.f32 %v991, %v1898
        %v1900 = vpop.f32.mrb[0].mxu0
        %v1901 = vadd.f32 %v995, %v1900
        %1902 = vmatprep.mubr.f32.mxu0 0.0
        %1903 = vmatmul.mubr.f32.gmra.mrb[0].mxu0 %v654
        %v1904 = vpop.f32.mrb[0].mxu0
        %v1905 = vadd.f32 %v991, %v1904
        %v1906 = vpop.f32.mrb[0].mxu0
        %v1907 = vadd.f32 %v995, %v1906
        %1908 = vmatprep.mubr.f32.mxu0 0.0
        %1909 = vmatmul.mubr.f32.gmra.mrb[0].mxu0 %v655
        %v1910 = vpop.f32.mrb[0].mxu0
        %v1911 = vadd.f32 %v991, %v1910
        %v1912 = vpop.f32.mrb[0].mxu0
        %v1913 = vadd.f32 %v995, %v1912
        %1914 = vmatprep.mubr.f32.mxu0 0.0
        %1915 = vmatmul.mubr.f32.gmra.mrb[0].mxu0 %v656
        %v1916 = vpop.f32.mrb[0].mxu0
        %v1917 = vadd.f32 %v991, %v1916
        %v1918 = vpop.f32.mrb[0].mxu0
        %v1919 = vadd.f32 %v995, %v1918
        %1920 = vmatprep.mubr.f32.mxu0 0.0
        %1921 = vmatmul.mubr.f32.gmra.mrb[0].mxu0 %v657
        %v1922 = vpop.f32.mrb[0].mxu0
        %v1923 = vadd.f32 %v991, %v1922
        %v1924 = vpop.f32.mrb[0].mxu0
        %v1925 = vadd.f32 %v995, %v1924
        %1926 = vmatprep.mubr.f32.mxu0 0.0
        %1927 = vmatmul.mubr.f32.gmra.mrb[0].mxu0 %v658
        %v1928 = vpop.f32.mrb[0].mxu0
        %v1929 = vadd.f32 %v991, %v1928
        %v1930 = vpop.f32.mrb[0].mxu0
        %v1931 = vadd.f32 %v995, %v1930
        %1932 = vmatprep.mubr.f32.mxu0 0.0
        %1933 = vmatmul.mubr.f32.gmra.mrb[0].mxu0 %v659
        %v1934 = vpop.f32.mrb[0].mxu0
        %v1935 = vadd.f32 %v991, %v1934
        %v1936 = vpop.f32.mrb[0].mxu0
        %v1937 = vadd.f32 %v995, %v1936
        %1938 = vmatprep.mubr.f32.mxu0 0.0
        %1939 = vmatmul.mubr.f32.gmra.mrb[0].mxu0 %v660
        %v1940 = vpop.f32.mrb[0].mxu0
        %v1941 = vadd.f32 %v991, %v1940
        %v1942 = vpop.f32.mrb[0].mxu0
        %v1943 = vadd.f32 %v995, %v1942
        %1944 = vmatprep.mubr.f32.mxu0 0.0
        %1945 = vmatmul.mubr.f32.gmra.mrb[0].mxu0 %v661
        %v1946 = vpop.f32.mrb[0].mxu0
        %v1947 = vadd.f32 %v991, %v1946
        %v1948 = vpop.f32.mrb[0].mxu0
        %v1949 = vadd.f32 %v995, %v1948
        %1950 = vmatprep.mubr.f32.mxu0 0.0
        %1951 = vmatmul.mubr.f32.gmra.mrb[0].mxu0 %v662
        %v1952 = vpop.f32.mrb[0].mxu0
        %v1953 = vadd.f32 %v991, %v1952
        %v1954 = vpop.f32.mrb[0].mxu0
        %v1955 = vadd.f32 %v995, %v1954
        %1956 = vmatprep.mubr.f32.mxu0 0.0
        %1957 = vmatmul.mubr.f32.gmra.mrb[0].mxu0 %v663
        %v1958 = vpop.f32.mrb[0].mxu0
        %v1959 = vadd.f32 %v991, %v1958
        %v1960 = vpop.f32.mrb[0].mxu0
        %v1961 = vadd.f32 %v995, %v1960
        %1962 = vmatprep.mubr.f32.mxu0 0.0
        %1963 = vmatmul.mubr.f32.gmra.mrb[0].mxu0 %v664
        %v1964 = vpop.f32.mrb[0].mxu0
        %v1965 = vadd.f32 %v991, %v1964
        %v1966 = vpop.f32.mrb[0].mxu0
        %v1967 = vadd.f32 %v995, %v1966
        %1968 = vmatprep.mubr.f32.mxu0 0.0
        %1969 = vmatmul.mubr.f32.gmra.mrb[0].mxu0 %v665
        %v1970 = vpop.f32.mrb[0].mxu0
        %v1971 = vadd.f32 %v991, %v1970
        %v1972 = vpop.f32.mrb[0].mxu0
        %v1973 = vadd.f32 %v995, %v1972
        %1974 = vmatprep.mubr.f32.mxu0 0.0
        %1975 = vmatmul.mubr.f32.gmra.mrb[0].mxu0 %v666
        %v1976 = vpop.f32.mrb[0].mxu0
        %v1977 = vadd.f32 %v991, %v1976
        %v1978 = vpop.f32.mrb[0].mxu0
        %v1979 = vadd.f32 %v995, %v1978
        %1980 = vmatprep.mubr.f32.mxu0 0.0
        %1981 = vmatmul.mubr.f32.gmra.mrb[0].mxu0 %v667
        %v1982 = vpop.f32.mrb[0].mxu0
        %v1983 = vadd.f32 %v991, %v1982
        %v1984 = vpop.f32.mrb[0].mxu0
        %v1985 = vadd.f32 %v995, %v1984
        %1986 = vmatprep.mubr.f32.mxu0 0.0
        %1987 = vmatmul.mubr.f32.gmra.mrb[0].mxu0 %v668
        %v1988 = vpop.f32.mrb[0].mxu0
        %v1989 = vadd.f32 %v991, %v1988
        %v1990 = vpop.f32.mrb[0].mxu0
        %v1991 = vadd.f32 %v995, %v1990
        %1992 = vmatprep.mubr.f32.mxu0 0.0
        %1993 = vmatmul.mubr.f32.gmra.mrb[0].mxu0 %v669
        %v1994 = vpop.f32.mrb[0].mxu0
        %v1995 = vadd.f32 %v991, %v1994
        %v1996 = vpop.f32.mrb[0].mxu0
        %v1997 = vadd.f32 %v995, %v1996
        %1998 = vmatprep.mubr.f32.mxu0 0.0
        %1999 = vmatmul.mubr.f32.gmra.mrb[0].mxu0 %v670
        %v2000 = vpop.f32.mrb[0].mxu0
        %v2001 = vadd.f32 %v991, %v2000
        %v2002 = vpop.f32.mrb[0].mxu0
        %v2003 = vadd.f32 %v995, %v2002
        %2004 = vmatprep.mubr.f32.mxu0 0.0
        %2005 = vmatmul.mubr.f32.gmra.mrb[0].mxu0 %v671
        %v2006 = vpop.f32.mrb[0].mxu0
        %v2007 = vadd.f32 %v991, %v2006
        %v2008 = vpop.f32.mrb[0].mxu0
        %v2009 = vadd.f32 %v995, %v2008
        %2010 = vmatprep.mubr.f32.mxu0 0.0
        %2011 = vmatmul.mubr.f32.gmra.mrb[0].mxu0 %v672
        %v2012 = vpop.f32.mrb[0].mxu0
        %v2013 = vadd.f32 %v991, %v2012
        %v2014 = vpop.f32.mrb[0].mxu0
        %v2015 = vadd.f32 %v995, %v2014
        %2016 = vmatprep.mubr.f32.mxu0 0.0
        %2017 = vmatmul.mubr.f32.gmra.mrb[0].mxu0 %v673
        %v2018 = vpop.f32.mrb[0].mxu0
        %v2019 = vadd.f32 %v991, %v2018
        %v2020 = vpop.f32.mrb[0].mxu0
        %v2021 = vadd.f32 %v995, %v2020
        %2022 = vmatprep.mubr.f32.mxu0 0.0
        %2023 = vmatmul.mubr.f32.gmra.mrb[0].mxu0 %v674
        %v2024 = vpop.f32.mrb[0].mxu0
        %v2025 = vadd.f32 %v991, %v2024
        %v2026 = vpop.f32.mrb[0].mxu0
        %v2027 = vadd.f32 %v995, %v2026
        %2028 = vmatprep.mubr.f32.mxu0 0.0
        %2029 = vmatmul.mubr.f32.gmra.mrb[0].mxu0 %v675
        %v2030 = vpop.f32.mrb[0].mxu0
        %v2031 = vadd.f32 %v991, %v2030
        %v2032 = vpop.f32.mrb[0].mxu0
        %v2033 = vadd.f32 %v995, %v2032
        %2034 = vmatprep.mubr.f32.mxu0 0.0
        %2035 = vmatmul.mubr.f32.gmra.mrb[0].mxu0 %v676
        %v2036 = vpop.f32.mrb[0].mxu0
        %v2037 = vadd.f32 %v991, %v2036
        %v2038 = vpop.f32.mrb[0].mxu0
        %v2039 = vadd.f32 %v995, %v2038
        %2040 = vmatprep.mubr.f32.mxu0 0.0
        %2041 = vmatmul.mubr.f32.gmra.mrb[0].mxu0 %v677
        %v2042 = vpop.f32.mrb[0].mxu0
        %v2043 = vadd.f32 %v991, %v2042
        %v2044 = vpop.f32.mrb[0].mxu0
        %v2045 = vadd.f32 %v995, %v2044
        %2046 = vmatprep.mubr.f32.mxu0 0.0
        %2047 = vmatmul.mubr.f32.gmra.mrb[0].mxu0 %v678
        %v2048 = vpop.f32.mrb[0].mxu0
        %v2049 = vadd.f32 %v991, %v2048
        %v2050 = vpop.f32.mrb[0].mxu0
        %v2051 = vadd.f32 %v995, %v2050
        %2052 = vmatprep.mubr.f32.mxu0 0.0
        %2053 = vmatmul.mubr.f32.gmra.mrb[0].mxu0 %v679
        %v2054 = vpop.f32.mrb[0].mxu0
        %v2055 = vadd.f32 %v991, %v2054
        %v2056 = vpop.f32.mrb[0].mxu0
        %v2057 = vadd.f32 %v995, %v2056
        %2058 = vmatprep.mubr.f32.mxu0 0.0
        %2059 = vmatmul.mubr.f32.gmra.mrb[0].mxu0 %v680
        %v2060 = vpop.f32.mrb[0].mxu0
        %v2061 = vadd.f32 %v991, %v2060
        %v2062 = vpop.f32.mrb[0].mxu0
        %v2063 = vadd.f32 %v995, %v2062
        %2064 = vmatprep.mubr.f32.mxu0 0.0
        %2065 = vmatmul.mubr.f32.gmra.mrb[0].mxu0 %v681
        %v2066 = vpop.f32.mrb[0].mxu0
        %v2067 = vadd.f32 %v991, %v2066
        %v2068 = vpop.f32.mrb[0].mxu0
        %v2069 = vadd.f32 %v995, %v2068
        %2070 = vmatprep.mubr.f32.mxu0 0.0
        %2071 = vmatmul.mubr.f32.gmra.mrb[0].mxu0 %v682
        %v2072 = vpop.f32.mrb[0].mxu0
        %v2073 = vadd.f32 %v991, %v2072
        %v2074 = vpop.f32.mrb[0].mxu0
        %v2075 = vadd.f32 %v995, %v2074
        %2076 = vmatprep.mubr.f32.mxu0 0.0
        %2077 = vmatmul.mubr.f32.gmra.mrb[0].mxu0 %v683
        %v2078 = vpop.f32.mrb[0].mxu0
        %v2079 = vadd.f32 %v991, %v2078
        %v2080 = vpop.f32.mrb[0].mxu0
        %v2081 = vadd.f32 %v995, %v2080
        %2082 = vmatprep.mubr.f32.mxu0 0.0
        %2083 = vmatmul.mubr.f32.gmra.mrb[0].mxu0 %v684
        %v2084 = vpop.f32.mrb[0].mxu0
        %v2085 = vadd.f32 %v991, %v2084
        %v2086 = vpop.f32.mrb[0].mxu0
        %v2087 = vadd.f32 %v995, %v2086
        %2088 = vmatprep.mubr.f32.mxu0 0.0
        %2089 = vmatmul.mubr.f32.gmra.mrb[0].mxu0 %v685
        %v2090 = vpop.f32.mrb[0].mxu0
        %v2091 = vadd.f32 %v991, %v2090
        %v2092 = vpop.f32.mrb[0].mxu0
        %v2093 = vadd.f32 %v995, %v2092
        %2094 = vmatprep.mubr.f32.mxu0 0.0
        %2095 = vmatmul.mubr.f32.gmra.mrb[0].mxu0 %v686
        %v2096 = vpop.f32.mrb[0].mxu0
        %v2097 = vadd.f32 %v991, %v2096
        %v2098 = vpop.f32.mrb[0].mxu0
        %v2099 = vadd.f32 %v995, %v2098
        %2100 = vmatprep.mubr.f32.mxu0 0.0
        %2101 = vmatmul.mubr.f32.gmra.mrb[0].mxu0 %v687
        %v2102 = vpop.f32.mrb[0].mxu0
        %v2103 = vadd.f32 %v991, %v2102
        %v2104 = vpop.f32.mrb[0].mxu0
        %v2105 = vadd.f32 %v995, %v2104
        %2106 = vmatprep.mubr.f32.mxu0 0.0
        %2107 = vmatmul.mubr.f32.gmra.mrb[0].mxu0 %v688
        %v2108 = vpop.f32.mrb[0].mxu0
        %v2109 = vadd.f32 %v991, %v2108
        %v2110 = vpop.f32.mrb[0].mxu0
        %v2111 = vadd.f32 %v995, %v2110
        %2112 = vmatprep.mubr.f32.mxu0 0.0
        %2113 = vmatmul.mubr.f32.gmra.mrb[0].mxu0 %v689
        %v2114 = vpop.f32.mrb[0].mxu0
        %v2115 = vadd.f32 %v991, %v2114
        %v2116 = vpop.f32.mrb[0].mxu0
        %v2117 = vadd.f32 %v995, %v2116
        %2118 = vmatprep.mubr.f32.mxu0 0.0
        %2119 = vmatmul.mubr.f32.gmra.mrb[0].mxu0 %v690
        %v2120 = vpop.f32.mrb[0].mxu0
        %v2121 = vadd.f32 %v991, %v2120
        %v2122 = vpop.f32.mrb[0].mxu0
        %v2123 = vadd.f32 %v995, %v2122
        %2124 = vmatprep.mubr.f32.mxu0 0.0
        %2125 = vmatmul.mubr.f32.gmra.mrb[0].mxu0 %v691
        %v2126 = vpop.f32.mrb[0].mxu0
        %v2127 = vadd.f32 %v991, %v2126
        %v2128 = vpop.f32.mrb[0].mxu0
        %v2129 = vadd.f32 %v995, %v2128
        %2130 = vmatprep.mubr.f32.mxu0 0.0
        %2131 = vmatmul.mubr.f32.gmra.mrb[0].mxu0 %v692
        %v2132 = vpop.f32.mrb[0].mxu0
        %v2133 = vadd.f32 %v991, %v2132
        %v2134 = vpop.f32.mrb[0].mxu0
        %v2135 = vadd.f32 %v995, %v2134
        %2136 = vmatprep.mubr.f32.mxu0 0.0
        %2137 = vmatmul.mubr.f32.gmra.mrb[0].mxu0 %v693
        %v2138 = vpop.f32.mrb[0].mxu0
        %v2139 = vadd.f32 %v991, %v2138
        %v2140 = vpop.f32.mrb[0].mxu0
        %v2141 = vadd.f32 %v995, %v2140
        %2142 = vmatprep.mubr.f32.mxu0 0.0
        %2143 = vmatmul.mubr.f32.gmra.mrb[0].mxu0 %v694
        %v2144 = vpop.f32.mrb[0].mxu0
        %v2145 = vadd.f32 %v991, %v2144
        %v2146 = vpop.f32.mrb[0].mxu0
        %v2147 = vadd.f32 %v995, %v2146
        %2148 = vmatprep.mubr.f32.mxu0 0.0
        %2149 = vmatmul.mubr.f32.gmra.mrb[0].mxu0 %v695
        %v2150 = vpop.f32.mrb[0].mxu0
        %v2151 = vadd.f32 %v991, %v2150
        %v2152 = vpop.f32.mrb[0].mxu0
        %v2153 = vadd.f32 %v995, %v2152
        %2154 = vmatprep.mubr.f32.mxu0 0.0
        %2155 = vmatmul.mubr.f32.gmra.mrb[0].mxu0 %v696
        %v2156 = vpop.f32.mrb[0].mxu0
        %v2157 = vadd.f32 %v991, %v2156
        %v2158 = vpop.f32.mrb[0].mxu0
        %v2159 = vadd.f32 %v995, %v2158
        %2160 = vmatprep.mubr.f32.mxu0 0.0
        %2161 = vmatmul.mubr.f32.gmra.mrb[0].mxu0 %v697
        %v2162 = vpop.f32.mrb[0].mxu0
        %v2163 = vadd.f32 %v991, %v2162
        %v2164 = vpop.f32.mrb[0].mxu0
        %v2165 = vadd.f32 %v995, %v2164
        %2166 = vmatprep.mubr.f32.mxu0 0.0
        %2167 = vmatmul.mubr.f32.gmra.mrb[0].mxu0 %v698
        %v2168 = vpop.f32.mrb[0].mxu0
        %v2169 = vadd.f32 %v991, %v2168
        %v2170 = vpop.f32.mrb[0].mxu0
        %v2171 = vadd.f32 %v995, %v2170
        %2172 = vmatprep.mubr.f32.mxu0 0.0
        %2173 = vmatmul.mubr.f32.gmra.mrb[0].mxu0 %v699
        %v2174 = vpop.f32.mrb[0].mxu0
        %v2175 = vadd.f32 %v991, %v2174
        %v2176 = vpop.f32.mrb[0].mxu0
        %v2177 = vadd.f32 %v995, %v2176
        %2178 = vmatprep.mubr.f32.mxu0 0.0
        %2179 = vmatmul.mubr.f32.gmra.mrb[0].mxu0 %v700
        %v2180 = vpop.f32.mrb[0].mxu0
        %v2181 = vadd.f32 %v991, %v2180
        %v2182 = vpop.f32.mrb[0].mxu0
        %v2183 = vadd.f32 %v995, %v2182
        %2184 = vmatprep.mubr.f32.mxu0 0.0
        %2185 = vmatmul.mubr.f32.gmra.mrb[0].mxu0 %v701
        %v2186 = vpop.f32.mrb[0].mxu0
        %v2187 = vadd.f32 %v991, %v2186
        %v2188 = vpop.f32.mrb[0].mxu0
        %v2189 = vadd.f32 %v995, %v2188
        %2190 = vmatprep.mubr.f32.mxu0 0.0
        %2191 = vmatmul.mubr.f32.gmra.mrb[0].mxu0 %v702
        %v2192 = vpop.f32.mrb[0].mxu0
        %v2193 = vadd.f32 %v991, %v2192
        %v2194 = vpop.f32.mrb[0].mxu0
        %v2195 = vadd.f32 %v995, %v2194
        %2196 = vmatprep.mubr.f32.mxu0 0.0
        %2197 = vmatmul.mubr.f32.gmra.mrb[0].mxu0 %v703
        %v2198 = vpop.f32.mrb[0].mxu0
        %v2199 = vadd.f32 %v991, %v2198
        %v2200 = vpop.f32.mrb[0].mxu0
        %v2201 = vadd.f32 %v995, %v2200
        %2202 = vmatprep.mubr.f32.mxu0 0.0
        %2203 = vmatmul.mubr.f32.gmra.mrb[0].mxu0 %v704
        %v2204 = vpop.f32.mrb[0].mxu0
        %v2205 = vadd.f32 %v991, %v2204
        %v2206 = vpop.f32.mrb[0].mxu0
        %v2207 = vadd.f32 %v995, %v2206
        %2208 = vmatprep.mubr.f32.mxu0 0.0
        %2209 = vmatmul.mubr.f32.gmra.mrb[0].mxu0 %v705
        %v2210 = vpop.f32.mrb[0].mxu0
        %v2211 = vadd.f32 %v991, %v2210
        %v2212 = vpop.f32.mrb[0].mxu0
        %v2213 = vadd.f32 %v995, %v2212
        %2214 = vmatprep.mubr.f32.mxu0 0.0
        %2215 = vmatmul.mubr.f32.gmra.mrb[0].mxu0 %v706
        %v2216 = vpop.f32.mrb[0].mxu0
        %v2217 = vadd.f32 %v991, %v2216
        %v2218 = vpop.f32.mrb[0].mxu0
        %v2219 = vadd.f32 %v995, %v2218
        %2220 = vmatprep.mubr.f32.mxu0 0.0
        %2221 = vmatmul.mubr.f32.gmra.mrb[0].mxu0 %v707
        %v2222 = vpop.f32.mrb[0].mxu0
        %v2223 = vadd.f32 %v991, %v2222
        %v2224 = vpop.f32.mrb[0].mxu0
        %v2225 = vadd.f32 %v995, %v2224
        %2226 = vmatprep.mubr.f32.mxu0 0.0
        %2227 = vmatmul.mubr.f32.gmra.mrb[0].mxu0 %v708
        %v2228 = vpop.f32.mrb[0].mxu0
        %v2229 = vadd.f32 %v991, %v2228
        %v2230 = vpop.f32.mrb[0].mxu0
        %v2231 = vadd.f32 %v995, %v2230
        %2232 = vmatprep.mubr.f32.mxu0 0.0
        %2233 = vmatmul.mubr.f32.gmra.mrb[0].mxu0 %v709
        %v2234 = vpop.f32.mrb[0].mxu0
        %v2235 = vadd.f32 %v991, %v2234
        %v2236 = vpop.f32.mrb[0].mxu0
        %v2237 = vadd.f32 %v995, %v2236
        %2238 = vmatprep.mubr.f32.mxu0 0.0
        %2239 = vmatmul.mubr.f32.gmra.mrb[0].mxu0 %v710
        %v2240 = vpop.f32.mrb[0].mxu0
        %v2241 = vadd.f32 %v991, %v2240
        %v2242 = vpop.f32.mrb[0].mxu0
        %v2243 = vadd.f32 %v995, %v2242
        %2244 = vmatprep.mubr.f32.mxu0 0.0
        %2245 = vmatmul.mubr.f32.gmra.mrb[0].mxu0 %v711
        %v2246 = vpop.f32.mrb[0].mxu0
        %v2247 = vadd.f32 %v991, %v2246
        %v2248 = vpop.f32.mrb[0].mxu0
        %v2249 = vadd.f32 %v995, %v2248
        %2250 = vmatprep.mubr.f32.mxu0 0.0
        %2251 = vmatmul.mubr.f32.gmra.mrb[0].mxu0 %v712
        %v2252 = vpop.f32.mrb[0].mxu0
        %v2253 = vadd.f32 %v991, %v2252
        %v2254 = vpop.f32.mrb[0].mxu0
        %v2255 = vadd.f32 %v995, %v2254
        %2256 = vmatprep.mubr.f32.mxu0 0.0
        %2257 = vmatmul.mubr.f32.gmra.mrb[0].mxu0 %v713
        %v2258 = vpop.f32.mrb[0].mxu0
        %v2259 = vadd.f32 %v991, %v2258
        %v2260 = vpop.f32.mrb[0].mxu0
        %v2261 = vadd.f32 %v995, %v2260
        %2262 = vmatprep.mubr.f32.mxu0 0.0
        %2263 = vmatmul.mubr.f32.gmra.mrb[0].mxu0 %v714
        %v2264 = vpop.f32.mrb[0].mxu0
        %v2265 = vadd.f32 %v991, %v2264
        %v2266 = vpop.f32.mrb[0].mxu0
        %v2267 = vadd.f32 %v995, %v2266
        %2268 = vmatprep.mubr.f32.mxu0 0.0
        %2269 = vmatmul.mubr.f32.gmra.mrb[0].mxu0 %v715
        %v2270 = vpop.f32.mrb[0].mxu0
        %v2271 = vadd.f32 %v991, %v2270
        %v2272 = vpop.f32.mrb[0].mxu0
        %v2273 = vadd.f32 %v995, %v2272
        %2274 = vmatprep.mubr.f32.mxu0 0.0
        %2275 = vmatmul.mubr.f32.gmra.mrb[0].mxu0 %v716
        %v2276 = vpop.f32.mrb[0].mxu0
        %v2277 = vadd.f32 %v991, %v2276
        %v2278 = vpop.f32.mrb[0].mxu0
        %v2279 = vadd.f32 %v995, %v2278
        %2280 = vmatprep.mubr.f32.mxu0 0.0
        %2281 = vmatmul.mubr.f32.gmra.mrb[0].mxu0 %v717
        %v2282 = vpop.f32.mrb[0].mxu0
        %v2283 = vadd.f32 %v991, %v2282
        %v2284 = vpop.f32.mrb[0].mxu0
        %v2285 = vadd.f32 %v995, %v2284
        %2286 = vmatprep.mubr.f32.mxu0 0.0
        %2287 = vmatmul.mubr.f32.gmra.mrb[0].mxu0 %v718
        %v2288 = vpop.f32.mrb[0].mxu0
        %v2289 = vadd.f32 %v991, %v2288
        %v2290 = vpop.f32.mrb[0].mxu0
        %v2291 = vadd.f32 %v995, %v2290
        %2292 = vmatprep.mubr.f32.mxu0 0.0
        %2293 = vmatmul.mubr.f32.gmra.mrb[0].mxu0 %v719
        %v2294 = vpop.f32.mrb[0].mxu0
        %v2295 = vadd.f32 %v991, %v2294
        %v2296 = vpop.f32.mrb[0].mxu0
        %v2297 = vadd.f32 %v995, %v2296
        %2298 = vmatprep.mubr.f32.mxu0 0.0
        %2299 = vmatmul.mubr.f32.gmra.mrb[0].mxu0 %v720
        %v2300 = vpop.f32.mrb[0].mxu0
        %v2301 = vadd.f32 %v991, %v2300
        %v2302 = vpop.f32.mrb[0].mxu0
        %v2303 = vadd.f32 %v995, %v2302
        %2304 = vmatprep.mubr.f32.mxu0 0.0
        %2305 = vmatmul.mubr.f32.gmra.mrb[0].mxu0 %v721
        %v2306 = vpop.f32.mrb[0].mxu0
        %v2307 = vadd.f32 %v991, %v2306
        %v2308 = vpop.f32.mrb[0].mxu0
        %v2309 = vadd.f32 %v995, %v2308
        %2310 = vmatprep.mubr.f32.mxu0 0.0
        %2311 = vmatmul.mubr.f32.gmra.mrb[0].mxu0 %v722
        %v2312 = vpop.f32.mrb[0].mxu0
        %v2313 = vadd.f32 %v991, %v2312
        %v2314 = vpop.f32.mrb[0].mxu0
        %v2315 = vadd.f32 %v995, %v2314
        %2316 = vmatprep.mubr.f32.mxu0 0.0
        %2317 = vmatmul.mubr.f32.gmra.mrb[0].mxu0 %v723
        %v2318 = vpop.f32.mrb[0].mxu0
        %v2319 = vadd.f32 %v991, %v2318
        %v2320 = vpop.f32.mrb[0].mxu0
        %v2321 = vadd.f32 %v995, %v2320
        %2322 = vmatprep.mubr.f32.mxu0 0.0
        %2323 = vmatmul.mubr.f32.gmra.mrb[0].mxu0 %v724
        %v2324 = vpop.f32.mrb[0].mxu0
        %v2325 = vadd.f32 %v991, %v2324
        %v2326 = vpop.f32.mrb[0].mxu0
        %v2327 = vadd.f32 %v995, %v2326
        %2328 = vmatprep.mubr.f32.mxu0 0.0
        %2329 = vmatmul.mubr.f32.gmra.mrb[0].mxu0 %v725
        %v2330 = vpop.f32.mrb[0].mxu0
        %v2331 = vadd.f32 %v991, %v2330
        %v2332 = vpop.f32.mrb[0].mxu0
        %v2333 = vadd.f32 %v995, %v2332
        %2334 = vmatprep.mubr.f32.mxu0 0.0
        %2335 = vmatmul.mubr.f32.gmra.mrb[0].mxu0 %v726
        %v2336 = vpop.f32.mrb[0].mxu0
        %v2337 = vadd.f32 %v991, %v2336
        %v2338 = vpop.f32.mrb[0].mxu0
        %v2339 = vadd.f32 %v995, %v2338
        %2340 = vmatprep.mubr.f32.mxu0 0.0
        %2341 = vmatmul.mubr.f32.gmra.mrb[0].mxu0 %v727
        %v2342 = vpop.f32.mrb[0].mxu0
        %v2343 = vadd.f32 %v991, %v2342
        %v2344 = vpop.f32.mrb[0].mxu0
        %v2345 = vadd.f32 %v995, %v2344
        %2346 = vmatprep.mubr.f32.mxu0 0.0
        %2347 = vmatmul.mubr.f32.gmra.mrb[0].mxu0 %v728
        %v2348 = vpop.f32.mrb[0].mxu0
        %v2349 = vadd.f32 %v991, %v2348
        %v2350 = vpop.f32.mrb[0].mxu0
        %v2351 = vadd.f32 %v995, %v2350
        %2352 = vmatprep.mubr.f32.mxu0 0.0
        %2353 = vmatmul.mubr.f32.gmra.mrb[0].mxu0 %v729
        %v2354 = vpop.f32.mrb[0].mxu0
        %v2355 = vadd.f32 %v991, %v2354
        %v2356 = vpop.f32.mrb[0].mxu0
        %v2357 = vadd.f32 %v995, %v2356
        %2358 = vmatprep.mubr.f32.mxu0 0.0
        %2359 = vmatmul.mubr.f32.gmra.mrb[0].mxu0 %v730
        %v2360 = vpop.f32.mrb[0].mxu0
        %v2361 = vadd.f32 %v991, %v2360
        %v2362 = vpop.f32.mrb[0].mxu0
        %v2363 = vadd.f32 %v995, %v2362
        %2364 = vmatprep.mubr.f32.mxu0 0.0
        %2365 = vmatmul.mubr.f32.gmra.mrb[0].mxu0 %v731
        %v2366 = vpop.f32.mrb[0].mxu0
        %v2367 = vadd.f32 %v991, %v2366
        %v2368 = vpop.f32.mrb[0].mxu0
        %v2369 = vadd.f32 %v995, %v2368
        %2370 = vmatprep.mubr.f32.mxu0 0.0
        %2371 = vmatmul.mubr.f32.gmra.mrb[0].mxu0 %v732
        %v2372 = vpop.f32.mrb[0].mxu0
        %v2373 = vadd.f32 %v991, %v2372
        %v2374 = vpop.f32.mrb[0].mxu0
        %v2375 = vadd.f32 %v995, %v2374
        %2376 = vmatprep.mubr.f32.mxu0 0.0
        %2377 = vmatmul.mubr.f32.gmra.mrb[0].mxu0 %v733
        %v2378 = vpop.f32.mrb[0].mxu0
        %v2379 = vadd.f32 %v991, %v2378
        %v2380 = vpop.f32.mrb[0].mxu0
        %v2381 = vadd.f32 %v995, %v2380
        %2382 = vmatprep.mubr.f32.mxu0 0.0
        %2383 = vmatmul.mubr.f32.gmra.mrb[0].mxu0 %v734
        %v2384 = vpop.f32.mrb[0].mxu0
        %v2385 = vadd.f32 %v991, %v2384
        %v2386 = vpop.f32.mrb[0].mxu0
        %v2387 = vadd.f32 %v995, %v2386
        %2388 = vmatprep.mubr.f32.mxu0 0.0
        %2389 = vmatmul.mubr.f32.gmra.mrb[0].mxu0 %v735
        %v2390 = vpop.f32.mrb[0].mxu0
        %v2391 = vadd.f32 %v991, %v2390
        %v2392 = vpop.f32.mrb[0].mxu0
        %v2393 = vadd.f32 %v995, %v2392
        %2394 = vmatprep.mubr.f32.mxu0 0.0
        %2395 = vmatmul.mubr.f32.gmra.mrb[0].mxu0 %v736
        %v2396 = vpop.f32.mrb[0].mxu0
        %v2397 = vadd.f32 %v991, %v2396
        %v2398 = vpop.f32.mrb[0].mxu0
        %v2399 = vadd.f32 %v995, %v2398
        %2400 = vmatprep.mubr.f32.mxu0 0.0
        %2401 = vmatmul.mubr.f32.gmra.mrb[0].mxu0 %v737
        %v2402 = vpop.f32.mrb[0].mxu0
        %v2403 = vadd.f32 %v991, %v2402
        %v2404 = vpop.f32.mrb[0].mxu0
        %v2405 = vadd.f32 %v995, %v2404
        %2406 = vmatprep.mubr.f32.mxu0 0.0
        %2407 = vmatmul.mubr.f32.gmra.mrb[0].mxu0 %v738
        %v2408 = vpop.f32.mrb[0].mxu0
        %v2409 = vadd.f32 %v991, %v2408
        %v2410 = vpop.f32.mrb[0].mxu0
        %v2411 = vadd.f32 %v995, %v2410
        %2412 = vmatprep.mubr.f32.mxu0 0.0
        %2413 = vmatmul.mubr.f32.gmra.mrb[0].mxu0 %v739
        %v2414 = vpop.f32.mrb[0].mxu0
        %v2415 = vadd.f32 %v991, %v2414
        %v2416 = vpop.f32.mrb[0].mxu0
        %v2417 = vadd.f32 %v995, %v2416
        %2418 = vmatprep.mubr.f32.mxu0 0.0
        %2419 = vmatmul.mubr.f32.gmra.mrb[0].mxu0 %v740
        %v2420 = vpop.f32.mrb[0].mxu0
        %v2421 = vadd.f32 %v991, %v2420
        %v2422 = vpop.f32.mrb[0].mxu0
        %v2423 = vadd.f32 %v995, %v2422
        %2424 = vmatprep.mubr.f32.mxu0 0.0
        %2425 = vmatmul.mubr.f32.gmra.mrb[0].mxu0 %v741
        %v2426 = vpop.f32.mrb[0].mxu0
        %v2427 = vadd.f32 %v991, %v2426
        %v2428 = vpop.f32.mrb[0].mxu0
        %v2429 = vadd.f32 %v995, %v2428
        %2430 = vmatprep.mubr.f32.mxu0 0.0
        %2431 = vmatmul.mubr.f32.gmra.mrb[0].mxu0 %v742
        %v2432 = vpop.f32.mrb[0].mxu0
        %v2433 = vadd.f32 %v991, %v2432
        %v2434 = vpop.f32.mrb[0].mxu0
        %v2435 = vadd.f32 %v995, %v2434
        %2436 = vmatprep.mubr.f32.mxu0 0.0
        %2437 = vmatmul.mubr.f32.gmra.mrb[0].mxu0 %v743
        %v2438 = vpop.f32.mrb[0].mxu0
        %v2439 = vadd.f32 %v991, %v2438
        %v2440 = vpop.f32.mrb[0].mxu0
        %v2441 = vadd.f32 %v995, %v2440
        %2442 = vmatprep.mubr.f32.mxu0 0.0
        %2443 = vmatmul.mubr.f32.gmra.mrb[0].mxu0 %v744
        %v2444 = vpop.f32.mrb[0].mxu0
        %v2445 = vadd.f32 %v991, %v2444
        %v2446 = vpop.f32.mrb[0].mxu0
        %v2447 = vadd.f32 %v995, %v2446
        %2448 = vmatprep.mubr.f32.mxu0 0.0
        %2449 = vmatmul.mubr.f32.gmra.mrb[0].mxu0 %v745
        %v2450 = vpop.f32.mrb[0].mxu0
        %v2451 = vadd.f32 %v991, %v2450
        %v2452 = vpop.f32.mrb[0].mxu0
        %v2453 = vadd.f32 %v995, %v2452
        %2454 = vmatprep.mubr.f32.mxu0 0.0
        %2455 = vmatmul.mubr.f32.gmra.mrb[0].mxu0 %v746
        %v2456 = vpop.f32.mrb[0].mxu0
        %v2457 = vadd.f32 %v991, %v2456
        %v2458 = vpop.f32.mrb[0].mxu0
        %v2459 = vadd.f32 %v995, %v2458
        %2460 = vmatprep.mubr.f32.mxu0 0.0
        %2461 = vmatmul.mubr.f32.gmra.mrb[0].mxu0 %v747
        %v2462 = vpop.f32.mrb[0].mxu0
        %v2463 = vadd.f32 %v991, %v2462
        %v2464 = vpop.f32.mrb[0].mxu0
        %v2465 = vadd.f32 %v995, %v2464
        %2466 = vmatprep.mubr.f32.mxu0 0.0
        %2467 = vmatmul.mubr.f32.gmra.mrb[0].mxu0 %v748
        %v2468 = vpop.f32.mrb[0].mxu0
        %v2469 = vadd.f32 %v991, %v2468
        %v2470 = vpop.f32.mrb[0].mxu0
        %v2471 = vadd.f32 %v995, %v2470
        %2472 = vmatprep.mubr.f32.mxu0 0.0
        %2473 = vmatmul.mubr.f32.gmra.mrb[0].mxu0 %v749
        %v2474 = vpop.f32.mrb[0].mxu0
        %v2475 = vadd.f32 %v991, %v2474
        %v2476 = vpop.f32.mrb[0].mxu0
        %v2477 = vadd.f32 %v995, %v2476
        %2478 = vmatprep.mubr.f32.mxu0 0.0
        %2479 = vmatmul.mubr.f32.gmra.mrb[0].mxu0 %v750
        %v2480 = vpop.f32.mrb[0].mxu0
        %v2481 = vadd.f32 %v991, %v2480
        %v2482 = vpop.f32.mrb[0].mxu0
        %v2483 = vadd.f32 %v995, %v2482
        %2484 = vmatprep.mubr.f32.mxu0 0.0
        %2485 = vmatmul.mubr.f32.gmra.mrb[0].mxu0 %v751
        %v2486 = vpop.f32.mrb[0].mxu0
        %v2487 = vadd.f32 %v991, %v2486
        %v2488 = vpop.f32.mrb[0].mxu0
        %v2489 = vadd.f32 %v995, %v2488
        %2490 = vmatprep.mubr.f32.mxu0 0.0
        %2491 = vmatmul.mubr.f32.gmra.mrb[0].mxu0 %v752
        %v2492 = vpop.f32.mrb[0].mxu0
        %v2493 = vadd.f32 %v991, %v2492
        %v2494 = vpop.f32.mrb[0].mxu0
        %v2495 = vadd.f32 %v995, %v2494
        %2496 = vmatprep.mubr.f32.mxu0 0.0
        %2497 = vmatmul.mubr.f32.gmra.mrb[0].mxu0 %v753
        %v2498 = vpop.f32.mrb[0].mxu0
        %v2499 = vadd.f32 %v991, %v2498
        %v2500 = vpop.f32.mrb[0].mxu0
        %v2501 = vadd.f32 %v995, %v2500
        %2502 = vmatprep.mubr.f32.mxu0 0.0
        %2503 = vmatmul.mubr.f32.gmra.mrb[0].mxu0 %v754
        %v2504 = vpop.f32.mrb[0].mxu0
        %v2505 = vadd.f32 %v991, %v2504
        %v2506 = vpop.f32.mrb[0].mxu0
        %v2507 = vadd.f32 %v995, %v2506
        %2508 = vmatprep.mubr.f32.mxu0 0.0
        %2509 = vmatmul.mubr.f32.gmra.mrb[0].mxu0 %v755
        %v2510 = vpop.f32.mrb[0].mxu0
        %v2511 = vadd.f32 %v991, %v2510
        %v2512 = vpop.f32.mrb[0].mxu0
        %v2513 = vadd.f32 %v995, %v2512
        %2514 = vmatprep.mubr.f32.mxu0 0.0
        %2515 = vmatmul.mubr.f32.gmra.mrb[0].mxu0 %v756
        %v2516 = vpop.f32.mrb[0].mxu0
        %v2517 = vadd.f32 %v991, %v2516
        %v2518 = vpop.f32.mrb[0].mxu0
        %v2519 = vadd.f32 %v995, %v2518
        %2520 = vmatprep.mubr.f32.mxu0 0.0
        %2521 = vmatmul.mubr.f32.gmra.mrb[0].mxu0 %v757
        %v2522 = vpop.f32.mrb[0].mxu0
        %v2523 = vadd.f32 %v991, %v2522
        %v2524 = vpop.f32.mrb[0].mxu0
        %v2525 = vadd.f32 %v995, %v2524
        %2526 = vmatprep.mubr.f32.mxu0 0.0
        %2527 = vmatmul.mubr.f32.gmra.mrb[0].mxu0 %v758
        %v2528 = vpop.f32.mrb[0].mxu0
        %v2529 = vadd.f32 %v991, %v2528
        %v2530 = vpop.f32.mrb[0].mxu0
        %v2531 = vadd.f32 %v995, %v2530
        %2532 = vmatprep.mubr.f32.mxu0 0.0
        %2533 = vmatmul.mubr.f32.gmra.mrb[0].mxu0 %v759
        %v2534 = vpop.f32.mrb[0].mxu0
        %v2535 = vadd.f32 %v991, %v2534
        %v2536 = vpop.f32.mrb[0].mxu0
        %v2537 = vadd.f32 %v995, %v2536
        %2538 = vmatprep.mubr.f32.mxu0 0.0
        %2539 = vmatmul.mubr.f32.gmra.mrb[0].mxu0 %v760
        %v2540 = vpop.f32.mrb[0].mxu0
        %v2541 = vadd.f32 %v991, %v2540
        %v2542 = vpop.f32.mrb[0].mxu0
        %v2543 = vadd.f32 %v995, %v2542
        %2544 = vmatprep.mubr.f32.mxu0 0.0
        %2545 = vmatmul.mubr.f32.gmra.mrb[0].mxu0 %v761
        %v2546 = vpop.f32.mrb[0].mxu0
        %v2547 = vadd.f32 %v991, %v2546
        %v2548 = vpop.f32.mrb[0].mxu0
        %v2549 = vadd.f32 %v995, %v2548
        %2550 = vmatprep.mubr.f32.mxu0 0.0
        %2551 = vmatmul.mubr.f32.gmra.mrb[0].mxu0 %v762
        %v2552 = vpop.f32.mrb[0].mxu0
        %v2553 = vadd.f32 %v991, %v2552
        %v2554 = vpop.f32.mrb[0].mxu0
        %v2555 = vadd.f32 %v995, %v2554
        %2556 = vmatprep.mubr.f32.mxu0 0.0
        %2557 = vmatmul.mubr.f32.gmra.mrb[0].mxu0 %v763
        %v2558 = vpop.f32.mrb[0].mxu0
        %v2559 = vadd.f32 %v991, %v2558
        %v2560 = vpop.f32.mrb[0].mxu0
        %v2561 = vadd.f32 %v995, %v2560
        %2562 = vmatprep.mubr.f32.mxu0 0.0
        %2563 = vmatmul.mubr.f32.gmra.mrb[0].mxu0 %v764
        %v2564 = vpop.f32.mrb[0].mxu0
        %v2565 = vadd.f32 %v991, %v2564
        %v2566 = vpop.f32.mrb[0].mxu0
        %v2567 = vadd.f32 %v995, %v2566
        %2568 = vmatprep.mubr.f32.mxu0 0.0
        %2569 = vmatmul.mubr.f32.gmra.mrb[0].mxu0 %v765
        %v2570 = vpop.f32.mrb[0].mxu0
        %v2571 = vadd.f32 %v991, %v2570
        %v2572 = vpop.f32.mrb[0].mxu0
        %v2573 = vadd.f32 %v995, %v2572
        %2574 = vmatprep.mubr.f32.mxu0 0.0
        %2575 = vmatmul.mubr.f32.gmra.mrb[0].mxu0 %v766
        %v2576 = vpop.f32.mrb[0].mxu0
        %v2577 = vadd.f32 %v991, %v2576
        %v2578 = vpop.f32.mrb[0].mxu0
        %v2579 = vadd.f32 %v995, %v2578
        %2580 = vmatprep.mubr.f32.mxu0 0.0
        %2581 = vmatmul.mubr.f32.gmra.mrb[0].mxu0 %v767
        %v2582 = vpop.f32.mrb[0].mxu0
        %v2583 = vadd.f32 %v991, %v2582
        %v2584 = vpop.f32.mrb[0].mxu0
        %v2585 = vadd.f32 %v995, %v2584
        %2586 = vmatprep.mubr.f32.mxu0 0.0
        %2587 = vmatmul.mubr.f32.gmra.mrb[0].mxu0 %v768
        %v2588 = vpop.f32.mrb[0].mxu0
        %v2589 = vadd.f32 %v991, %v2588
        %v2590 = vpop.f32.mrb[0].mxu0
        %v2591 = vadd.f32 %v995, %v2590
        %2592 = vmatprep.mubr.f32.mxu0 0.0
        %2593 = vmatmul.mubr.f32.gmra.mrb[0].mxu0 %v769
        %v2594 = vpop.f32.mrb[0].mxu0
        %v2595 = vadd.f32 %v991, %v2594
        %v2596 = vpop.f32.mrb[0].mxu0
        %v2597 = vadd.f32 %v995, %v2596
        %2598 = vdwg.mxu0
        %v2615 = vcombine.high %v876, %v876
        %v2617 = vunpack.c.l.s4 1966171168
        %v2618 = vunpack.c.0.s8 %v2617
        %v2619 = vlaneseq
        %v2620 = vshrl.u32 %v2619, 7
        %v2621 = vsub.s32 %v2618, %v2620
        %v2622 = vrot.slane %v876, %v2621
        %v2624 = vunpack.c.l.s4 1966171168
        %v2625 = vunpack.c.0.s8 %v2624
        %v2626 = vlaneseq
        %v2627 = vshrl.u32 %v2626, 7
        %v2628 = vsub.s32 %v2625, %v2627
        %v2629 = vrot.slane %v2615, %v2628
        %v2630 = vcombine.high %v2622, %v2622
        %v2631 = vcombine.high %v2629, %v2629
        %v2633 = vunpack.c.l.s4 1966171168
        %v2634 = vunpack.c.0.s8 %v2633
        %v2635 = vlaneseq
        %v2636 = vshrl.u32 %v2635, 7
        %v2637 = vsub.s32 %v2634, %v2636
        %v2638 = vrot.slane %v2622, %v2637
        %v2640 = vunpack.c.l.s4 1966171168
        %v2641 = vunpack.c.0.s8 %v2640
        %v2642 = vlaneseq
        %v2643 = vshrl.u32 %v2642, 7
        %v2644 = vsub.s32 %v2641, %v2643
        %v2645 = vrot.slane %v2629, %v2644
        %v2647 = vunpack.c.l.s4 1966171168
        %v2648 = vunpack.c.0.s8 %v2647
        %v2649 = vlaneseq
        %v2650 = vshrl.u32 %v2649, 7
        %v2651 = vsub.s32 %v2648, %v2650
        %v2652 = vrot.slane %v2630, %v2651
        %v2654 = vunpack.c.l.s4 1966171168
        %v2655 = vunpack.c.0.s8 %v2654
        %v2656 = vlaneseq
        %v2657 = vshrl.u32 %v2656, 7
        %v2658 = vsub.s32 %v2655, %v2657
        %v2659 = vrot.slane %v2631, %v2658
        %v2660 = vcombine.high %v2638, %v2638
        %v2661 = vcombine.high %v2645, %v2645
        %v2662 = vcombine.high %v2652, %v2652
        %v2663 = vcombine.high %v2659, %v2659
        %v2664 = vcombine.high %v881, %v881
        %v2666 = vunpack.c.l.s4 1966171168
        %v2667 = vunpack.c.0.s8 %v2666
        %v2668 = vlaneseq
        %v2669 = vshrl.u32 %v2668, 7
        %v2670 = vsub.s32 %v2667, %v2669
        %v2671 = vrot.slane %v881, %v2670
        %v2673 = vunpack.c.l.s4 1966171168
        %v2674 = vunpack.c.0.s8 %v2673
        %v2675 = vlaneseq
        %v2676 = vshrl.u32 %v2675, 7
        %v2677 = vsub.s32 %v2674, %v2676
        %v2678 = vrot.slane %v2664, %v2677
        %v2679 = vcombine.high %v2671, %v2671
        %v2680 = vcombine.high %v2678, %v2678
        %v2682 = vunpack.c.l.s4 1966171168
        %v2683 = vunpack.c.0.s8 %v2682
        %v2684 = vlaneseq
        %v2685 = vshrl.u32 %v2684, 7
        %v2686 = vsub.s32 %v2683, %v2685
        %v2687 = vrot.slane %v2671, %v2686
        %v2689 = vunpack.c.l.s4 1966171168
        %v2690 = vunpack.c.0.s8 %v2689
        %v2691 = vlaneseq
        %v2692 = vshrl.u32 %v2691, 7
        %v2693 = vsub.s32 %v2690, %v2692
        %v2694 = vrot.slane %v2678, %v2693
        %v2696 = vunpack.c.l.s4 1966171168
        %v2697 = vunpack.c.0.s8 %v2696
        %v2698 = vlaneseq
        %v2699 = vshrl.u32 %v2698, 7
        %v2700 = vsub.s32 %v2697, %v2699
        %v2701 = vrot.slane %v2679, %v2700
        %v2703 = vunpack.c.l.s4 1966171168
        %v2704 = vunpack.c.0.s8 %v2703
        %v2705 = vlaneseq
        %v2706 = vshrl.u32 %v2705, 7
        %v2707 = vsub.s32 %v2704, %v2706
        %v2708 = vrot.slane %v2680, %v2707
        %v2709 = vcombine.high %v2687, %v2687
        %v2710 = vcombine.high %v2694, %v2694
        %v2711 = vcombine.high %v2701, %v2701
        %v2712 = vcombine.high %v2708, %v2708
        %v2713 = vcombine.high %v886, %v886
        %v2715 = vunpack.c.l.s4 1966171168
        %v2716 = vunpack.c.0.s8 %v2715
        %v2717 = vlaneseq
        %v2718 = vshrl.u32 %v2717, 7
        %v2719 = vsub.s32 %v2716, %v2718
        %v2720 = vrot.slane %v886, %v2719
        %v2722 = vunpack.c.l.s4 1966171168
        %v2723 = vunpack.c.0.s8 %v2722
        %v2724 = vlaneseq
        %v2725 = vshrl.u32 %v2724, 7
        %v2726 = vsub.s32 %v2723, %v2725
        %v2727 = vrot.slane %v2713, %v2726
        %v2728 = vcombine.high %v2720, %v2720
        %v2729 = vcombine.high %v2727, %v2727
        %v2731 = vunpack.c.l.s4 1966171168
        %v2732 = vunpack.c.0.s8 %v2731
        %v2733 = vlaneseq
        %v2734 = vshrl.u32 %v2733, 7
        %v2735 = vsub.s32 %v2732, %v2734
        %v2736 = vrot.slane %v2720, %v2735
        %v2738 = vunpack.c.l.s4 1966171168
        %v2739 = vunpack.c.0.s8 %v2738
        %v2740 = vlaneseq
        %v2741 = vshrl.u32 %v2740, 7
        %v2742 = vsub.s32 %v2739, %v2741
        %v2743 = vrot.slane %v2727, %v2742
        %v2745 = vunpack.c.l.s4 1966171168
        %v2746 = vunpack.c.0.s8 %v2745
        %v2747 = vlaneseq
        %v2748 = vshrl.u32 %v2747, 7
        %v2749 = vsub.s32 %v2746, %v2748
        %v2750 = vrot.slane %v2728, %v2749
        %v2752 = vunpack.c.l.s4 1966171168
        %v2753 = vunpack.c.0.s8 %v2752
        %v2754 = vlaneseq
        %v2755 = vshrl.u32 %v2754, 7
        %v2756 = vsub.s32 %v2753, %v2755
        %v2757 = vrot.slane %v2729, %v2756
        %v2758 = vcombine.high %v2736, %v2736
        %v2759 = vcombine.high %v2743, %v2743
        %v2760 = vcombine.high %v2750, %v2750
        %v2761 = vcombine.high %v2757, %v2757
        %v2762 = vcombine.high %v891, %v891
        %v2764 = vunpack.c.l.s4 1966171168
        %v2765 = vunpack.c.0.s8 %v2764
        %v2766 = vlaneseq
        %v2767 = vshrl.u32 %v2766, 7
        %v2768 = vsub.s32 %v2765, %v2767
        %v2769 = vrot.slane %v891, %v2768
        %v2771 = vunpack.c.l.s4 1966171168
        %v2772 = vunpack.c.0.s8 %v2771
        %v2773 = vlaneseq
        %v2774 = vshrl.u32 %v2773, 7
        %v2775 = vsub.s32 %v2772, %v2774
        %v2776 = vrot.slane %v2762, %v2775
        %v2777 = vcombine.high %v2769, %v2769
        %v2778 = vcombine.high %v2776, %v2776
        %v2780 = vunpack.c.l.s4 1966171168
        %v2781 = vunpack.c.0.s8 %v2780
        %v2782 = vlaneseq
        %v2783 = vshrl.u32 %v2782, 7
        %v2784 = vsub.s32 %v2781, %v2783
        %v2785 = vrot.slane %v2769, %v2784
        %v2787 = vunpack.c.l.s4 1966171168
        %v2788 = vunpack.c.0.s8 %v2787
        %v2789 = vlaneseq
        %v2790 = vshrl.u32 %v2789, 7
        %v2791 = vsub.s32 %v2788, %v2790
        %v2792 = vrot.slane %v2776, %v2791
        %v2794 = vunpack.c.l.s4 1966171168
        %v2795 = vunpack.c.0.s8 %v2794
        %v2796 = vlaneseq
        %v2797 = vshrl.u32 %v2796, 7
        %v2798 = vsub.s32 %v2795, %v2797
        %v2799 = vrot.slane %v2777, %v2798
        %v2801 = vunpack.c.l.s4 1966171168
        %v2802 = vunpack.c.0.s8 %v2801
        %v2803 = vlaneseq
        %v2804 = vshrl.u32 %v2803, 7
        %v2805 = vsub.s32 %v2802, %v2804
        %v2806 = vrot.slane %v2778, %v2805
        %v2807 = vcombine.high %v2785, %v2785
        %v2808 = vcombine.high %v2792, %v2792
        %v2809 = vcombine.high %v2799, %v2799
        %v2810 = vcombine.high %v2806, %v2806
        %v2811 = vcombine.high %v896, %v896
        %v2813 = vunpack.c.l.s4 1966171168
        %v2814 = vunpack.c.0.s8 %v2813
        %v2815 = vlaneseq
        %v2816 = vshrl.u32 %v2815, 7
        %v2817 = vsub.s32 %v2814, %v2816
        %v2818 = vrot.slane %v896, %v2817
        %v2820 = vunpack.c.l.s4 1966171168
        %v2821 = vunpack.c.0.s8 %v2820
        %v2822 = vlaneseq
        %v2823 = vshrl.u32 %v2822, 7
        %v2824 = vsub.s32 %v2821, %v2823
        %v2825 = vrot.slane %v2811, %v2824
        %v2826 = vcombine.high %v2818, %v2818
        %v2827 = vcombine.high %v2825, %v2825
        %v2829 = vunpack.c.l.s4 1966171168
        %v2830 = vunpack.c.0.s8 %v2829
        %v2831 = vlaneseq
        %v2832 = vshrl.u32 %v2831, 7
        %v2833 = vsub.s32 %v2830, %v2832
        %v2834 = vrot.slane %v2818, %v2833
        %v2836 = vunpack.c.l.s4 1966171168
        %v2837 = vunpack.c.0.s8 %v2836
        %v2838 = vlaneseq
        %v2839 = vshrl.u32 %v2838, 7
        %v2840 = vsub.s32 %v2837, %v2839
        %v2841 = vrot.slane %v2825, %v2840
        %v2843 = vunpack.c.l.s4 1966171168
        %v2844 = vunpack.c.0.s8 %v2843
        %v2845 = vlaneseq
        %v2846 = vshrl.u32 %v2845, 7
        %v2847 = vsub.s32 %v2844, %v2846
        %v2848 = vrot.slane %v2826, %v2847
        %v2850 = vunpack.c.l.s4 1966171168
        %v2851 = vunpack.c.0.s8 %v2850
        %v2852 = vlaneseq
        %v2853 = vshrl.u32 %v2852, 7
        %v2854 = vsub.s32 %v2851, %v2853
        %v2855 = vrot.slane %v2827, %v2854
        %v2856 = vcombine.high %v2834, %v2834
        %v2857 = vcombine.high %v2841, %v2841
        %v2858 = vcombine.high %v2848, %v2848
        %v2859 = vcombine.high %v2855, %v2855
        %v2860 = vcombine.high %v901, %v901
        %v2862 = vunpack.c.l.s4 1966171168
        %v2863 = vunpack.c.0.s8 %v2862
        %v2864 = vlaneseq
        %v2865 = vshrl.u32 %v2864, 7
        %v2866 = vsub.s32 %v2863, %v2865
        %v2867 = vrot.slane %v901, %v2866
        %v2869 = vunpack.c.l.s4 1966171168
        %v2870 = vunpack.c.0.s8 %v2869
        %v2871 = vlaneseq
        %v2872 = vshrl.u32 %v2871, 7
        %v2873 = vsub.s32 %v2870, %v2872
        %v2874 = vrot.slane %v2860, %v2873
        %v2875 = vcombine.high %v2867, %v2867
        %v2876 = vcombine.high %v2874, %v2874
        %v2878 = vunpack.c.l.s4 1966171168
        %v2879 = vunpack.c.0.s8 %v2878
        %v2880 = vlaneseq
        %v2881 = vshrl.u32 %v2880, 7
        %v2882 = vsub.s32 %v2879, %v2881
        %v2883 = vrot.slane %v2867, %v2882
        %v2885 = vunpack.c.l.s4 1966171168
        %v2886 = vunpack.c.0.s8 %v2885
        %v2887 = vlaneseq
        %v2888 = vshrl.u32 %v2887, 7
        %v2889 = vsub.s32 %v2886, %v2888
        %v2890 = vrot.slane %v2874, %v2889
        %v2892 = vunpack.c.l.s4 1966171168
        %v2893 = vunpack.c.0.s8 %v2892
        %v2894 = vlaneseq
        %v2895 = vshrl.u32 %v2894, 7
        %v2896 = vsub.s32 %v2893, %v2895
        %v2897 = vrot.slane %v2875, %v2896
        %v2899 = vunpack.c.l.s4 1966171168
        %v2900 = vunpack.c.0.s8 %v2899
        %v2901 = vlaneseq
        %v2902 = vshrl.u32 %v2901, 7
        %v2903 = vsub.s32 %v2900, %v2902
        %v2904 = vrot.slane %v2876, %v2903
        %v2905 = vcombine.high %v2883, %v2883
        %v2906 = vcombine.high %v2890, %v2890
        %v2907 = vcombine.high %v2897, %v2897
        %v2908 = vcombine.high %v2904, %v2904
        %v2909 = vcombine.high %v906, %v906
        %v2911 = vunpack.c.l.s4 1966171168
        %v2912 = vunpack.c.0.s8 %v2911
        %v2913 = vlaneseq
        %v2914 = vshrl.u32 %v2913, 7
        %v2915 = vsub.s32 %v2912, %v2914
        %v2916 = vrot.slane %v906, %v2915
        %v2918 = vunpack.c.l.s4 1966171168
        %v2919 = vunpack.c.0.s8 %v2918
        %v2920 = vlaneseq
        %v2921 = vshrl.u32 %v2920, 7
        %v2922 = vsub.s32 %v2919, %v2921
        %v2923 = vrot.slane %v2909, %v2922
        %v2924 = vcombine.high %v2916, %v2916
        %v2925 = vcombine.high %v2923, %v2923
        %v2927 = vunpack.c.l.s4 1966171168
        %v2928 = vunpack.c.0.s8 %v2927
        %v2929 = vlaneseq
        %v2930 = vshrl.u32 %v2929, 7
        %v2931 = vsub.s32 %v2928, %v2930
        %v2932 = vrot.slane %v2916, %v2931
        %v2934 = vunpack.c.l.s4 1966171168
        %v2935 = vunpack.c.0.s8 %v2934
        %v2936 = vlaneseq
        %v2937 = vshrl.u32 %v2936, 7
        %v2938 = vsub.s32 %v2935, %v2937
        %v2939 = vrot.slane %v2923, %v2938
        %v2941 = vunpack.c.l.s4 1966171168
        %v2942 = vunpack.c.0.s8 %v2941
        %v2943 = vlaneseq
        %v2944 = vshrl.u32 %v2943, 7
        %v2945 = vsub.s32 %v2942, %v2944
        %v2946 = vrot.slane %v2924, %v2945
        %v2948 = vunpack.c.l.s4 1966171168
        %v2949 = vunpack.c.0.s8 %v2948
        %v2950 = vlaneseq
        %v2951 = vshrl.u32 %v2950, 7
        %v2952 = vsub.s32 %v2949, %v2951
        %v2953 = vrot.slane %v2925, %v2952
        %v2954 = vcombine.high %v2932, %v2932
        %v2955 = vcombine.high %v2939, %v2939
        %v2956 = vcombine.high %v2946, %v2946
        %v2957 = vcombine.high %v2953, %v2953
        %v2958 = vcombine.high %v911, %v911
        %v2960 = vunpack.c.l.s4 1966171168
        %v2961 = vunpack.c.0.s8 %v2960
        %v2962 = vlaneseq
        %v2963 = vshrl.u32 %v2962, 7
        %v2964 = vsub.s32 %v2961, %v2963
        %v2965 = vrot.slane %v911, %v2964
        %v2967 = vunpack.c.l.s4 1966171168
        %v2968 = vunpack.c.0.s8 %v2967
        %v2969 = vlaneseq
        %v2970 = vshrl.u32 %v2969, 7
        %v2971 = vsub.s32 %v2968, %v2970
        %v2972 = vrot.slane %v2958, %v2971
        %v2973 = vcombine.high %v2965, %v2965
        %v2974 = vcombine.high %v2972, %v2972
        %v2976 = vunpack.c.l.s4 1966171168
        %v2977 = vunpack.c.0.s8 %v2976
        %v2978 = vlaneseq
        %v2979 = vshrl.u32 %v2978, 7
        %v2980 = vsub.s32 %v2977, %v2979
        %v2981 = vrot.slane %v2965, %v2980
        %v2983 = vunpack.c.l.s4 1966171168
        %v2984 = vunpack.c.0.s8 %v2983
        %v2985 = vlaneseq
        %v2986 = vshrl.u32 %v2985, 7
        %v2987 = vsub.s32 %v2984, %v2986
        %v2988 = vrot.slane %v2972, %v2987
        %v2990 = vunpack.c.l.s4 1966171168
        %v2991 = vunpack.c.0.s8 %v2990
        %v2992 = vlaneseq
        %v2993 = vshrl.u32 %v2992, 7
        %v2994 = vsub.s32 %v2991, %v2993
        %v2995 = vrot.slane %v2973, %v2994
        %v2997 = vunpack.c.l.s4 1966171168
        %v2998 = vunpack.c.0.s8 %v2997
        %v2999 = vlaneseq
        %v3000 = vshrl.u32 %v2999, 7
        %v3001 = vsub.s32 %v2998, %v3000
        %v3002 = vrot.slane %v2974, %v3001
        %v3003 = vcombine.high %v2981, %v2981
        %v3004 = vcombine.high %v2988, %v2988
        %v3005 = vcombine.high %v2995, %v2995
        %v3006 = vcombine.high %v3002, %v3002
        %v3007 = vcombine.high %v916, %v916
        %v3009 = vunpack.c.l.s4 1966171168
        %v3010 = vunpack.c.0.s8 %v3009
        %v3011 = vlaneseq
        %v3012 = vshrl.u32 %v3011, 7
        %v3013 = vsub.s32 %v3010, %v3012
        %v3014 = vrot.slane %v916, %v3013
        %v3016 = vunpack.c.l.s4 1966171168
        %v3017 = vunpack.c.0.s8 %v3016
        %v3018 = vlaneseq
        %v3019 = vshrl.u32 %v3018, 7
        %v3020 = vsub.s32 %v3017, %v3019
        %v3021 = vrot.slane %v3007, %v3020
        %v3022 = vcombine.high %v3014, %v3014
        %v3023 = vcombine.high %v3021, %v3021
        %v3025 = vunpack.c.l.s4 1966171168
        %v3026 = vunpack.c.0.s8 %v3025
        %v3027 = vlaneseq
        %v3028 = vshrl.u32 %v3027, 7
        %v3029 = vsub.s32 %v3026, %v3028
        %v3030 = vrot.slane %v3014, %v3029
        %v3032 = vunpack.c.l.s4 1966171168
        %v3033 = vunpack.c.0.s8 %v3032
        %v3034 = vlaneseq
        %v3035 = vshrl.u32 %v3034, 7
        %v3036 = vsub.s32 %v3033, %v3035
        %v3037 = vrot.slane %v3021, %v3036
        %v3039 = vunpack.c.l.s4 1966171168
        %v3040 = vunpack.c.0.s8 %v3039
        %v3041 = vlaneseq
        %v3042 = vshrl.u32 %v3041, 7
        %v3043 = vsub.s32 %v3040, %v3042
        %v3044 = vrot.slane %v3022, %v3043
        %v3046 = vunpack.c.l.s4 1966171168
        %v3047 = vunpack.c.0.s8 %v3046
        %v3048 = vlaneseq
        %v3049 = vshrl.u32 %v3048, 7
        %v3050 = vsub.s32 %v3047, %v3049
        %v3051 = vrot.slane %v3023, %v3050
        %v3052 = vcombine.high %v3030, %v3030
        %v3053 = vcombine.high %v3037, %v3037
        %v3054 = vcombine.high %v3044, %v3044
        %v3055 = vcombine.high %v3051, %v3051
        %v3056 = vcombine.high %v921, %v921
        %v3058 = vunpack.c.l.s4 1966171168
        %v3059 = vunpack.c.0.s8 %v3058
        %v3060 = vlaneseq
        %v3061 = vshrl.u32 %v3060, 7
        %v3062 = vsub.s32 %v3059, %v3061
        %v3063 = vrot.slane %v921, %v3062
        %v3065 = vunpack.c.l.s4 1966171168
        %v3066 = vunpack.c.0.s8 %v3065
        %v3067 = vlaneseq
        %v3068 = vshrl.u32 %v3067, 7
        %v3069 = vsub.s32 %v3066, %v3068
        %v3070 = vrot.slane %v3056, %v3069
        %v3071 = vcombine.high %v3063, %v3063
        %v3072 = vcombine.high %v3070, %v3070
        %v3074 = vunpack.c.l.s4 1966171168
        %v3075 = vunpack.c.0.s8 %v3074
        %v3076 = vlaneseq
        %v3077 = vshrl.u32 %v3076, 7
        %v3078 = vsub.s32 %v3075, %v3077
        %v3079 = vrot.slane %v3063, %v3078
        %v3081 = vunpack.c.l.s4 1966171168
        %v3082 = vunpack.c.0.s8 %v3081
        %v3083 = vlaneseq
        %v3084 = vshrl.u32 %v3083, 7
        %v3085 = vsub.s32 %v3082, %v3084
        %v3086 = vrot.slane %v3070, %v3085
        %v3088 = vunpack.c.l.s4 1966171168
        %v3089 = vunpack.c.0.s8 %v3088
        %v3090 = vlaneseq
        %v3091 = vshrl.u32 %v3090, 7
        %v3092 = vsub.s32 %v3089, %v3091
        %v3093 = vrot.slane %v3071, %v3092
        %v3095 = vunpack.c.l.s4 1966171168
        %v3096 = vunpack.c.0.s8 %v3095
        %v3097 = vlaneseq
        %v3098 = vshrl.u32 %v3097, 7
        %v3099 = vsub.s32 %v3096, %v3098
        %v3100 = vrot.slane %v3072, %v3099
        %v3101 = vcombine.high %v3079, %v3079
        %v3102 = vcombine.high %v3086, %v3086
        %v3103 = vcombine.high %v3093, %v3093
        %v3104 = vcombine.high %v3100, %v3100
        %v3105 = vcombine.high %v926, %v926
        %v3107 = vunpack.c.l.s4 1966171168
        %v3108 = vunpack.c.0.s8 %v3107
        %v3109 = vlaneseq
        %v3110 = vshrl.u32 %v3109, 7
        %v3111 = vsub.s32 %v3108, %v3110
        %v3112 = vrot.slane %v926, %v3111
        %v3114 = vunpack.c.l.s4 1966171168
        %v3115 = vunpack.c.0.s8 %v3114
        %v3116 = vlaneseq
        %v3117 = vshrl.u32 %v3116, 7
        %v3118 = vsub.s32 %v3115, %v3117
        %v3119 = vrot.slane %v3105, %v3118
        %v3120 = vcombine.high %v3112, %v3112
        %v3121 = vcombine.high %v3119, %v3119
        %v3123 = vunpack.c.l.s4 1966171168
        %v3124 = vunpack.c.0.s8 %v3123
        %v3125 = vlaneseq
        %v3126 = vshrl.u32 %v3125, 7
        %v3127 = vsub.s32 %v3124, %v3126
        %v3128 = vrot.slane %v3112, %v3127
        %v3130 = vunpack.c.l.s4 1966171168
        %v3131 = vunpack.c.0.s8 %v3130
        %v3132 = vlaneseq
        %v3133 = vshrl.u32 %v3132, 7
        %v3134 = vsub.s32 %v3131, %v3133
        %v3135 = vrot.slane %v3119, %v3134
        %v3137 = vunpack.c.l.s4 1966171168
        %v3138 = vunpack.c.0.s8 %v3137
        %v3139 = vlaneseq
        %v3140 = vshrl.u32 %v3139, 7
        %v3141 = vsub.s32 %v3138, %v3140
        %v3142 = vrot.slane %v3120, %v3141
        %v3144 = vunpack.c.l.s4 1966171168
        %v3145 = vunpack.c.0.s8 %v3144
        %v3146 = vlaneseq
        %v3147 = vshrl.u32 %v3146, 7
        %v3148 = vsub.s32 %v3145, %v3147
        %v3149 = vrot.slane %v3121, %v3148
        %v3150 = vcombine.high %v3128, %v3128
        %v3151 = vcombine.high %v3135, %v3135
        %v3152 = vcombine.high %v3142, %v3142
        %v3153 = vcombine.high %v3149, %v3149
        %v3154 = vcombine.high %v931, %v931
        %v3156 = vunpack.c.l.s4 1966171168
        %v3157 = vunpack.c.0.s8 %v3156
        %v3158 = vlaneseq
        %v3159 = vshrl.u32 %v3158, 7
        %v3160 = vsub.s32 %v3157, %v3159
        %v3161 = vrot.slane %v931, %v3160
        %v3163 = vunpack.c.l.s4 1966171168
        %v3164 = vunpack.c.0.s8 %v3163
        %v3165 = vlaneseq
        %v3166 = vshrl.u32 %v3165, 7
        %v3167 = vsub.s32 %v3164, %v3166
        %v3168 = vrot.slane %v3154, %v3167
        %v3169 = vcombine.high %v3161, %v3161
        %v3170 = vcombine.high %v3168, %v3168
        %v3172 = vunpack.c.l.s4 1966171168
        %v3173 = vunpack.c.0.s8 %v3172
        %v3174 = vlaneseq
        %v3175 = vshrl.u32 %v3174, 7
        %v3176 = vsub.s32 %v3173, %v3175
        %v3177 = vrot.slane %v3161, %v3176
        %v3179 = vunpack.c.l.s4 1966171168
        %v3180 = vunpack.c.0.s8 %v3179
        %v3181 = vlaneseq
        %v3182 = vshrl.u32 %v3181, 7
        %v3183 = vsub.s32 %v3180, %v3182
        %v3184 = vrot.slane %v3168, %v3183
        %v3186 = vunpack.c.l.s4 1966171168
        %v3187 = vunpack.c.0.s8 %v3186
        %v3188 = vlaneseq
        %v3189 = vshrl.u32 %v3188, 7
        %v3190 = vsub.s32 %v3187, %v3189
        %v3191 = vrot.slane %v3169, %v3190
        %v3193 = vunpack.c.l.s4 1966171168
        %v3194 = vunpack.c.0.s8 %v3193
        %v3195 = vlaneseq
        %v3196 = vshrl.u32 %v3195, 7
        %v3197 = vsub.s32 %v3194, %v3196
        %v3198 = vrot.slane %v3170, %v3197
        %v3199 = vcombine.high %v3177, %v3177
        %v3200 = vcombine.high %v3184, %v3184
        %v3201 = vcombine.high %v3191, %v3191
        %v3202 = vcombine.high %v3198, %v3198
        %v3203 = vcombine.high %v936, %v936
        %v3205 = vunpack.c.l.s4 1966171168
        %v3206 = vunpack.c.0.s8 %v3205
        %v3207 = vlaneseq
        %v3208 = vshrl.u32 %v3207, 7
        %v3209 = vsub.s32 %v3206, %v3208
        %v3210 = vrot.slane %v936, %v3209
        %v3212 = vunpack.c.l.s4 1966171168
        %v3213 = vunpack.c.0.s8 %v3212
        %v3214 = vlaneseq
        %v3215 = vshrl.u32 %v3214, 7
        %v3216 = vsub.s32 %v3213, %v3215
        %v3217 = vrot.slane %v3203, %v3216
        %v3218 = vcombine.high %v3210, %v3210
        %v3219 = vcombine.high %v3217, %v3217
        %v3221 = vunpack.c.l.s4 1966171168
        %v3222 = vunpack.c.0.s8 %v3221
        %v3223 = vlaneseq
        %v3224 = vshrl.u32 %v3223, 7
        %v3225 = vsub.s32 %v3222, %v3224
        %v3226 = vrot.slane %v3210, %v3225
        %v3228 = vunpack.c.l.s4 1966171168
        %v3229 = vunpack.c.0.s8 %v3228
        %v3230 = vlaneseq
        %v3231 = vshrl.u32 %v3230, 7
        %v3232 = vsub.s32 %v3229, %v3231
        %v3233 = vrot.slane %v3217, %v3232
        %v3235 = vunpack.c.l.s4 1966171168
        %v3236 = vunpack.c.0.s8 %v3235
        %v3237 = vlaneseq
        %v3238 = vshrl.u32 %v3237, 7
        %v3239 = vsub.s32 %v3236, %v3238
        %v3240 = vrot.slane %v3218, %v3239
        %v3242 = vunpack.c.l.s4 1966171168
        %v3243 = vunpack.c.0.s8 %v3242
        %v3244 = vlaneseq
        %v3245 = vshrl.u32 %v3244, 7
        %v3246 = vsub.s32 %v3243, %v3245
        %v3247 = vrot.slane %v3219, %v3246
        %v3248 = vcombine.high %v3226, %v3226
        %v3249 = vcombine.high %v3233, %v3233
        %v3250 = vcombine.high %v3240, %v3240
        %v3251 = vcombine.high %v3247, %v3247
        %v3252 = vcombine.high %v941, %v941
        %v3254 = vunpack.c.l.s4 1966171168
        %v3255 = vunpack.c.0.s8 %v3254
        %v3256 = vlaneseq
        %v3257 = vshrl.u32 %v3256, 7
        %v3258 = vsub.s32 %v3255, %v3257
        %v3259 = vrot.slane %v941, %v3258
        %v3261 = vunpack.c.l.s4 1966171168
        %v3262 = vunpack.c.0.s8 %v3261
        %v3263 = vlaneseq
        %v3264 = vshrl.u32 %v3263, 7
        %v3265 = vsub.s32 %v3262, %v3264
        %v3266 = vrot.slane %v3252, %v3265
        %v3267 = vcombine.high %v3259, %v3259
        %v3268 = vcombine.high %v3266, %v3266
        %v3270 = vunpack.c.l.s4 1966171168
        %v3271 = vunpack.c.0.s8 %v3270
        %v3272 = vlaneseq
        %v3273 = vshrl.u32 %v3272, 7
        %v3274 = vsub.s32 %v3271, %v3273
        %v3275 = vrot.slane %v3259, %v3274
        %v3277 = vunpack.c.l.s4 1966171168
        %v3278 = vunpack.c.0.s8 %v3277
        %v3279 = vlaneseq
        %v3280 = vshrl.u32 %v3279, 7
        %v3281 = vsub.s32 %v3278, %v3280
        %v3282 = vrot.slane %v3266, %v3281
        %v3284 = vunpack.c.l.s4 1966171168
        %v3285 = vunpack.c.0.s8 %v3284
        %v3286 = vlaneseq
        %v3287 = vshrl.u32 %v3286, 7
        %v3288 = vsub.s32 %v3285, %v3287
        %v3289 = vrot.slane %v3267, %v3288
        %v3291 = vunpack.c.l.s4 1966171168
        %v3292 = vunpack.c.0.s8 %v3291
        %v3293 = vlaneseq
        %v3294 = vshrl.u32 %v3293, 7
        %v3295 = vsub.s32 %v3292, %v3294
        %v3296 = vrot.slane %v3268, %v3295
        %v3297 = vcombine.high %v3275, %v3275
        %v3298 = vcombine.high %v3282, %v3282
        %v3299 = vcombine.high %v3289, %v3289
        %v3300 = vcombine.high %v3296, %v3296
        %v3301 = vcombine.high %v946, %v946
        %v3303 = vunpack.c.l.s4 1966171168
        %v3304 = vunpack.c.0.s8 %v3303
        %v3305 = vlaneseq
        %v3306 = vshrl.u32 %v3305, 7
        %v3307 = vsub.s32 %v3304, %v3306
        %v3308 = vrot.slane %v946, %v3307
        %v3310 = vunpack.c.l.s4 1966171168
        %v3311 = vunpack.c.0.s8 %v3310
        %v3312 = vlaneseq
        %v3313 = vshrl.u32 %v3312, 7
        %v3314 = vsub.s32 %v3311, %v3313
        %v3315 = vrot.slane %v3301, %v3314
        %v3316 = vcombine.high %v3308, %v3308
        %v3317 = vcombine.high %v3315, %v3315
        %v3319 = vunpack.c.l.s4 1966171168
        %v3320 = vunpack.c.0.s8 %v3319
        %v3321 = vlaneseq
        %v3322 = vshrl.u32 %v3321, 7
        %v3323 = vsub.s32 %v3320, %v3322
        %v3324 = vrot.slane %v3308, %v3323
        %v3326 = vunpack.c.l.s4 1966171168
        %v3327 = vunpack.c.0.s8 %v3326
        %v3328 = vlaneseq
        %v3329 = vshrl.u32 %v3328, 7
        %v3330 = vsub.s32 %v3327, %v3329
        %v3331 = vrot.slane %v3315, %v3330
        %v3333 = vunpack.c.l.s4 1966171168
        %v3334 = vunpack.c.0.s8 %v3333
        %v3335 = vlaneseq
        %v3336 = vshrl.u32 %v3335, 7
        %v3337 = vsub.s32 %v3334, %v3336
        %v3338 = vrot.slane %v3316, %v3337
        %v3340 = vunpack.c.l.s4 1966171168
        %v3341 = vunpack.c.0.s8 %v3340
        %v3342 = vlaneseq
        %v3343 = vshrl.u32 %v3342, 7
        %v3344 = vsub.s32 %v3341, %v3343
        %v3345 = vrot.slane %v3317, %v3344
        %v3346 = vcombine.high %v3324, %v3324
        %v3347 = vcombine.high %v3331, %v3331
        %v3348 = vcombine.high %v3338, %v3338
        %v3349 = vcombine.high %v3345, %v3345
        %v3350 = vcombine.high %v951, %v951
        %v3352 = vunpack.c.l.s4 1966171168
        %v3353 = vunpack.c.0.s8 %v3352
        %v3354 = vlaneseq
        %v3355 = vshrl.u32 %v3354, 7
        %v3356 = vsub.s32 %v3353, %v3355
        %v3357 = vrot.slane %v951, %v3356
        %v3359 = vunpack.c.l.s4 1966171168
        %v3360 = vunpack.c.0.s8 %v3359
        %v3361 = vlaneseq
        %v3362 = vshrl.u32 %v3361, 7
        %v3363 = vsub.s32 %v3360, %v3362
        %v3364 = vrot.slane %v3350, %v3363
        %v3365 = vcombine.high %v3357, %v3357
        %v3366 = vcombine.high %v3364, %v3364
        %v3368 = vunpack.c.l.s4 1966171168
        %v3369 = vunpack.c.0.s8 %v3368
        %v3370 = vlaneseq
        %v3371 = vshrl.u32 %v3370, 7
        %v3372 = vsub.s32 %v3369, %v3371
        %v3373 = vrot.slane %v3357, %v3372
        %v3375 = vunpack.c.l.s4 1966171168
        %v3376 = vunpack.c.0.s8 %v3375
        %v3377 = vlaneseq
        %v3378 = vshrl.u32 %v3377, 7
        %v3379 = vsub.s32 %v3376, %v3378
        %v3380 = vrot.slane %v3364, %v3379
        %v3382 = vunpack.c.l.s4 1966171168
        %v3383 = vunpack.c.0.s8 %v3382
        %v3384 = vlaneseq
        %v3385 = vshrl.u32 %v3384, 7
        %v3386 = vsub.s32 %v3383, %v3385
        %v3387 = vrot.slane %v3365, %v3386
        %v3389 = vunpack.c.l.s4 1966171168
        %v3390 = vunpack.c.0.s8 %v3389
        %v3391 = vlaneseq
        %v3392 = vshrl.u32 %v3391, 7
        %v3393 = vsub.s32 %v3390, %v3392
        %v3394 = vrot.slane %v3366, %v3393
        %v3395 = vcombine.high %v3373, %v3373
        %v3396 = vcombine.high %v3380, %v3380
        %v3397 = vcombine.high %v3387, %v3387
        %v3398 = vcombine.high %v3394, %v3394
        %v3399 = vlaneseq
        %v3400 = vshrl.u32 %v3399, 7
        %v3401 = vsub.s32 0, %v3400
        %v3402 = vrot.slane %v2638, %v3401
        %v3403 = vlaneseq
        %v3404 = vshrl.u32 %v3403, 7
        %v3405 = vsub.s32 0, %v3404
        %v3406 = vrot.slane %v2652, %v3405
        %v3407 = vlaneseq
        %v3408 = vshrl.u32 %v3407, 7
        %v3409 = vsub.s32 0, %v3408
        %v3410 = vrot.slane %v2660, %v3409
        %v3411 = vlaneseq
        %v3412 = vshrl.u32 %v3411, 7
        %v3413 = vsub.s32 0, %v3412
        %v3414 = vrot.slane %v2662, %v3413
        %v3415 = vlaneseq
        %v3416 = vshrl.u32 %v3415, 7
        %v3417 = vsub.s32 0, %v3416
        %v3418 = vrot.slane %v2645, %v3417
        %v3419 = vlaneseq
        %v3420 = vshrl.u32 %v3419, 7
        %v3421 = vsub.s32 0, %v3420
        %v3422 = vrot.slane %v2659, %v3421
        %v3423 = vlaneseq
        %v3424 = vshrl.u32 %v3423, 7
        %v3425 = vsub.s32 0, %v3424
        %v3426 = vrot.slane %v2661, %v3425
        %v3427 = vlaneseq
        %v3428 = vshrl.u32 %v3427, 7
        %v3429 = vsub.s32 0, %v3428
        %v3430 = vrot.slane %v2663, %v3429
        %v3431 = vlaneseq
        %v3432 = vshrl.u32 %v3431, 7
        %v3433 = vsub.s32 0, %v3432
        %v3434 = vrot.slane %v2687, %v3433
        %v3435 = vlaneseq
        %v3436 = vshrl.u32 %v3435, 7
        %v3437 = vsub.s32 0, %v3436
        %v3438 = vrot.slane %v2701, %v3437
        %v3439 = vlaneseq
        %v3440 = vshrl.u32 %v3439, 7
        %v3441 = vsub.s32 0, %v3440
        %v3442 = vrot.slane %v2709, %v3441
        %v3443 = vlaneseq
        %v3444 = vshrl.u32 %v3443, 7
        %v3445 = vsub.s32 0, %v3444
        %v3446 = vrot.slane %v2711, %v3445
        %v3447 = vlaneseq
        %v3448 = vshrl.u32 %v3447, 7
        %v3449 = vsub.s32 0, %v3448
        %v3450 = vrot.slane %v2694, %v3449
        %v3451 = vlaneseq
        %v3452 = vshrl.u32 %v3451, 7
        %v3453 = vsub.s32 0, %v3452
        %v3454 = vrot.slane %v2708, %v3453
        %v3455 = vlaneseq
        %v3456 = vshrl.u32 %v3455, 7
        %v3457 = vsub.s32 0, %v3456
        %v3458 = vrot.slane %v2710, %v3457
        %v3459 = vlaneseq
        %v3460 = vshrl.u32 %v3459, 7
        %v3461 = vsub.s32 0, %v3460
        %v3462 = vrot.slane %v2712, %v3461
        %v3463 = vlaneseq
        %v3464 = vshrl.u32 %v3463, 7
        %v3465 = vsub.s32 0, %v3464
        %v3466 = vrot.slane %v2736, %v3465
        %v3467 = vlaneseq
        %v3468 = vshrl.u32 %v3467, 7
        %v3469 = vsub.s32 0, %v3468
        %v3470 = vrot.slane %v2750, %v3469
        %v3471 = vlaneseq
        %v3472 = vshrl.u32 %v3471, 7
        %v3473 = vsub.s32 0, %v3472
        %v3474 = vrot.slane %v2758, %v3473
        %v3475 = vlaneseq
        %v3476 = vshrl.u32 %v3475, 7
        %v3477 = vsub.s32 0, %v3476
        %v3478 = vrot.slane %v2760, %v3477
        %v3479 = vlaneseq
        %v3480 = vshrl.u32 %v3479, 7
        %v3481 = vsub.s32 0, %v3480
        %v3482 = vrot.slane %v2743, %v3481
        %v3483 = vlaneseq
        %v3484 = vshrl.u32 %v3483, 7
        %v3485 = vsub.s32 0, %v3484
        %v3486 = vrot.slane %v2757, %v3485
        %v3487 = vlaneseq
        %v3488 = vshrl.u32 %v3487, 7
        %v3489 = vsub.s32 0, %v3488
        %v3490 = vrot.slane %v2759, %v3489
        %v3491 = vlaneseq
        %v3492 = vshrl.u32 %v3491, 7
        %v3493 = vsub.s32 0, %v3492
        %v3494 = vrot.slane %v2761, %v3493
        %v3495 = vlaneseq
        %v3496 = vshrl.u32 %v3495, 7
        %v3497 = vsub.s32 0, %v3496
        %v3498 = vrot.slane %v2785, %v3497
        %v3499 = vlaneseq
        %v3500 = vshrl.u32 %v3499, 7
        %v3501 = vsub.s32 0, %v3500
        %v3502 = vrot.slane %v2799, %v3501
        %v3503 = vlaneseq
        %v3504 = vshrl.u32 %v3503, 7
        %v3505 = vsub.s32 0, %v3504
        %v3506 = vrot.slane %v2807, %v3505
        %v3507 = vlaneseq
        %v3508 = vshrl.u32 %v3507, 7
        %v3509 = vsub.s32 0, %v3508
        %v3510 = vrot.slane %v2809, %v3509
        %v3511 = vlaneseq
        %v3512 = vshrl.u32 %v3511, 7
        %v3513 = vsub.s32 0, %v3512
        %v3514 = vrot.slane %v2792, %v3513
        %v3515 = vlaneseq
        %v3516 = vshrl.u32 %v3515, 7
        %v3517 = vsub.s32 0, %v3516
        %v3518 = vrot.slane %v2806, %v3517
        %v3519 = vlaneseq
        %v3520 = vshrl.u32 %v3519, 7
        %v3521 = vsub.s32 0, %v3520
        %v3522 = vrot.slane %v2808, %v3521
        %v3523 = vlaneseq
        %v3524 = vshrl.u32 %v3523, 7
        %v3525 = vsub.s32 0, %v3524
        %v3526 = vrot.slane %v2810, %v3525
        %v3527 = vlaneseq
        %v3528 = vshrl.u32 %v3527, 7
        %v3529 = vsub.s32 0, %v3528
        %v3530 = vrot.slane %v2834, %v3529
        %v3531 = vlaneseq
        %v3532 = vshrl.u32 %v3531, 7
        %v3533 = vsub.s32 0, %v3532
        %v3534 = vrot.slane %v2848, %v3533
        %v3535 = vlaneseq
        %v3536 = vshrl.u32 %v3535, 7
        %v3537 = vsub.s32 0, %v3536
        %v3538 = vrot.slane %v2856, %v3537
        %v3539 = vlaneseq
        %v3540 = vshrl.u32 %v3539, 7
        %v3541 = vsub.s32 0, %v3540
        %v3542 = vrot.slane %v2858, %v3541
        %v3543 = vlaneseq
        %v3544 = vshrl.u32 %v3543, 7
        %v3545 = vsub.s32 0, %v3544
        %v3546 = vrot.slane %v2841, %v3545
        %v3547 = vlaneseq
        %v3548 = vshrl.u32 %v3547, 7
        %v3549 = vsub.s32 0, %v3548
        %v3550 = vrot.slane %v2855, %v3549
        %v3551 = vlaneseq
        %v3552 = vshrl.u32 %v3551, 7
        %v3553 = vsub.s32 0, %v3552
        %v3554 = vrot.slane %v2857, %v3553
        %v3555 = vlaneseq
        %v3556 = vshrl.u32 %v3555, 7
        %v3557 = vsub.s32 0, %v3556
        %v3558 = vrot.slane %v2859, %v3557
        %v3559 = vlaneseq
        %v3560 = vshrl.u32 %v3559, 7
        %v3561 = vsub.s32 0, %v3560
        %v3562 = vrot.slane %v2883, %v3561
        %v3563 = vlaneseq
        %v3564 = vshrl.u32 %v3563, 7
        %v3565 = vsub.s32 0, %v3564
        %v3566 = vrot.slane %v2897, %v3565
        %v3567 = vlaneseq
        %v3568 = vshrl.u32 %v3567, 7
        %v3569 = vsub.s32 0, %v3568
        %v3570 = vrot.slane %v2905, %v3569
        %v3571 = vlaneseq
        %v3572 = vshrl.u32 %v3571, 7
        %v3573 = vsub.s32 0, %v3572
        %v3574 = vrot.slane %v2907, %v3573
        %v3575 = vlaneseq
        %v3576 = vshrl.u32 %v3575, 7
        %v3577 = vsub.s32 0, %v3576
        %v3578 = vrot.slane %v2890, %v3577
        %v3579 = vlaneseq
        %v3580 = vshrl.u32 %v3579, 7
        %v3581 = vsub.s32 0, %v3580
        %v3582 = vrot.slane %v2904, %v3581
        %v3583 = vlaneseq
        %v3584 = vshrl.u32 %v3583, 7
        %v3585 = vsub.s32 0, %v3584
        %v3586 = vrot.slane %v2906, %v3585
        %v3587 = vlaneseq
        %v3588 = vshrl.u32 %v3587, 7
        %v3589 = vsub.s32 0, %v3588
        %v3590 = vrot.slane %v2908, %v3589
        %v3591 = vlaneseq
        %v3592 = vshrl.u32 %v3591, 7
        %v3593 = vsub.s32 0, %v3592
        %v3594 = vrot.slane %v2932, %v3593
        %v3595 = vlaneseq
        %v3596 = vshrl.u32 %v3595, 7
        %v3597 = vsub.s32 0, %v3596
        %v3598 = vrot.slane %v2946, %v3597
        %v3599 = vlaneseq
        %v3600 = vshrl.u32 %v3599, 7
        %v3601 = vsub.s32 0, %v3600
        %v3602 = vrot.slane %v2954, %v3601
        %v3603 = vlaneseq
        %v3604 = vshrl.u32 %v3603, 7
        %v3605 = vsub.s32 0, %v3604
        %v3606 = vrot.slane %v2956, %v3605
        %v3607 = vlaneseq
        %v3608 = vshrl.u32 %v3607, 7
        %v3609 = vsub.s32 0, %v3608
        %v3610 = vrot.slane %v2939, %v3609
        %v3611 = vlaneseq
        %v3612 = vshrl.u32 %v3611, 7
        %v3613 = vsub.s32 0, %v3612
        %v3614 = vrot.slane %v2953, %v3613
        %v3615 = vlaneseq
        %v3616 = vshrl.u32 %v3615, 7
        %v3617 = vsub.s32 0, %v3616
        %v3618 = vrot.slane %v2955, %v3617
        %v3619 = vlaneseq
        %v3620 = vshrl.u32 %v3619, 7
        %v3621 = vsub.s32 0, %v3620
        %v3622 = vrot.slane %v2957, %v3621
        %v3623 = vlaneseq
        %v3624 = vshrl.u32 %v3623, 7
        %v3625 = vsub.s32 0, %v3624
        %v3626 = vrot.slane %v2981, %v3625
        %v3627 = vlaneseq
        %v3628 = vshrl.u32 %v3627, 7
        %v3629 = vsub.s32 0, %v3628
        %v3630 = vrot.slane %v2995, %v3629
        %v3631 = vlaneseq
        %v3632 = vshrl.u32 %v3631, 7
        %v3633 = vsub.s32 0, %v3632
        %v3634 = vrot.slane %v3003, %v3633
        %v3635 = vlaneseq
        %v3636 = vshrl.u32 %v3635, 7
        %v3637 = vsub.s32 0, %v3636
        %v3638 = vrot.slane %v3005, %v3637
        %v3639 = vlaneseq
        %v3640 = vshrl.u32 %v3639, 7
        %v3641 = vsub.s32 0, %v3640
        %v3642 = vrot.slane %v2988, %v3641
        %v3643 = vlaneseq
        %v3644 = vshrl.u32 %v3643, 7
        %v3645 = vsub.s32 0, %v3644
        %v3646 = vrot.slane %v3002, %v3645
        %v3647 = vlaneseq
        %v3648 = vshrl.u32 %v3647, 7
        %v3649 = vsub.s32 0, %v3648
        %v3650 = vrot.slane %v3004, %v3649
        %v3651 = vlaneseq
        %v3652 = vshrl.u32 %v3651, 7
        %v3653 = vsub.s32 0, %v3652
        %v3654 = vrot.slane %v3006, %v3653
        %v3655 = vlaneseq
        %v3656 = vshrl.u32 %v3655, 7
        %v3657 = vsub.s32 0, %v3656
        %v3658 = vrot.slane %v3030, %v3657
        %v3659 = vlaneseq
        %v3660 = vshrl.u32 %v3659, 7
        %v3661 = vsub.s32 0, %v3660
        %v3662 = vrot.slane %v3044, %v3661
        %v3663 = vlaneseq
        %v3664 = vshrl.u32 %v3663, 7
        %v3665 = vsub.s32 0, %v3664
        %v3666 = vrot.slane %v3052, %v3665
        %v3667 = vlaneseq
        %v3668 = vshrl.u32 %v3667, 7
        %v3669 = vsub.s32 0, %v3668
        %v3670 = vrot.slane %v3054, %v3669
        %v3671 = vlaneseq
        %v3672 = vshrl.u32 %v3671, 7
        %v3673 = vsub.s32 0, %v3672
        %v3674 = vrot.slane %v3037, %v3673
        %v3675 = vlaneseq
        %v3676 = vshrl.u32 %v3675, 7
        %v3677 = vsub.s32 0, %v3676
        %v3678 = vrot.slane %v3051, %v3677
        %v3679 = vlaneseq
        %v3680 = vshrl.u32 %v3679, 7
        %v3681 = vsub.s32 0, %v3680
        %v3682 = vrot.slane %v3053, %v3681
        %v3683 = vlaneseq
        %v3684 = vshrl.u32 %v3683, 7
        %v3685 = vsub.s32 0, %v3684
        %v3686 = vrot.slane %v3055, %v3685
        %v3687 = vlaneseq
        %v3688 = vshrl.u32 %v3687, 7
        %v3689 = vsub.s32 0, %v3688
        %v3690 = vrot.slane %v3079, %v3689
        %v3691 = vlaneseq
        %v3692 = vshrl.u32 %v3691, 7
        %v3693 = vsub.s32 0, %v3692
        %v3694 = vrot.slane %v3093, %v3693
        %v3695 = vlaneseq
        %v3696 = vshrl.u32 %v3695, 7
        %v3697 = vsub.s32 0, %v3696
        %v3698 = vrot.slane %v3101, %v3697
        %v3699 = vlaneseq
        %v3700 = vshrl.u32 %v3699, 7
        %v3701 = vsub.s32 0, %v3700
        %v3702 = vrot.slane %v3103, %v3701
        %v3703 = vlaneseq
        %v3704 = vshrl.u32 %v3703, 7
        %v3705 = vsub.s32 0, %v3704
        %v3706 = vrot.slane %v3086, %v3705
        %v3707 = vlaneseq
        %v3708 = vshrl.u32 %v3707, 7
        %v3709 = vsub.s32 0, %v3708
        %v3710 = vrot.slane %v3100, %v3709
        %v3711 = vlaneseq
        %v3712 = vshrl.u32 %v3711, 7
        %v3713 = vsub.s32 0, %v3712
        %v3714 = vrot.slane %v3102, %v3713
        %v3715 = vlaneseq
        %v3716 = vshrl.u32 %v3715, 7
        %v3717 = vsub.s32 0, %v3716
        %v3718 = vrot.slane %v3104, %v3717
        %v3719 = vlaneseq
        %v3720 = vshrl.u32 %v3719, 7
        %v3721 = vsub.s32 0, %v3720
        %v3722 = vrot.slane %v3128, %v3721
        %v3723 = vlaneseq
        %v3724 = vshrl.u32 %v3723, 7
        %v3725 = vsub.s32 0, %v3724
        %v3726 = vrot.slane %v3142, %v3725
        %v3727 = vlaneseq
        %v3728 = vshrl.u32 %v3727, 7
        %v3729 = vsub.s32 0, %v3728
        %v3730 = vrot.slane %v3150, %v3729
        %v3731 = vlaneseq
        %v3732 = vshrl.u32 %v3731, 7
        %v3733 = vsub.s32 0, %v3732
        %v3734 = vrot.slane %v3152, %v3733
        %v3735 = vlaneseq
        %v3736 = vshrl.u32 %v3735, 7
        %v3737 = vsub.s32 0, %v3736
        %v3738 = vrot.slane %v3135, %v3737
        %v3739 = vlaneseq
        %v3740 = vshrl.u32 %v3739, 7
        %v3741 = vsub.s32 0, %v3740
        %v3742 = vrot.slane %v3149, %v3741
        %v3743 = vlaneseq
        %v3744 = vshrl.u32 %v3743, 7
        %v3745 = vsub.s32 0, %v3744
        %v3746 = vrot.slane %v3151, %v3745
        %v3747 = vlaneseq
        %v3748 = vshrl.u32 %v3747, 7
        %v3749 = vsub.s32 0, %v3748
        %v3750 = vrot.slane %v3153, %v3749
        %v3751 = vlaneseq
        %v3752 = vshrl.u32 %v3751, 7
        %v3753 = vsub.s32 0, %v3752
        %v3754 = vrot.slane %v3177, %v3753
        %v3755 = vlaneseq
        %v3756 = vshrl.u32 %v3755, 7
        %v3757 = vsub.s32 0, %v3756
        %v3758 = vrot.slane %v3191, %v3757
        %v3759 = vlaneseq
        %v3760 = vshrl.u32 %v3759, 7
        %v3761 = vsub.s32 0, %v3760
        %v3762 = vrot.slane %v3199, %v3761
        %v3763 = vlaneseq
        %v3764 = vshrl.u32 %v3763, 7
        %v3765 = vsub.s32 0, %v3764
        %v3766 = vrot.slane %v3201, %v3765
        %v3767 = vlaneseq
        %v3768 = vshrl.u32 %v3767, 7
        %v3769 = vsub.s32 0, %v3768
        %v3770 = vrot.slane %v3184, %v3769
        %v3771 = vlaneseq
        %v3772 = vshrl.u32 %v3771, 7
        %v3773 = vsub.s32 0, %v3772
        %v3774 = vrot.slane %v3198, %v3773
        %v3775 = vlaneseq
        %v3776 = vshrl.u32 %v3775, 7
        %v3777 = vsub.s32 0, %v3776
        %v3778 = vrot.slane %v3200, %v3777
        %v3779 = vlaneseq
        %v3780 = vshrl.u32 %v3779, 7
        %v3781 = vsub.s32 0, %v3780
        %v3782 = vrot.slane %v3202, %v3781
        %v3783 = vlaneseq
        %v3784 = vshrl.u32 %v3783, 7
        %v3785 = vsub.s32 0, %v3784
        %v3786 = vrot.slane %v3226, %v3785
        %v3787 = vlaneseq
        %v3788 = vshrl.u32 %v3787, 7
        %v3789 = vsub.s32 0, %v3788
        %v3790 = vrot.slane %v3240, %v3789
        %v3791 = vlaneseq
        %v3792 = vshrl.u32 %v3791, 7
        %v3793 = vsub.s32 0, %v3792
        %v3794 = vrot.slane %v3248, %v3793
        %v3795 = vlaneseq
        %v3796 = vshrl.u32 %v3795, 7
        %v3797 = vsub.s32 0, %v3796
        %v3798 = vrot.slane %v3250, %v3797
        %v3799 = vlaneseq
        %v3800 = vshrl.u32 %v3799, 7
        %v3801 = vsub.s32 0, %v3800
        %v3802 = vrot.slane %v3233, %v3801
        %v3803 = vlaneseq
        %v3804 = vshrl.u32 %v3803, 7
        %v3805 = vsub.s32 0, %v3804
        %v3806 = vrot.slane %v3247, %v3805
        %v3807 = vlaneseq
        %v3808 = vshrl.u32 %v3807, 7
        %v3809 = vsub.s32 0, %v3808
        %v3810 = vrot.slane %v3249, %v3809
        %v3811 = vlaneseq
        %v3812 = vshrl.u32 %v3811, 7
        %v3813 = vsub.s32 0, %v3812
        %v3814 = vrot.slane %v3251, %v3813
        %v3815 = vlaneseq
        %v3816 = vshrl.u32 %v3815, 7
        %v3817 = vsub.s32 0, %v3816
        %v3818 = vrot.slane %v3275, %v3817
        %v3819 = vlaneseq
        %v3820 = vshrl.u32 %v3819, 7
        %v3821 = vsub.s32 0, %v3820
        %v3822 = vrot.slane %v3289, %v3821
        %v3823 = vlaneseq
        %v3824 = vshrl.u32 %v3823, 7
        %v3825 = vsub.s32 0, %v3824
        %v3826 = vrot.slane %v3297, %v3825
        %v3827 = vlaneseq
        %v3828 = vshrl.u32 %v3827, 7
        %v3829 = vsub.s32 0, %v3828
        %v3830 = vrot.slane %v3299, %v3829
        %v3831 = vlaneseq
        %v3832 = vshrl.u32 %v3831, 7
        %v3833 = vsub.s32 0, %v3832
        %v3834 = vrot.slane %v3282, %v3833
        %v3835 = vlaneseq
        %v3836 = vshrl.u32 %v3835, 7
        %v3837 = vsub.s32 0, %v3836
        %v3838 = vrot.slane %v3296, %v3837
        %v3839 = vlaneseq
        %v3840 = vshrl.u32 %v3839, 7
        %v3841 = vsub.s32 0, %v3840
        %v3842 = vrot.slane %v3298, %v3841
        %v3843 = vlaneseq
        %v3844 = vshrl.u32 %v3843, 7
        %v3845 = vsub.s32 0, %v3844
        %v3846 = vrot.slane %v3300, %v3845
        %v3847 = vlaneseq
        %v3848 = vshrl.u32 %v3847, 7
        %v3849 = vsub.s32 0, %v3848
        %v3850 = vrot.slane %v3324, %v3849
        %v3851 = vlaneseq
        %v3852 = vshrl.u32 %v3851, 7
        %v3853 = vsub.s32 0, %v3852
        %v3854 = vrot.slane %v3338, %v3853
        %v3855 = vlaneseq
        %v3856 = vshrl.u32 %v3855, 7
        %v3857 = vsub.s32 0, %v3856
        %v3858 = vrot.slane %v3346, %v3857
        %v3859 = vlaneseq
        %v3860 = vshrl.u32 %v3859, 7
        %v3861 = vsub.s32 0, %v3860
        %v3862 = vrot.slane %v3348, %v3861
        %v3863 = vlaneseq
        %v3864 = vshrl.u32 %v3863, 7
        %v3865 = vsub.s32 0, %v3864
        %v3866 = vrot.slane %v3331, %v3865
        %v3867 = vlaneseq
        %v3868 = vshrl.u32 %v3867, 7
        %v3869 = vsub.s32 0, %v3868
        %v3870 = vrot.slane %v3345, %v3869
        %v3871 = vlaneseq
        %v3872 = vshrl.u32 %v3871, 7
        %v3873 = vsub.s32 0, %v3872
        %v3874 = vrot.slane %v3347, %v3873
        %v3875 = vlaneseq
        %v3876 = vshrl.u32 %v3875, 7
        %v3877 = vsub.s32 0, %v3876
        %v3878 = vrot.slane %v3349, %v3877
        %v3879 = vlaneseq
        %v3880 = vshrl.u32 %v3879, 7
        %v3881 = vsub.s32 0, %v3880
        %v3882 = vrot.slane %v3373, %v3881
        %v3883 = vlaneseq
        %v3884 = vshrl.u32 %v3883, 7
        %v3885 = vsub.s32 0, %v3884
        %v3886 = vrot.slane %v3387, %v3885
        %v3887 = vlaneseq
        %v3888 = vshrl.u32 %v3887, 7
        %v3889 = vsub.s32 0, %v3888
        %v3890 = vrot.slane %v3395, %v3889
        %v3891 = vlaneseq
        %v3892 = vshrl.u32 %v3891, 7
        %v3893 = vsub.s32 0, %v3892
        %v3894 = vrot.slane %v3397, %v3893
        %v3895 = vlaneseq
        %v3896 = vshrl.u32 %v3895, 7
        %v3897 = vsub.s32 0, %v3896
        %v3898 = vrot.slane %v3380, %v3897
        %v3899 = vlaneseq
        %v3900 = vshrl.u32 %v3899, 7
        %v3901 = vsub.s32 0, %v3900
        %v3902 = vrot.slane %v3394, %v3901
        %v3903 = vlaneseq
        %v3904 = vshrl.u32 %v3903, 7
        %v3905 = vsub.s32 0, %v3904
        %v3906 = vrot.slane %v3396, %v3905
        %v3907 = vlaneseq
        %v3908 = vshrl.u32 %v3907, 7
        %v3909 = vsub.s32 0, %v3908
        %v3910 = vrot.slane %v3398, %v3909
        %v4039 = vmul.f32 %v3402, %v1065
        %v4040 = vmul.f32 %v3402, %v1071
        %v4041 = vmul.f32 %v3406, %v1077
        %v4042 = vmul.f32 %v3406, %v1083
        %v4043 = vmul.f32 %v3410, %v1089
        %v4044 = vmul.f32 %v3410, %v1095
        %v4045 = vmul.f32 %v3414, %v1101
        %v4046 = vmul.f32 %v3414, %v1107
        %v4047 = vmul.f32 %v3418, %v1113
        %v4048 = vmul.f32 %v3418, %v1119
        %v4049 = vmul.f32 %v3422, %v1125
        %v4050 = vmul.f32 %v3422, %v1131
        %v4051 = vmul.f32 %v3426, %v1137
        %v4052 = vmul.f32 %v3426, %v1143
        %v4053 = vmul.f32 %v3430, %v1149
        %v4054 = vmul.f32 %v3430, %v1155
        %v4055 = vmul.f32 %v3434, %v1161
        %v4056 = vmul.f32 %v3434, %v1167
        %v4057 = vmul.f32 %v3438, %v1173
        %v4058 = vmul.f32 %v3438, %v1179
        %v4059 = vmul.f32 %v3442, %v1185
        %v4060 = vmul.f32 %v3442, %v1191
        %v4061 = vmul.f32 %v3446, %v1197
        %v4062 = vmul.f32 %v3446, %v1203
        %v4063 = vmul.f32 %v3450, %v1209
        %v4064 = vmul.f32 %v3450, %v1215
        %v4065 = vmul.f32 %v3454, %v1221
        %v4066 = vmul.f32 %v3454, %v1227
        %v4067 = vmul.f32 %v3458, %v1233
        %v4068 = vmul.f32 %v3458, %v1239
        %v4069 = vmul.f32 %v3462, %v1245
        %v4070 = vmul.f32 %v3462, %v1251
        %v4071 = vmul.f32 %v3466, %v1257
        %v4072 = vmul.f32 %v3466, %v1263
        %v4073 = vmul.f32 %v3470, %v1269
        %v4074 = vmul.f32 %v3470, %v1275
        %v4075 = vmul.f32 %v3474, %v1281
        %v4076 = vmul.f32 %v3474, %v1287
        %v4077 = vmul.f32 %v3478, %v1293
        %v4078 = vmul.f32 %v3478, %v1299
        %v4079 = vmul.f32 %v3482, %v1305
        %v4080 = vmul.f32 %v3482, %v1311
        %v4081 = vmul.f32 %v3486, %v1317
        %v4082 = vmul.f32 %v3486, %v1323
        %v4083 = vmul.f32 %v3490, %v1329
        %v4084 = vmul.f32 %v3490, %v1335
        %v4085 = vmul.f32 %v3494, %v1341
        %v4086 = vmul.f32 %v3494, %v1347
        %v4087 = vmul.f32 %v3498, %v1353
        %v4088 = vmul.f32 %v3498, %v1359
        %v4089 = vmul.f32 %v3502, %v1365
        %v4090 = vmul.f32 %v3502, %v1371
        %v4091 = vmul.f32 %v3506, %v1377
        %v4092 = vmul.f32 %v3506, %v1383
        %v4093 = vmul.f32 %v3510, %v1389
        %v4094 = vmul.f32 %v3510, %v1395
        %v4095 = vmul.f32 %v3514, %v1401
        %v4096 = vmul.f32 %v3514, %v1407
        %v4097 = vmul.f32 %v3518, %v1413
        %v4098 = vmul.f32 %v3518, %v1419
        %v4099 = vmul.f32 %v3522, %v1425
        %v4100 = vmul.f32 %v3522, %v1431
        %v4101 = vmul.f32 %v3526, %v1437
        %v4102 = vmul.f32 %v3526, %v1443
        %v4103 = vmul.f32 %v3530, %v1449
        %v4104 = vmul.f32 %v3530, %v1455
        %v4105 = vmul.f32 %v3534, %v1461
        %v4106 = vmul.f32 %v3534, %v1467
        %v4107 = vmul.f32 %v3538, %v1473
        %v4108 = vmul.f32 %v3538, %v1479
        %v4109 = vmul.f32 %v3542, %v1485
        %v4110 = vmul.f32 %v3542, %v1491
        %v4111 = vmul.f32 %v3546, %v1497
        %v4112 = vmul.f32 %v3546, %v1503
        %v4113 = vmul.f32 %v3550, %v1509
        %v4114 = vmul.f32 %v3550, %v1515
        %v4115 = vmul.f32 %v3554, %v1521
        %v4116 = vmul.f32 %v3554, %v1527
        %v4117 = vmul.f32 %v3558, %v1533
        %v4118 = vmul.f32 %v3558, %v1539
        %v4119 = vmul.f32 %v3562, %v1545
        %v4120 = vmul.f32 %v3562, %v1551
        %v4121 = vmul.f32 %v3566, %v1557
        %v4122 = vmul.f32 %v3566, %v1563
        %v4123 = vmul.f32 %v3570, %v1569
        %v4124 = vmul.f32 %v3570, %v1575
        %v4125 = vmul.f32 %v3574, %v1581
        %v4126 = vmul.f32 %v3574, %v1587
        %v4127 = vmul.f32 %v3578, %v1593
        %v4128 = vmul.f32 %v3578, %v1599
        %v4129 = vmul.f32 %v3582, %v1605
        %v4130 = vmul.f32 %v3582, %v1611
        %v4131 = vmul.f32 %v3586, %v1617
        %v4132 = vmul.f32 %v3586, %v1623
        %v4133 = vmul.f32 %v3590, %v1629
        %v4134 = vmul.f32 %v3590, %v1635
        %v4135 = vmul.f32 %v3594, %v1641
        %v4136 = vmul.f32 %v3594, %v1647
        %v4137 = vmul.f32 %v3598, %v1653
        %v4138 = vmul.f32 %v3598, %v1659
        %v4139 = vmul.f32 %v3602, %v1665
        %v4140 = vmul.f32 %v3602, %v1671
        %v4141 = vmul.f32 %v3606, %v1677
        %v4142 = vmul.f32 %v3606, %v1683
        %v4143 = vmul.f32 %v3610, %v1689
        %v4144 = vmul.f32 %v3610, %v1695
        %v4145 = vmul.f32 %v3614, %v1701
        %v4146 = vmul.f32 %v3614, %v1707
        %v4147 = vmul.f32 %v3618, %v1713
        %v4148 = vmul.f32 %v3618, %v1719
        %v4149 = vmul.f32 %v3622, %v1725
        %v4150 = vmul.f32 %v3622, %v1731
        %v4151 = vmul.f32 %v3626, %v1737
        %v4152 = vmul.f32 %v3626, %v1743
        %v4153 = vmul.f32 %v3630, %v1749
        %v4154 = vmul.f32 %v3630, %v1755
        %v4155 = vmul.f32 %v3634, %v1761
        %v4156 = vmul.f32 %v3634, %v1767
        %v4157 = vmul.f32 %v3638, %v1773
        %v4158 = vmul.f32 %v3638, %v1779
        %v4159 = vmul.f32 %v3642, %v1785
        %v4160 = vmul.f32 %v3642, %v1791
        %v4161 = vmul.f32 %v3646, %v1797
        %v4162 = vmul.f32 %v3646, %v1803
        %v4163 = vmul.f32 %v3650, %v1809
        %v4164 = vmul.f32 %v3650, %v1815
        %v4165 = vmul.f32 %v3654, %v1821
        %v4166 = vmul.f32 %v3654, %v1827
        %v4167 = vmul.f32 %v3658, %v1833
        %v4168 = vmul.f32 %v3658, %v1839
        %v4169 = vmul.f32 %v3662, %v1845
        %v4170 = vmul.f32 %v3662, %v1851
        %v4171 = vmul.f32 %v3666, %v1857
        %v4172 = vmul.f32 %v3666, %v1863
        %v4173 = vmul.f32 %v3670, %v1869
        %v4174 = vmul.f32 %v3670, %v1875
        %v4175 = vmul.f32 %v3674, %v1881
        %v4176 = vmul.f32 %v3674, %v1887
        %v4177 = vmul.f32 %v3678, %v1893
        %v4178 = vmul.f32 %v3678, %v1899
        %v4179 = vmul.f32 %v3682, %v1905
        %v4180 = vmul.f32 %v3682, %v1911
        %v4181 = vmul.f32 %v3686, %v1917
        %v4182 = vmul.f32 %v3686, %v1923
        %v4183 = vmul.f32 %v3690, %v1929
        %v4184 = vmul.f32 %v3690, %v1935
        %v4185 = vmul.f32 %v3694, %v1941
        %v4186 = vmul.f32 %v3694, %v1947
        %v4187 = vmul.f32 %v3698, %v1953
        %v4188 = vmul.f32 %v3698, %v1959
        %v4189 = vmul.f32 %v3702, %v1965
        %v4190 = vmul.f32 %v3702, %v1971
        %v4191 = vmul.f32 %v3706, %v1977
        %v4192 = vmul.f32 %v3706, %v1983
        %v4193 = vmul.f32 %v3710, %v1989
        %v4194 = vmul.f32 %v3710, %v1995
        %v4195 = vmul.f32 %v3714, %v2001
        %v4196 = vmul.f32 %v3714, %v2007
        %v4197 = vmul.f32 %v3718, %v2013
        %v4198 = vmul.f32 %v3718, %v2019
        %v4199 = vmul.f32 %v3722, %v2025
        %v4200 = vmul.f32 %v3722, %v2031
        %v4201 = vmul.f32 %v3726, %v2037
        %v4202 = vmul.f32 %v3726, %v2043
        %v4203 = vmul.f32 %v3730, %v2049
        %v4204 = vmul.f32 %v3730, %v2055
        %v4205 = vmul.f32 %v3734, %v2061
        %v4206 = vmul.f32 %v3734, %v2067
        %v4207 = vmul.f32 %v3738, %v2073
        %v4208 = vmul.f32 %v3738, %v2079
        %v4209 = vmul.f32 %v3742, %v2085
        %v4210 = vmul.f32 %v3742, %v2091
        %v4211 = vmul.f32 %v3746, %v2097
        %v4212 = vmul.f32 %v3746, %v2103
        %v4213 = vmul.f32 %v3750, %v2109
        %v4214 = vmul.f32 %v3750, %v2115
        %v4215 = vmul.f32 %v3754, %v2121
        %v4216 = vmul.f32 %v3754, %v2127
        %v4217 = vmul.f32 %v3758, %v2133
        %v4218 = vmul.f32 %v3758, %v2139
        %v4219 = vmul.f32 %v3762, %v2145
        %v4220 = vmul.f32 %v3762, %v2151
        %v4221 = vmul.f32 %v3766, %v2157
        %v4222 = vmul.f32 %v3766, %v2163
        %v4223 = vmul.f32 %v3770, %v2169
        %v4224 = vmul.f32 %v3770, %v2175
        %v4225 = vmul.f32 %v3774, %v2181
        %v4226 = vmul.f32 %v3774, %v2187
        %v4227 = vmul.f32 %v3778, %v2193
        %v4228 = vmul.f32 %v3778, %v2199
        %v4229 = vmul.f32 %v3782, %v2205
        %v4230 = vmul.f32 %v3782, %v2211
        %v4231 = vmul.f32 %v3786, %v2217
        %v4232 = vmul.f32 %v3786, %v2223
        %v4233 = vmul.f32 %v3790, %v2229
        %v4234 = vmul.f32 %v3790, %v2235
        %v4235 = vmul.f32 %v3794, %v2241
        %v4236 = vmul.f32 %v3794, %v2247
        %v4237 = vmul.f32 %v3798, %v2253
        %v4238 = vmul.f32 %v3798, %v2259
        %v4239 = vmul.f32 %v3802, %v2265
        %v4240 = vmul.f32 %v3802, %v2271
        %v4241 = vmul.f32 %v3806, %v2277
        %v4242 = vmul.f32 %v3806, %v2283
        %v4243 = vmul.f32 %v3810, %v2289
        %v4244 = vmul.f32 %v3810, %v2295
        %v4245 = vmul.f32 %v3814, %v2301
        %v4246 = vmul.f32 %v3814, %v2307
        %v4247 = vmul.f32 %v3818, %v2313
        %v4248 = vmul.f32 %v3818, %v2319
        %v4249 = vmul.f32 %v3822, %v2325
        %v4250 = vmul.f32 %v3822, %v2331
        %v4251 = vmul.f32 %v3826, %v2337
        %v4252 = vmul.f32 %v3826, %v2343
        %v4253 = vmul.f32 %v3830, %v2349
        %v4254 = vmul.f32 %v3830, %v2355
        %v4255 = vmul.f32 %v3834, %v2361
        %v4256 = vmul.f32 %v3834, %v2367
        %v4257 = vmul.f32 %v3838, %v2373
        %v4258 = vmul.f32 %v3838, %v2379
        %v4259 = vmul.f32 %v3842, %v2385
        %v4260 = vmul.f32 %v3842, %v2391
        %v4261 = vmul.f32 %v3846, %v2397
        %v4262 = vmul.f32 %v3846, %v2403
        %v4263 = vmul.f32 %v3850, %v2409
        %v4264 = vmul.f32 %v3850, %v2415
        %v4265 = vmul.f32 %v3854, %v2421
        %v4266 = vmul.f32 %v3854, %v2427
        %v4267 = vmul.f32 %v3858, %v2433
        %v4268 = vmul.f32 %v3858, %v2439
        %v4269 = vmul.f32 %v3862, %v2445
        %v4270 = vmul.f32 %v3862, %v2451
        %v4271 = vmul.f32 %v3866, %v2457
        %v4272 = vmul.f32 %v3866, %v2463
        %v4273 = vmul.f32 %v3870, %v2469
        %v4274 = vmul.f32 %v3870, %v2475
        %v4275 = vmul.f32 %v3874, %v2481
        %v4276 = vmul.f32 %v3874, %v2487
        %v4277 = vmul.f32 %v3878, %v2493
        %v4278 = vmul.f32 %v3878, %v2499
        %v4279 = vmul.f32 %v3882, %v2505
        %v4280 = vmul.f32 %v3882, %v2511
        %v4281 = vmul.f32 %v3886, %v2517
        %v4282 = vmul.f32 %v3886, %v2523
        %v4283 = vmul.f32 %v3890, %v2529
        %v4284 = vmul.f32 %v3890, %v2535
        %v4285 = vmul.f32 %v3894, %v2541
        %v4286 = vmul.f32 %v3894, %v2547
        %v4287 = vmul.f32 %v3898, %v2553
        %v4288 = vmul.f32 %v3898, %v2559
        %v4289 = vmul.f32 %v3902, %v2565
        %v4290 = vmul.f32 %v3902, %v2571
        %v4291 = vmul.f32 %v3906, %v2577
        %v4292 = vmul.f32 %v3906, %v2583
        %v4293 = vmul.f32 %v3910, %v2589
        %v4294 = vmul.f32 %v3910, %v2595
        %4295 = vadd.xlane.f32.xlu0 %v4039
        %v4296 = vpop.xlane.xlu0 %4295
        %4297 = vadd.xlane.f32.xlu0 %v4040
        %v4298 = vpop.xlane.xlu0 %4297
        %4299 = vadd.xlane.f32.xlu0 %v4041
        %v4300 = vpop.xlane.xlu0 %4299
        %4301 = vadd.xlane.f32.xlu0 %v4042
        %v4302 = vpop.xlane.xlu0 %4301
        %4303 = vadd.xlane.f32.xlu0 %v4043
        %v4304 = vpop.xlane.xlu0 %4303
        %4305 = vadd.xlane.f32.xlu0 %v4044
        %v4306 = vpop.xlane.xlu0 %4305
        %4307 = vadd.xlane.f32.xlu0 %v4045
        %v4308 = vpop.xlane.xlu0 %4307
        %4309 = vadd.xlane.f32.xlu0 %v4046
        %v4310 = vpop.xlane.xlu0 %4309
        %4311 = vadd.xlane.f32.xlu0 %v4047
        %v4312 = vpop.xlane.xlu0 %4311
        %4313 = vadd.xlane.f32.xlu0 %v4048
        %v4314 = vpop.xlane.xlu0 %4313
        %4315 = vadd.xlane.f32.xlu0 %v4049
        %v4316 = vpop.xlane.xlu0 %4315
        %4317 = vadd.xlane.f32.xlu0 %v4050
        %v4318 = vpop.xlane.xlu0 %4317
        %4319 = vadd.xlane.f32.xlu0 %v4051
        %v4320 = vpop.xlane.xlu0 %4319
        %4321 = vadd.xlane.f32.xlu0 %v4052
        %v4322 = vpop.xlane.xlu0 %4321
        %4323 = vadd.xlane.f32.xlu0 %v4053
        %v4324 = vpop.xlane.xlu0 %4323
        %4325 = vadd.xlane.f32.xlu0 %v4054
        %v4326 = vpop.xlane.xlu0 %4325
        %4327 = vadd.xlane.f32.xlu0 %v4055
        %v4328 = vpop.xlane.xlu0 %4327
        %4329 = vadd.xlane.f32.xlu0 %v4056
        %v4330 = vpop.xlane.xlu0 %4329
        %4331 = vadd.xlane.f32.xlu0 %v4057
        %v4332 = vpop.xlane.xlu0 %4331
        %4333 = vadd.xlane.f32.xlu0 %v4058
        %v4334 = vpop.xlane.xlu0 %4333
        %4335 = vadd.xlane.f32.xlu0 %v4059
        %v4336 = vpop.xlane.xlu0 %4335
        %4337 = vadd.xlane.f32.xlu0 %v4060
        %v4338 = vpop.xlane.xlu0 %4337
        %4339 = vadd.xlane.f32.xlu0 %v4061
        %v4340 = vpop.xlane.xlu0 %4339
        %4341 = vadd.xlane.f32.xlu0 %v4062
        %v4342 = vpop.xlane.xlu0 %4341
        %4343 = vadd.xlane.f32.xlu0 %v4063
        %v4344 = vpop.xlane.xlu0 %4343
        %4345 = vadd.xlane.f32.xlu0 %v4064
        %v4346 = vpop.xlane.xlu0 %4345
        %4347 = vadd.xlane.f32.xlu0 %v4065
        %v4348 = vpop.xlane.xlu0 %4347
        %4349 = vadd.xlane.f32.xlu0 %v4066
        %v4350 = vpop.xlane.xlu0 %4349
        %4351 = vadd.xlane.f32.xlu0 %v4067
        %v4352 = vpop.xlane.xlu0 %4351
        %4353 = vadd.xlane.f32.xlu0 %v4068
        %v4354 = vpop.xlane.xlu0 %4353
        %4355 = vadd.xlane.f32.xlu0 %v4069
        %v4356 = vpop.xlane.xlu0 %4355
        %4357 = vadd.xlane.f32.xlu0 %v4070
        %v4358 = vpop.xlane.xlu0 %4357
        %4359 = vadd.xlane.f32.xlu0 %v4071
        %v4360 = vpop.xlane.xlu0 %4359
        %4361 = vadd.xlane.f32.xlu0 %v4072
        %v4362 = vpop.xlane.xlu0 %4361
        %4363 = vadd.xlane.f32.xlu0 %v4073
        %v4364 = vpop.xlane.xlu0 %4363
        %4365 = vadd.xlane.f32.xlu0 %v4074
        %v4366 = vpop.xlane.xlu0 %4365
        %4367 = vadd.xlane.f32.xlu0 %v4075
        %v4368 = vpop.xlane.xlu0 %4367
        %4369 = vadd.xlane.f32.xlu0 %v4076
        %v4370 = vpop.xlane.xlu0 %4369
        %4371 = vadd.xlane.f32.xlu0 %v4077
        %v4372 = vpop.xlane.xlu0 %4371
        %4373 = vadd.xlane.f32.xlu0 %v4078
        %v4374 = vpop.xlane.xlu0 %4373
        %4375 = vadd.xlane.f32.xlu0 %v4079
        %v4376 = vpop.xlane.xlu0 %4375
        %4377 = vadd.xlane.f32.xlu0 %v4080
        %v4378 = vpop.xlane.xlu0 %4377
        %4379 = vadd.xlane.f32.xlu0 %v4081
        %v4380 = vpop.xlane.xlu0 %4379
        %4381 = vadd.xlane.f32.xlu0 %v4082
        %v4382 = vpop.xlane.xlu0 %4381
        %4383 = vadd.xlane.f32.xlu0 %v4083
        %v4384 = vpop.xlane.xlu0 %4383
        %4385 = vadd.xlane.f32.xlu0 %v4084
        %v4386 = vpop.xlane.xlu0 %4385
        %4387 = vadd.xlane.f32.xlu0 %v4085
        %v4388 = vpop.xlane.xlu0 %4387
        %4389 = vadd.xlane.f32.xlu0 %v4086
        %v4390 = vpop.xlane.xlu0 %4389
        %4391 = vadd.xlane.f32.xlu0 %v4087
        %v4392 = vpop.xlane.xlu0 %4391
        %4393 = vadd.xlane.f32.xlu0 %v4088
        %v4394 = vpop.xlane.xlu0 %4393
        %4395 = vadd.xlane.f32.xlu0 %v4089
        %v4396 = vpop.xlane.xlu0 %4395
        %4397 = vadd.xlane.f32.xlu0 %v4090
        %v4398 = vpop.xlane.xlu0 %4397
        %4399 = vadd.xlane.f32.xlu0 %v4091
        %v4400 = vpop.xlane.xlu0 %4399
        %4401 = vadd.xlane.f32.xlu0 %v4092
        %v4402 = vpop.xlane.xlu0 %4401
        %4403 = vadd.xlane.f32.xlu0 %v4093
        %v4404 = vpop.xlane.xlu0 %4403
        %4405 = vadd.xlane.f32.xlu0 %v4094
        %v4406 = vpop.xlane.xlu0 %4405
        %4407 = vadd.xlane.f32.xlu0 %v4095
        %v4408 = vpop.xlane.xlu0 %4407
        %4409 = vadd.xlane.f32.xlu0 %v4096
        %v4410 = vpop.xlane.xlu0 %4409
        %4411 = vadd.xlane.f32.xlu0 %v4097
        %v4412 = vpop.xlane.xlu0 %4411
        %4413 = vadd.xlane.f32.xlu0 %v4098
        %v4414 = vpop.xlane.xlu0 %4413
        %4415 = vadd.xlane.f32.xlu0 %v4099
        %v4416 = vpop.xlane.xlu0 %4415
        %4417 = vadd.xlane.f32.xlu0 %v4100
        %v4418 = vpop.xlane.xlu0 %4417
        %4419 = vadd.xlane.f32.xlu0 %v4101
        %v4420 = vpop.xlane.xlu0 %4419
        %4421 = vadd.xlane.f32.xlu0 %v4102
        %v4422 = vpop.xlane.xlu0 %4421
        %4423 = vadd.xlane.f32.xlu0 %v4103
        %v4424 = vpop.xlane.xlu0 %4423
        %4425 = vadd.xlane.f32.xlu0 %v4104
        %v4426 = vpop.xlane.xlu0 %4425
        %4427 = vadd.xlane.f32.xlu0 %v4105
        %v4428 = vpop.xlane.xlu0 %4427
        %4429 = vadd.xlane.f32.xlu0 %v4106
        %v4430 = vpop.xlane.xlu0 %4429
        %4431 = vadd.xlane.f32.xlu0 %v4107
        %v4432 = vpop.xlane.xlu0 %4431
        %4433 = vadd.xlane.f32.xlu0 %v4108
        %v4434 = vpop.xlane.xlu0 %4433
        %4435 = vadd.xlane.f32.xlu0 %v4109
        %v4436 = vpop.xlane.xlu0 %4435
        %4437 = vadd.xlane.f32.xlu0 %v4110
        %v4438 = vpop.xlane.xlu0 %4437
        %4439 = vadd.xlane.f32.xlu0 %v4111
        %v4440 = vpop.xlane.xlu0 %4439
        %4441 = vadd.xlane.f32.xlu0 %v4112
        %v4442 = vpop.xlane.xlu0 %4441
        %4443 = vadd.xlane.f32.xlu0 %v4113
        %v4444 = vpop.xlane.xlu0 %4443
        %4445 = vadd.xlane.f32.xlu0 %v4114
        %v4446 = vpop.xlane.xlu0 %4445
        %4447 = vadd.xlane.f32.xlu0 %v4115
        %v4448 = vpop.xlane.xlu0 %4447
        %4449 = vadd.xlane.f32.xlu0 %v4116
        %v4450 = vpop.xlane.xlu0 %4449
        %4451 = vadd.xlane.f32.xlu0 %v4117
        %v4452 = vpop.xlane.xlu0 %4451
        %4453 = vadd.xlane.f32.xlu0 %v4118
        %v4454 = vpop.xlane.xlu0 %4453
        %4455 = vadd.xlane.f32.xlu0 %v4119
        %v4456 = vpop.xlane.xlu0 %4455
        %4457 = vadd.xlane.f32.xlu0 %v4120
        %v4458 = vpop.xlane.xlu0 %4457
        %4459 = vadd.xlane.f32.xlu0 %v4121
        %v4460 = vpop.xlane.xlu0 %4459
        %4461 = vadd.xlane.f32.xlu0 %v4122
        %v4462 = vpop.xlane.xlu0 %4461
        %4463 = vadd.xlane.f32.xlu0 %v4123
        %v4464 = vpop.xlane.xlu0 %4463
        %4465 = vadd.xlane.f32.xlu0 %v4124
        %v4466 = vpop.xlane.xlu0 %4465
        %4467 = vadd.xlane.f32.xlu0 %v4125
        %v4468 = vpop.xlane.xlu0 %4467
        %4469 = vadd.xlane.f32.xlu0 %v4126
        %v4470 = vpop.xlane.xlu0 %4469
        %4471 = vadd.xlane.f32.xlu0 %v4127
        %v4472 = vpop.xlane.xlu0 %4471
        %4473 = vadd.xlane.f32.xlu0 %v4128
        %v4474 = vpop.xlane.xlu0 %4473
        %4475 = vadd.xlane.f32.xlu0 %v4129
        %v4476 = vpop.xlane.xlu0 %4475
        %4477 = vadd.xlane.f32.xlu0 %v4130
        %v4478 = vpop.xlane.xlu0 %4477
        %4479 = vadd.xlane.f32.xlu0 %v4131
        %v4480 = vpop.xlane.xlu0 %4479
        %4481 = vadd.xlane.f32.xlu0 %v4132
        %v4482 = vpop.xlane.xlu0 %4481
        %4483 = vadd.xlane.f32.xlu0 %v4133
        %v4484 = vpop.xlane.xlu0 %4483
        %4485 = vadd.xlane.f32.xlu0 %v4134
        %v4486 = vpop.xlane.xlu0 %4485
        %4487 = vadd.xlane.f32.xlu0 %v4135
        %v4488 = vpop.xlane.xlu0 %4487
        %4489 = vadd.xlane.f32.xlu0 %v4136
        %v4490 = vpop.xlane.xlu0 %4489
        %4491 = vadd.xlane.f32.xlu0 %v4137
        %v4492 = vpop.xlane.xlu0 %4491
        %4493 = vadd.xlane.f32.xlu0 %v4138
        %v4494 = vpop.xlane.xlu0 %4493
        %4495 = vadd.xlane.f32.xlu0 %v4139
        %v4496 = vpop.xlane.xlu0 %4495
        %4497 = vadd.xlane.f32.xlu0 %v4140
        %v4498 = vpop.xlane.xlu0 %4497
        %4499 = vadd.xlane.f32.xlu0 %v4141
        %v4500 = vpop.xlane.xlu0 %4499
        %4501 = vadd.xlane.f32.xlu0 %v4142
        %v4502 = vpop.xlane.xlu0 %4501
        %4503 = vadd.xlane.f32.xlu0 %v4143
        %v4504 = vpop.xlane.xlu0 %4503
        %4505 = vadd.xlane.f32.xlu0 %v4144
        %v4506 = vpop.xlane.xlu0 %4505
        %4507 = vadd.xlane.f32.xlu0 %v4145
        %v4508 = vpop.xlane.xlu0 %4507
        %4509 = vadd.xlane.f32.xlu0 %v4146
        %v4510 = vpop.xlane.xlu0 %4509
        %4511 = vadd.xlane.f32.xlu0 %v4147
        %v4512 = vpop.xlane.xlu0 %4511
        %4513 = vadd.xlane.f32.xlu0 %v4148
        %v4514 = vpop.xlane.xlu0 %4513
        %4515 = vadd.xlane.f32.xlu0 %v4149
        %v4516 = vpop.xlane.xlu0 %4515
        %4517 = vadd.xlane.f32.xlu0 %v4150
        %v4518 = vpop.xlane.xlu0 %4517
        %4519 = vadd.xlane.f32.xlu0 %v4151
        %v4520 = vpop.xlane.xlu0 %4519
        %4521 = vadd.xlane.f32.xlu0 %v4152
        %v4522 = vpop.xlane.xlu0 %4521
        %4523 = vadd.xlane.f32.xlu0 %v4153
        %v4524 = vpop.xlane.xlu0 %4523
        %4525 = vadd.xlane.f32.xlu0 %v4154
        %v4526 = vpop.xlane.xlu0 %4525
        %4527 = vadd.xlane.f32.xlu0 %v4155
        %v4528 = vpop.xlane.xlu0 %4527
        %4529 = vadd.xlane.f32.xlu0 %v4156
        %v4530 = vpop.xlane.xlu0 %4529
        %4531 = vadd.xlane.f32.xlu0 %v4157
        %v4532 = vpop.xlane.xlu0 %4531
        %4533 = vadd.xlane.f32.xlu0 %v4158
        %v4534 = vpop.xlane.xlu0 %4533
        %4535 = vadd.xlane.f32.xlu0 %v4159
        %v4536 = vpop.xlane.xlu0 %4535
        %4537 = vadd.xlane.f32.xlu0 %v4160
        %v4538 = vpop.xlane.xlu0 %4537
        %4539 = vadd.xlane.f32.xlu0 %v4161
        %v4540 = vpop.xlane.xlu0 %4539
        %4541 = vadd.xlane.f32.xlu0 %v4162
        %v4542 = vpop.xlane.xlu0 %4541
        %4543 = vadd.xlane.f32.xlu0 %v4163
        %v4544 = vpop.xlane.xlu0 %4543
        %4545 = vadd.xlane.f32.xlu0 %v4164
        %v4546 = vpop.xlane.xlu0 %4545
        %4547 = vadd.xlane.f32.xlu0 %v4165
        %v4548 = vpop.xlane.xlu0 %4547
        %4549 = vadd.xlane.f32.xlu0 %v4166
        %v4550 = vpop.xlane.xlu0 %4549
        %4551 = vadd.xlane.f32.xlu0 %v4167
        %v4552 = vpop.xlane.xlu0 %4551
        %4553 = vadd.xlane.f32.xlu0 %v4168
        %v4554 = vpop.xlane.xlu0 %4553
        %4555 = vadd.xlane.f32.xlu0 %v4169
        %v4556 = vpop.xlane.xlu0 %4555
        %4557 = vadd.xlane.f32.xlu0 %v4170
        %v4558 = vpop.xlane.xlu0 %4557
        %4559 = vadd.xlane.f32.xlu0 %v4171
        %v4560 = vpop.xlane.xlu0 %4559
        %4561 = vadd.xlane.f32.xlu0 %v4172
        %v4562 = vpop.xlane.xlu0 %4561
        %4563 = vadd.xlane.f32.xlu0 %v4173
        %v4564 = vpop.xlane.xlu0 %4563
        %4565 = vadd.xlane.f32.xlu0 %v4174
        %v4566 = vpop.xlane.xlu0 %4565
        %4567 = vadd.xlane.f32.xlu0 %v4175
        %v4568 = vpop.xlane.xlu0 %4567
        %4569 = vadd.xlane.f32.xlu0 %v4176
        %v4570 = vpop.xlane.xlu0 %4569
        %4571 = vadd.xlane.f32.xlu0 %v4177
        %v4572 = vpop.xlane.xlu0 %4571
        %4573 = vadd.xlane.f32.xlu0 %v4178
        %v4574 = vpop.xlane.xlu0 %4573
        %4575 = vadd.xlane.f32.xlu0 %v4179
        %v4576 = vpop.xlane.xlu0 %4575
        %4577 = vadd.xlane.f32.xlu0 %v4180
        %v4578 = vpop.xlane.xlu0 %4577
        %4579 = vadd.xlane.f32.xlu0 %v4181
        %v4580 = vpop.xlane.xlu0 %4579
        %4581 = vadd.xlane.f32.xlu0 %v4182
        %v4582 = vpop.xlane.xlu0 %4581
        %4583 = vadd.xlane.f32.xlu0 %v4183
        %v4584 = vpop.xlane.xlu0 %4583
        %4585 = vadd.xlane.f32.xlu0 %v4184
        %v4586 = vpop.xlane.xlu0 %4585
        %4587 = vadd.xlane.f32.xlu0 %v4185
        %v4588 = vpop.xlane.xlu0 %4587
        %4589 = vadd.xlane.f32.xlu0 %v4186
        %v4590 = vpop.xlane.xlu0 %4589
        %4591 = vadd.xlane.f32.xlu0 %v4187
        %v4592 = vpop.xlane.xlu0 %4591
        %4593 = vadd.xlane.f32.xlu0 %v4188
        %v4594 = vpop.xlane.xlu0 %4593
        %4595 = vadd.xlane.f32.xlu0 %v4189
        %v4596 = vpop.xlane.xlu0 %4595
        %4597 = vadd.xlane.f32.xlu0 %v4190
        %v4598 = vpop.xlane.xlu0 %4597
        %4599 = vadd.xlane.f32.xlu0 %v4191
        %v4600 = vpop.xlane.xlu0 %4599
        %4601 = vadd.xlane.f32.xlu0 %v4192
        %v4602 = vpop.xlane.xlu0 %4601
        %4603 = vadd.xlane.f32.xlu0 %v4193
        %v4604 = vpop.xlane.xlu0 %4603
        %4605 = vadd.xlane.f32.xlu0 %v4194
        %v4606 = vpop.xlane.xlu0 %4605
        %4607 = vadd.xlane.f32.xlu0 %v4195
        %v4608 = vpop.xlane.xlu0 %4607
        %4609 = vadd.xlane.f32.xlu0 %v4196
        %v4610 = vpop.xlane.xlu0 %4609
        %4611 = vadd.xlane.f32.xlu0 %v4197
        %v4612 = vpop.xlane.xlu0 %4611
        %4613 = vadd.xlane.f32.xlu0 %v4198
        %v4614 = vpop.xlane.xlu0 %4613
        %4615 = vadd.xlane.f32.xlu0 %v4199
        %v4616 = vpop.xlane.xlu0 %4615
        %4617 = vadd.xlane.f32.xlu0 %v4200
        %v4618 = vpop.xlane.xlu0 %4617
        %4619 = vadd.xlane.f32.xlu0 %v4201
        %v4620 = vpop.xlane.xlu0 %4619
        %4621 = vadd.xlane.f32.xlu0 %v4202
        %v4622 = vpop.xlane.xlu0 %4621
        %4623 = vadd.xlane.f32.xlu0 %v4203
        %v4624 = vpop.xlane.xlu0 %4623
        %4625 = vadd.xlane.f32.xlu0 %v4204
        %v4626 = vpop.xlane.xlu0 %4625
        %4627 = vadd.xlane.f32.xlu0 %v4205
        %v4628 = vpop.xlane.xlu0 %4627
        %4629 = vadd.xlane.f32.xlu0 %v4206
        %v4630 = vpop.xlane.xlu0 %4629
        %4631 = vadd.xlane.f32.xlu0 %v4207
        %v4632 = vpop.xlane.xlu0 %4631
        %4633 = vadd.xlane.f32.xlu0 %v4208
        %v4634 = vpop.xlane.xlu0 %4633
        %4635 = vadd.xlane.f32.xlu0 %v4209
        %v4636 = vpop.xlane.xlu0 %4635
        %4637 = vadd.xlane.f32.xlu0 %v4210
        %v4638 = vpop.xlane.xlu0 %4637
        %4639 = vadd.xlane.f32.xlu0 %v4211
        %v4640 = vpop.xlane.xlu0 %4639
        %4641 = vadd.xlane.f32.xlu0 %v4212
        %v4642 = vpop.xlane.xlu0 %4641
        %4643 = vadd.xlane.f32.xlu0 %v4213
        %v4644 = vpop.xlane.xlu0 %4643
        %4645 = vadd.xlane.f32.xlu0 %v4214
        %v4646 = vpop.xlane.xlu0 %4645
        %4647 = vadd.xlane.f32.xlu0 %v4215
        %v4648 = vpop.xlane.xlu0 %4647
        %4649 = vadd.xlane.f32.xlu0 %v4216
        %v4650 = vpop.xlane.xlu0 %4649
        %4651 = vadd.xlane.f32.xlu0 %v4217
        %v4652 = vpop.xlane.xlu0 %4651
        %4653 = vadd.xlane.f32.xlu0 %v4218
        %v4654 = vpop.xlane.xlu0 %4653
        %4655 = vadd.xlane.f32.xlu0 %v4219
        %v4656 = vpop.xlane.xlu0 %4655
        %4657 = vadd.xlane.f32.xlu0 %v4220
        %v4658 = vpop.xlane.xlu0 %4657
        %4659 = vadd.xlane.f32.xlu0 %v4221
        %v4660 = vpop.xlane.xlu0 %4659
        %4661 = vadd.xlane.f32.xlu0 %v4222
        %v4662 = vpop.xlane.xlu0 %4661
        %4663 = vadd.xlane.f32.xlu0 %v4223
        %v4664 = vpop.xlane.xlu0 %4663
        %4665 = vadd.xlane.f32.xlu0 %v4224
        %v4666 = vpop.xlane.xlu0 %4665
        %4667 = vadd.xlane.f32.xlu0 %v4225
        %v4668 = vpop.xlane.xlu0 %4667
        %4669 = vadd.xlane.f32.xlu0 %v4226
        %v4670 = vpop.xlane.xlu0 %4669
        %4671 = vadd.xlane.f32.xlu0 %v4227
        %v4672 = vpop.xlane.xlu0 %4671
        %4673 = vadd.xlane.f32.xlu0 %v4228
        %v4674 = vpop.xlane.xlu0 %4673
        %4675 = vadd.xlane.f32.xlu0 %v4229
        %v4676 = vpop.xlane.xlu0 %4675
        %4677 = vadd.xlane.f32.xlu0 %v4230
        %v4678 = vpop.xlane.xlu0 %4677
        %4679 = vadd.xlane.f32.xlu0 %v4231
        %v4680 = vpop.xlane.xlu0 %4679
        %4681 = vadd.xlane.f32.xlu0 %v4232
        %v4682 = vpop.xlane.xlu0 %4681
        %4683 = vadd.xlane.f32.xlu0 %v4233
        %v4684 = vpop.xlane.xlu0 %4683
        %4685 = vadd.xlane.f32.xlu0 %v4234
        %v4686 = vpop.xlane.xlu0 %4685
        %4687 = vadd.xlane.f32.xlu0 %v4235
        %v4688 = vpop.xlane.xlu0 %4687
        %4689 = vadd.xlane.f32.xlu0 %v4236
        %v4690 = vpop.xlane.xlu0 %4689
        %4691 = vadd.xlane.f32.xlu0 %v4237
        %v4692 = vpop.xlane.xlu0 %4691
        %4693 = vadd.xlane.f32.xlu0 %v4238
        %v4694 = vpop.xlane.xlu0 %4693
        %4695 = vadd.xlane.f32.xlu0 %v4239
        %v4696 = vpop.xlane.xlu0 %4695
        %4697 = vadd.xlane.f32.xlu0 %v4240
        %v4698 = vpop.xlane.xlu0 %4697
        %4699 = vadd.xlane.f32.xlu0 %v4241
        %v4700 = vpop.xlane.xlu0 %4699
        %4701 = vadd.xlane.f32.xlu0 %v4242
        %v4702 = vpop.xlane.xlu0 %4701
        %4703 = vadd.xlane.f32.xlu0 %v4243
        %v4704 = vpop.xlane.xlu0 %4703
        %4705 = vadd.xlane.f32.xlu0 %v4244
        %v4706 = vpop.xlane.xlu0 %4705
        %4707 = vadd.xlane.f32.xlu0 %v4245
        %v4708 = vpop.xlane.xlu0 %4707
        %4709 = vadd.xlane.f32.xlu0 %v4246
        %v4710 = vpop.xlane.xlu0 %4709
        %4711 = vadd.xlane.f32.xlu0 %v4247
        %v4712 = vpop.xlane.xlu0 %4711
        %4713 = vadd.xlane.f32.xlu0 %v4248
        %v4714 = vpop.xlane.xlu0 %4713
        %4715 = vadd.xlane.f32.xlu0 %v4249
        %v4716 = vpop.xlane.xlu0 %4715
        %4717 = vadd.xlane.f32.xlu0 %v4250
        %v4718 = vpop.xlane.xlu0 %4717
        %4719 = vadd.xlane.f32.xlu0 %v4251
        %v4720 = vpop.xlane.xlu0 %4719
        %4721 = vadd.xlane.f32.xlu0 %v4252
        %v4722 = vpop.xlane.xlu0 %4721
        %4723 = vadd.xlane.f32.xlu0 %v4253
        %v4724 = vpop.xlane.xlu0 %4723
        %4725 = vadd.xlane.f32.xlu0 %v4254
        %v4726 = vpop.xlane.xlu0 %4725
        %4727 = vadd.xlane.f32.xlu0 %v4255
        %v4728 = vpop.xlane.xlu0 %4727
        %4729 = vadd.xlane.f32.xlu0 %v4256
        %v4730 = vpop.xlane.xlu0 %4729
        %4731 = vadd.xlane.f32.xlu0 %v4257
        %v4732 = vpop.xlane.xlu0 %4731
        %4733 = vadd.xlane.f32.xlu0 %v4258
        %v4734 = vpop.xlane.xlu0 %4733
        %4735 = vadd.xlane.f32.xlu0 %v4259
        %v4736 = vpop.xlane.xlu0 %4735
        %4737 = vadd.xlane.f32.xlu0 %v4260
        %v4738 = vpop.xlane.xlu0 %4737
        %4739 = vadd.xlane.f32.xlu0 %v4261
        %v4740 = vpop.xlane.xlu0 %4739
        %4741 = vadd.xlane.f32.xlu0 %v4262
        %v4742 = vpop.xlane.xlu0 %4741
        %4743 = vadd.xlane.f32.xlu0 %v4263
        %v4744 = vpop.xlane.xlu0 %4743
        %4745 = vadd.xlane.f32.xlu0 %v4264
        %v4746 = vpop.xlane.xlu0 %4745
        %4747 = vadd.xlane.f32.xlu0 %v4265
        %v4748 = vpop.xlane.xlu0 %4747
        %4749 = vadd.xlane.f32.xlu0 %v4266
        %v4750 = vpop.xlane.xlu0 %4749
        %4751 = vadd.xlane.f32.xlu0 %v4267
        %v4752 = vpop.xlane.xlu0 %4751
        %4753 = vadd.xlane.f32.xlu0 %v4268
        %v4754 = vpop.xlane.xlu0 %4753
        %4755 = vadd.xlane.f32.xlu0 %v4269
        %v4756 = vpop.xlane.xlu0 %4755
        %4757 = vadd.xlane.f32.xlu0 %v4270
        %v4758 = vpop.xlane.xlu0 %4757
        %4759 = vadd.xlane.f32.xlu0 %v4271
        %v4760 = vpop.xlane.xlu0 %4759
        %4761 = vadd.xlane.f32.xlu0 %v4272
        %v4762 = vpop.xlane.xlu0 %4761
        %4763 = vadd.xlane.f32.xlu0 %v4273
        %v4764 = vpop.xlane.xlu0 %4763
        %4765 = vadd.xlane.f32.xlu0 %v4274
        %v4766 = vpop.xlane.xlu0 %4765
        %4767 = vadd.xlane.f32.xlu0 %v4275
        %v4768 = vpop.xlane.xlu0 %4767
        %4769 = vadd.xlane.f32.xlu0 %v4276
        %v4770 = vpop.xlane.xlu0 %4769
        %4771 = vadd.xlane.f32.xlu0 %v4277
        %v4772 = vpop.xlane.xlu0 %4771
        %4773 = vadd.xlane.f32.xlu0 %v4278
        %v4774 = vpop.xlane.xlu0 %4773
        %4775 = vadd.xlane.f32.xlu0 %v4279
        %v4776 = vpop.xlane.xlu0 %4775
        %4777 = vadd.xlane.f32.xlu0 %v4280
        %v4778 = vpop.xlane.xlu0 %4777
        %4779 = vadd.xlane.f32.xlu0 %v4281
        %v4780 = vpop.xlane.xlu0 %4779
        %4781 = vadd.xlane.f32.xlu0 %v4282
        %v4782 = vpop.xlane.xlu0 %4781
        %4783 = vadd.xlane.f32.xlu0 %v4283
        %v4784 = vpop.xlane.xlu0 %4783
        %4785 = vadd.xlane.f32.xlu0 %v4284
        %v4786 = vpop.xlane.xlu0 %4785
        %4787 = vadd.xlane.f32.xlu0 %v4285
        %v4788 = vpop.xlane.xlu0 %4787
        %4789 = vadd.xlane.f32.xlu0 %v4286
        %v4790 = vpop.xlane.xlu0 %4789
        %4791 = vadd.xlane.f32.xlu0 %v4287
        %v4792 = vpop.xlane.xlu0 %4791
        %4793 = vadd.xlane.f32.xlu0 %v4288
        %v4794 = vpop.xlane.xlu0 %4793
        %4795 = vadd.xlane.f32.xlu0 %v4289
        %v4796 = vpop.xlane.xlu0 %4795
        %4797 = vadd.xlane.f32.xlu0 %v4290
        %v4798 = vpop.xlane.xlu0 %4797
        %4799 = vadd.xlane.f32.xlu0 %v4291
        %v4800 = vpop.xlane.xlu0 %4799
        %4801 = vadd.xlane.f32.xlu0 %v4292
        %v4802 = vpop.xlane.xlu0 %4801
        %4803 = vadd.xlane.f32.xlu0 %v4293
        %v4804 = vpop.xlane.xlu0 %4803
        %4805 = vadd.xlane.f32.xlu0 %v4294
        %v4806 = vpop.xlane.xlu0 %4805
        %v4807 = vmul.f32 %v4296, 0.088388346
        %v4808 = vmul.f32 %v4298, 0.088388346
        %v4809 = vmul.f32 %v4300, 0.088388346
        %v4810 = vmul.f32 %v4302, 0.088388346
        %v4811 = vmul.f32 %v4304, 0.088388346
        %v4812 = vmul.f32 %v4306, 0.088388346
        %v4813 = vmul.f32 %v4308, 0.088388346
        %v4814 = vmul.f32 %v4310, 0.088388346
        %v4815 = vmul.f32 %v4312, 0.088388346
        %v4816 = vmul.f32 %v4314, 0.088388346
        %v4817 = vmul.f32 %v4316, 0.088388346
        %v4818 = vmul.f32 %v4318, 0.088388346
        %v4819 = vmul.f32 %v4320, 0.088388346
        %v4820 = vmul.f32 %v4322, 0.088388346
        %v4821 = vmul.f32 %v4324, 0.088388346
        %v4822 = vmul.f32 %v4326, 0.088388346
        %v4823 = vmul.f32 %v4328, 0.088388346
        %v4824 = vmul.f32 %v4330, 0.088388346
        %v4825 = vmul.f32 %v4332, 0.088388346
        %v4826 = vmul.f32 %v4334, 0.088388346
        %v4827 = vmul.f32 %v4336, 0.088388346
        %v4828 = vmul.f32 %v4338, 0.088388346
        %v4829 = vmul.f32 %v4340, 0.088388346
        %v4830 = vmul.f32 %v4342, 0.088388346
        %v4831 = vmul.f32 %v4344, 0.088388346
        %v4832 = vmul.f32 %v4346, 0.088388346
        %v4833 = vmul.f32 %v4348, 0.088388346
        %v4834 = vmul.f32 %v4350, 0.088388346
        %v4835 = vmul.f32 %v4352, 0.088388346
        %v4836 = vmul.f32 %v4354, 0.088388346
        %v4837 = vmul.f32 %v4356, 0.088388346
        %v4838 = vmul.f32 %v4358, 0.088388346
        %v4839 = vmul.f32 %v4360, 0.088388346
        %v4840 = vmul.f32 %v4362, 0.088388346
        %v4841 = vmul.f32 %v4364, 0.088388346
        %v4842 = vmul.f32 %v4366, 0.088388346
        %v4843 = vmul.f32 %v4368, 0.088388346
        %v4844 = vmul.f32 %v4370, 0.088388346
        %v4845 = vmul.f32 %v4372, 0.088388346
        %v4846 = vmul.f32 %v4374, 0.088388346
        %v4847 = vmul.f32 %v4376, 0.088388346
        %v4848 = vmul.f32 %v4378, 0.088388346
        %v4849 = vmul.f32 %v4380, 0.088388346
        %v4850 = vmul.f32 %v4382, 0.088388346
        %v4851 = vmul.f32 %v4384, 0.088388346
        %v4852 = vmul.f32 %v4386, 0.088388346
        %v4853 = vmul.f32 %v4388, 0.088388346
        %v4854 = vmul.f32 %v4390, 0.088388346
        %v4855 = vmul.f32 %v4392, 0.088388346
        %v4856 = vmul.f32 %v4394, 0.088388346
        %v4857 = vmul.f32 %v4396, 0.088388346
        %v4858 = vmul.f32 %v4398, 0.088388346
        %v4859 = vmul.f32 %v4400, 0.088388346
        %v4860 = vmul.f32 %v4402, 0.088388346
        %v4861 = vmul.f32 %v4404, 0.088388346
        %v4862 = vmul.f32 %v4406, 0.088388346
        %v4863 = vmul.f32 %v4408, 0.088388346
        %v4864 = vmul.f32 %v4410, 0.088388346
        %v4865 = vmul.f32 %v4412, 0.088388346
        %v4866 = vmul.f32 %v4414, 0.088388346
        %v4867 = vmul.f32 %v4416, 0.088388346
        %v4868 = vmul.f32 %v4418, 0.088388346
        %v4869 = vmul.f32 %v4420, 0.088388346
        %v4870 = vmul.f32 %v4422, 0.088388346
        %v4871 = vmul.f32 %v4424, 0.088388346
        %v4872 = vmul.f32 %v4426, 0.088388346
        %v4873 = vmul.f32 %v4428, 0.088388346
        %v4874 = vmul.f32 %v4430, 0.088388346
        %v4875 = vmul.f32 %v4432, 0.088388346
        %v4876 = vmul.f32 %v4434, 0.088388346
        %v4877 = vmul.f32 %v4436, 0.088388346
        %v4878 = vmul.f32 %v4438, 0.088388346
        %v4879 = vmul.f32 %v4440, 0.088388346
        %v4880 = vmul.f32 %v4442, 0.088388346
        %v4881 = vmul.f32 %v4444, 0.088388346
        %v4882 = vmul.f32 %v4446, 0.088388346
        %v4883 = vmul.f32 %v4448, 0.088388346
        %v4884 = vmul.f32 %v4450, 0.088388346
        %v4885 = vmul.f32 %v4452, 0.088388346
        %v4886 = vmul.f32 %v4454, 0.088388346
        %v4887 = vmul.f32 %v4456, 0.088388346
        %v4888 = vmul.f32 %v4458, 0.088388346
        %v4889 = vmul.f32 %v4460, 0.088388346
        %v4890 = vmul.f32 %v4462, 0.088388346
        %v4891 = vmul.f32 %v4464, 0.088388346
        %v4892 = vmul.f32 %v4466, 0.088388346
        %v4893 = vmul.f32 %v4468, 0.088388346
        %v4894 = vmul.f32 %v4470, 0.088388346
        %v4895 = vmul.f32 %v4472, 0.088388346
        %v4896 = vmul.f32 %v4474, 0.088388346
        %v4897 = vmul.f32 %v4476, 0.088388346
        %v4898 = vmul.f32 %v4478, 0.088388346
        %v4899 = vmul.f32 %v4480, 0.088388346
        %v4900 = vmul.f32 %v4482, 0.088388346
        %v4901 = vmul.f32 %v4484, 0.088388346
        %v4902 = vmul.f32 %v4486, 0.088388346
        %v4903 = vmul.f32 %v4488, 0.088388346
        %v4904 = vmul.f32 %v4490, 0.088388346
        %v4905 = vmul.f32 %v4492, 0.088388346
        %v4906 = vmul.f32 %v4494, 0.088388346
        %v4907 = vmul.f32 %v4496, 0.088388346
        %v4908 = vmul.f32 %v4498, 0.088388346
        %v4909 = vmul.f32 %v4500, 0.088388346
        %v4910 = vmul.f32 %v4502, 0.088388346
        %v4911 = vmul.f32 %v4504, 0.088388346
        %v4912 = vmul.f32 %v4506, 0.088388346
        %v4913 = vmul.f32 %v4508, 0.088388346
        %v4914 = vmul.f32 %v4510, 0.088388346
        %v4915 = vmul.f32 %v4512, 0.088388346
        %v4916 = vmul.f32 %v4514, 0.088388346
        %v4917 = vmul.f32 %v4516, 0.088388346
        %v4918 = vmul.f32 %v4518, 0.088388346
        %v4919 = vmul.f32 %v4520, 0.088388346
        %v4920 = vmul.f32 %v4522, 0.088388346
        %v4921 = vmul.f32 %v4524, 0.088388346
        %v4922 = vmul.f32 %v4526, 0.088388346
        %v4923 = vmul.f32 %v4528, 0.088388346
        %v4924 = vmul.f32 %v4530, 0.088388346
        %v4925 = vmul.f32 %v4532, 0.088388346
        %v4926 = vmul.f32 %v4534, 0.088388346
        %v4927 = vmul.f32 %v4536, 0.088388346
        %v4928 = vmul.f32 %v4538, 0.088388346
        %v4929 = vmul.f32 %v4540, 0.088388346
        %v4930 = vmul.f32 %v4542, 0.088388346
        %v4931 = vmul.f32 %v4544, 0.088388346
        %v4932 = vmul.f32 %v4546, 0.088388346
        %v4933 = vmul.f32 %v4548, 0.088388346
        %v4934 = vmul.f32 %v4550, 0.088388346
        %v4935 = vmul.f32 %v4552, 0.088388346
        %v4936 = vmul.f32 %v4554, 0.088388346
        %v4937 = vmul.f32 %v4556, 0.088388346
        %v4938 = vmul.f32 %v4558, 0.088388346
        %v4939 = vmul.f32 %v4560, 0.088388346
        %v4940 = vmul.f32 %v4562, 0.088388346
        %v4941 = vmul.f32 %v4564, 0.088388346
        %v4942 = vmul.f32 %v4566, 0.088388346
        %v4943 = vmul.f32 %v4568, 0.088388346
        %v4944 = vmul.f32 %v4570, 0.088388346
        %v4945 = vmul.f32 %v4572, 0.088388346
        %v4946 = vmul.f32 %v4574, 0.088388346
        %v4947 = vmul.f32 %v4576, 0.088388346
        %v4948 = vmul.f32 %v4578, 0.088388346
        %v4949 = vmul.f32 %v4580, 0.088388346
        %v4950 = vmul.f32 %v4582, 0.088388346
        %v4951 = vmul.f32 %v4584, 0.088388346
        %v4952 = vmul.f32 %v4586, 0.088388346
        %v4953 = vmul.f32 %v4588, 0.088388346
        %v4954 = vmul.f32 %v4590, 0.088388346
        %v4955 = vmul.f32 %v4592, 0.088388346
        %v4956 = vmul.f32 %v4594, 0.088388346
        %v4957 = vmul.f32 %v4596, 0.088388346
        %v4958 = vmul.f32 %v4598, 0.088388346
        %v4959 = vmul.f32 %v4600, 0.088388346
        %v4960 = vmul.f32 %v4602, 0.088388346
        %v4961 = vmul.f32 %v4604, 0.088388346
        %v4962 = vmul.f32 %v4606, 0.088388346
        %v4963 = vmul.f32 %v4608, 0.088388346
        %v4964 = vmul.f32 %v4610, 0.088388346
        %v4965 = vmul.f32 %v4612, 0.088388346
        %v4966 = vmul.f32 %v4614, 0.088388346
        %v4967 = vmul.f32 %v4616, 0.088388346
        %v4968 = vmul.f32 %v4618, 0.088388346
        %v4969 = vmul.f32 %v4620, 0.088388346
        %v4970 = vmul.f32 %v4622, 0.088388346
        %v4971 = vmul.f32 %v4624, 0.088388346
        %v4972 = vmul.f32 %v4626, 0.088388346
        %v4973 = vmul.f32 %v4628, 0.088388346
        %v4974 = vmul.f32 %v4630, 0.088388346
        %v4975 = vmul.f32 %v4632, 0.088388346
        %v4976 = vmul.f32 %v4634, 0.088388346
        %v4977 = vmul.f32 %v4636, 0.088388346
        %v4978 = vmul.f32 %v4638, 0.088388346
        %v4979 = vmul.f32 %v4640, 0.088388346
        %v4980 = vmul.f32 %v4642, 0.088388346
        %v4981 = vmul.f32 %v4644, 0.088388346
        %v4982 = vmul.f32 %v4646, 0.088388346
        %v4983 = vmul.f32 %v4648, 0.088388346
        %v4984 = vmul.f32 %v4650, 0.088388346
        %v4985 = vmul.f32 %v4652, 0.088388346
        %v4986 = vmul.f32 %v4654, 0.088388346
        %v4987 = vmul.f32 %v4656, 0.088388346
        %v4988 = vmul.f32 %v4658, 0.088388346
        %v4989 = vmul.f32 %v4660, 0.088388346
        %v4990 = vmul.f32 %v4662, 0.088388346
        %v4991 = vmul.f32 %v4664, 0.088388346
        %v4992 = vmul.f32 %v4666, 0.088388346
        %v4993 = vmul.f32 %v4668, 0.088388346
        %v4994 = vmul.f32 %v4670, 0.088388346
        %v4995 = vmul.f32 %v4672, 0.088388346
        %v4996 = vmul.f32 %v4674, 0.088388346
        %v4997 = vmul.f32 %v4676, 0.088388346
        %v4998 = vmul.f32 %v4678, 0.088388346
        %v4999 = vmul.f32 %v4680, 0.088388346
        %v5000 = vmul.f32 %v4682, 0.088388346
        %v5001 = vmul.f32 %v4684, 0.088388346
        %v5002 = vmul.f32 %v4686, 0.088388346
        %v5003 = vmul.f32 %v4688, 0.088388346
        %v5004 = vmul.f32 %v4690, 0.088388346
        %v5005 = vmul.f32 %v4692, 0.088388346
        %v5006 = vmul.f32 %v4694, 0.088388346
        %v5007 = vmul.f32 %v4696, 0.088388346
        %v5008 = vmul.f32 %v4698, 0.088388346
        %v5009 = vmul.f32 %v4700, 0.088388346
        %v5010 = vmul.f32 %v4702, 0.088388346
        %v5011 = vmul.f32 %v4704, 0.088388346
        %v5012 = vmul.f32 %v4706, 0.088388346
        %v5013 = vmul.f32 %v4708, 0.088388346
        %v5014 = vmul.f32 %v4710, 0.088388346
        %v5015 = vmul.f32 %v4712, 0.088388346
        %v5016 = vmul.f32 %v4714, 0.088388346
        %v5017 = vmul.f32 %v4716, 0.088388346
        %v5018 = vmul.f32 %v4718, 0.088388346
        %v5019 = vmul.f32 %v4720, 0.088388346
        %v5020 = vmul.f32 %v4722, 0.088388346
        %v5021 = vmul.f32 %v4724, 0.088388346
        %v5022 = vmul.f32 %v4726, 0.088388346
        %v5023 = vmul.f32 %v4728, 0.088388346
        %v5024 = vmul.f32 %v4730, 0.088388346
        %v5025 = vmul.f32 %v4732, 0.088388346
        %v5026 = vmul.f32 %v4734, 0.088388346
        %v5027 = vmul.f32 %v4736, 0.088388346
        %v5028 = vmul.f32 %v4738, 0.088388346
        %v5029 = vmul.f32 %v4740, 0.088388346
        %v5030 = vmul.f32 %v4742, 0.088388346
        %v5031 = vmul.f32 %v4744, 0.088388346
        %v5032 = vmul.f32 %v4746, 0.088388346
        %v5033 = vmul.f32 %v4748, 0.088388346
        %v5034 = vmul.f32 %v4750, 0.088388346
        %v5035 = vmul.f32 %v4752, 0.088388346
        %v5036 = vmul.f32 %v4754, 0.088388346
        %v5037 = vmul.f32 %v4756, 0.088388346
        %v5038 = vmul.f32 %v4758, 0.088388346
        %v5039 = vmul.f32 %v4760, 0.088388346
        %v5040 = vmul.f32 %v4762, 0.088388346
        %v5041 = vmul.f32 %v4764, 0.088388346
        %v5042 = vmul.f32 %v4766, 0.088388346
        %v5043 = vmul.f32 %v4768, 0.088388346
        %v5044 = vmul.f32 %v4770, 0.088388346
        %v5045 = vmul.f32 %v4772, 0.088388346
        %v5046 = vmul.f32 %v4774, 0.088388346
        %v5047 = vmul.f32 %v4776, 0.088388346
        %v5048 = vmul.f32 %v4778, 0.088388346
        %v5049 = vmul.f32 %v4780, 0.088388346
        %v5050 = vmul.f32 %v4782, 0.088388346
        %v5051 = vmul.f32 %v4784, 0.088388346
        %v5052 = vmul.f32 %v4786, 0.088388346
        %v5053 = vmul.f32 %v4788, 0.088388346
        %v5054 = vmul.f32 %v4790, 0.088388346
        %v5055 = vmul.f32 %v4792, 0.088388346
        %v5056 = vmul.f32 %v4794, 0.088388346
        %v5057 = vmul.f32 %v4796, 0.088388346
        %v5058 = vmul.f32 %v4798, 0.088388346
        %v5059 = vmul.f32 %v4800, 0.088388346
        %v5060 = vmul.f32 %v4802, 0.088388346
        %v5061 = vmul.f32 %v4804, 0.088388346
        %v5062 = vmul.f32 %v4806, 0.088388346
        %vm5063 = vcmp.gt.f32.partialorder %v770, 0.0
        %vm5064 = vcmp.gt.f32.partialorder %v771, 0.0
        %vm5065 = vcmp.gt.f32.partialorder %v772, 0.0
        %vm5066 = vcmp.gt.f32.partialorder %v773, 0.0
        %vm5067 = vcmp.gt.f32.partialorder %v774, 0.0
        %vm5068 = vcmp.gt.f32.partialorder %v775, 0.0
        %vm5069 = vcmp.gt.f32.partialorder %v776, 0.0
        %vm5070 = vcmp.gt.f32.partialorder %v777, 0.0
        %vm5071 = vcmp.gt.f32.partialorder %v778, 0.0
        %vm5072 = vcmp.gt.f32.partialorder %v779, 0.0
        %vm5073 = vcmp.gt.f32.partialorder %v780, 0.0
        %vm5074 = vcmp.gt.f32.partialorder %v781, 0.0
        %vm5075 = vcmp.gt.f32.partialorder %v782, 0.0
        %vm5076 = vcmp.gt.f32.partialorder %v783, 0.0
        %vm5077 = vcmp.gt.f32.partialorder %v784, 0.0
        %vm5078 = vcmp.gt.f32.partialorder %v785, 0.0
        %v5335 = vlaneseq
        %v5336 = vand.u32 %v5335, 127
        %v5337 = vlaneseq
        %v5338 = vshrl.u32 %v5337, 7
        %v5339 = vsub.s32 %v5336, %v5338
        %v5340 = vrot.slane %v4807, %v5339
        %v5341 = vadd.s32 %v5336, 4294967288
        %v5342 = vlaneseq
        %v5343 = vshrl.u32 %v5342, 7
        %v5344 = vsub.s32 %v5341, %v5343
        %v5345 = vrot.slane %v4808, %v5344
        %vm5346 = vcmask 130112
        %v5347 = vsel %vm5346, %v5345, %v5340
        %v5348 = vlaneseq
        %v5349 = vshrl.u32 %v5348, 7
        %v5350 = vsub.s32 %v5336, %v5349
        %v5351 = vrot.slane %v4809, %v5350
        %v5352 = vlaneseq
        %v5353 = vshrl.u32 %v5352, 7
        %v5354 = vsub.s32 %v5341, %v5353
        %v5355 = vrot.slane %v4810, %v5354
        %v5356 = vsel %vm5346, %v5355, %v5351
        %v5357 = vlaneseq
        %v5358 = vshrl.u32 %v5357, 7
        %v5359 = vsub.s32 %v5336, %v5358
        %v5360 = vrot.slane %v4811, %v5359
        %v5361 = vlaneseq
        %v5362 = vshrl.u32 %v5361, 7
        %v5363 = vsub.s32 %v5341, %v5362
        %v5364 = vrot.slane %v4812, %v5363
        %v5365 = vsel %vm5346, %v5364, %v5360
        %v5366 = vlaneseq
        %v5367 = vshrl.u32 %v5366, 7
        %v5368 = vsub.s32 %v5336, %v5367
        %v5369 = vrot.slane %v4813, %v5368
        %v5370 = vlaneseq
        %v5371 = vshrl.u32 %v5370, 7
        %v5372 = vsub.s32 %v5341, %v5371
        %v5373 = vrot.slane %v4814, %v5372
        %v5374 = vsel %vm5346, %v5373, %v5369
        %v5375 = vlaneseq
        %v5376 = vshrl.u32 %v5375, 7
        %v5377 = vsub.s32 %v5336, %v5376
        %v5378 = vrot.slane %v4815, %v5377
        %v5379 = vlaneseq
        %v5380 = vshrl.u32 %v5379, 7
        %v5381 = vsub.s32 %v5341, %v5380
        %v5382 = vrot.slane %v4816, %v5381
        %v5383 = vsel %vm5346, %v5382, %v5378
        %v5384 = vlaneseq
        %v5385 = vshrl.u32 %v5384, 7
        %v5386 = vsub.s32 %v5336, %v5385
        %v5387 = vrot.slane %v4817, %v5386
        %v5388 = vlaneseq
        %v5389 = vshrl.u32 %v5388, 7
        %v5390 = vsub.s32 %v5341, %v5389
        %v5391 = vrot.slane %v4818, %v5390
        %v5392 = vsel %vm5346, %v5391, %v5387
        %v5393 = vlaneseq
        %v5394 = vshrl.u32 %v5393, 7
        %v5395 = vsub.s32 %v5336, %v5394
        %v5396 = vrot.slane %v4819, %v5395
        %v5397 = vlaneseq
        %v5398 = vshrl.u32 %v5397, 7
        %v5399 = vsub.s32 %v5341, %v5398
        %v5400 = vrot.slane %v4820, %v5399
        %v5401 = vsel %vm5346, %v5400, %v5396
        %v5402 = vlaneseq
        %v5403 = vshrl.u32 %v5402, 7
        %v5404 = vsub.s32 %v5336, %v5403
        %v5405 = vrot.slane %v4821, %v5404
        %v5406 = vlaneseq
        %v5407 = vshrl.u32 %v5406, 7
        %v5408 = vsub.s32 %v5341, %v5407
        %v5409 = vrot.slane %v4822, %v5408
        %v5410 = vsel %vm5346, %v5409, %v5405
        %v5411 = vlaneseq
        %v5412 = vshrl.u32 %v5411, 7
        %v5413 = vsub.s32 %v5336, %v5412
        %v5414 = vrot.slane %v4823, %v5413
        %v5415 = vlaneseq
        %v5416 = vshrl.u32 %v5415, 7
        %v5417 = vsub.s32 %v5341, %v5416
        %v5418 = vrot.slane %v4824, %v5417
        %v5419 = vsel %vm5346, %v5418, %v5414
        %v5420 = vlaneseq
        %v5421 = vshrl.u32 %v5420, 7
        %v5422 = vsub.s32 %v5336, %v5421
        %v5423 = vrot.slane %v4825, %v5422
        %v5424 = vlaneseq
        %v5425 = vshrl.u32 %v5424, 7
        %v5426 = vsub.s32 %v5341, %v5425
        %v5427 = vrot.slane %v4826, %v5426
        %v5428 = vsel %vm5346, %v5427, %v5423
        %v5429 = vlaneseq
        %v5430 = vshrl.u32 %v5429, 7
        %v5431 = vsub.s32 %v5336, %v5430
        %v5432 = vrot.slane %v4827, %v5431
        %v5433 = vlaneseq
        %v5434 = vshrl.u32 %v5433, 7
        %v5435 = vsub.s32 %v5341, %v5434
        %v5436 = vrot.slane %v4828, %v5435
        %v5437 = vsel %vm5346, %v5436, %v5432
        %v5438 = vlaneseq
        %v5439 = vshrl.u32 %v5438, 7
        %v5440 = vsub.s32 %v5336, %v5439
        %v5441 = vrot.slane %v4829, %v5440
        %v5442 = vlaneseq
        %v5443 = vshrl.u32 %v5442, 7
        %v5444 = vsub.s32 %v5341, %v5443
        %v5445 = vrot.slane %v4830, %v5444
        %v5446 = vsel %vm5346, %v5445, %v5441
        %v5447 = vlaneseq
        %v5448 = vshrl.u32 %v5447, 7
        %v5449 = vsub.s32 %v5336, %v5448
        %v5450 = vrot.slane %v4831, %v5449
        %v5451 = vlaneseq
        %v5452 = vshrl.u32 %v5451, 7
        %v5453 = vsub.s32 %v5341, %v5452
        %v5454 = vrot.slane %v4832, %v5453
        %v5455 = vsel %vm5346, %v5454, %v5450
        %v5456 = vlaneseq
        %v5457 = vshrl.u32 %v5456, 7
        %v5458 = vsub.s32 %v5336, %v5457
        %v5459 = vrot.slane %v4833, %v5458
        %v5460 = vlaneseq
        %v5461 = vshrl.u32 %v5460, 7
        %v5462 = vsub.s32 %v5341, %v5461
        %v5463 = vrot.slane %v4834, %v5462
        %v5464 = vsel %vm5346, %v5463, %v5459
        %v5465 = vlaneseq
        %v5466 = vshrl.u32 %v5465, 7
        %v5467 = vsub.s32 %v5336, %v5466
        %v5468 = vrot.slane %v4835, %v5467
        %v5469 = vlaneseq
        %v5470 = vshrl.u32 %v5469, 7
        %v5471 = vsub.s32 %v5341, %v5470
        %v5472 = vrot.slane %v4836, %v5471
        %v5473 = vsel %vm5346, %v5472, %v5468
        %v5474 = vlaneseq
        %v5475 = vshrl.u32 %v5474, 7
        %v5476 = vsub.s32 %v5336, %v5475
        %v5477 = vrot.slane %v4837, %v5476
        %v5478 = vlaneseq
        %v5479 = vshrl.u32 %v5478, 7
        %v5480 = vsub.s32 %v5341, %v5479
        %v5481 = vrot.slane %v4838, %v5480
        %v5482 = vsel %vm5346, %v5481, %v5477
        %v5483 = vlaneseq
        %v5484 = vshrl.u32 %v5483, 7
        %v5485 = vsub.s32 %v5336, %v5484
        %v5486 = vrot.slane %v4839, %v5485
        %v5487 = vlaneseq
        %v5488 = vshrl.u32 %v5487, 7
        %v5489 = vsub.s32 %v5341, %v5488
        %v5490 = vrot.slane %v4840, %v5489
        %v5491 = vsel %vm5346, %v5490, %v5486
        %v5492 = vlaneseq
        %v5493 = vshrl.u32 %v5492, 7
        %v5494 = vsub.s32 %v5336, %v5493
        %v5495 = vrot.slane %v4841, %v5494
        %v5496 = vlaneseq
        %v5497 = vshrl.u32 %v5496, 7
        %v5498 = vsub.s32 %v5341, %v5497
        %v5499 = vrot.slane %v4842, %v5498
        %v5500 = vsel %vm5346, %v5499, %v5495
        %v5501 = vlaneseq
        %v5502 = vshrl.u32 %v5501, 7
        %v5503 = vsub.s32 %v5336, %v5502
        %v5504 = vrot.slane %v4843, %v5503
        %v5505 = vlaneseq
        %v5506 = vshrl.u32 %v5505, 7
        %v5507 = vsub.s32 %v5341, %v5506
        %v5508 = vrot.slane %v4844, %v5507
        %v5509 = vsel %vm5346, %v5508, %v5504
        %v5510 = vlaneseq
        %v5511 = vshrl.u32 %v5510, 7
        %v5512 = vsub.s32 %v5336, %v5511
        %v5513 = vrot.slane %v4845, %v5512
        %v5514 = vlaneseq
        %v5515 = vshrl.u32 %v5514, 7
        %v5516 = vsub.s32 %v5341, %v5515
        %v5517 = vrot.slane %v4846, %v5516
        %v5518 = vsel %vm5346, %v5517, %v5513
        %v5519 = vlaneseq
        %v5520 = vshrl.u32 %v5519, 7
        %v5521 = vsub.s32 %v5336, %v5520
        %v5522 = vrot.slane %v4847, %v5521
        %v5523 = vlaneseq
        %v5524 = vshrl.u32 %v5523, 7
        %v5525 = vsub.s32 %v5341, %v5524
        %v5526 = vrot.slane %v4848, %v5525
        %v5527 = vsel %vm5346, %v5526, %v5522
        %v5528 = vlaneseq
        %v5529 = vshrl.u32 %v5528, 7
        %v5530 = vsub.s32 %v5336, %v5529
        %v5531 = vrot.slane %v4849, %v5530
        %v5532 = vlaneseq
        %v5533 = vshrl.u32 %v5532, 7
        %v5534 = vsub.s32 %v5341, %v5533
        %v5535 = vrot.slane %v4850, %v5534
        %v5536 = vsel %vm5346, %v5535, %v5531
        %v5537 = vlaneseq
        %v5538 = vshrl.u32 %v5537, 7
        %v5539 = vsub.s32 %v5336, %v5538
        %v5540 = vrot.slane %v4851, %v5539
        %v5541 = vlaneseq
        %v5542 = vshrl.u32 %v5541, 7
        %v5543 = vsub.s32 %v5341, %v5542
        %v5544 = vrot.slane %v4852, %v5543
        %v5545 = vsel %vm5346, %v5544, %v5540
        %v5546 = vlaneseq
        %v5547 = vshrl.u32 %v5546, 7
        %v5548 = vsub.s32 %v5336, %v5547
        %v5549 = vrot.slane %v4853, %v5548
        %v5550 = vlaneseq
        %v5551 = vshrl.u32 %v5550, 7
        %v5552 = vsub.s32 %v5341, %v5551
        %v5553 = vrot.slane %v4854, %v5552
        %v5554 = vsel %vm5346, %v5553, %v5549
        %v5555 = vlaneseq
        %v5556 = vshrl.u32 %v5555, 7
        %v5557 = vsub.s32 %v5336, %v5556
        %v5558 = vrot.slane %v4855, %v5557
        %v5559 = vlaneseq
        %v5560 = vshrl.u32 %v5559, 7
        %v5561 = vsub.s32 %v5341, %v5560
        %v5562 = vrot.slane %v4856, %v5561
        %v5563 = vsel %vm5346, %v5562, %v5558
        %v5564 = vlaneseq
        %v5565 = vshrl.u32 %v5564, 7
        %v5566 = vsub.s32 %v5336, %v5565
        %v5567 = vrot.slane %v4857, %v5566
        %v5568 = vlaneseq
        %v5569 = vshrl.u32 %v5568, 7
        %v5570 = vsub.s32 %v5341, %v5569
        %v5571 = vrot.slane %v4858, %v5570
        %v5572 = vsel %vm5346, %v5571, %v5567
        %v5573 = vlaneseq
        %v5574 = vshrl.u32 %v5573, 7
        %v5575 = vsub.s32 %v5336, %v5574
        %v5576 = vrot.slane %v4859, %v5575
        %v5577 = vlaneseq
        %v5578 = vshrl.u32 %v5577, 7
        %v5579 = vsub.s32 %v5341, %v5578
        %v5580 = vrot.slane %v4860, %v5579
        %v5581 = vsel %vm5346, %v5580, %v5576
        %v5582 = vlaneseq
        %v5583 = vshrl.u32 %v5582, 7
        %v5584 = vsub.s32 %v5336, %v5583
        %v5585 = vrot.slane %v4861, %v5584
        %v5586 = vlaneseq
        %v5587 = vshrl.u32 %v5586, 7
        %v5588 = vsub.s32 %v5341, %v5587
        %v5589 = vrot.slane %v4862, %v5588
        %v5590 = vsel %vm5346, %v5589, %v5585
        %v5591 = vlaneseq
        %v5592 = vshrl.u32 %v5591, 7
        %v5593 = vsub.s32 %v5336, %v5592
        %v5594 = vrot.slane %v4863, %v5593
        %v5595 = vlaneseq
        %v5596 = vshrl.u32 %v5595, 7
        %v5597 = vsub.s32 %v5341, %v5596
        %v5598 = vrot.slane %v4864, %v5597
        %v5599 = vsel %vm5346, %v5598, %v5594
        %v5600 = vlaneseq
        %v5601 = vshrl.u32 %v5600, 7
        %v5602 = vsub.s32 %v5336, %v5601
        %v5603 = vrot.slane %v4865, %v5602
        %v5604 = vlaneseq
        %v5605 = vshrl.u32 %v5604, 7
        %v5606 = vsub.s32 %v5341, %v5605
        %v5607 = vrot.slane %v4866, %v5606
        %v5608 = vsel %vm5346, %v5607, %v5603
        %v5609 = vlaneseq
        %v5610 = vshrl.u32 %v5609, 7
        %v5611 = vsub.s32 %v5336, %v5610
        %v5612 = vrot.slane %v4867, %v5611
        %v5613 = vlaneseq
        %v5614 = vshrl.u32 %v5613, 7
        %v5615 = vsub.s32 %v5341, %v5614
        %v5616 = vrot.slane %v4868, %v5615
        %v5617 = vsel %vm5346, %v5616, %v5612
        %v5618 = vlaneseq
        %v5619 = vshrl.u32 %v5618, 7
        %v5620 = vsub.s32 %v5336, %v5619
        %v5621 = vrot.slane %v4869, %v5620
        %v5622 = vlaneseq
        %v5623 = vshrl.u32 %v5622, 7
        %v5624 = vsub.s32 %v5341, %v5623
        %v5625 = vrot.slane %v4870, %v5624
        %v5626 = vsel %vm5346, %v5625, %v5621
        %v5627 = vlaneseq
        %v5628 = vshrl.u32 %v5627, 7
        %v5629 = vsub.s32 %v5336, %v5628
        %v5630 = vrot.slane %v4871, %v5629
        %v5631 = vlaneseq
        %v5632 = vshrl.u32 %v5631, 7
        %v5633 = vsub.s32 %v5341, %v5632
        %v5634 = vrot.slane %v4872, %v5633
        %v5635 = vsel %vm5346, %v5634, %v5630
        %v5636 = vlaneseq
        %v5637 = vshrl.u32 %v5636, 7
        %v5638 = vsub.s32 %v5336, %v5637
        %v5639 = vrot.slane %v4873, %v5638
        %v5640 = vlaneseq
        %v5641 = vshrl.u32 %v5640, 7
        %v5642 = vsub.s32 %v5341, %v5641
        %v5643 = vrot.slane %v4874, %v5642
        %v5644 = vsel %vm5346, %v5643, %v5639
        %v5645 = vlaneseq
        %v5646 = vshrl.u32 %v5645, 7
        %v5647 = vsub.s32 %v5336, %v5646
        %v5648 = vrot.slane %v4875, %v5647
        %v5649 = vlaneseq
        %v5650 = vshrl.u32 %v5649, 7
        %v5651 = vsub.s32 %v5341, %v5650
        %v5652 = vrot.slane %v4876, %v5651
        %v5653 = vsel %vm5346, %v5652, %v5648
        %v5654 = vlaneseq
        %v5655 = vshrl.u32 %v5654, 7
        %v5656 = vsub.s32 %v5336, %v5655
        %v5657 = vrot.slane %v4877, %v5656
        %v5658 = vlaneseq
        %v5659 = vshrl.u32 %v5658, 7
        %v5660 = vsub.s32 %v5341, %v5659
        %v5661 = vrot.slane %v4878, %v5660
        %v5662 = vsel %vm5346, %v5661, %v5657
        %v5663 = vlaneseq
        %v5664 = vshrl.u32 %v5663, 7
        %v5665 = vsub.s32 %v5336, %v5664
        %v5666 = vrot.slane %v4879, %v5665
        %v5667 = vlaneseq
        %v5668 = vshrl.u32 %v5667, 7
        %v5669 = vsub.s32 %v5341, %v5668
        %v5670 = vrot.slane %v4880, %v5669
        %v5671 = vsel %vm5346, %v5670, %v5666
        %v5672 = vlaneseq
        %v5673 = vshrl.u32 %v5672, 7
        %v5674 = vsub.s32 %v5336, %v5673
        %v5675 = vrot.slane %v4881, %v5674
        %v5676 = vlaneseq
        %v5677 = vshrl.u32 %v5676, 7
        %v5678 = vsub.s32 %v5341, %v5677
        %v5679 = vrot.slane %v4882, %v5678
        %v5680 = vsel %vm5346, %v5679, %v5675
        %v5681 = vlaneseq
        %v5682 = vshrl.u32 %v5681, 7
        %v5683 = vsub.s32 %v5336, %v5682
        %v5684 = vrot.slane %v4883, %v5683
        %v5685 = vlaneseq
        %v5686 = vshrl.u32 %v5685, 7
        %v5687 = vsub.s32 %v5341, %v5686
        %v5688 = vrot.slane %v4884, %v5687
        %v5689 = vsel %vm5346, %v5688, %v5684
        %v5690 = vlaneseq
        %v5691 = vshrl.u32 %v5690, 7
        %v5692 = vsub.s32 %v5336, %v5691
        %v5693 = vrot.slane %v4885, %v5692
        %v5694 = vlaneseq
        %v5695 = vshrl.u32 %v5694, 7
        %v5696 = vsub.s32 %v5341, %v5695
        %v5697 = vrot.slane %v4886, %v5696
        %v5698 = vsel %vm5346, %v5697, %v5693
        %v5699 = vlaneseq
        %v5700 = vshrl.u32 %v5699, 7
        %v5701 = vsub.s32 %v5336, %v5700
        %v5702 = vrot.slane %v4887, %v5701
        %v5703 = vlaneseq
        %v5704 = vshrl.u32 %v5703, 7
        %v5705 = vsub.s32 %v5341, %v5704
        %v5706 = vrot.slane %v4888, %v5705
        %v5707 = vsel %vm5346, %v5706, %v5702
        %v5708 = vlaneseq
        %v5709 = vshrl.u32 %v5708, 7
        %v5710 = vsub.s32 %v5336, %v5709
        %v5711 = vrot.slane %v4889, %v5710
        %v5712 = vlaneseq
        %v5713 = vshrl.u32 %v5712, 7
        %v5714 = vsub.s32 %v5341, %v5713
        %v5715 = vrot.slane %v4890, %v5714
        %v5716 = vsel %vm5346, %v5715, %v5711
        %v5717 = vlaneseq
        %v5718 = vshrl.u32 %v5717, 7
        %v5719 = vsub.s32 %v5336, %v5718
        %v5720 = vrot.slane %v4891, %v5719
        %v5721 = vlaneseq
        %v5722 = vshrl.u32 %v5721, 7
        %v5723 = vsub.s32 %v5341, %v5722
        %v5724 = vrot.slane %v4892, %v5723
        %v5725 = vsel %vm5346, %v5724, %v5720
        %v5726 = vlaneseq
        %v5727 = vshrl.u32 %v5726, 7
        %v5728 = vsub.s32 %v5336, %v5727
        %v5729 = vrot.slane %v4893, %v5728
        %v5730 = vlaneseq
        %v5731 = vshrl.u32 %v5730, 7
        %v5732 = vsub.s32 %v5341, %v5731
        %v5733 = vrot.slane %v4894, %v5732
        %v5734 = vsel %vm5346, %v5733, %v5729
        %v5735 = vlaneseq
        %v5736 = vshrl.u32 %v5735, 7
        %v5737 = vsub.s32 %v5336, %v5736
        %v5738 = vrot.slane %v4895, %v5737
        %v5739 = vlaneseq
        %v5740 = vshrl.u32 %v5739, 7
        %v5741 = vsub.s32 %v5341, %v5740
        %v5742 = vrot.slane %v4896, %v5741
        %v5743 = vsel %vm5346, %v5742, %v5738
        %v5744 = vlaneseq
        %v5745 = vshrl.u32 %v5744, 7
        %v5746 = vsub.s32 %v5336, %v5745
        %v5747 = vrot.slane %v4897, %v5746
        %v5748 = vlaneseq
        %v5749 = vshrl.u32 %v5748, 7
        %v5750 = vsub.s32 %v5341, %v5749
        %v5751 = vrot.slane %v4898, %v5750
        %v5752 = vsel %vm5346, %v5751, %v5747
        %v5753 = vlaneseq
        %v5754 = vshrl.u32 %v5753, 7
        %v5755 = vsub.s32 %v5336, %v5754
        %v5756 = vrot.slane %v4899, %v5755
        %v5757 = vlaneseq
        %v5758 = vshrl.u32 %v5757, 7
        %v5759 = vsub.s32 %v5341, %v5758
        %v5760 = vrot.slane %v4900, %v5759
        %v5761 = vsel %vm5346, %v5760, %v5756
        %v5762 = vlaneseq
        %v5763 = vshrl.u32 %v5762, 7
        %v5764 = vsub.s32 %v5336, %v5763
        %v5765 = vrot.slane %v4901, %v5764
        %v5766 = vlaneseq
        %v5767 = vshrl.u32 %v5766, 7
        %v5768 = vsub.s32 %v5341, %v5767
        %v5769 = vrot.slane %v4902, %v5768
        %v5770 = vsel %vm5346, %v5769, %v5765
        %v5771 = vlaneseq
        %v5772 = vshrl.u32 %v5771, 7
        %v5773 = vsub.s32 %v5336, %v5772
        %v5774 = vrot.slane %v4903, %v5773
        %v5775 = vlaneseq
        %v5776 = vshrl.u32 %v5775, 7
        %v5777 = vsub.s32 %v5341, %v5776
        %v5778 = vrot.slane %v4904, %v5777
        %v5779 = vsel %vm5346, %v5778, %v5774
        %v5780 = vlaneseq
        %v5781 = vshrl.u32 %v5780, 7
        %v5782 = vsub.s32 %v5336, %v5781
        %v5783 = vrot.slane %v4905, %v5782
        %v5784 = vlaneseq
        %v5785 = vshrl.u32 %v5784, 7
        %v5786 = vsub.s32 %v5341, %v5785
        %v5787 = vrot.slane %v4906, %v5786
        %v5788 = vsel %vm5346, %v5787, %v5783
        %v5789 = vlaneseq
        %v5790 = vshrl.u32 %v5789, 7
        %v5791 = vsub.s32 %v5336, %v5790
        %v5792 = vrot.slane %v4907, %v5791
        %v5793 = vlaneseq
        %v5794 = vshrl.u32 %v5793, 7
        %v5795 = vsub.s32 %v5341, %v5794
        %v5796 = vrot.slane %v4908, %v5795
        %v5797 = vsel %vm5346, %v5796, %v5792
        %v5798 = vlaneseq
        %v5799 = vshrl.u32 %v5798, 7
        %v5800 = vsub.s32 %v5336, %v5799
        %v5801 = vrot.slane %v4909, %v5800
        %v5802 = vlaneseq
        %v5803 = vshrl.u32 %v5802, 7
        %v5804 = vsub.s32 %v5341, %v5803
        %v5805 = vrot.slane %v4910, %v5804
        %v5806 = vsel %vm5346, %v5805, %v5801
        %v5807 = vlaneseq
        %v5808 = vshrl.u32 %v5807, 7
        %v5809 = vsub.s32 %v5336, %v5808
        %v5810 = vrot.slane %v4911, %v5809
        %v5811 = vlaneseq
        %v5812 = vshrl.u32 %v5811, 7
        %v5813 = vsub.s32 %v5341, %v5812
        %v5814 = vrot.slane %v4912, %v5813
        %v5815 = vsel %vm5346, %v5814, %v5810
        %v5816 = vlaneseq
        %v5817 = vshrl.u32 %v5816, 7
        %v5818 = vsub.s32 %v5336, %v5817
        %v5819 = vrot.slane %v4913, %v5818
        %v5820 = vlaneseq
        %v5821 = vshrl.u32 %v5820, 7
        %v5822 = vsub.s32 %v5341, %v5821
        %v5823 = vrot.slane %v4914, %v5822
        %v5824 = vsel %vm5346, %v5823, %v5819
        %v5825 = vlaneseq
        %v5826 = vshrl.u32 %v5825, 7
        %v5827 = vsub.s32 %v5336, %v5826
        %v5828 = vrot.slane %v4915, %v5827
        %v5829 = vlaneseq
        %v5830 = vshrl.u32 %v5829, 7
        %v5831 = vsub.s32 %v5341, %v5830
        %v5832 = vrot.slane %v4916, %v5831
        %v5833 = vsel %vm5346, %v5832, %v5828
        %v5834 = vlaneseq
        %v5835 = vshrl.u32 %v5834, 7
        %v5836 = vsub.s32 %v5336, %v5835
        %v5837 = vrot.slane %v4917, %v5836
        %v5838 = vlaneseq
        %v5839 = vshrl.u32 %v5838, 7
        %v5840 = vsub.s32 %v5341, %v5839
        %v5841 = vrot.slane %v4918, %v5840
        %v5842 = vsel %vm5346, %v5841, %v5837
        %v5843 = vlaneseq
        %v5844 = vshrl.u32 %v5843, 7
        %v5845 = vsub.s32 %v5336, %v5844
        %v5846 = vrot.slane %v4919, %v5845
        %v5847 = vlaneseq
        %v5848 = vshrl.u32 %v5847, 7
        %v5849 = vsub.s32 %v5341, %v5848
        %v5850 = vrot.slane %v4920, %v5849
        %v5851 = vsel %vm5346, %v5850, %v5846
        %v5852 = vlaneseq
        %v5853 = vshrl.u32 %v5852, 7
        %v5854 = vsub.s32 %v5336, %v5853
        %v5855 = vrot.slane %v4921, %v5854
        %v5856 = vlaneseq
        %v5857 = vshrl.u32 %v5856, 7
        %v5858 = vsub.s32 %v5341, %v5857
        %v5859 = vrot.slane %v4922, %v5858
        %v5860 = vsel %vm5346, %v5859, %v5855
        %v5861 = vlaneseq
        %v5862 = vshrl.u32 %v5861, 7
        %v5863 = vsub.s32 %v5336, %v5862
        %v5864 = vrot.slane %v4923, %v5863
        %v5865 = vlaneseq
        %v5866 = vshrl.u32 %v5865, 7
        %v5867 = vsub.s32 %v5341, %v5866
        %v5868 = vrot.slane %v4924, %v5867
        %v5869 = vsel %vm5346, %v5868, %v5864
        %v5870 = vlaneseq
        %v5871 = vshrl.u32 %v5870, 7
        %v5872 = vsub.s32 %v5336, %v5871
        %v5873 = vrot.slane %v4925, %v5872
        %v5874 = vlaneseq
        %v5875 = vshrl.u32 %v5874, 7
        %v5876 = vsub.s32 %v5341, %v5875
        %v5877 = vrot.slane %v4926, %v5876
        %v5878 = vsel %vm5346, %v5877, %v5873
        %v5879 = vlaneseq
        %v5880 = vshrl.u32 %v5879, 7
        %v5881 = vsub.s32 %v5336, %v5880
        %v5882 = vrot.slane %v4927, %v5881
        %v5883 = vlaneseq
        %v5884 = vshrl.u32 %v5883, 7
        %v5885 = vsub.s32 %v5341, %v5884
        %v5886 = vrot.slane %v4928, %v5885
        %v5887 = vsel %vm5346, %v5886, %v5882
        %v5888 = vlaneseq
        %v5889 = vshrl.u32 %v5888, 7
        %v5890 = vsub.s32 %v5336, %v5889
        %v5891 = vrot.slane %v4929, %v5890
        %v5892 = vlaneseq
        %v5893 = vshrl.u32 %v5892, 7
        %v5894 = vsub.s32 %v5341, %v5893
        %v5895 = vrot.slane %v4930, %v5894
        %v5896 = vsel %vm5346, %v5895, %v5891
        %v5897 = vlaneseq
        %v5898 = vshrl.u32 %v5897, 7
        %v5899 = vsub.s32 %v5336, %v5898
        %v5900 = vrot.slane %v4931, %v5899
        %v5901 = vlaneseq
        %v5902 = vshrl.u32 %v5901, 7
        %v5903 = vsub.s32 %v5341, %v5902
        %v5904 = vrot.slane %v4932, %v5903
        %v5905 = vsel %vm5346, %v5904, %v5900
        %v5906 = vlaneseq
        %v5907 = vshrl.u32 %v5906, 7
        %v5908 = vsub.s32 %v5336, %v5907
        %v5909 = vrot.slane %v4933, %v5908
        %v5910 = vlaneseq
        %v5911 = vshrl.u32 %v5910, 7
        %v5912 = vsub.s32 %v5341, %v5911
        %v5913 = vrot.slane %v4934, %v5912
        %v5914 = vsel %vm5346, %v5913, %v5909
        %v5915 = vlaneseq
        %v5916 = vshrl.u32 %v5915, 7
        %v5917 = vsub.s32 %v5336, %v5916
        %v5918 = vrot.slane %v4935, %v5917
        %v5919 = vlaneseq
        %v5920 = vshrl.u32 %v5919, 7
        %v5921 = vsub.s32 %v5341, %v5920
        %v5922 = vrot.slane %v4936, %v5921
        %v5923 = vsel %vm5346, %v5922, %v5918
        %v5924 = vlaneseq
        %v5925 = vshrl.u32 %v5924, 7
        %v5926 = vsub.s32 %v5336, %v5925
        %v5927 = vrot.slane %v4937, %v5926
        %v5928 = vlaneseq
        %v5929 = vshrl.u32 %v5928, 7
        %v5930 = vsub.s32 %v5341, %v5929
        %v5931 = vrot.slane %v4938, %v5930
        %v5932 = vsel %vm5346, %v5931, %v5927
        %v5933 = vlaneseq
        %v5934 = vshrl.u32 %v5933, 7
        %v5935 = vsub.s32 %v5336, %v5934
        %v5936 = vrot.slane %v4939, %v5935
        %v5937 = vlaneseq
        %v5938 = vshrl.u32 %v5937, 7
        %v5939 = vsub.s32 %v5341, %v5938
        %v5940 = vrot.slane %v4940, %v5939
        %v5941 = vsel %vm5346, %v5940, %v5936
        %v5942 = vlaneseq
        %v5943 = vshrl.u32 %v5942, 7
        %v5944 = vsub.s32 %v5336, %v5943
        %v5945 = vrot.slane %v4941, %v5944
        %v5946 = vlaneseq
        %v5947 = vshrl.u32 %v5946, 7
        %v5948 = vsub.s32 %v5341, %v5947
        %v5949 = vrot.slane %v4942, %v5948
        %v5950 = vsel %vm5346, %v5949, %v5945
        %v5951 = vlaneseq
        %v5952 = vshrl.u32 %v5951, 7
        %v5953 = vsub.s32 %v5336, %v5952
        %v5954 = vrot.slane %v4943, %v5953
        %v5955 = vlaneseq
        %v5956 = vshrl.u32 %v5955, 7
        %v5957 = vsub.s32 %v5341, %v5956
        %v5958 = vrot.slane %v4944, %v5957
        %v5959 = vsel %vm5346, %v5958, %v5954
        %v5960 = vlaneseq
        %v5961 = vshrl.u32 %v5960, 7
        %v5962 = vsub.s32 %v5336, %v5961
        %v5963 = vrot.slane %v4945, %v5962
        %v5964 = vlaneseq
        %v5965 = vshrl.u32 %v5964, 7
        %v5966 = vsub.s32 %v5341, %v5965
        %v5967 = vrot.slane %v4946, %v5966
        %v5968 = vsel %vm5346, %v5967, %v5963
        %v5969 = vlaneseq
        %v5970 = vshrl.u32 %v5969, 7
        %v5971 = vsub.s32 %v5336, %v5970
        %v5972 = vrot.slane %v4947, %v5971
        %v5973 = vlaneseq
        %v5974 = vshrl.u32 %v5973, 7
        %v5975 = vsub.s32 %v5341, %v5974
        %v5976 = vrot.slane %v4948, %v5975
        %v5977 = vsel %vm5346, %v5976, %v5972
        %v5978 = vlaneseq
        %v5979 = vshrl.u32 %v5978, 7
        %v5980 = vsub.s32 %v5336, %v5979
        %v5981 = vrot.slane %v4949, %v5980
        %v5982 = vlaneseq
        %v5983 = vshrl.u32 %v5982, 7
        %v5984 = vsub.s32 %v5341, %v5983
        %v5985 = vrot.slane %v4950, %v5984
        %v5986 = vsel %vm5346, %v5985, %v5981
        %v5987 = vlaneseq
        %v5988 = vshrl.u32 %v5987, 7
        %v5989 = vsub.s32 %v5336, %v5988
        %v5990 = vrot.slane %v4951, %v5989
        %v5991 = vlaneseq
        %v5992 = vshrl.u32 %v5991, 7
        %v5993 = vsub.s32 %v5341, %v5992
        %v5994 = vrot.slane %v4952, %v5993
        %v5995 = vsel %vm5346, %v5994, %v5990
        %v5996 = vlaneseq
        %v5997 = vshrl.u32 %v5996, 7
        %v5998 = vsub.s32 %v5336, %v5997
        %v5999 = vrot.slane %v4953, %v5998
        %v6000 = vlaneseq
        %v6001 = vshrl.u32 %v6000, 7
        %v6002 = vsub.s32 %v5341, %v6001
        %v6003 = vrot.slane %v4954, %v6002
        %v6004 = vsel %vm5346, %v6003, %v5999
        %v6005 = vlaneseq
        %v6006 = vshrl.u32 %v6005, 7
        %v6007 = vsub.s32 %v5336, %v6006
        %v6008 = vrot.slane %v4955, %v6007
        %v6009 = vlaneseq
        %v6010 = vshrl.u32 %v6009, 7
        %v6011 = vsub.s32 %v5341, %v6010
        %v6012 = vrot.slane %v4956, %v6011
        %v6013 = vsel %vm5346, %v6012, %v6008
        %v6014 = vlaneseq
        %v6015 = vshrl.u32 %v6014, 7
        %v6016 = vsub.s32 %v5336, %v6015
        %v6017 = vrot.slane %v4957, %v6016
        %v6018 = vlaneseq
        %v6019 = vshrl.u32 %v6018, 7
        %v6020 = vsub.s32 %v5341, %v6019
        %v6021 = vrot.slane %v4958, %v6020
        %v6022 = vsel %vm5346, %v6021, %v6017
        %v6023 = vlaneseq
        %v6024 = vshrl.u32 %v6023, 7
        %v6025 = vsub.s32 %v5336, %v6024
        %v6026 = vrot.slane %v4959, %v6025
        %v6027 = vlaneseq
        %v6028 = vshrl.u32 %v6027, 7
        %v6029 = vsub.s32 %v5341, %v6028
        %v6030 = vrot.slane %v4960, %v6029
        %v6031 = vsel %vm5346, %v6030, %v6026
        %v6032 = vlaneseq
        %v6033 = vshrl.u32 %v6032, 7
        %v6034 = vsub.s32 %v5336, %v6033
        %v6035 = vrot.slane %v4961, %v6034
        %v6036 = vlaneseq
        %v6037 = vshrl.u32 %v6036, 7
        %v6038 = vsub.s32 %v5341, %v6037
        %v6039 = vrot.slane %v4962, %v6038
        %v6040 = vsel %vm5346, %v6039, %v6035
        %v6041 = vlaneseq
        %v6042 = vshrl.u32 %v6041, 7
        %v6043 = vsub.s32 %v5336, %v6042
        %v6044 = vrot.slane %v4963, %v6043
        %v6045 = vlaneseq
        %v6046 = vshrl.u32 %v6045, 7
        %v6047 = vsub.s32 %v5341, %v6046
        %v6048 = vrot.slane %v4964, %v6047
        %v6049 = vsel %vm5346, %v6048, %v6044
        %v6050 = vlaneseq
        %v6051 = vshrl.u32 %v6050, 7
        %v6052 = vsub.s32 %v5336, %v6051
        %v6053 = vrot.slane %v4965, %v6052
        %v6054 = vlaneseq
        %v6055 = vshrl.u32 %v6054, 7
        %v6056 = vsub.s32 %v5341, %v6055
        %v6057 = vrot.slane %v4966, %v6056
        %v6058 = vsel %vm5346, %v6057, %v6053
        %v6059 = vlaneseq
        %v6060 = vshrl.u32 %v6059, 7
        %v6061 = vsub.s32 %v5336, %v6060
        %v6062 = vrot.slane %v4967, %v6061
        %v6063 = vlaneseq
        %v6064 = vshrl.u32 %v6063, 7
        %v6065 = vsub.s32 %v5341, %v6064
        %v6066 = vrot.slane %v4968, %v6065
        %v6067 = vsel %vm5346, %v6066, %v6062
        %v6068 = vlaneseq
        %v6069 = vshrl.u32 %v6068, 7
        %v6070 = vsub.s32 %v5336, %v6069
        %v6071 = vrot.slane %v4969, %v6070
        %v6072 = vlaneseq
        %v6073 = vshrl.u32 %v6072, 7
        %v6074 = vsub.s32 %v5341, %v6073
        %v6075 = vrot.slane %v4970, %v6074
        %v6076 = vsel %vm5346, %v6075, %v6071
        %v6077 = vlaneseq
        %v6078 = vshrl.u32 %v6077, 7
        %v6079 = vsub.s32 %v5336, %v6078
        %v6080 = vrot.slane %v4971, %v6079
        %v6081 = vlaneseq
        %v6082 = vshrl.u32 %v6081, 7
        %v6083 = vsub.s32 %v5341, %v6082
        %v6084 = vrot.slane %v4972, %v6083
        %v6085 = vsel %vm5346, %v6084, %v6080
        %v6086 = vlaneseq
        %v6087 = vshrl.u32 %v6086, 7
        %v6088 = vsub.s32 %v5336, %v6087
        %v6089 = vrot.slane %v4973, %v6088
        %v6090 = vlaneseq
        %v6091 = vshrl.u32 %v6090, 7
        %v6092 = vsub.s32 %v5341, %v6091
        %v6093 = vrot.slane %v4974, %v6092
        %v6094 = vsel %vm5346, %v6093, %v6089
        %v6095 = vlaneseq
        %v6096 = vshrl.u32 %v6095, 7
        %v6097 = vsub.s32 %v5336, %v6096
        %v6098 = vrot.slane %v4975, %v6097
        %v6099 = vlaneseq
        %v6100 = vshrl.u32 %v6099, 7
        %v6101 = vsub.s32 %v5341, %v6100
        %v6102 = vrot.slane %v4976, %v6101
        %v6103 = vsel %vm5346, %v6102, %v6098
        %v6104 = vlaneseq
        %v6105 = vshrl.u32 %v6104, 7
        %v6106 = vsub.s32 %v5336, %v6105
        %v6107 = vrot.slane %v4977, %v6106
        %v6108 = vlaneseq
        %v6109 = vshrl.u32 %v6108, 7
        %v6110 = vsub.s32 %v5341, %v6109
        %v6111 = vrot.slane %v4978, %v6110
        %v6112 = vsel %vm5346, %v6111, %v6107
        %v6113 = vlaneseq
        %v6114 = vshrl.u32 %v6113, 7
        %v6115 = vsub.s32 %v5336, %v6114
        %v6116 = vrot.slane %v4979, %v6115
        %v6117 = vlaneseq
        %v6118 = vshrl.u32 %v6117, 7
        %v6119 = vsub.s32 %v5341, %v6118
        %v6120 = vrot.slane %v4980, %v6119
        %v6121 = vsel %vm5346, %v6120, %v6116
        %v6122 = vlaneseq
        %v6123 = vshrl.u32 %v6122, 7
        %v6124 = vsub.s32 %v5336, %v6123
        %v6125 = vrot.slane %v4981, %v6124
        %v6126 = vlaneseq
        %v6127 = vshrl.u32 %v6126, 7
        %v6128 = vsub.s32 %v5341, %v6127
        %v6129 = vrot.slane %v4982, %v6128
        %v6130 = vsel %vm5346, %v6129, %v6125
        %v6131 = vlaneseq
        %v6132 = vshrl.u32 %v6131, 7
        %v6133 = vsub.s32 %v5336, %v6132
        %v6134 = vrot.slane %v4983, %v6133
        %v6135 = vlaneseq
        %v6136 = vshrl.u32 %v6135, 7
        %v6137 = vsub.s32 %v5341, %v6136
        %v6138 = vrot.slane %v4984, %v6137
        %v6139 = vsel %vm5346, %v6138, %v6134
        %v6140 = vlaneseq
        %v6141 = vshrl.u32 %v6140, 7
        %v6142 = vsub.s32 %v5336, %v6141
        %v6143 = vrot.slane %v4985, %v6142
        %v6144 = vlaneseq
        %v6145 = vshrl.u32 %v6144, 7
        %v6146 = vsub.s32 %v5341, %v6145
        %v6147 = vrot.slane %v4986, %v6146
        %v6148 = vsel %vm5346, %v6147, %v6143
        %v6149 = vlaneseq
        %v6150 = vshrl.u32 %v6149, 7
        %v6151 = vsub.s32 %v5336, %v6150
        %v6152 = vrot.slane %v4987, %v6151
        %v6153 = vlaneseq
        %v6154 = vshrl.u32 %v6153, 7
        %v6155 = vsub.s32 %v5341, %v6154
        %v6156 = vrot.slane %v4988, %v6155
        %v6157 = vsel %vm5346, %v6156, %v6152
        %v6158 = vlaneseq
        %v6159 = vshrl.u32 %v6158, 7
        %v6160 = vsub.s32 %v5336, %v6159
        %v6161 = vrot.slane %v4989, %v6160
        %v6162 = vlaneseq
        %v6163 = vshrl.u32 %v6162, 7
        %v6164 = vsub.s32 %v5341, %v6163
        %v6165 = vrot.slane %v4990, %v6164
        %v6166 = vsel %vm5346, %v6165, %v6161
        %v6167 = vlaneseq
        %v6168 = vshrl.u32 %v6167, 7
        %v6169 = vsub.s32 %v5336, %v6168
        %v6170 = vrot.slane %v4991, %v6169
        %v6171 = vlaneseq
        %v6172 = vshrl.u32 %v6171, 7
        %v6173 = vsub.s32 %v5341, %v6172
        %v6174 = vrot.slane %v4992, %v6173
        %v6175 = vsel %vm5346, %v6174, %v6170
        %v6176 = vlaneseq
        %v6177 = vshrl.u32 %v6176, 7
        %v6178 = vsub.s32 %v5336, %v6177
        %v6179 = vrot.slane %v4993, %v6178
        %v6180 = vlaneseq
        %v6181 = vshrl.u32 %v6180, 7
        %v6182 = vsub.s32 %v5341, %v6181
        %v6183 = vrot.slane %v4994, %v6182
        %v6184 = vsel %vm5346, %v6183, %v6179
        %v6185 = vlaneseq
        %v6186 = vshrl.u32 %v6185, 7
        %v6187 = vsub.s32 %v5336, %v6186
        %v6188 = vrot.slane %v4995, %v6187
        %v6189 = vlaneseq
        %v6190 = vshrl.u32 %v6189, 7
        %v6191 = vsub.s32 %v5341, %v6190
        %v6192 = vrot.slane %v4996, %v6191
        %v6193 = vsel %vm5346, %v6192, %v6188
        %v6194 = vlaneseq
        %v6195 = vshrl.u32 %v6194, 7
        %v6196 = vsub.s32 %v5336, %v6195
        %v6197 = vrot.slane %v4997, %v6196
        %v6198 = vlaneseq
        %v6199 = vshrl.u32 %v6198, 7
        %v6200 = vsub.s32 %v5341, %v6199
        %v6201 = vrot.slane %v4998, %v6200
        %v6202 = vsel %vm5346, %v6201, %v6197
        %v6203 = vlaneseq
        %v6204 = vshrl.u32 %v6203, 7
        %v6205 = vsub.s32 %v5336, %v6204
        %v6206 = vrot.slane %v4999, %v6205
        %v6207 = vlaneseq
        %v6208 = vshrl.u32 %v6207, 7
        %v6209 = vsub.s32 %v5341, %v6208
        %v6210 = vrot.slane %v5000, %v6209
        %v6211 = vsel %vm5346, %v6210, %v6206
        %v6212 = vlaneseq
        %v6213 = vshrl.u32 %v6212, 7
        %v6214 = vsub.s32 %v5336, %v6213
        %v6215 = vrot.slane %v5001, %v6214
        %v6216 = vlaneseq
        %v6217 = vshrl.u32 %v6216, 7
        %v6218 = vsub.s32 %v5341, %v6217
        %v6219 = vrot.slane %v5002, %v6218
        %v6220 = vsel %vm5346, %v6219, %v6215
        %v6221 = vlaneseq
        %v6222 = vshrl.u32 %v6221, 7
        %v6223 = vsub.s32 %v5336, %v6222
        %v6224 = vrot.slane %v5003, %v6223
        %v6225 = vlaneseq
        %v6226 = vshrl.u32 %v6225, 7
        %v6227 = vsub.s32 %v5341, %v6226
        %v6228 = vrot.slane %v5004, %v6227
        %v6229 = vsel %vm5346, %v6228, %v6224
        %v6230 = vlaneseq
        %v6231 = vshrl.u32 %v6230, 7
        %v6232 = vsub.s32 %v5336, %v6231
        %v6233 = vrot.slane %v5005, %v6232
        %v6234 = vlaneseq
        %v6235 = vshrl.u32 %v6234, 7
        %v6236 = vsub.s32 %v5341, %v6235
        %v6237 = vrot.slane %v5006, %v6236
        %v6238 = vsel %vm5346, %v6237, %v6233
        %v6239 = vlaneseq
        %v6240 = vshrl.u32 %v6239, 7
        %v6241 = vsub.s32 %v5336, %v6240
        %v6242 = vrot.slane %v5007, %v6241
        %v6243 = vlaneseq
        %v6244 = vshrl.u32 %v6243, 7
        %v6245 = vsub.s32 %v5341, %v6244
        %v6246 = vrot.slane %v5008, %v6245
        %v6247 = vsel %vm5346, %v6246, %v6242
        %v6248 = vlaneseq
        %v6249 = vshrl.u32 %v6248, 7
        %v6250 = vsub.s32 %v5336, %v6249
        %v6251 = vrot.slane %v5009, %v6250
        %v6252 = vlaneseq
        %v6253 = vshrl.u32 %v6252, 7
        %v6254 = vsub.s32 %v5341, %v6253
        %v6255 = vrot.slane %v5010, %v6254
        %v6256 = vsel %vm5346, %v6255, %v6251
        %v6257 = vlaneseq
        %v6258 = vshrl.u32 %v6257, 7
        %v6259 = vsub.s32 %v5336, %v6258
        %v6260 = vrot.slane %v5011, %v6259
        %v6261 = vlaneseq
        %v6262 = vshrl.u32 %v6261, 7
        %v6263 = vsub.s32 %v5341, %v6262
        %v6264 = vrot.slane %v5012, %v6263
        %v6265 = vsel %vm5346, %v6264, %v6260
        %v6266 = vlaneseq
        %v6267 = vshrl.u32 %v6266, 7
        %v6268 = vsub.s32 %v5336, %v6267
        %v6269 = vrot.slane %v5013, %v6268
        %v6270 = vlaneseq
        %v6271 = vshrl.u32 %v6270, 7
        %v6272 = vsub.s32 %v5341, %v6271
        %v6273 = vrot.slane %v5014, %v6272
        %v6274 = vsel %vm5346, %v6273, %v6269
        %v6275 = vlaneseq
        %v6276 = vshrl.u32 %v6275, 7
        %v6277 = vsub.s32 %v5336, %v6276
        %v6278 = vrot.slane %v5015, %v6277
        %v6279 = vlaneseq
        %v6280 = vshrl.u32 %v6279, 7
        %v6281 = vsub.s32 %v5341, %v6280
        %v6282 = vrot.slane %v5016, %v6281
        %v6283 = vsel %vm5346, %v6282, %v6278
        %v6284 = vlaneseq
        %v6285 = vshrl.u32 %v6284, 7
        %v6286 = vsub.s32 %v5336, %v6285
        %v6287 = vrot.slane %v5017, %v6286
        %v6288 = vlaneseq
        %v6289 = vshrl.u32 %v6288, 7
        %v6290 = vsub.s32 %v5341, %v6289
        %v6291 = vrot.slane %v5018, %v6290
        %v6292 = vsel %vm5346, %v6291, %v6287
        %v6293 = vlaneseq
        %v6294 = vshrl.u32 %v6293, 7
        %v6295 = vsub.s32 %v5336, %v6294
        %v6296 = vrot.slane %v5019, %v6295
        %v6297 = vlaneseq
        %v6298 = vshrl.u32 %v6297, 7
        %v6299 = vsub.s32 %v5341, %v6298
        %v6300 = vrot.slane %v5020, %v6299
        %v6301 = vsel %vm5346, %v6300, %v6296
        %v6302 = vlaneseq
        %v6303 = vshrl.u32 %v6302, 7
        %v6304 = vsub.s32 %v5336, %v6303
        %v6305 = vrot.slane %v5021, %v6304
        %v6306 = vlaneseq
        %v6307 = vshrl.u32 %v6306, 7
        %v6308 = vsub.s32 %v5341, %v6307
        %v6309 = vrot.slane %v5022, %v6308
        %v6310 = vsel %vm5346, %v6309, %v6305
        %v6311 = vlaneseq
        %v6312 = vshrl.u32 %v6311, 7
        %v6313 = vsub.s32 %v5336, %v6312
        %v6314 = vrot.slane %v5023, %v6313
        %v6315 = vlaneseq
        %v6316 = vshrl.u32 %v6315, 7
        %v6317 = vsub.s32 %v5341, %v6316
        %v6318 = vrot.slane %v5024, %v6317
        %v6319 = vsel %vm5346, %v6318, %v6314
        %v6320 = vlaneseq
        %v6321 = vshrl.u32 %v6320, 7
        %v6322 = vsub.s32 %v5336, %v6321
        %v6323 = vrot.slane %v5025, %v6322
        %v6324 = vlaneseq
        %v6325 = vshrl.u32 %v6324, 7
        %v6326 = vsub.s32 %v5341, %v6325
        %v6327 = vrot.slane %v5026, %v6326
        %v6328 = vsel %vm5346, %v6327, %v6323
        %v6329 = vlaneseq
        %v6330 = vshrl.u32 %v6329, 7
        %v6331 = vsub.s32 %v5336, %v6330
        %v6332 = vrot.slane %v5027, %v6331
        %v6333 = vlaneseq
        %v6334 = vshrl.u32 %v6333, 7
        %v6335 = vsub.s32 %v5341, %v6334
        %v6336 = vrot.slane %v5028, %v6335
        %v6337 = vsel %vm5346, %v6336, %v6332
        %v6338 = vlaneseq
        %v6339 = vshrl.u32 %v6338, 7
        %v6340 = vsub.s32 %v5336, %v6339
        %v6341 = vrot.slane %v5029, %v6340
        %v6342 = vlaneseq
        %v6343 = vshrl.u32 %v6342, 7
        %v6344 = vsub.s32 %v5341, %v6343
        %v6345 = vrot.slane %v5030, %v6344
        %v6346 = vsel %vm5346, %v6345, %v6341
        %v6347 = vlaneseq
        %v6348 = vshrl.u32 %v6347, 7
        %v6349 = vsub.s32 %v5336, %v6348
        %v6350 = vrot.slane %v5031, %v6349
        %v6351 = vlaneseq
        %v6352 = vshrl.u32 %v6351, 7
        %v6353 = vsub.s32 %v5341, %v6352
        %v6354 = vrot.slane %v5032, %v6353
        %v6355 = vsel %vm5346, %v6354, %v6350
        %v6356 = vlaneseq
        %v6357 = vshrl.u32 %v6356, 7
        %v6358 = vsub.s32 %v5336, %v6357
        %v6359 = vrot.slane %v5033, %v6358
        %v6360 = vlaneseq
        %v6361 = vshrl.u32 %v6360, 7
        %v6362 = vsub.s32 %v5341, %v6361
        %v6363 = vrot.slane %v5034, %v6362
        %v6364 = vsel %vm5346, %v6363, %v6359
        %v6365 = vlaneseq
        %v6366 = vshrl.u32 %v6365, 7
        %v6367 = vsub.s32 %v5336, %v6366
        %v6368 = vrot.slane %v5035, %v6367
        %v6369 = vlaneseq
        %v6370 = vshrl.u32 %v6369, 7
        %v6371 = vsub.s32 %v5341, %v6370
        %v6372 = vrot.slane %v5036, %v6371
        %v6373 = vsel %vm5346, %v6372, %v6368
        %v6374 = vlaneseq
        %v6375 = vshrl.u32 %v6374, 7
        %v6376 = vsub.s32 %v5336, %v6375
        %v6377 = vrot.slane %v5037, %v6376
        %v6378 = vlaneseq
        %v6379 = vshrl.u32 %v6378, 7
        %v6380 = vsub.s32 %v5341, %v6379
        %v6381 = vrot.slane %v5038, %v6380
        %v6382 = vsel %vm5346, %v6381, %v6377
        %v6383 = vlaneseq
        %v6384 = vshrl.u32 %v6383, 7
        %v6385 = vsub.s32 %v5336, %v6384
        %v6386 = vrot.slane %v5039, %v6385
        %v6387 = vlaneseq
        %v6388 = vshrl.u32 %v6387, 7
        %v6389 = vsub.s32 %v5341, %v6388
        %v6390 = vrot.slane %v5040, %v6389
        %v6391 = vsel %vm5346, %v6390, %v6386
        %v6392 = vlaneseq
        %v6393 = vshrl.u32 %v6392, 7
        %v6394 = vsub.s32 %v5336, %v6393
        %v6395 = vrot.slane %v5041, %v6394
        %v6396 = vlaneseq
        %v6397 = vshrl.u32 %v6396, 7
        %v6398 = vsub.s32 %v5341, %v6397
        %v6399 = vrot.slane %v5042, %v6398
        %v6400 = vsel %vm5346, %v6399, %v6395
        %v6401 = vlaneseq
        %v6402 = vshrl.u32 %v6401, 7
        %v6403 = vsub.s32 %v5336, %v6402
        %v6404 = vrot.slane %v5043, %v6403
        %v6405 = vlaneseq
        %v6406 = vshrl.u32 %v6405, 7
        %v6407 = vsub.s32 %v5341, %v6406
        %v6408 = vrot.slane %v5044, %v6407
        %v6409 = vsel %vm5346, %v6408, %v6404
        %v6410 = vlaneseq
        %v6411 = vshrl.u32 %v6410, 7
        %v6412 = vsub.s32 %v5336, %v6411
        %v6413 = vrot.slane %v5045, %v6412
        %v6414 = vlaneseq
        %v6415 = vshrl.u32 %v6414, 7
        %v6416 = vsub.s32 %v5341, %v6415
        %v6417 = vrot.slane %v5046, %v6416
        %v6418 = vsel %vm5346, %v6417, %v6413
        %v6419 = vlaneseq
        %v6420 = vshrl.u32 %v6419, 7
        %v6421 = vsub.s32 %v5336, %v6420
        %v6422 = vrot.slane %v5047, %v6421
        %v6423 = vlaneseq
        %v6424 = vshrl.u32 %v6423, 7
        %v6425 = vsub.s32 %v5341, %v6424
        %v6426 = vrot.slane %v5048, %v6425
        %v6427 = vsel %vm5346, %v6426, %v6422
        %v6428 = vlaneseq
        %v6429 = vshrl.u32 %v6428, 7
        %v6430 = vsub.s32 %v5336, %v6429
        %v6431 = vrot.slane %v5049, %v6430
        %v6432 = vlaneseq
        %v6433 = vshrl.u32 %v6432, 7
        %v6434 = vsub.s32 %v5341, %v6433
        %v6435 = vrot.slane %v5050, %v6434
        %v6436 = vsel %vm5346, %v6435, %v6431
        %v6437 = vlaneseq
        %v6438 = vshrl.u32 %v6437, 7
        %v6439 = vsub.s32 %v5336, %v6438
        %v6440 = vrot.slane %v5051, %v6439
        %v6441 = vlaneseq
        %v6442 = vshrl.u32 %v6441, 7
        %v6443 = vsub.s32 %v5341, %v6442
        %v6444 = vrot.slane %v5052, %v6443
        %v6445 = vsel %vm5346, %v6444, %v6440
        %v6446 = vlaneseq
        %v6447 = vshrl.u32 %v6446, 7
        %v6448 = vsub.s32 %v5336, %v6447
        %v6449 = vrot.slane %v5053, %v6448
        %v6450 = vlaneseq
        %v6451 = vshrl.u32 %v6450, 7
        %v6452 = vsub.s32 %v5341, %v6451
        %v6453 = vrot.slane %v5054, %v6452
        %v6454 = vsel %vm5346, %v6453, %v6449
        %v6455 = vlaneseq
        %v6456 = vshrl.u32 %v6455, 7
        %v6457 = vsub.s32 %v5336, %v6456
        %v6458 = vrot.slane %v5055, %v6457
        %v6459 = vlaneseq
        %v6460 = vshrl.u32 %v6459, 7
        %v6461 = vsub.s32 %v5341, %v6460
        %v6462 = vrot.slane %v5056, %v6461
        %v6463 = vsel %vm5346, %v6462, %v6458
        %v6464 = vlaneseq
        %v6465 = vshrl.u32 %v6464, 7
        %v6466 = vsub.s32 %v5336, %v6465
        %v6467 = vrot.slane %v5057, %v6466
        %v6468 = vlaneseq
        %v6469 = vshrl.u32 %v6468, 7
        %v6470 = vsub.s32 %v5341, %v6469
        %v6471 = vrot.slane %v5058, %v6470
        %v6472 = vsel %vm5346, %v6471, %v6467
        %v6473 = vlaneseq
        %v6474 = vshrl.u32 %v6473, 7
        %v6475 = vsub.s32 %v5336, %v6474
        %v6476 = vrot.slane %v5059, %v6475
        %v6477 = vlaneseq
        %v6478 = vshrl.u32 %v6477, 7
        %v6479 = vsub.s32 %v5341, %v6478
        %v6480 = vrot.slane %v5060, %v6479
        %v6481 = vsel %vm5346, %v6480, %v6476
        %v6482 = vlaneseq
        %v6483 = vshrl.u32 %v6482, 7
        %v6484 = vsub.s32 %v5336, %v6483
        %v6485 = vrot.slane %v5061, %v6484
        %v6486 = vlaneseq
        %v6487 = vshrl.u32 %v6486, 7
        %v6488 = vsub.s32 %v5341, %v6487
        %v6489 = vrot.slane %v5062, %v6488
        %v6490 = vsel %vm5346, %v6489, %v6485
        %vm6491 = vcmask 1041409
        %v6492 = vsel %vm6491, %v5356, %v5347
        %vm6493 = vcmask 1042434
        %v6494 = vsel %vm6493, %v5365, %v6492
        %vm6495 = vcmask 1043459
        %v6496 = vsel %vm6495, %v5374, %v6494
        %vm6497 = vcmask 1044484
        %v6498 = vsel %vm6497, %v5383, %v6496
        %vm6499 = vcmask 1045509
        %v6500 = vsel %vm6499, %v5392, %v6498
        %vm6501 = vcmask 1046534
        %v6502 = vsel %vm6501, %v5401, %v6500
        %vm6503 = vcmask 1047559
        %v6504 = vsel %vm6503, %v5410, %v6502
        %v6505 = vsel %vm6491, %v5428, %v5419
        %v6506 = vsel %vm6493, %v5437, %v6505
        %v6507 = vsel %vm6495, %v5446, %v6506
        %v6508 = vsel %vm6497, %v5455, %v6507
        %v6509 = vsel %vm6499, %v5464, %v6508
        %v6510 = vsel %vm6501, %v5473, %v6509
        %v6511 = vsel %vm6503, %v5482, %v6510
        %v6512 = vsel %vm6491, %v5500, %v5491
        %v6513 = vsel %vm6493, %v5509, %v6512
        %v6514 = vsel %vm6495, %v5518, %v6513
        %v6515 = vsel %vm6497, %v5527, %v6514
        %v6516 = vsel %vm6499, %v5536, %v6515
        %v6517 = vsel %vm6501, %v5545, %v6516
        %v6518 = vsel %vm6503, %v5554, %v6517
        %v6519 = vsel %vm6491, %v5572, %v5563
        %v6520 = vsel %vm6493, %v5581, %v6519
        %v6521 = vsel %vm6495, %v5590, %v6520
        %v6522 = vsel %vm6497, %v5599, %v6521
        %v6523 = vsel %vm6499, %v5608, %v6522
        %v6524 = vsel %vm6501, %v5617, %v6523
        %v6525 = vsel %vm6503, %v5626, %v6524
        %v6526 = vsel %vm6491, %v5644, %v5635
        %v6527 = vsel %vm6493, %v5653, %v6526
        %v6528 = vsel %vm6495, %v5662, %v6527
        %v6529 = vsel %vm6497, %v5671, %v6528
        %v6530 = vsel %vm6499, %v5680, %v6529
        %v6531 = vsel %vm6501, %v5689, %v6530
        %v6532 = vsel %vm6503, %v5698, %v6531
        %v6533 = vsel %vm6491, %v5716, %v5707
        %v6534 = vsel %vm6493, %v5725, %v6533
        %v6535 = vsel %vm6495, %v5734, %v6534
        %v6536 = vsel %vm6497, %v5743, %v6535
        %v6537 = vsel %vm6499, %v5752, %v6536
        %v6538 = vsel %vm6501, %v5761, %v6537
        %v6539 = vsel %vm6503, %v5770, %v6538
        %v6540 = vsel %vm6491, %v5788, %v5779
        %v6541 = vsel %vm6493, %v5797, %v6540
        %v6542 = vsel %vm6495, %v5806, %v6541
        %v6543 = vsel %vm6497, %v5815, %v6542
        %v6544 = vsel %vm6499, %v5824, %v6543
        %v6545 = vsel %vm6501, %v5833, %v6544
        %v6546 = vsel %vm6503, %v5842, %v6545
        %v6547 = vsel %vm6491, %v5860, %v5851
        %v6548 = vsel %vm6493, %v5869, %v6547
        %v6549 = vsel %vm6495, %v5878, %v6548
        %v6550 = vsel %vm6497, %v5887, %v6549
        %v6551 = vsel %vm6499, %v5896, %v6550
        %v6552 = vsel %vm6501, %v5905, %v6551
        %v6553 = vsel %vm6503, %v5914, %v6552
        %v6554 = vsel %vm6491, %v5932, %v5923
        %v6555 = vsel %vm6493, %v5941, %v6554
        %v6556 = vsel %vm6495, %v5950, %v6555
        %v6557 = vsel %vm6497, %v5959, %v6556
        %v6558 = vsel %vm6499, %v5968, %v6557
        %v6559 = vsel %vm6501, %v5977, %v6558
        %v6560 = vsel %vm6503, %v5986, %v6559
        %v6561 = vsel %vm6491, %v6004, %v5995
        %v6562 = vsel %vm6493, %v6013, %v6561
        %v6563 = vsel %vm6495, %v6022, %v6562
        %v6564 = vsel %vm6497, %v6031, %v6563
        %v6565 = vsel %vm6499, %v6040, %v6564
        %v6566 = vsel %vm6501, %v6049, %v6565
        %v6567 = vsel %vm6503, %v6058, %v6566
        %v6568 = vsel %vm6491, %v6076, %v6067
        %v6569 = vsel %vm6493, %v6085, %v6568
        %v6570 = vsel %vm6495, %v6094, %v6569
        %v6571 = vsel %vm6497, %v6103, %v6570
        %v6572 = vsel %vm6499, %v6112, %v6571
        %v6573 = vsel %vm6501, %v6121, %v6572
        %v6574 = vsel %vm6503, %v6130, %v6573
        %v6575 = vsel %vm6491, %v6148, %v6139
        %v6576 = vsel %vm6493, %v6157, %v6575
        %v6577 = vsel %vm6495, %v6166, %v6576
        %v6578 = vsel %vm6497, %v6175, %v6577
        %v6579 = vsel %vm6499, %v6184, %v6578
        %v6580 = vsel %vm6501, %v6193, %v6579
        %v6581 = vsel %vm6503, %v6202, %v6580
        %v6582 = vsel %vm6491, %v6220, %v6211
        %v6583 = vsel %vm6493, %v6229, %v6582
        %v6584 = vsel %vm6495, %v6238, %v6583
        %v6585 = vsel %vm6497, %v6247, %v6584
        %v6586 = vsel %vm6499, %v6256, %v6585
        %v6587 = vsel %vm6501, %v6265, %v6586
        %v6588 = vsel %vm6503, %v6274, %v6587
        %v6589 = vsel %vm6491, %v6292, %v6283
        %v6590 = vsel %vm6493, %v6301, %v6589
        %v6591 = vsel %vm6495, %v6310, %v6590
        %v6592 = vsel %vm6497, %v6319, %v6591
        %v6593 = vsel %vm6499, %v6328, %v6592
        %v6594 = vsel %vm6501, %v6337, %v6593
        %v6595 = vsel %vm6503, %v6346, %v6594
        %v6596 = vsel %vm6491, %v6364, %v6355
        %v6597 = vsel %vm6493, %v6373, %v6596
        %v6598 = vsel %vm6495, %v6382, %v6597
        %v6599 = vsel %vm6497, %v6391, %v6598
        %v6600 = vsel %vm6499, %v6400, %v6599
        %v6601 = vsel %vm6501, %v6409, %v6600
        %v6602 = vsel %vm6503, %v6418, %v6601
        %v6603 = vsel %vm6491, %v6436, %v6427
        %v6604 = vsel %vm6493, %v6445, %v6603
        %v6605 = vsel %vm6495, %v6454, %v6604
        %v6606 = vsel %vm6497, %v6463, %v6605
        %v6607 = vsel %vm6499, %v6472, %v6606
        %v6608 = vsel %vm6501, %v6481, %v6607
        %v6609 = vsel %vm6503, %v6490, %v6608
        %v6626 = vsel %vm5063, %v6504, -1e+30
        %v6627 = vsel %vm5064, %v6511, -1e+30
        %v6628 = vsel %vm5065, %v6518, -1e+30
        %v6629 = vsel %vm5066, %v6525, -1e+30
        %v6630 = vsel %vm5067, %v6532, -1e+30
        %v6631 = vsel %vm5068, %v6539, -1e+30
        %v6632 = vsel %vm5069, %v6546, -1e+30
        %v6633 = vsel %vm5070, %v6553, -1e+30
        %v6634 = vsel %vm5071, %v6560, -1e+30
        %v6635 = vsel %vm5072, %v6567, -1e+30
        %v6636 = vsel %vm5073, %v6574, -1e+30
        %v6637 = vsel %vm5074, %v6581, -1e+30
        %v6638 = vsel %vm5075, %v6588, -1e+30
        %v6639 = vsel %vm5076, %v6595, -1e+30
        %v6640 = vsel %vm5077, %v6602, -1e+30
        %v6641 = vsel %vm5078, %v6609, -1e+30
        %vm6642 = vcmask 130048
        %v6643 = vsel %vm6642, %v6626, -inf
        %6644 = vmax.xlane.f32.xlu0 %v6643
        %v6645 = vpop.xlane.xlu0 %6644
        %v6646 = vsel %vm6642, %v6627, -inf
        %6647 = vmax.xlane.f32.xlu0 %v6646
        %v6648 = vpop.xlane.xlu0 %6647
        %v6649 = vsel %vm6642, %v6628, -inf
        %6650 = vmax.xlane.f32.xlu0 %v6649
        %v6651 = vpop.xlane.xlu0 %6650
        %v6652 = vsel %vm6642, %v6629, -inf
        %6653 = vmax.xlane.f32.xlu0 %v6652
        %v6654 = vpop.xlane.xlu0 %6653
        %v6655 = vsel %vm6642, %v6630, -inf
        %6656 = vmax.xlane.f32.xlu0 %v6655
        %v6657 = vpop.xlane.xlu0 %6656
        %v6658 = vsel %vm6642, %v6631, -inf
        %6659 = vmax.xlane.f32.xlu0 %v6658
        %v6660 = vpop.xlane.xlu0 %6659
        %v6661 = vsel %vm6642, %v6632, -inf
        %6662 = vmax.xlane.f32.xlu0 %v6661
        %v6663 = vpop.xlane.xlu0 %6662
        %v6664 = vsel %vm6642, %v6633, -inf
        %6665 = vmax.xlane.f32.xlu0 %v6664
        %v6666 = vpop.xlane.xlu0 %6665
        %v6667 = vsel %vm6642, %v6634, -inf
        %6668 = vmax.xlane.f32.xlu0 %v6667
        %v6669 = vpop.xlane.xlu0 %6668
        %v6670 = vsel %vm6642, %v6635, -inf
        %6671 = vmax.xlane.f32.xlu0 %v6670
        %v6672 = vpop.xlane.xlu0 %6671
        %v6673 = vsel %vm6642, %v6636, -inf
        %6674 = vmax.xlane.f32.xlu0 %v6673
        %v6675 = vpop.xlane.xlu0 %6674
        %v6676 = vsel %vm6642, %v6637, -inf
        %6677 = vmax.xlane.f32.xlu0 %v6676
        %v6678 = vpop.xlane.xlu0 %6677
        %v6679 = vsel %vm6642, %v6638, -inf
        %6680 = vmax.xlane.f32.xlu0 %v6679
        %v6681 = vpop.xlane.xlu0 %6680
        %v6682 = vsel %vm6642, %v6639, -inf
        %6683 = vmax.xlane.f32.xlu0 %v6682
        %v6684 = vpop.xlane.xlu0 %6683
        %v6685 = vsel %vm6642, %v6640, -inf
        %6686 = vmax.xlane.f32.xlu0 %v6685
        %v6687 = vpop.xlane.xlu0 %6686
        %v6688 = vsel %vm6642, %v6641, -inf
        %6689 = vmax.xlane.f32.xlu0 %v6688
        %v6690 = vpop.xlane.xlu0 %6689
        %v6691 = vsub.f32 %v6626, %v6645
        %v6692 = vsub.f32 %v6627, %v6648
        %v6693 = vsub.f32 %v6628, %v6651
        %v6694 = vsub.f32 %v6629, %v6654
        %v6695 = vsub.f32 %v6630, %v6657
        %v6696 = vsub.f32 %v6631, %v6660
        %v6697 = vsub.f32 %v6632, %v6663
        %v6698 = vsub.f32 %v6633, %v6666
        %v6699 = vsub.f32 %v6634, %v6669
        %v6700 = vsub.f32 %v6635, %v6672
        %v6701 = vsub.f32 %v6636, %v6675
        %v6702 = vsub.f32 %v6637, %v6678
        %v6703 = vsub.f32 %v6638, %v6681
        %v6704 = vsub.f32 %v6639, %v6684
        %v6705 = vsub.f32 %v6640, %v6687
        %v6706 = vsub.f32 %v6641, %v6690
        %v6707 = vmul.f32 %v6691, 1.442695
        %v6708 = vpow.pop %v6707
        %v6709 = vmul.f32 %v6692, 1.442695
        %v6710 = vpow.pop %v6709
        %v6711 = vmul.f32 %v6693, 1.442695
        %v6712 = vpow.pop %v6711
        %v6713 = vmul.f32 %v6694, 1.442695
        %v6714 = vpow.pop %v6713
        %v6715 = vmul.f32 %v6695, 1.442695
        %v6716 = vpow.pop %v6715
        %v6717 = vmul.f32 %v6696, 1.442695
        %v6718 = vpow.pop %v6717
        %v6719 = vmul.f32 %v6697, 1.442695
        %v6720 = vpow.pop %v6719
        %v6721 = vmul.f32 %v6698, 1.442695
        %v6722 = vpow.pop %v6721
        %v6723 = vmul.f32 %v6699, 1.442695
        %v6724 = vpow.pop %v6723
        %v6725 = vmul.f32 %v6700, 1.442695
        %v6726 = vpow.pop %v6725
        %v6727 = vmul.f32 %v6701, 1.442695
        %v6728 = vpow.pop %v6727
        %v6729 = vmul.f32 %v6702, 1.442695
        %v6730 = vpow.pop %v6729
        %v6731 = vmul.f32 %v6703, 1.442695
        %v6732 = vpow.pop %v6731
        %v6733 = vmul.f32 %v6704, 1.442695
        %v6734 = vpow.pop %v6733
        %v6735 = vmul.f32 %v6705, 1.442695
        %v6736 = vpow.pop %v6735
        %v6737 = vmul.f32 %v6706, 1.442695
        %v6738 = vpow.pop %v6737
        %v6739 = vsel %vm6642, %v6708, 0.0
        %6740 = vadd.xlane.f32.xlu0 %v6739
        %v6741 = vpop.xlane.xlu0 %6740
        %v6742 = vsel %vm6642, %v6710, 0.0
        %6743 = vadd.xlane.f32.xlu0 %v6742
        %v6744 = vpop.xlane.xlu0 %6743
        %v6745 = vsel %vm6642, %v6712, 0.0
        %6746 = vadd.xlane.f32.xlu0 %v6745
        %v6747 = vpop.xlane.xlu0 %6746
        %v6748 = vsel %vm6642, %v6714, 0.0
        %6749 = vadd.xlane.f32.xlu0 %v6748
        %v6750 = vpop.xlane.xlu0 %6749
        %v6751 = vsel %vm6642, %v6716, 0.0
        %6752 = vadd.xlane.f32.xlu0 %v6751
        %v6753 = vpop.xlane.xlu0 %6752
        %v6754 = vsel %vm6642, %v6718, 0.0
        %6755 = vadd.xlane.f32.xlu0 %v6754
        %v6756 = vpop.xlane.xlu0 %6755
        %v6757 = vsel %vm6642, %v6720, 0.0
        %6758 = vadd.xlane.f32.xlu0 %v6757
        %v6759 = vpop.xlane.xlu0 %6758
        %v6760 = vsel %vm6642, %v6722, 0.0
        %6761 = vadd.xlane.f32.xlu0 %v6760
        %v6762 = vpop.xlane.xlu0 %6761
        %v6763 = vsel %vm6642, %v6724, 0.0
        %6764 = vadd.xlane.f32.xlu0 %v6763
        %v6765 = vpop.xlane.xlu0 %6764
        %v6766 = vsel %vm6642, %v6726, 0.0
        %6767 = vadd.xlane.f32.xlu0 %v6766
        %v6768 = vpop.xlane.xlu0 %6767
        %v6769 = vsel %vm6642, %v6728, 0.0
        %6770 = vadd.xlane.f32.xlu0 %v6769
        %v6771 = vpop.xlane.xlu0 %6770
        %v6772 = vsel %vm6642, %v6730, 0.0
        %6773 = vadd.xlane.f32.xlu0 %v6772
        %v6774 = vpop.xlane.xlu0 %6773
        %v6775 = vsel %vm6642, %v6732, 0.0
        %6776 = vadd.xlane.f32.xlu0 %v6775
        %v6777 = vpop.xlane.xlu0 %6776
        %v6778 = vsel %vm6642, %v6734, 0.0
        %6779 = vadd.xlane.f32.xlu0 %v6778
        %v6780 = vpop.xlane.xlu0 %6779
        %v6781 = vsel %vm6642, %v6736, 0.0
        %6782 = vadd.xlane.f32.xlu0 %v6781
        %v6783 = vpop.xlane.xlu0 %6782
        %v6784 = vsel %vm6642, %v6738, 0.0
        %6785 = vadd.xlane.f32.xlu0 %v6784
        %v6786 = vpop.xlane.xlu0 %6785
        %v6787 = vrcp.pop %v6741
        %v6788 = vrcp.pop %v6744
        %v6789 = vrcp.pop %v6747
        %v6790 = vrcp.pop %v6750
        %v6791 = vrcp.pop %v6753
        %v6792 = vrcp.pop %v6756
        %v6793 = vrcp.pop %v6759
        %v6794 = vrcp.pop %v6762
        %v6795 = vrcp.pop %v6765
        %v6796 = vrcp.pop %v6768
        %v6797 = vrcp.pop %v6771
        %v6798 = vrcp.pop %v6774
        %v6799 = vrcp.pop %v6777
        %v6800 = vrcp.pop %v6780
        %v6801 = vrcp.pop %v6783
        %v6802 = vrcp.pop %v6786
        %v6803 = vmul.f32 %v6708, %v6787
        %v6804 = vmul.f32 %v6710, %v6788
        %v6805 = vmul.f32 %v6712, %v6789
        %v6806 = vmul.f32 %v6714, %v6790
        %v6807 = vmul.f32 %v6716, %v6791
        %v6808 = vmul.f32 %v6718, %v6792
        %v6809 = vmul.f32 %v6720, %v6793
        %v6810 = vmul.f32 %v6722, %v6794
        %v6811 = vmul.f32 %v6724, %v6795
        %v6812 = vmul.f32 %v6726, %v6796
        %v6813 = vmul.f32 %v6728, %v6797
        %v6814 = vmul.f32 %v6730, %v6798
        %v6815 = vmul.f32 %v6732, %v6799
        %v6816 = vmul.f32 %v6734, %v6800
        %v6817 = vmul.f32 %v6736, %v6801
        %v6818 = vmul.f32 %v6738, %v6802
        %v6819 = vlaneseq
        %v6820 = vshrl.u32 %v6819, 7
        %v6821 = vsub.s32 0, %v6820
        %v6822 = vrot.slane %v6803, %v6821
        %6824 = vbcast.lane.b32.xlu0 %v6822, 256
        %v6825 = vpop.permute.xlu0 %6824
        %s6827 = sor.u32 256, 8
        %6828 = vbcast.lane.b32.xlu0 %v6822, %s6827
        %v6829 = vpop.permute.xlu0 %6828
        %v6830 = vlaneseq
        %v6831 = vshrl.u32 %v6830, 7
        %v6832 = vsub.s32 1, %v6831
        %v6833 = vrot.slane %v6803, %v6832
        %6835 = vbcast.lane.b32.xlu0 %v6833, 256
        %v6836 = vpop.permute.xlu0 %6835
        %s6838 = sor.u32 256, 8
        %6839 = vbcast.lane.b32.xlu0 %v6833, %s6838
        %v6840 = vpop.permute.xlu0 %6839
        %v6841 = vlaneseq
        %v6842 = vshrl.u32 %v6841, 7
        %v6843 = vsub.s32 2, %v6842
        %v6844 = vrot.slane %v6803, %v6843
        %6846 = vbcast.lane.b32.xlu0 %v6844, 256
        %v6847 = vpop.permute.xlu0 %6846
        %s6849 = sor.u32 256, 8
        %6850 = vbcast.lane.b32.xlu0 %v6844, %s6849
        %v6851 = vpop.permute.xlu0 %6850
        %v6852 = vlaneseq
        %v6853 = vshrl.u32 %v6852, 7
        %v6854 = vsub.s32 3, %v6853
        %v6855 = vrot.slane %v6803, %v6854
        %6857 = vbcast.lane.b32.xlu0 %v6855, 256
        %v6858 = vpop.permute.xlu0 %6857
        %s6860 = sor.u32 256, 8
        %6861 = vbcast.lane.b32.xlu0 %v6855, %s6860
        %v6862 = vpop.permute.xlu0 %6861
        %v6863 = vlaneseq
        %v6864 = vshrl.u32 %v6863, 7
        %v6865 = vsub.s32 4, %v6864
        %v6866 = vrot.slane %v6803, %v6865
        %6868 = vbcast.lane.b32.xlu0 %v6866, 256
        %v6869 = vpop.permute.xlu0 %6868
        %s6871 = sor.u32 256, 8
        %6872 = vbcast.lane.b32.xlu0 %v6866, %s6871
        %v6873 = vpop.permute.xlu0 %6872
        %v6874 = vlaneseq
        %v6875 = vshrl.u32 %v6874, 7
        %v6876 = vsub.s32 5, %v6875
        %v6877 = vrot.slane %v6803, %v6876
        %6879 = vbcast.lane.b32.xlu0 %v6877, 256
        %v6880 = vpop.permute.xlu0 %6879
        %s6882 = sor.u32 256, 8
        %6883 = vbcast.lane.b32.xlu0 %v6877, %s6882
        %v6884 = vpop.permute.xlu0 %6883
        %v6885 = vlaneseq
        %v6886 = vshrl.u32 %v6885, 7
        %v6887 = vsub.s32 6, %v6886
        %v6888 = vrot.slane %v6803, %v6887
        %6890 = vbcast.lane.b32.xlu0 %v6888, 256
        %v6891 = vpop.permute.xlu0 %6890
        %s6893 = sor.u32 256, 8
        %6894 = vbcast.lane.b32.xlu0 %v6888, %s6893
        %v6895 = vpop.permute.xlu0 %6894
        %v6896 = vlaneseq
        %v6897 = vshrl.u32 %v6896, 7
        %v6898 = vsub.s32 7, %v6897
        %v6899 = vrot.slane %v6803, %v6898
        %6901 = vbcast.lane.b32.xlu0 %v6899, 256
        %v6902 = vpop.permute.xlu0 %6901
        %s6904 = sor.u32 256, 8
        %6905 = vbcast.lane.b32.xlu0 %v6899, %s6904
        %v6906 = vpop.permute.xlu0 %6905
        %v6907 = vlaneseq
        %v6908 = vshrl.u32 %v6907, 7
        %v6909 = vsub.s32 0, %v6908
        %v6910 = vrot.slane %v6804, %v6909
        %6912 = vbcast.lane.b32.xlu0 %v6910, 256
        %v6913 = vpop.permute.xlu0 %6912
        %s6915 = sor.u32 256, 8
        %6916 = vbcast.lane.b32.xlu0 %v6910, %s6915
        %v6917 = vpop.permute.xlu0 %6916
        %v6918 = vlaneseq
        %v6919 = vshrl.u32 %v6918, 7
        %v6920 = vsub.s32 1, %v6919
        %v6921 = vrot.slane %v6804, %v6920
        %6923 = vbcast.lane.b32.xlu0 %v6921, 256
        %v6924 = vpop.permute.xlu0 %6923
        %s6926 = sor.u32 256, 8
        %6927 = vbcast.lane.b32.xlu0 %v6921, %s6926
        %v6928 = vpop.permute.xlu0 %6927
        %v6929 = vlaneseq
        %v6930 = vshrl.u32 %v6929, 7
        %v6931 = vsub.s32 2, %v6930
        %v6932 = vrot.slane %v6804, %v6931
        %6934 = vbcast.lane.b32.xlu0 %v6932, 256
        %v6935 = vpop.permute.xlu0 %6934
        %s6937 = sor.u32 256, 8
        %6938 = vbcast.lane.b32.xlu0 %v6932, %s6937
        %v6939 = vpop.permute.xlu0 %6938
        %v6940 = vlaneseq
        %v6941 = vshrl.u32 %v6940, 7
        %v6942 = vsub.s32 3, %v6941
        %v6943 = vrot.slane %v6804, %v6942
        %6945 = vbcast.lane.b32.xlu0 %v6943, 256
        %v6946 = vpop.permute.xlu0 %6945
        %s6948 = sor.u32 256, 8
        %6949 = vbcast.lane.b32.xlu0 %v6943, %s6948
        %v6950 = vpop.permute.xlu0 %6949
        %v6951 = vlaneseq
        %v6952 = vshrl.u32 %v6951, 7
        %v6953 = vsub.s32 4, %v6952
        %v6954 = vrot.slane %v6804, %v6953
        %6956 = vbcast.lane.b32.xlu0 %v6954, 256
        %v6957 = vpop.permute.xlu0 %6956
        %s6959 = sor.u32 256, 8
        %6960 = vbcast.lane.b32.xlu0 %v6954, %s6959
        %v6961 = vpop.permute.xlu0 %6960
        %v6962 = vlaneseq
        %v6963 = vshrl.u32 %v6962, 7
        %v6964 = vsub.s32 5, %v6963
        %v6965 = vrot.slane %v6804, %v6964
        %6967 = vbcast.lane.b32.xlu0 %v6965, 256
        %v6968 = vpop.permute.xlu0 %6967
        %s6970 = sor.u32 256, 8
        %6971 = vbcast.lane.b32.xlu0 %v6965, %s6970
        %v6972 = vpop.permute.xlu0 %6971
        %v6973 = vlaneseq
        %v6974 = vshrl.u32 %v6973, 7
        %v6975 = vsub.s32 6, %v6974
        %v6976 = vrot.slane %v6804, %v6975
        %6978 = vbcast.lane.b32.xlu0 %v6976, 256
        %v6979 = vpop.permute.xlu0 %6978
        %s6981 = sor.u32 256, 8
        %6982 = vbcast.lane.b32.xlu0 %v6976, %s6981
        %v6983 = vpop.permute.xlu0 %6982
        %v6984 = vlaneseq
        %v6985 = vshrl.u32 %v6984, 7
        %v6986 = vsub.s32 7, %v6985
        %v6987 = vrot.slane %v6804, %v6986
        %6989 = vbcast.lane.b32.xlu0 %v6987, 256
        %v6990 = vpop.permute.xlu0 %6989
        %s6992 = sor.u32 256, 8
        %6993 = vbcast.lane.b32.xlu0 %v6987, %s6992
        %v6994 = vpop.permute.xlu0 %6993
        %v6995 = vlaneseq
        %v6996 = vshrl.u32 %v6995, 7
        %v6997 = vsub.s32 0, %v6996
        %v6998 = vrot.slane %v6805, %v6997
        %7000 = vbcast.lane.b32.xlu0 %v6998, 256
        %v7001 = vpop.permute.xlu0 %7000
        %s7003 = sor.u32 256, 8
        %7004 = vbcast.lane.b32.xlu0 %v6998, %s7003
        %v7005 = vpop.permute.xlu0 %7004
        %v7006 = vlaneseq
        %v7007 = vshrl.u32 %v7006, 7
        %v7008 = vsub.s32 1, %v7007
        %v7009 = vrot.slane %v6805, %v7008
        %7011 = vbcast.lane.b32.xlu0 %v7009, 256
        %v7012 = vpop.permute.xlu0 %7011
        %s7014 = sor.u32 256, 8
        %7015 = vbcast.lane.b32.xlu0 %v7009, %s7014
        %v7016 = vpop.permute.xlu0 %7015
        %v7017 = vlaneseq
        %v7018 = vshrl.u32 %v7017, 7
        %v7019 = vsub.s32 2, %v7018
        %v7020 = vrot.slane %v6805, %v7019
        %7022 = vbcast.lane.b32.xlu0 %v7020, 256
        %v7023 = vpop.permute.xlu0 %7022
        %s7025 = sor.u32 256, 8
        %7026 = vbcast.lane.b32.xlu0 %v7020, %s7025
        %v7027 = vpop.permute.xlu0 %7026
        %v7028 = vlaneseq
        %v7029 = vshrl.u32 %v7028, 7
        %v7030 = vsub.s32 3, %v7029
        %v7031 = vrot.slane %v6805, %v7030
        %7033 = vbcast.lane.b32.xlu0 %v7031, 256
        %v7034 = vpop.permute.xlu0 %7033
        %s7036 = sor.u32 256, 8
        %7037 = vbcast.lane.b32.xlu0 %v7031, %s7036
        %v7038 = vpop.permute.xlu0 %7037
        %v7039 = vlaneseq
        %v7040 = vshrl.u32 %v7039, 7
        %v7041 = vsub.s32 4, %v7040
        %v7042 = vrot.slane %v6805, %v7041
        %7044 = vbcast.lane.b32.xlu0 %v7042, 256
        %v7045 = vpop.permute.xlu0 %7044
        %s7047 = sor.u32 256, 8
        %7048 = vbcast.lane.b32.xlu0 %v7042, %s7047
        %v7049 = vpop.permute.xlu0 %7048
        %v7050 = vlaneseq
        %v7051 = vshrl.u32 %v7050, 7
        %v7052 = vsub.s32 5, %v7051
        %v7053 = vrot.slane %v6805, %v7052
        %7055 = vbcast.lane.b32.xlu0 %v7053, 256
        %v7056 = vpop.permute.xlu0 %7055
        %s7058 = sor.u32 256, 8
        %7059 = vbcast.lane.b32.xlu0 %v7053, %s7058
        %v7060 = vpop.permute.xlu0 %7059
        %v7061 = vlaneseq
        %v7062 = vshrl.u32 %v7061, 7
        %v7063 = vsub.s32 6, %v7062
        %v7064 = vrot.slane %v6805, %v7063
        %7066 = vbcast.lane.b32.xlu0 %v7064, 256
        %v7067 = vpop.permute.xlu0 %7066
        %s7069 = sor.u32 256, 8
        %7070 = vbcast.lane.b32.xlu0 %v7064, %s7069
        %v7071 = vpop.permute.xlu0 %7070
        %v7072 = vlaneseq
        %v7073 = vshrl.u32 %v7072, 7
        %v7074 = vsub.s32 7, %v7073
        %v7075 = vrot.slane %v6805, %v7074
        %7077 = vbcast.lane.b32.xlu0 %v7075, 256
        %v7078 = vpop.permute.xlu0 %7077
        %s7080 = sor.u32 256, 8
        %7081 = vbcast.lane.b32.xlu0 %v7075, %s7080
        %v7082 = vpop.permute.xlu0 %7081
        %v7083 = vlaneseq
        %v7084 = vshrl.u32 %v7083, 7
        %v7085 = vsub.s32 0, %v7084
        %v7086 = vrot.slane %v6806, %v7085
        %7088 = vbcast.lane.b32.xlu0 %v7086, 256
        %v7089 = vpop.permute.xlu0 %7088
        %s7091 = sor.u32 256, 8
        %7092 = vbcast.lane.b32.xlu0 %v7086, %s7091
        %v7093 = vpop.permute.xlu0 %7092
        %v7094 = vlaneseq
        %v7095 = vshrl.u32 %v7094, 7
        %v7096 = vsub.s32 1, %v7095
        %v7097 = vrot.slane %v6806, %v7096
        %7099 = vbcast.lane.b32.xlu0 %v7097, 256
        %v7100 = vpop.permute.xlu0 %7099
        %s7102 = sor.u32 256, 8
        %7103 = vbcast.lane.b32.xlu0 %v7097, %s7102
        %v7104 = vpop.permute.xlu0 %7103
        %v7105 = vlaneseq
        %v7106 = vshrl.u32 %v7105, 7
        %v7107 = vsub.s32 2, %v7106
        %v7108 = vrot.slane %v6806, %v7107
        %7110 = vbcast.lane.b32.xlu0 %v7108, 256
        %v7111 = vpop.permute.xlu0 %7110
        %s7113 = sor.u32 256, 8
        %7114 = vbcast.lane.b32.xlu0 %v7108, %s7113
        %v7115 = vpop.permute.xlu0 %7114
        %v7116 = vlaneseq
        %v7117 = vshrl.u32 %v7116, 7
        %v7118 = vsub.s32 3, %v7117
        %v7119 = vrot.slane %v6806, %v7118
        %7121 = vbcast.lane.b32.xlu0 %v7119, 256
        %v7122 = vpop.permute.xlu0 %7121
        %s7124 = sor.u32 256, 8
        %7125 = vbcast.lane.b32.xlu0 %v7119, %s7124
        %v7126 = vpop.permute.xlu0 %7125
        %v7127 = vlaneseq
        %v7128 = vshrl.u32 %v7127, 7
        %v7129 = vsub.s32 4, %v7128
        %v7130 = vrot.slane %v6806, %v7129
        %7132 = vbcast.lane.b32.xlu0 %v7130, 256
        %v7133 = vpop.permute.xlu0 %7132
        %s7135 = sor.u32 256, 8
        %7136 = vbcast.lane.b32.xlu0 %v7130, %s7135
        %v7137 = vpop.permute.xlu0 %7136
        %v7138 = vlaneseq
        %v7139 = vshrl.u32 %v7138, 7
        %v7140 = vsub.s32 5, %v7139
        %v7141 = vrot.slane %v6806, %v7140
        %7143 = vbcast.lane.b32.xlu0 %v7141, 256
        %v7144 = vpop.permute.xlu0 %7143
        %s7146 = sor.u32 256, 8
        %7147 = vbcast.lane.b32.xlu0 %v7141, %s7146
        %v7148 = vpop.permute.xlu0 %7147
        %v7149 = vlaneseq
        %v7150 = vshrl.u32 %v7149, 7
        %v7151 = vsub.s32 6, %v7150
        %v7152 = vrot.slane %v6806, %v7151
        %7154 = vbcast.lane.b32.xlu0 %v7152, 256
        %v7155 = vpop.permute.xlu0 %7154
        %s7157 = sor.u32 256, 8
        %7158 = vbcast.lane.b32.xlu0 %v7152, %s7157
        %v7159 = vpop.permute.xlu0 %7158
        %v7160 = vlaneseq
        %v7161 = vshrl.u32 %v7160, 7
        %v7162 = vsub.s32 7, %v7161
        %v7163 = vrot.slane %v6806, %v7162
        %7165 = vbcast.lane.b32.xlu0 %v7163, 256
        %v7166 = vpop.permute.xlu0 %7165
        %s7168 = sor.u32 256, 8
        %7169 = vbcast.lane.b32.xlu0 %v7163, %s7168
        %v7170 = vpop.permute.xlu0 %7169
        %v7171 = vlaneseq
        %v7172 = vshrl.u32 %v7171, 7
        %v7173 = vsub.s32 0, %v7172
        %v7174 = vrot.slane %v6807, %v7173
        %7176 = vbcast.lane.b32.xlu0 %v7174, 256
        %v7177 = vpop.permute.xlu0 %7176
        %s7179 = sor.u32 256, 8
        %7180 = vbcast.lane.b32.xlu0 %v7174, %s7179
        %v7181 = vpop.permute.xlu0 %7180
        %v7182 = vlaneseq
        %v7183 = vshrl.u32 %v7182, 7
        %v7184 = vsub.s32 1, %v7183
        %v7185 = vrot.slane %v6807, %v7184
        %7187 = vbcast.lane.b32.xlu0 %v7185, 256
        %v7188 = vpop.permute.xlu0 %7187
        %s7190 = sor.u32 256, 8
        %7191 = vbcast.lane.b32.xlu0 %v7185, %s7190
        %v7192 = vpop.permute.xlu0 %7191
        %v7193 = vlaneseq
        %v7194 = vshrl.u32 %v7193, 7
        %v7195 = vsub.s32 2, %v7194
        %v7196 = vrot.slane %v6807, %v7195
        %7198 = vbcast.lane.b32.xlu0 %v7196, 256
        %v7199 = vpop.permute.xlu0 %7198
        %s7201 = sor.u32 256, 8
        %7202 = vbcast.lane.b32.xlu0 %v7196, %s7201
        %v7203 = vpop.permute.xlu0 %7202
        %v7204 = vlaneseq
        %v7205 = vshrl.u32 %v7204, 7
        %v7206 = vsub.s32 3, %v7205
        %v7207 = vrot.slane %v6807, %v7206
        %7209 = vbcast.lane.b32.xlu0 %v7207, 256
        %v7210 = vpop.permute.xlu0 %7209
        %s7212 = sor.u32 256, 8
        %7213 = vbcast.lane.b32.xlu0 %v7207, %s7212
        %v7214 = vpop.permute.xlu0 %7213
        %v7215 = vlaneseq
        %v7216 = vshrl.u32 %v7215, 7
        %v7217 = vsub.s32 4, %v7216
        %v7218 = vrot.slane %v6807, %v7217
        %7220 = vbcast.lane.b32.xlu0 %v7218, 256
        %v7221 = vpop.permute.xlu0 %7220
        %s7223 = sor.u32 256, 8
        %7224 = vbcast.lane.b32.xlu0 %v7218, %s7223
        %v7225 = vpop.permute.xlu0 %7224
        %v7226 = vlaneseq
        %v7227 = vshrl.u32 %v7226, 7
        %v7228 = vsub.s32 5, %v7227
        %v7229 = vrot.slane %v6807, %v7228
        %7231 = vbcast.lane.b32.xlu0 %v7229, 256
        %v7232 = vpop.permute.xlu0 %7231
        %s7234 = sor.u32 256, 8
        %7235 = vbcast.lane.b32.xlu0 %v7229, %s7234
        %v7236 = vpop.permute.xlu0 %7235
        %v7237 = vlaneseq
        %v7238 = vshrl.u32 %v7237, 7
        %v7239 = vsub.s32 6, %v7238
        %v7240 = vrot.slane %v6807, %v7239
        %7242 = vbcast.lane.b32.xlu0 %v7240, 256
        %v7243 = vpop.permute.xlu0 %7242
        %s7245 = sor.u32 256, 8
        %7246 = vbcast.lane.b32.xlu0 %v7240, %s7245
        %v7247 = vpop.permute.xlu0 %7246
        %v7248 = vlaneseq
        %v7249 = vshrl.u32 %v7248, 7
        %v7250 = vsub.s32 7, %v7249
        %v7251 = vrot.slane %v6807, %v7250
        %7253 = vbcast.lane.b32.xlu0 %v7251, 256
        %v7254 = vpop.permute.xlu0 %7253
        %s7256 = sor.u32 256, 8
        %7257 = vbcast.lane.b32.xlu0 %v7251, %s7256
        %v7258 = vpop.permute.xlu0 %7257
        %v7259 = vlaneseq
        %v7260 = vshrl.u32 %v7259, 7
        %v7261 = vsub.s32 0, %v7260
        %v7262 = vrot.slane %v6808, %v7261
        %7264 = vbcast.lane.b32.xlu0 %v7262, 256
        %v7265 = vpop.permute.xlu0 %7264
        %s7267 = sor.u32 256, 8
        %7268 = vbcast.lane.b32.xlu0 %v7262, %s7267
        %v7269 = vpop.permute.xlu0 %7268
        %v7270 = vlaneseq
        %v7271 = vshrl.u32 %v7270, 7
        %v7272 = vsub.s32 1, %v7271
        %v7273 = vrot.slane %v6808, %v7272
        %7275 = vbcast.lane.b32.xlu0 %v7273, 256
        %v7276 = vpop.permute.xlu0 %7275
        %s7278 = sor.u32 256, 8
        %7279 = vbcast.lane.b32.xlu0 %v7273, %s7278
        %v7280 = vpop.permute.xlu0 %7279
        %v7281 = vlaneseq
        %v7282 = vshrl.u32 %v7281, 7
        %v7283 = vsub.s32 2, %v7282
        %v7284 = vrot.slane %v6808, %v7283
        %7286 = vbcast.lane.b32.xlu0 %v7284, 256
        %v7287 = vpop.permute.xlu0 %7286
        %s7289 = sor.u32 256, 8
        %7290 = vbcast.lane.b32.xlu0 %v7284, %s7289
        %v7291 = vpop.permute.xlu0 %7290
        %v7292 = vlaneseq
        %v7293 = vshrl.u32 %v7292, 7
        %v7294 = vsub.s32 3, %v7293
        %v7295 = vrot.slane %v6808, %v7294
        %7297 = vbcast.lane.b32.xlu0 %v7295, 256
        %v7298 = vpop.permute.xlu0 %7297
        %s7300 = sor.u32 256, 8
        %7301 = vbcast.lane.b32.xlu0 %v7295, %s7300
        %v7302 = vpop.permute.xlu0 %7301
        %v7303 = vlaneseq
        %v7304 = vshrl.u32 %v7303, 7
        %v7305 = vsub.s32 4, %v7304
        %v7306 = vrot.slane %v6808, %v7305
        %7308 = vbcast.lane.b32.xlu0 %v7306, 256
        %v7309 = vpop.permute.xlu0 %7308
        %s7311 = sor.u32 256, 8
        %7312 = vbcast.lane.b32.xlu0 %v7306, %s7311
        %v7313 = vpop.permute.xlu0 %7312
        %v7314 = vlaneseq
        %v7315 = vshrl.u32 %v7314, 7
        %v7316 = vsub.s32 5, %v7315
        %v7317 = vrot.slane %v6808, %v7316
        %7319 = vbcast.lane.b32.xlu0 %v7317, 256
        %v7320 = vpop.permute.xlu0 %7319
        %s7322 = sor.u32 256, 8
        %7323 = vbcast.lane.b32.xlu0 %v7317, %s7322
        %v7324 = vpop.permute.xlu0 %7323
        %v7325 = vlaneseq
        %v7326 = vshrl.u32 %v7325, 7
        %v7327 = vsub.s32 6, %v7326
        %v7328 = vrot.slane %v6808, %v7327
        %7330 = vbcast.lane.b32.xlu0 %v7328, 256
        %v7331 = vpop.permute.xlu0 %7330
        %s7333 = sor.u32 256, 8
        %7334 = vbcast.lane.b32.xlu0 %v7328, %s7333
        %v7335 = vpop.permute.xlu0 %7334
        %v7336 = vlaneseq
        %v7337 = vshrl.u32 %v7336, 7
        %v7338 = vsub.s32 7, %v7337
        %v7339 = vrot.slane %v6808, %v7338
        %7341 = vbcast.lane.b32.xlu0 %v7339, 256
        %v7342 = vpop.permute.xlu0 %7341
        %s7344 = sor.u32 256, 8
        %7345 = vbcast.lane.b32.xlu0 %v7339, %s7344
        %v7346 = vpop.permute.xlu0 %7345
        %v7347 = vlaneseq
        %v7348 = vshrl.u32 %v7347, 7
        %v7349 = vsub.s32 0, %v7348
        %v7350 = vrot.slane %v6809, %v7349
        %7352 = vbcast.lane.b32.xlu0 %v7350, 256
        %v7353 = vpop.permute.xlu0 %7352
        %s7355 = sor.u32 256, 8
        %7356 = vbcast.lane.b32.xlu0 %v7350, %s7355
        %v7357 = vpop.permute.xlu0 %7356
        %v7358 = vlaneseq
        %v7359 = vshrl.u32 %v7358, 7
        %v7360 = vsub.s32 1, %v7359
        %v7361 = vrot.slane %v6809, %v7360
        %7363 = vbcast.lane.b32.xlu0 %v7361, 256
        %v7364 = vpop.permute.xlu0 %7363
        %s7366 = sor.u32 256, 8
        %7367 = vbcast.lane.b32.xlu0 %v7361, %s7366
        %v7368 = vpop.permute.xlu0 %7367
        %v7369 = vlaneseq
        %v7370 = vshrl.u32 %v7369, 7
        %v7371 = vsub.s32 2, %v7370
        %v7372 = vrot.slane %v6809, %v7371
        %7374 = vbcast.lane.b32.xlu0 %v7372, 256
        %v7375 = vpop.permute.xlu0 %7374
        %s7377 = sor.u32 256, 8
        %7378 = vbcast.lane.b32.xlu0 %v7372, %s7377
        %v7379 = vpop.permute.xlu0 %7378
        %v7380 = vlaneseq
        %v7381 = vshrl.u32 %v7380, 7
        %v7382 = vsub.s32 3, %v7381
        %v7383 = vrot.slane %v6809, %v7382
        %7385 = vbcast.lane.b32.xlu0 %v7383, 256
        %v7386 = vpop.permute.xlu0 %7385
        %s7388 = sor.u32 256, 8
        %7389 = vbcast.lane.b32.xlu0 %v7383, %s7388
        %v7390 = vpop.permute.xlu0 %7389
        %v7391 = vlaneseq
        %v7392 = vshrl.u32 %v7391, 7
        %v7393 = vsub.s32 4, %v7392
        %v7394 = vrot.slane %v6809, %v7393
        %7396 = vbcast.lane.b32.xlu0 %v7394, 256
        %v7397 = vpop.permute.xlu0 %7396
        %s7399 = sor.u32 256, 8
        %7400 = vbcast.lane.b32.xlu0 %v7394, %s7399
        %v7401 = vpop.permute.xlu0 %7400
        %v7402 = vlaneseq
        %v7403 = vshrl.u32 %v7402, 7
        %v7404 = vsub.s32 5, %v7403
        %v7405 = vrot.slane %v6809, %v7404
        %7407 = vbcast.lane.b32.xlu0 %v7405, 256
        %v7408 = vpop.permute.xlu0 %7407
        %s7410 = sor.u32 256, 8
        %7411 = vbcast.lane.b32.xlu0 %v7405, %s7410
        %v7412 = vpop.permute.xlu0 %7411
        %v7413 = vlaneseq
        %v7414 = vshrl.u32 %v7413, 7
        %v7415 = vsub.s32 6, %v7414
        %v7416 = vrot.slane %v6809, %v7415
        %7418 = vbcast.lane.b32.xlu0 %v7416, 256
        %v7419 = vpop.permute.xlu0 %7418
        %s7421 = sor.u32 256, 8
        %7422 = vbcast.lane.b32.xlu0 %v7416, %s7421
        %v7423 = vpop.permute.xlu0 %7422
        %v7424 = vlaneseq
        %v7425 = vshrl.u32 %v7424, 7
        %v7426 = vsub.s32 7, %v7425
        %v7427 = vrot.slane %v6809, %v7426
        %7429 = vbcast.lane.b32.xlu0 %v7427, 256
        %v7430 = vpop.permute.xlu0 %7429
        %s7432 = sor.u32 256, 8
        %7433 = vbcast.lane.b32.xlu0 %v7427, %s7432
        %v7434 = vpop.permute.xlu0 %7433
        %v7435 = vlaneseq
        %v7436 = vshrl.u32 %v7435, 7
        %v7437 = vsub.s32 0, %v7436
        %v7438 = vrot.slane %v6810, %v7437
        %7440 = vbcast.lane.b32.xlu0 %v7438, 256
        %v7441 = vpop.permute.xlu0 %7440
        %s7443 = sor.u32 256, 8
        %7444 = vbcast.lane.b32.xlu0 %v7438, %s7443
        %v7445 = vpop.permute.xlu0 %7444
        %v7446 = vlaneseq
        %v7447 = vshrl.u32 %v7446, 7
        %v7448 = vsub.s32 1, %v7447
        %v7449 = vrot.slane %v6810, %v7448
        %7451 = vbcast.lane.b32.xlu0 %v7449, 256
        %v7452 = vpop.permute.xlu0 %7451
        %s7454 = sor.u32 256, 8
        %7455 = vbcast.lane.b32.xlu0 %v7449, %s7454
        %v7456 = vpop.permute.xlu0 %7455
        %v7457 = vlaneseq
        %v7458 = vshrl.u32 %v7457, 7
        %v7459 = vsub.s32 2, %v7458
        %v7460 = vrot.slane %v6810, %v7459
        %7462 = vbcast.lane.b32.xlu0 %v7460, 256
        %v7463 = vpop.permute.xlu0 %7462
        %s7465 = sor.u32 256, 8
        %7466 = vbcast.lane.b32.xlu0 %v7460, %s7465
        %v7467 = vpop.permute.xlu0 %7466
        %v7468 = vlaneseq
        %v7469 = vshrl.u32 %v7468, 7
        %v7470 = vsub.s32 3, %v7469
        %v7471 = vrot.slane %v6810, %v7470
        %7473 = vbcast.lane.b32.xlu0 %v7471, 256
        %v7474 = vpop.permute.xlu0 %7473
        %s7476 = sor.u32 256, 8
        %7477 = vbcast.lane.b32.xlu0 %v7471, %s7476
        %v7478 = vpop.permute.xlu0 %7477
        %v7479 = vlaneseq
        %v7480 = vshrl.u32 %v7479, 7
        %v7481 = vsub.s32 4, %v7480
        %v7482 = vrot.slane %v6810, %v7481
        %7484 = vbcast.lane.b32.xlu0 %v7482, 256
        %v7485 = vpop.permute.xlu0 %7484
        %s7487 = sor.u32 256, 8
        %7488 = vbcast.lane.b32.xlu0 %v7482, %s7487
        %v7489 = vpop.permute.xlu0 %7488
        %v7490 = vlaneseq
        %v7491 = vshrl.u32 %v7490, 7
        %v7492 = vsub.s32 5, %v7491
        %v7493 = vrot.slane %v6810, %v7492
        %7495 = vbcast.lane.b32.xlu0 %v7493, 256
        %v7496 = vpop.permute.xlu0 %7495
        %s7498 = sor.u32 256, 8
        %7499 = vbcast.lane.b32.xlu0 %v7493, %s7498
        %v7500 = vpop.permute.xlu0 %7499
        %v7501 = vlaneseq
        %v7502 = vshrl.u32 %v7501, 7
        %v7503 = vsub.s32 6, %v7502
        %v7504 = vrot.slane %v6810, %v7503
        %7506 = vbcast.lane.b32.xlu0 %v7504, 256
        %v7507 = vpop.permute.xlu0 %7506
        %s7509 = sor.u32 256, 8
        %7510 = vbcast.lane.b32.xlu0 %v7504, %s7509
        %v7511 = vpop.permute.xlu0 %7510
        %v7512 = vlaneseq
        %v7513 = vshrl.u32 %v7512, 7
        %v7514 = vsub.s32 7, %v7513
        %v7515 = vrot.slane %v6810, %v7514
        %7517 = vbcast.lane.b32.xlu0 %v7515, 256
        %v7518 = vpop.permute.xlu0 %7517
        %s7520 = sor.u32 256, 8
        %7521 = vbcast.lane.b32.xlu0 %v7515, %s7520
        %v7522 = vpop.permute.xlu0 %7521
        %v7523 = vlaneseq
        %v7524 = vshrl.u32 %v7523, 7
        %v7525 = vsub.s32 0, %v7524
        %v7526 = vrot.slane %v6811, %v7525
        %7528 = vbcast.lane.b32.xlu0 %v7526, 256
        %v7529 = vpop.permute.xlu0 %7528
        %s7531 = sor.u32 256, 8
        %7532 = vbcast.lane.b32.xlu0 %v7526, %s7531
        %v7533 = vpop.permute.xlu0 %7532
        %v7534 = vlaneseq
        %v7535 = vshrl.u32 %v7534, 7
        %v7536 = vsub.s32 1, %v7535
        %v7537 = vrot.slane %v6811, %v7536
        %7539 = vbcast.lane.b32.xlu0 %v7537, 256
        %v7540 = vpop.permute.xlu0 %7539
        %s7542 = sor.u32 256, 8
        %7543 = vbcast.lane.b32.xlu0 %v7537, %s7542
        %v7544 = vpop.permute.xlu0 %7543
        %v7545 = vlaneseq
        %v7546 = vshrl.u32 %v7545, 7
        %v7547 = vsub.s32 2, %v7546
        %v7548 = vrot.slane %v6811, %v7547
        %7550 = vbcast.lane.b32.xlu0 %v7548, 256
        %v7551 = vpop.permute.xlu0 %7550
        %s7553 = sor.u32 256, 8
        %7554 = vbcast.lane.b32.xlu0 %v7548, %s7553
        %v7555 = vpop.permute.xlu0 %7554
        %v7556 = vlaneseq
        %v7557 = vshrl.u32 %v7556, 7
        %v7558 = vsub.s32 3, %v7557
        %v7559 = vrot.slane %v6811, %v7558
        %7561 = vbcast.lane.b32.xlu0 %v7559, 256
        %v7562 = vpop.permute.xlu0 %7561
        %s7564 = sor.u32 256, 8
        %7565 = vbcast.lane.b32.xlu0 %v7559, %s7564
        %v7566 = vpop.permute.xlu0 %7565
        %v7567 = vlaneseq
        %v7568 = vshrl.u32 %v7567, 7
        %v7569 = vsub.s32 4, %v7568
        %v7570 = vrot.slane %v6811, %v7569
        %7572 = vbcast.lane.b32.xlu0 %v7570, 256
        %v7573 = vpop.permute.xlu0 %7572
        %s7575 = sor.u32 256, 8
        %7576 = vbcast.lane.b32.xlu0 %v7570, %s7575
        %v7577 = vpop.permute.xlu0 %7576
        %v7578 = vlaneseq
        %v7579 = vshrl.u32 %v7578, 7
        %v7580 = vsub.s32 5, %v7579
        %v7581 = vrot.slane %v6811, %v7580
        %7583 = vbcast.lane.b32.xlu0 %v7581, 256
        %v7584 = vpop.permute.xlu0 %7583
        %s7586 = sor.u32 256, 8
        %7587 = vbcast.lane.b32.xlu0 %v7581, %s7586
        %v7588 = vpop.permute.xlu0 %7587
        %v7589 = vlaneseq
        %v7590 = vshrl.u32 %v7589, 7
        %v7591 = vsub.s32 6, %v7590
        %v7592 = vrot.slane %v6811, %v7591
        %7594 = vbcast.lane.b32.xlu0 %v7592, 256
        %v7595 = vpop.permute.xlu0 %7594
        %s7597 = sor.u32 256, 8
        %7598 = vbcast.lane.b32.xlu0 %v7592, %s7597
        %v7599 = vpop.permute.xlu0 %7598
        %v7600 = vlaneseq
        %v7601 = vshrl.u32 %v7600, 7
        %v7602 = vsub.s32 7, %v7601
        %v7603 = vrot.slane %v6811, %v7602
        %7605 = vbcast.lane.b32.xlu0 %v7603, 256
        %v7606 = vpop.permute.xlu0 %7605
        %s7608 = sor.u32 256, 8
        %7609 = vbcast.lane.b32.xlu0 %v7603, %s7608
        %v7610 = vpop.permute.xlu0 %7609
        %v7611 = vlaneseq
        %v7612 = vshrl.u32 %v7611, 7
        %v7613 = vsub.s32 0, %v7612
        %v7614 = vrot.slane %v6812, %v7613
        %7616 = vbcast.lane.b32.xlu0 %v7614, 256
        %v7617 = vpop.permute.xlu0 %7616
        %s7619 = sor.u32 256, 8
        %7620 = vbcast.lane.b32.xlu0 %v7614, %s7619
        %v7621 = vpop.permute.xlu0 %7620
        %v7622 = vlaneseq
        %v7623 = vshrl.u32 %v7622, 7
        %v7624 = vsub.s32 1, %v7623
        %v7625 = vrot.slane %v6812, %v7624
        %7627 = vbcast.lane.b32.xlu0 %v7625, 256
        %v7628 = vpop.permute.xlu0 %7627
        %s7630 = sor.u32 256, 8
        %7631 = vbcast.lane.b32.xlu0 %v7625, %s7630
        %v7632 = vpop.permute.xlu0 %7631
        %v7633 = vlaneseq
        %v7634 = vshrl.u32 %v7633, 7
        %v7635 = vsub.s32 2, %v7634
        %v7636 = vrot.slane %v6812, %v7635
        %7638 = vbcast.lane.b32.xlu0 %v7636, 256
        %v7639 = vpop.permute.xlu0 %7638
        %s7641 = sor.u32 256, 8
        %7642 = vbcast.lane.b32.xlu0 %v7636, %s7641
        %v7643 = vpop.permute.xlu0 %7642
        %v7644 = vlaneseq
        %v7645 = vshrl.u32 %v7644, 7
        %v7646 = vsub.s32 3, %v7645
        %v7647 = vrot.slane %v6812, %v7646
        %7649 = vbcast.lane.b32.xlu0 %v7647, 256
        %v7650 = vpop.permute.xlu0 %7649
        %s7652 = sor.u32 256, 8
        %7653 = vbcast.lane.b32.xlu0 %v7647, %s7652
        %v7654 = vpop.permute.xlu0 %7653
        %v7655 = vlaneseq
        %v7656 = vshrl.u32 %v7655, 7
        %v7657 = vsub.s32 4, %v7656
        %v7658 = vrot.slane %v6812, %v7657
        %7660 = vbcast.lane.b32.xlu0 %v7658, 256
        %v7661 = vpop.permute.xlu0 %7660
        %s7663 = sor.u32 256, 8
        %7664 = vbcast.lane.b32.xlu0 %v7658, %s7663
        %v7665 = vpop.permute.xlu0 %7664
        %v7666 = vlaneseq
        %v7667 = vshrl.u32 %v7666, 7
        %v7668 = vsub.s32 5, %v7667
        %v7669 = vrot.slane %v6812, %v7668
        %7671 = vbcast.lane.b32.xlu0 %v7669, 256
        %v7672 = vpop.permute.xlu0 %7671
        %s7674 = sor.u32 256, 8
        %7675 = vbcast.lane.b32.xlu0 %v7669, %s7674
        %v7676 = vpop.permute.xlu0 %7675
        %v7677 = vlaneseq
        %v7678 = vshrl.u32 %v7677, 7
        %v7679 = vsub.s32 6, %v7678
        %v7680 = vrot.slane %v6812, %v7679
        %7682 = vbcast.lane.b32.xlu0 %v7680, 256
        %v7683 = vpop.permute.xlu0 %7682
        %s7685 = sor.u32 256, 8
        %7686 = vbcast.lane.b32.xlu0 %v7680, %s7685
        %v7687 = vpop.permute.xlu0 %7686
        %v7688 = vlaneseq
        %v7689 = vshrl.u32 %v7688, 7
        %v7690 = vsub.s32 7, %v7689
        %v7691 = vrot.slane %v6812, %v7690
        %7693 = vbcast.lane.b32.xlu0 %v7691, 256
        %v7694 = vpop.permute.xlu0 %7693
        %s7696 = sor.u32 256, 8
        %7697 = vbcast.lane.b32.xlu0 %v7691, %s7696
        %v7698 = vpop.permute.xlu0 %7697
        %v7699 = vlaneseq
        %v7700 = vshrl.u32 %v7699, 7
        %v7701 = vsub.s32 0, %v7700
        %v7702 = vrot.slane %v6813, %v7701
        %7704 = vbcast.lane.b32.xlu0 %v7702, 256
        %v7705 = vpop.permute.xlu0 %7704
        %s7707 = sor.u32 256, 8
        %7708 = vbcast.lane.b32.xlu0 %v7702, %s7707
        %v7709 = vpop.permute.xlu0 %7708
        %v7710 = vlaneseq
        %v7711 = vshrl.u32 %v7710, 7
        %v7712 = vsub.s32 1, %v7711
        %v7713 = vrot.slane %v6813, %v7712
        %7715 = vbcast.lane.b32.xlu0 %v7713, 256
        %v7716 = vpop.permute.xlu0 %7715
        %s7718 = sor.u32 256, 8
        %7719 = vbcast.lane.b32.xlu0 %v7713, %s7718
        %v7720 = vpop.permute.xlu0 %7719
        %v7721 = vlaneseq
        %v7722 = vshrl.u32 %v7721, 7
        %v7723 = vsub.s32 2, %v7722
        %v7724 = vrot.slane %v6813, %v7723
        %7726 = vbcast.lane.b32.xlu0 %v7724, 256
        %v7727 = vpop.permute.xlu0 %7726
        %s7729 = sor.u32 256, 8
        %7730 = vbcast.lane.b32.xlu0 %v7724, %s7729
        %v7731 = vpop.permute.xlu0 %7730
        %v7732 = vlaneseq
        %v7733 = vshrl.u32 %v7732, 7
        %v7734 = vsub.s32 3, %v7733
        %v7735 = vrot.slane %v6813, %v7734
        %7737 = vbcast.lane.b32.xlu0 %v7735, 256
        %v7738 = vpop.permute.xlu0 %7737
        %s7740 = sor.u32 256, 8
        %7741 = vbcast.lane.b32.xlu0 %v7735, %s7740
        %v7742 = vpop.permute.xlu0 %7741
        %v7743 = vlaneseq
        %v7744 = vshrl.u32 %v7743, 7
        %v7745 = vsub.s32 4, %v7744
        %v7746 = vrot.slane %v6813, %v7745
        %7748 = vbcast.lane.b32.xlu0 %v7746, 256
        %v7749 = vpop.permute.xlu0 %7748
        %s7751 = sor.u32 256, 8
        %7752 = vbcast.lane.b32.xlu0 %v7746, %s7751
        %v7753 = vpop.permute.xlu0 %7752
        %v7754 = vlaneseq
        %v7755 = vshrl.u32 %v7754, 7
        %v7756 = vsub.s32 5, %v7755
        %v7757 = vrot.slane %v6813, %v7756
        %7759 = vbcast.lane.b32.xlu0 %v7757, 256
        %v7760 = vpop.permute.xlu0 %7759
        %s7762 = sor.u32 256, 8
        %7763 = vbcast.lane.b32.xlu0 %v7757, %s7762
        %v7764 = vpop.permute.xlu0 %7763
        %v7765 = vlaneseq
        %v7766 = vshrl.u32 %v7765, 7
        %v7767 = vsub.s32 6, %v7766
        %v7768 = vrot.slane %v6813, %v7767
        %7770 = vbcast.lane.b32.xlu0 %v7768, 256
        %v7771 = vpop.permute.xlu0 %7770
        %s7773 = sor.u32 256, 8
        %7774 = vbcast.lane.b32.xlu0 %v7768, %s7773
        %v7775 = vpop.permute.xlu0 %7774
        %v7776 = vlaneseq
        %v7777 = vshrl.u32 %v7776, 7
        %v7778 = vsub.s32 7, %v7777
        %v7779 = vrot.slane %v6813, %v7778
        %7781 = vbcast.lane.b32.xlu0 %v7779, 256
        %v7782 = vpop.permute.xlu0 %7781
        %s7784 = sor.u32 256, 8
        %7785 = vbcast.lane.b32.xlu0 %v7779, %s7784
        %v7786 = vpop.permute.xlu0 %7785
        %v7787 = vlaneseq
        %v7788 = vshrl.u32 %v7787, 7
        %v7789 = vsub.s32 0, %v7788
        %v7790 = vrot.slane %v6814, %v7789
        %7792 = vbcast.lane.b32.xlu0 %v7790, 256
        %v7793 = vpop.permute.xlu0 %7792
        %s7795 = sor.u32 256, 8
        %7796 = vbcast.lane.b32.xlu0 %v7790, %s7795
        %v7797 = vpop.permute.xlu0 %7796
        %v7798 = vlaneseq
        %v7799 = vshrl.u32 %v7798, 7
        %v7800 = vsub.s32 1, %v7799
        %v7801 = vrot.slane %v6814, %v7800
        %7803 = vbcast.lane.b32.xlu0 %v7801, 256
        %v7804 = vpop.permute.xlu0 %7803
        %s7806 = sor.u32 256, 8
        %7807 = vbcast.lane.b32.xlu0 %v7801, %s7806
        %v7808 = vpop.permute.xlu0 %7807
        %v7809 = vlaneseq
        %v7810 = vshrl.u32 %v7809, 7
        %v7811 = vsub.s32 2, %v7810
        %v7812 = vrot.slane %v6814, %v7811
        %7814 = vbcast.lane.b32.xlu0 %v7812, 256
        %v7815 = vpop.permute.xlu0 %7814
        %s7817 = sor.u32 256, 8
        %7818 = vbcast.lane.b32.xlu0 %v7812, %s7817
        %v7819 = vpop.permute.xlu0 %7818
        %v7820 = vlaneseq
        %v7821 = vshrl.u32 %v7820, 7
        %v7822 = vsub.s32 3, %v7821
        %v7823 = vrot.slane %v6814, %v7822
        %7825 = vbcast.lane.b32.xlu0 %v7823, 256
        %v7826 = vpop.permute.xlu0 %7825
        %s7828 = sor.u32 256, 8
        %7829 = vbcast.lane.b32.xlu0 %v7823, %s7828
        %v7830 = vpop.permute.xlu0 %7829
        %v7831 = vlaneseq
        %v7832 = vshrl.u32 %v7831, 7
        %v7833 = vsub.s32 4, %v7832
        %v7834 = vrot.slane %v6814, %v7833
        %7836 = vbcast.lane.b32.xlu0 %v7834, 256
        %v7837 = vpop.permute.xlu0 %7836
        %s7839 = sor.u32 256, 8
        %7840 = vbcast.lane.b32.xlu0 %v7834, %s7839
        %v7841 = vpop.permute.xlu0 %7840
        %v7842 = vlaneseq
        %v7843 = vshrl.u32 %v7842, 7
        %v7844 = vsub.s32 5, %v7843
        %v7845 = vrot.slane %v6814, %v7844
        %7847 = vbcast.lane.b32.xlu0 %v7845, 256
        %v7848 = vpop.permute.xlu0 %7847
        %s7850 = sor.u32 256, 8
        %7851 = vbcast.lane.b32.xlu0 %v7845, %s7850
        %v7852 = vpop.permute.xlu0 %7851
        %v7853 = vlaneseq
        %v7854 = vshrl.u32 %v7853, 7
        %v7855 = vsub.s32 6, %v7854
        %v7856 = vrot.slane %v6814, %v7855
        %7858 = vbcast.lane.b32.xlu0 %v7856, 256
        %v7859 = vpop.permute.xlu0 %7858
        %s7861 = sor.u32 256, 8
        %7862 = vbcast.lane.b32.xlu0 %v7856, %s7861
        %v7863 = vpop.permute.xlu0 %7862
        %v7864 = vlaneseq
        %v7865 = vshrl.u32 %v7864, 7
        %v7866 = vsub.s32 7, %v7865
        %v7867 = vrot.slane %v6814, %v7866
        %7869 = vbcast.lane.b32.xlu0 %v7867, 256
        %v7870 = vpop.permute.xlu0 %7869
        %s7872 = sor.u32 256, 8
        %7873 = vbcast.lane.b32.xlu0 %v7867, %s7872
        %v7874 = vpop.permute.xlu0 %7873
        %v7875 = vlaneseq
        %v7876 = vshrl.u32 %v7875, 7
        %v7877 = vsub.s32 0, %v7876
        %v7878 = vrot.slane %v6815, %v7877
        %7880 = vbcast.lane.b32.xlu0 %v7878, 256
        %v7881 = vpop.permute.xlu0 %7880
        %s7883 = sor.u32 256, 8
        %7884 = vbcast.lane.b32.xlu0 %v7878, %s7883
        %v7885 = vpop.permute.xlu0 %7884
        %v7886 = vlaneseq
        %v7887 = vshrl.u32 %v7886, 7
        %v7888 = vsub.s32 1, %v7887
        %v7889 = vrot.slane %v6815, %v7888
        %7891 = vbcast.lane.b32.xlu0 %v7889, 256
        %v7892 = vpop.permute.xlu0 %7891
        %s7894 = sor.u32 256, 8
        %7895 = vbcast.lane.b32.xlu0 %v7889, %s7894
        %v7896 = vpop.permute.xlu0 %7895
        %v7897 = vlaneseq
        %v7898 = vshrl.u32 %v7897, 7
        %v7899 = vsub.s32 2, %v7898
        %v7900 = vrot.slane %v6815, %v7899
        %7902 = vbcast.lane.b32.xlu0 %v7900, 256
        %v7903 = vpop.permute.xlu0 %7902
        %s7905 = sor.u32 256, 8
        %7906 = vbcast.lane.b32.xlu0 %v7900, %s7905
        %v7907 = vpop.permute.xlu0 %7906
        %v7908 = vlaneseq
        %v7909 = vshrl.u32 %v7908, 7
        %v7910 = vsub.s32 3, %v7909
        %v7911 = vrot.slane %v6815, %v7910
        %7913 = vbcast.lane.b32.xlu0 %v7911, 256
        %v7914 = vpop.permute.xlu0 %7913
        %s7916 = sor.u32 256, 8
        %7917 = vbcast.lane.b32.xlu0 %v7911, %s7916
        %v7918 = vpop.permute.xlu0 %7917
        %v7919 = vlaneseq
        %v7920 = vshrl.u32 %v7919, 7
        %v7921 = vsub.s32 4, %v7920
        %v7922 = vrot.slane %v6815, %v7921
        %7924 = vbcast.lane.b32.xlu0 %v7922, 256
        %v7925 = vpop.permute.xlu0 %7924
        %s7927 = sor.u32 256, 8
        %7928 = vbcast.lane.b32.xlu0 %v7922, %s7927
        %v7929 = vpop.permute.xlu0 %7928
        %v7930 = vlaneseq
        %v7931 = vshrl.u32 %v7930, 7
        %v7932 = vsub.s32 5, %v7931
        %v7933 = vrot.slane %v6815, %v7932
        %7935 = vbcast.lane.b32.xlu0 %v7933, 256
        %v7936 = vpop.permute.xlu0 %7935
        %s7938 = sor.u32 256, 8
        %7939 = vbcast.lane.b32.xlu0 %v7933, %s7938
        %v7940 = vpop.permute.xlu0 %7939
        %v7941 = vlaneseq
        %v7942 = vshrl.u32 %v7941, 7
        %v7943 = vsub.s32 6, %v7942
        %v7944 = vrot.slane %v6815, %v7943
        %7946 = vbcast.lane.b32.xlu0 %v7944, 256
        %v7947 = vpop.permute.xlu0 %7946
        %s7949 = sor.u32 256, 8
        %7950 = vbcast.lane.b32.xlu0 %v7944, %s7949
        %v7951 = vpop.permute.xlu0 %7950
        %v7952 = vlaneseq
        %v7953 = vshrl.u32 %v7952, 7
        %v7954 = vsub.s32 7, %v7953
        %v7955 = vrot.slane %v6815, %v7954
        %7957 = vbcast.lane.b32.xlu0 %v7955, 256
        %v7958 = vpop.permute.xlu0 %7957
        %s7960 = sor.u32 256, 8
        %7961 = vbcast.lane.b32.xlu0 %v7955, %s7960
        %v7962 = vpop.permute.xlu0 %7961
        %v7963 = vlaneseq
        %v7964 = vshrl.u32 %v7963, 7
        %v7965 = vsub.s32 0, %v7964
        %v7966 = vrot.slane %v6816, %v7965
        %7968 = vbcast.lane.b32.xlu0 %v7966, 256
        %v7969 = vpop.permute.xlu0 %7968
        %s7971 = sor.u32 256, 8
        %7972 = vbcast.lane.b32.xlu0 %v7966, %s7971
        %v7973 = vpop.permute.xlu0 %7972
        %v7974 = vlaneseq
        %v7975 = vshrl.u32 %v7974, 7
        %v7976 = vsub.s32 1, %v7975
        %v7977 = vrot.slane %v6816, %v7976
        %7979 = vbcast.lane.b32.xlu0 %v7977, 256
        %v7980 = vpop.permute.xlu0 %7979
        %s7982 = sor.u32 256, 8
        %7983 = vbcast.lane.b32.xlu0 %v7977, %s7982
        %v7984 = vpop.permute.xlu0 %7983
        %v7985 = vlaneseq
        %v7986 = vshrl.u32 %v7985, 7
        %v7987 = vsub.s32 2, %v7986
        %v7988 = vrot.slane %v6816, %v7987
        %7990 = vbcast.lane.b32.xlu0 %v7988, 256
        %v7991 = vpop.permute.xlu0 %7990
        %s7993 = sor.u32 256, 8
        %7994 = vbcast.lane.b32.xlu0 %v7988, %s7993
        %v7995 = vpop.permute.xlu0 %7994
        %v7996 = vlaneseq
        %v7997 = vshrl.u32 %v7996, 7
        %v7998 = vsub.s32 3, %v7997
        %v7999 = vrot.slane %v6816, %v7998
        %8001 = vbcast.lane.b32.xlu0 %v7999, 256
        %v8002 = vpop.permute.xlu0 %8001
        %s8004 = sor.u32 256, 8
        %8005 = vbcast.lane.b32.xlu0 %v7999, %s8004
        %v8006 = vpop.permute.xlu0 %8005
        %v8007 = vlaneseq
        %v8008 = vshrl.u32 %v8007, 7
        %v8009 = vsub.s32 4, %v8008
        %v8010 = vrot.slane %v6816, %v8009
        %8012 = vbcast.lane.b32.xlu0 %v8010, 256
        %v8013 = vpop.permute.xlu0 %8012
        %s8015 = sor.u32 256, 8
        %8016 = vbcast.lane.b32.xlu0 %v8010, %s8015
        %v8017 = vpop.permute.xlu0 %8016
        %v8018 = vlaneseq
        %v8019 = vshrl.u32 %v8018, 7
        %v8020 = vsub.s32 5, %v8019
        %v8021 = vrot.slane %v6816, %v8020
        %8023 = vbcast.lane.b32.xlu0 %v8021, 256
        %v8024 = vpop.permute.xlu0 %8023
        %s8026 = sor.u32 256, 8
        %8027 = vbcast.lane.b32.xlu0 %v8021, %s8026
        %v8028 = vpop.permute.xlu0 %8027
        %v8029 = vlaneseq
        %v8030 = vshrl.u32 %v8029, 7
        %v8031 = vsub.s32 6, %v8030
        %v8032 = vrot.slane %v6816, %v8031
        %8034 = vbcast.lane.b32.xlu0 %v8032, 256
        %v8035 = vpop.permute.xlu0 %8034
        %s8037 = sor.u32 256, 8
        %8038 = vbcast.lane.b32.xlu0 %v8032, %s8037
        %v8039 = vpop.permute.xlu0 %8038
        %v8040 = vlaneseq
        %v8041 = vshrl.u32 %v8040, 7
        %v8042 = vsub.s32 7, %v8041
        %v8043 = vrot.slane %v6816, %v8042
        %8045 = vbcast.lane.b32.xlu0 %v8043, 256
        %v8046 = vpop.permute.xlu0 %8045
        %s8048 = sor.u32 256, 8
        %8049 = vbcast.lane.b32.xlu0 %v8043, %s8048
        %v8050 = vpop.permute.xlu0 %8049
        %v8051 = vlaneseq
        %v8052 = vshrl.u32 %v8051, 7
        %v8053 = vsub.s32 0, %v8052
        %v8054 = vrot.slane %v6817, %v8053
        %8056 = vbcast.lane.b32.xlu0 %v8054, 256
        %v8057 = vpop.permute.xlu0 %8056
        %s8059 = sor.u32 256, 8
        %8060 = vbcast.lane.b32.xlu0 %v8054, %s8059
        %v8061 = vpop.permute.xlu0 %8060
        %v8062 = vlaneseq
        %v8063 = vshrl.u32 %v8062, 7
        %v8064 = vsub.s32 1, %v8063
        %v8065 = vrot.slane %v6817, %v8064
        %8067 = vbcast.lane.b32.xlu0 %v8065, 256
        %v8068 = vpop.permute.xlu0 %8067
        %s8070 = sor.u32 256, 8
        %8071 = vbcast.lane.b32.xlu0 %v8065, %s8070
        %v8072 = vpop.permute.xlu0 %8071
        %v8073 = vlaneseq
        %v8074 = vshrl.u32 %v8073, 7
        %v8075 = vsub.s32 2, %v8074
        %v8076 = vrot.slane %v6817, %v8075
        %8078 = vbcast.lane.b32.xlu0 %v8076, 256
        %v8079 = vpop.permute.xlu0 %8078
        %s8081 = sor.u32 256, 8
        %8082 = vbcast.lane.b32.xlu0 %v8076, %s8081
        %v8083 = vpop.permute.xlu0 %8082
        %v8084 = vlaneseq
        %v8085 = vshrl.u32 %v8084, 7
        %v8086 = vsub.s32 3, %v8085
        %v8087 = vrot.slane %v6817, %v8086
        %8089 = vbcast.lane.b32.xlu0 %v8087, 256
        %v8090 = vpop.permute.xlu0 %8089
        %s8092 = sor.u32 256, 8
        %8093 = vbcast.lane.b32.xlu0 %v8087, %s8092
        %v8094 = vpop.permute.xlu0 %8093
        %v8095 = vlaneseq
        %v8096 = vshrl.u32 %v8095, 7
        %v8097 = vsub.s32 4, %v8096
        %v8098 = vrot.slane %v6817, %v8097
        %8100 = vbcast.lane.b32.xlu0 %v8098, 256
        %v8101 = vpop.permute.xlu0 %8100
        %s8103 = sor.u32 256, 8
        %8104 = vbcast.lane.b32.xlu0 %v8098, %s8103
        %v8105 = vpop.permute.xlu0 %8104
        %v8106 = vlaneseq
        %v8107 = vshrl.u32 %v8106, 7
        %v8108 = vsub.s32 5, %v8107
        %v8109 = vrot.slane %v6817, %v8108
        %8111 = vbcast.lane.b32.xlu0 %v8109, 256
        %v8112 = vpop.permute.xlu0 %8111
        %s8114 = sor.u32 256, 8
        %8115 = vbcast.lane.b32.xlu0 %v8109, %s8114
        %v8116 = vpop.permute.xlu0 %8115
        %v8117 = vlaneseq
        %v8118 = vshrl.u32 %v8117, 7
        %v8119 = vsub.s32 6, %v8118
        %v8120 = vrot.slane %v6817, %v8119
        %8122 = vbcast.lane.b32.xlu0 %v8120, 256
        %v8123 = vpop.permute.xlu0 %8122
        %s8125 = sor.u32 256, 8
        %8126 = vbcast.lane.b32.xlu0 %v8120, %s8125
        %v8127 = vpop.permute.xlu0 %8126
        %v8128 = vlaneseq
        %v8129 = vshrl.u32 %v8128, 7
        %v8130 = vsub.s32 7, %v8129
        %v8131 = vrot.slane %v6817, %v8130
        %8133 = vbcast.lane.b32.xlu0 %v8131, 256
        %v8134 = vpop.permute.xlu0 %8133
        %s8136 = sor.u32 256, 8
        %8137 = vbcast.lane.b32.xlu0 %v8131, %s8136
        %v8138 = vpop.permute.xlu0 %8137
        %v8139 = vlaneseq
        %v8140 = vshrl.u32 %v8139, 7
        %v8141 = vsub.s32 0, %v8140
        %v8142 = vrot.slane %v6818, %v8141
        %8144 = vbcast.lane.b32.xlu0 %v8142, 256
        %v8145 = vpop.permute.xlu0 %8144
        %s8147 = sor.u32 256, 8
        %8148 = vbcast.lane.b32.xlu0 %v8142, %s8147
        %v8149 = vpop.permute.xlu0 %8148
        %v8150 = vlaneseq
        %v8151 = vshrl.u32 %v8150, 7
        %v8152 = vsub.s32 1, %v8151
        %v8153 = vrot.slane %v6818, %v8152
        %8155 = vbcast.lane.b32.xlu0 %v8153, 256
        %v8156 = vpop.permute.xlu0 %8155
        %s8158 = sor.u32 256, 8
        %8159 = vbcast.lane.b32.xlu0 %v8153, %s8158
        %v8160 = vpop.permute.xlu0 %8159
        %v8161 = vlaneseq
        %v8162 = vshrl.u32 %v8161, 7
        %v8163 = vsub.s32 2, %v8162
        %v8164 = vrot.slane %v6818, %v8163
        %8166 = vbcast.lane.b32.xlu0 %v8164, 256
        %v8167 = vpop.permute.xlu0 %8166
        %s8169 = sor.u32 256, 8
        %8170 = vbcast.lane.b32.xlu0 %v8164, %s8169
        %v8171 = vpop.permute.xlu0 %8170
        %v8172 = vlaneseq
        %v8173 = vshrl.u32 %v8172, 7
        %v8174 = vsub.s32 3, %v8173
        %v8175 = vrot.slane %v6818, %v8174
        %8177 = vbcast.lane.b32.xlu0 %v8175, 256
        %v8178 = vpop.permute.xlu0 %8177
        %s8180 = sor.u32 256, 8
        %8181 = vbcast.lane.b32.xlu0 %v8175, %s8180
        %v8182 = vpop.permute.xlu0 %8181
        %v8183 = vlaneseq
        %v8184 = vshrl.u32 %v8183, 7
        %v8185 = vsub.s32 4, %v8184
        %v8186 = vrot.slane %v6818, %v8185
        %8188 = vbcast.lane.b32.xlu0 %v8186, 256
        %v8189 = vpop.permute.xlu0 %8188
        %s8191 = sor.u32 256, 8
        %8192 = vbcast.lane.b32.xlu0 %v8186, %s8191
        %v8193 = vpop.permute.xlu0 %8192
        %v8194 = vlaneseq
        %v8195 = vshrl.u32 %v8194, 7
        %v8196 = vsub.s32 5, %v8195
        %v8197 = vrot.slane %v6818, %v8196
        %8199 = vbcast.lane.b32.xlu0 %v8197, 256
        %v8200 = vpop.permute.xlu0 %8199
        %s8202 = sor.u32 256, 8
        %8203 = vbcast.lane.b32.xlu0 %v8197, %s8202
        %v8204 = vpop.permute.xlu0 %8203
        %v8205 = vlaneseq
        %v8206 = vshrl.u32 %v8205, 7
        %v8207 = vsub.s32 6, %v8206
        %v8208 = vrot.slane %v6818, %v8207
        %8210 = vbcast.lane.b32.xlu0 %v8208, 256
        %v8211 = vpop.permute.xlu0 %8210
        %s8213 = sor.u32 256, 8
        %8214 = vbcast.lane.b32.xlu0 %v8208, %s8213
        %v8215 = vpop.permute.xlu0 %8214
        %v8216 = vlaneseq
        %v8217 = vshrl.u32 %v8216, 7
        %v8218 = vsub.s32 7, %v8217
        %v8219 = vrot.slane %v6818, %v8218
        %8221 = vbcast.lane.b32.xlu0 %v8219, 256
        %v8222 = vpop.permute.xlu0 %8221
        %s8224 = sor.u32 256, 8
        %8225 = vbcast.lane.b32.xlu0 %v8219, %s8224
        %v8226 = vpop.permute.xlu0 %8225
        %v8227 = vmul.f32 %v6825, %v1067
        %v8228 = vmul.f32 %v6829, %v1073
        %v8229 = vmul.f32 %v6836, %v1079
        %v8230 = vmul.f32 %v6840, %v1085
        %v8231 = vmul.f32 %v6847, %v1091
        %v8232 = vmul.f32 %v6851, %v1097
        %v8233 = vmul.f32 %v6858, %v1103
        %v8234 = vmul.f32 %v6862, %v1109
        %v8235 = vmul.f32 %v6869, %v1115
        %v8236 = vmul.f32 %v6873, %v1121
        %v8237 = vmul.f32 %v6880, %v1127
        %v8238 = vmul.f32 %v6884, %v1133
        %v8239 = vmul.f32 %v6891, %v1139
        %v8240 = vmul.f32 %v6895, %v1145
        %v8241 = vmul.f32 %v6902, %v1151
        %v8242 = vmul.f32 %v6906, %v1157
        %v8243 = vmul.f32 %v6913, %v1163
        %v8244 = vmul.f32 %v6917, %v1169
        %v8245 = vmul.f32 %v6924, %v1175
        %v8246 = vmul.f32 %v6928, %v1181
        %v8247 = vmul.f32 %v6935, %v1187
        %v8248 = vmul.f32 %v6939, %v1193
        %v8249 = vmul.f32 %v6946, %v1199
        %v8250 = vmul.f32 %v6950, %v1205
        %v8251 = vmul.f32 %v6957, %v1211
        %v8252 = vmul.f32 %v6961, %v1217
        %v8253 = vmul.f32 %v6968, %v1223
        %v8254 = vmul.f32 %v6972, %v1229
        %v8255 = vmul.f32 %v6979, %v1235
        %v8256 = vmul.f32 %v6983, %v1241
        %v8257 = vmul.f32 %v6990, %v1247
        %v8258 = vmul.f32 %v6994, %v1253
        %v8259 = vmul.f32 %v7001, %v1259
        %v8260 = vmul.f32 %v7005, %v1265
        %v8261 = vmul.f32 %v7012, %v1271
        %v8262 = vmul.f32 %v7016, %v1277
        %v8263 = vmul.f32 %v7023, %v1283
        %v8264 = vmul.f32 %v7027, %v1289
        %v8265 = vmul.f32 %v7034, %v1295
        %v8266 = vmul.f32 %v7038, %v1301
        %v8267 = vmul.f32 %v7045, %v1307
        %v8268 = vmul.f32 %v7049, %v1313
        %v8269 = vmul.f32 %v7056, %v1319
        %v8270 = vmul.f32 %v7060, %v1325
        %v8271 = vmul.f32 %v7067, %v1331
        %v8272 = vmul.f32 %v7071, %v1337
        %v8273 = vmul.f32 %v7078, %v1343
        %v8274 = vmul.f32 %v7082, %v1349
        %v8275 = vmul.f32 %v7089, %v1355
        %v8276 = vmul.f32 %v7093, %v1361
        %v8277 = vmul.f32 %v7100, %v1367
        %v8278 = vmul.f32 %v7104, %v1373
        %v8279 = vmul.f32 %v7111, %v1379
        %v8280 = vmul.f32 %v7115, %v1385
        %v8281 = vmul.f32 %v7122, %v1391
        %v8282 = vmul.f32 %v7126, %v1397
        %v8283 = vmul.f32 %v7133, %v1403
        %v8284 = vmul.f32 %v7137, %v1409
        %v8285 = vmul.f32 %v7144, %v1415
        %v8286 = vmul.f32 %v7148, %v1421
        %v8287 = vmul.f32 %v7155, %v1427
        %v8288 = vmul.f32 %v7159, %v1433
        %v8289 = vmul.f32 %v7166, %v1439
        %v8290 = vmul.f32 %v7170, %v1445
        %v8291 = vmul.f32 %v7177, %v1451
        %v8292 = vmul.f32 %v7181, %v1457
        %v8293 = vmul.f32 %v7188, %v1463
        %v8294 = vmul.f32 %v7192, %v1469
        %v8295 = vmul.f32 %v7199, %v1475
        %v8296 = vmul.f32 %v7203, %v1481
        %v8297 = vmul.f32 %v7210, %v1487
        %v8298 = vmul.f32 %v7214, %v1493
        %v8299 = vmul.f32 %v7221, %v1499
        %v8300 = vmul.f32 %v7225, %v1505
        %v8301 = vmul.f32 %v7232, %v1511
        %v8302 = vmul.f32 %v7236, %v1517
        %v8303 = vmul.f32 %v7243, %v1523
        %v8304 = vmul.f32 %v7247, %v1529
        %v8305 = vmul.f32 %v7254, %v1535
        %v8306 = vmul.f32 %v7258, %v1541
        %v8307 = vmul.f32 %v7265, %v1547
        %v8308 = vmul.f32 %v7269, %v1553
        %v8309 = vmul.f32 %v7276, %v1559
        %v8310 = vmul.f32 %v7280, %v1565
        %v8311 = vmul.f32 %v7287, %v1571
        %v8312 = vmul.f32 %v7291, %v1577
        %v8313 = vmul.f32 %v7298, %v1583
        %v8314 = vmul.f32 %v7302, %v1589
        %v8315 = vmul.f32 %v7309, %v1595
        %v8316 = vmul.f32 %v7313, %v1601
        %v8317 = vmul.f32 %v7320, %v1607
        %v8318 = vmul.f32 %v7324, %v1613
        %v8319 = vmul.f32 %v7331, %v1619
        %v8320 = vmul.f32 %v7335, %v1625
        %v8321 = vmul.f32 %v7342, %v1631
        %v8322 = vmul.f32 %v7346, %v1637
        %v8323 = vmul.f32 %v7353, %v1643
        %v8324 = vmul.f32 %v7357, %v1649
        %v8325 = vmul.f32 %v7364, %v1655
        %v8326 = vmul.f32 %v7368, %v1661
        %v8327 = vmul.f32 %v7375, %v1667
        %v8328 = vmul.f32 %v7379, %v1673
        %v8329 = vmul.f32 %v7386, %v1679
        %v8330 = vmul.f32 %v7390, %v1685
        %v8331 = vmul.f32 %v7397, %v1691
        %v8332 = vmul.f32 %v7401, %v1697
        %v8333 = vmul.f32 %v7408, %v1703
        %v8334 = vmul.f32 %v7412, %v1709
        %v8335 = vmul.f32 %v7419, %v1715
        %v8336 = vmul.f32 %v7423, %v1721
        %v8337 = vmul.f32 %v7430, %v1727
        %v8338 = vmul.f32 %v7434, %v1733
        %v8339 = vmul.f32 %v7441, %v1739
        %v8340 = vmul.f32 %v7445, %v1745
        %v8341 = vmul.f32 %v7452, %v1751
        %v8342 = vmul.f32 %v7456, %v1757
        %v8343 = vmul.f32 %v7463, %v1763
        %v8344 = vmul.f32 %v7467, %v1769
        %v8345 = vmul.f32 %v7474, %v1775
        %v8346 = vmul.f32 %v7478, %v1781
        %v8347 = vmul.f32 %v7485, %v1787
        %v8348 = vmul.f32 %v7489, %v1793
        %v8349 = vmul.f32 %v7496, %v1799
        %v8350 = vmul.f32 %v7500, %v1805
        %v8351 = vmul.f32 %v7507, %v1811
        %v8352 = vmul.f32 %v7511, %v1817
        %v8353 = vmul.f32 %v7518, %v1823
        %v8354 = vmul.f32 %v7522, %v1829
        %v8355 = vmul.f32 %v7529, %v1835
        %v8356 = vmul.f32 %v7533, %v1841
        %v8357 = vmul.f32 %v7540, %v1847
        %v8358 = vmul.f32 %v7544, %v1853
        %v8359 = vmul.f32 %v7551, %v1859
        %v8360 = vmul.f32 %v7555, %v1865
        %v8361 = vmul.f32 %v7562, %v1871
        %v8362 = vmul.f32 %v7566, %v1877
        %v8363 = vmul.f32 %v7573, %v1883
        %v8364 = vmul.f32 %v7577, %v1889
        %v8365 = vmul.f32 %v7584, %v1895
        %v8366 = vmul.f32 %v7588, %v1901
        %v8367 = vmul.f32 %v7595, %v1907
        %v8368 = vmul.f32 %v7599, %v1913
        %v8369 = vmul.f32 %v7606, %v1919
        %v8370 = vmul.f32 %v7610, %v1925
        %v8371 = vmul.f32 %v7617, %v1931
        %v8372 = vmul.f32 %v7621, %v1937
        %v8373 = vmul.f32 %v7628, %v1943
        %v8374 = vmul.f32 %v7632, %v1949
        %v8375 = vmul.f32 %v7639, %v1955
        %v8376 = vmul.f32 %v7643, %v1961
        %v8377 = vmul.f32 %v7650, %v1967
        %v8378 = vmul.f32 %v7654, %v1973
        %v8379 = vmul.f32 %v7661, %v1979
        %v8380 = vmul.f32 %v7665, %v1985
        %v8381 = vmul.f32 %v7672, %v1991
        %v8382 = vmul.f32 %v7676, %v1997
        %v8383 = vmul.f32 %v7683, %v2003
        %v8384 = vmul.f32 %v7687, %v2009
        %v8385 = vmul.f32 %v7694, %v2015
        %v8386 = vmul.f32 %v7698, %v2021
        %v8387 = vmul.f32 %v7705, %v2027
        %v8388 = vmul.f32 %v7709, %v2033
        %v8389 = vmul.f32 %v7716, %v2039
        %v8390 = vmul.f32 %v7720, %v2045
        %v8391 = vmul.f32 %v7727, %v2051
        %v8392 = vmul.f32 %v7731, %v2057
        %v8393 = vmul.f32 %v7738, %v2063
        %v8394 = vmul.f32 %v7742, %v2069
        %v8395 = vmul.f32 %v7749, %v2075
        %v8396 = vmul.f32 %v7753, %v2081
        %v8397 = vmul.f32 %v7760, %v2087
        %v8398 = vmul.f32 %v7764, %v2093
        %v8399 = vmul.f32 %v7771, %v2099
        %v8400 = vmul.f32 %v7775, %v2105
        %v8401 = vmul.f32 %v7782, %v2111
        %v8402 = vmul.f32 %v7786, %v2117
        %v8403 = vmul.f32 %v7793, %v2123
        %v8404 = vmul.f32 %v7797, %v2129
        %v8405 = vmul.f32 %v7804, %v2135
        %v8406 = vmul.f32 %v7808, %v2141
        %v8407 = vmul.f32 %v7815, %v2147
        %v8408 = vmul.f32 %v7819, %v2153
        %v8409 = vmul.f32 %v7826, %v2159
        %v8410 = vmul.f32 %v7830, %v2165
        %v8411 = vmul.f32 %v7837, %v2171
        %v8412 = vmul.f32 %v7841, %v2177
        %v8413 = vmul.f32 %v7848, %v2183
        %v8414 = vmul.f32 %v7852, %v2189
        %v8415 = vmul.f32 %v7859, %v2195
        %v8416 = vmul.f32 %v7863, %v2201
        %v8417 = vmul.f32 %v7870, %v2207
        %v8418 = vmul.f32 %v7874, %v2213
        %v8419 = vmul.f32 %v7881, %v2219
        %v8420 = vmul.f32 %v7885, %v2225
        %v8421 = vmul.f32 %v7892, %v2231
        %v8422 = vmul.f32 %v7896, %v2237
        %v8423 = vmul.f32 %v7903, %v2243
        %v8424 = vmul.f32 %v7907, %v2249
        %v8425 = vmul.f32 %v7914, %v2255
        %v8426 = vmul.f32 %v7918, %v2261
        %v8427 = vmul.f32 %v7925, %v2267
        %v8428 = vmul.f32 %v7929, %v2273
        %v8429 = vmul.f32 %v7936, %v2279
        %v8430 = vmul.f32 %v7940, %v2285
        %v8431 = vmul.f32 %v7947, %v2291
        %v8432 = vmul.f32 %v7951, %v2297
        %v8433 = vmul.f32 %v7958, %v2303
        %v8434 = vmul.f32 %v7962, %v2309
        %v8435 = vmul.f32 %v7969, %v2315
        %v8436 = vmul.f32 %v7973, %v2321
        %v8437 = vmul.f32 %v7980, %v2327
        %v8438 = vmul.f32 %v7984, %v2333
        %v8439 = vmul.f32 %v7991, %v2339
        %v8440 = vmul.f32 %v7995, %v2345
        %v8441 = vmul.f32 %v8002, %v2351
        %v8442 = vmul.f32 %v8006, %v2357
        %v8443 = vmul.f32 %v8013, %v2363
        %v8444 = vmul.f32 %v8017, %v2369
        %v8445 = vmul.f32 %v8024, %v2375
        %v8446 = vmul.f32 %v8028, %v2381
        %v8447 = vmul.f32 %v8035, %v2387
        %v8448 = vmul.f32 %v8039, %v2393
        %v8449 = vmul.f32 %v8046, %v2399
        %v8450 = vmul.f32 %v8050, %v2405
        %v8451 = vmul.f32 %v8057, %v2411
        %v8452 = vmul.f32 %v8061, %v2417
        %v8453 = vmul.f32 %v8068, %v2423
        %v8454 = vmul.f32 %v8072, %v2429
        %v8455 = vmul.f32 %v8079, %v2435
        %v8456 = vmul.f32 %v8083, %v2441
        %v8457 = vmul.f32 %v8090, %v2447
        %v8458 = vmul.f32 %v8094, %v2453
        %v8459 = vmul.f32 %v8101, %v2459
        %v8460 = vmul.f32 %v8105, %v2465
        %v8461 = vmul.f32 %v8112, %v2471
        %v8462 = vmul.f32 %v8116, %v2477
        %v8463 = vmul.f32 %v8123, %v2483
        %v8464 = vmul.f32 %v8127, %v2489
        %v8465 = vmul.f32 %v8134, %v2495
        %v8466 = vmul.f32 %v8138, %v2501
        %v8467 = vmul.f32 %v8145, %v2507
        %v8468 = vmul.f32 %v8149, %v2513
        %v8469 = vmul.f32 %v8156, %v2519
        %v8470 = vmul.f32 %v8160, %v2525
        %v8471 = vmul.f32 %v8167, %v2531
        %v8472 = vmul.f32 %v8171, %v2537
        %v8473 = vmul.f32 %v8178, %v2543
        %v8474 = vmul.f32 %v8182, %v2549
        %v8475 = vmul.f32 %v8189, %v2555
        %v8476 = vmul.f32 %v8193, %v2561
        %v8477 = vmul.f32 %v8200, %v2567
        %v8478 = vmul.f32 %v8204, %v2573
        %v8479 = vmul.f32 %v8211, %v2579
        %v8480 = vmul.f32 %v8215, %v2585
        %v8481 = vmul.f32 %v8222, %v2591
        %v8482 = vmul.f32 %v8226, %v2597
        %v8483 = vadd.f32 %v8227, %v8228
        %v8484 = vrot.slane %v8483, 4
        %v8485 = vadd.f32 %v8483, %v8484
        %v8486 = vrot.slane %v8485, 2
        %v8487 = vadd.f32 %v8485, %v8486
        %v8488 = vrot.slane %v8487, 1
        %v8489 = vadd.f32 %v8487, %v8488
        %v8490 = vadd.f32 %v8229, %v8230
        %v8491 = vrot.slane %v8490, 4
        %v8492 = vadd.f32 %v8490, %v8491
        %v8493 = vrot.slane %v8492, 2
        %v8494 = vadd.f32 %v8492, %v8493
        %v8495 = vrot.slane %v8494, 1
        %v8496 = vadd.f32 %v8494, %v8495
        %v8497 = vadd.f32 %v8231, %v8232
        %v8498 = vrot.slane %v8497, 4
        %v8499 = vadd.f32 %v8497, %v8498
        %v8500 = vrot.slane %v8499, 2
        %v8501 = vadd.f32 %v8499, %v8500
        %v8502 = vrot.slane %v8501, 1
        %v8503 = vadd.f32 %v8501, %v8502
        %v8504 = vadd.f32 %v8233, %v8234
        %v8505 = vrot.slane %v8504, 4
        %v8506 = vadd.f32 %v8504, %v8505
        %v8507 = vrot.slane %v8506, 2
        %v8508 = vadd.f32 %v8506, %v8507
        %v8509 = vrot.slane %v8508, 1
        %v8510 = vadd.f32 %v8508, %v8509
        %v8511 = vadd.f32 %v8235, %v8236
        %v8512 = vrot.slane %v8511, 4
        %v8513 = vadd.f32 %v8511, %v8512
        %v8514 = vrot.slane %v8513, 2
        %v8515 = vadd.f32 %v8513, %v8514
        %v8516 = vrot.slane %v8515, 1
        %v8517 = vadd.f32 %v8515, %v8516
        %v8518 = vadd.f32 %v8237, %v8238
        %v8519 = vrot.slane %v8518, 4
        %v8520 = vadd.f32 %v8518, %v8519
        %v8521 = vrot.slane %v8520, 2
        %v8522 = vadd.f32 %v8520, %v8521
        %v8523 = vrot.slane %v8522, 1
        %v8524 = vadd.f32 %v8522, %v8523
        %v8525 = vadd.f32 %v8239, %v8240
        %v8526 = vrot.slane %v8525, 4
        %v8527 = vadd.f32 %v8525, %v8526
        %v8528 = vrot.slane %v8527, 2
        %v8529 = vadd.f32 %v8527, %v8528
        %v8530 = vrot.slane %v8529, 1
        %v8531 = vadd.f32 %v8529, %v8530
        %v8532 = vadd.f32 %v8241, %v8242
        %v8533 = vrot.slane %v8532, 4
        %v8534 = vadd.f32 %v8532, %v8533
        %v8535 = vrot.slane %v8534, 2
        %v8536 = vadd.f32 %v8534, %v8535
        %v8537 = vrot.slane %v8536, 1
        %v8538 = vadd.f32 %v8536, %v8537
        %v8539 = vadd.f32 %v8243, %v8244
        %v8540 = vrot.slane %v8539, 4
        %v8541 = vadd.f32 %v8539, %v8540
        %v8542 = vrot.slane %v8541, 2
        %v8543 = vadd.f32 %v8541, %v8542
        %v8544 = vrot.slane %v8543, 1
        %v8545 = vadd.f32 %v8543, %v8544
        %v8546 = vadd.f32 %v8245, %v8246
        %v8547 = vrot.slane %v8546, 4
        %v8548 = vadd.f32 %v8546, %v8547
        %v8549 = vrot.slane %v8548, 2
        %v8550 = vadd.f32 %v8548, %v8549
        %v8551 = vrot.slane %v8550, 1
        %v8552 = vadd.f32 %v8550, %v8551
        %v8553 = vadd.f32 %v8247, %v8248
        %v8554 = vrot.slane %v8553, 4
        %v8555 = vadd.f32 %v8553, %v8554
        %v8556 = vrot.slane %v8555, 2
        %v8557 = vadd.f32 %v8555, %v8556
        %v8558 = vrot.slane %v8557, 1
        %v8559 = vadd.f32 %v8557, %v8558
        %v8560 = vadd.f32 %v8249, %v8250
        %v8561 = vrot.slane %v8560, 4
        %v8562 = vadd.f32 %v8560, %v8561
        %v8563 = vrot.slane %v8562, 2
        %v8564 = vadd.f32 %v8562, %v8563
        %v8565 = vrot.slane %v8564, 1
        %v8566 = vadd.f32 %v8564, %v8565
        %v8567 = vadd.f32 %v8251, %v8252
        %v8568 = vrot.slane %v8567, 4
        %v8569 = vadd.f32 %v8567, %v8568
        %v8570 = vrot.slane %v8569, 2
        %v8571 = vadd.f32 %v8569, %v8570
        %v8572 = vrot.slane %v8571, 1
        %v8573 = vadd.f32 %v8571, %v8572
        %v8574 = vadd.f32 %v8253, %v8254
        %v8575 = vrot.slane %v8574, 4
        %v8576 = vadd.f32 %v8574, %v8575
        %v8577 = vrot.slane %v8576, 2
        %v8578 = vadd.f32 %v8576, %v8577
        %v8579 = vrot.slane %v8578, 1
        %v8580 = vadd.f32 %v8578, %v8579
        %v8581 = vadd.f32 %v8255, %v8256
        %v8582 = vrot.slane %v8581, 4
        %v8583 = vadd.f32 %v8581, %v8582
        %v8584 = vrot.slane %v8583, 2
        %v8585 = vadd.f32 %v8583, %v8584
        %v8586 = vrot.slane %v8585, 1
        %v8587 = vadd.f32 %v8585, %v8586
        %v8588 = vadd.f32 %v8257, %v8258
        %v8589 = vrot.slane %v8588, 4
        %v8590 = vadd.f32 %v8588, %v8589
        %v8591 = vrot.slane %v8590, 2
        %v8592 = vadd.f32 %v8590, %v8591
        %v8593 = vrot.slane %v8592, 1
        %v8594 = vadd.f32 %v8592, %v8593
        %v8595 = vadd.f32 %v8259, %v8260
        %v8596 = vrot.slane %v8595, 4
        %v8597 = vadd.f32 %v8595, %v8596
        %v8598 = vrot.slane %v8597, 2
        %v8599 = vadd.f32 %v8597, %v8598
        %v8600 = vrot.slane %v8599, 1
        %v8601 = vadd.f32 %v8599, %v8600
        %v8602 = vadd.f32 %v8261, %v8262
        %v8603 = vrot.slane %v8602, 4
        %v8604 = vadd.f32 %v8602, %v8603
        %v8605 = vrot.slane %v8604, 2
        %v8606 = vadd.f32 %v8604, %v8605
        %v8607 = vrot.slane %v8606, 1
        %v8608 = vadd.f32 %v8606, %v8607
        %v8609 = vadd.f32 %v8263, %v8264
        %v8610 = vrot.slane %v8609, 4
        %v8611 = vadd.f32 %v8609, %v8610
        %v8612 = vrot.slane %v8611, 2
        %v8613 = vadd.f32 %v8611, %v8612
        %v8614 = vrot.slane %v8613, 1
        %v8615 = vadd.f32 %v8613, %v8614
        %v8616 = vadd.f32 %v8265, %v8266
        %v8617 = vrot.slane %v8616, 4
        %v8618 = vadd.f32 %v8616, %v8617
        %v8619 = vrot.slane %v8618, 2
        %v8620 = vadd.f32 %v8618, %v8619
        %v8621 = vrot.slane %v8620, 1
        %v8622 = vadd.f32 %v8620, %v8621
        %v8623 = vadd.f32 %v8267, %v8268
        %v8624 = vrot.slane %v8623, 4
        %v8625 = vadd.f32 %v8623, %v8624
        %v8626 = vrot.slane %v8625, 2
        %v8627 = vadd.f32 %v8625, %v8626
        %v8628 = vrot.slane %v8627, 1
        %v8629 = vadd.f32 %v8627, %v8628
        %v8630 = vadd.f32 %v8269, %v8270
        %v8631 = vrot.slane %v8630, 4
        %v8632 = vadd.f32 %v8630, %v8631
        %v8633 = vrot.slane %v8632, 2
        %v8634 = vadd.f32 %v8632, %v8633
        %v8635 = vrot.slane %v8634, 1
        %v8636 = vadd.f32 %v8634, %v8635
        %v8637 = vadd.f32 %v8271, %v8272
        %v8638 = vrot.slane %v8637, 4
        %v8639 = vadd.f32 %v8637, %v8638
        %v8640 = vrot.slane %v8639, 2
        %v8641 = vadd.f32 %v8639, %v8640
        %v8642 = vrot.slane %v8641, 1
        %v8643 = vadd.f32 %v8641, %v8642
        %v8644 = vadd.f32 %v8273, %v8274
        %v8645 = vrot.slane %v8644, 4
        %v8646 = vadd.f32 %v8644, %v8645
        %v8647 = vrot.slane %v8646, 2
        %v8648 = vadd.f32 %v8646, %v8647
        %v8649 = vrot.slane %v8648, 1
        %v8650 = vadd.f32 %v8648, %v8649
        %v8651 = vadd.f32 %v8275, %v8276
        %v8652 = vrot.slane %v8651, 4
        %v8653 = vadd.f32 %v8651, %v8652
        %v8654 = vrot.slane %v8653, 2
        %v8655 = vadd.f32 %v8653, %v8654
        %v8656 = vrot.slane %v8655, 1
        %v8657 = vadd.f32 %v8655, %v8656
        %v8658 = vadd.f32 %v8277, %v8278
        %v8659 = vrot.slane %v8658, 4
        %v8660 = vadd.f32 %v8658, %v8659
        %v8661 = vrot.slane %v8660, 2
        %v8662 = vadd.f32 %v8660, %v8661
        %v8663 = vrot.slane %v8662, 1
        %v8664 = vadd.f32 %v8662, %v8663
        %v8665 = vadd.f32 %v8279, %v8280
        %v8666 = vrot.slane %v8665, 4
        %v8667 = vadd.f32 %v8665, %v8666
        %v8668 = vrot.slane %v8667, 2
        %v8669 = vadd.f32 %v8667, %v8668
        %v8670 = vrot.slane %v8669, 1
        %v8671 = vadd.f32 %v8669, %v8670
        %v8672 = vadd.f32 %v8281, %v8282
        %v8673 = vrot.slane %v8672, 4
        %v8674 = vadd.f32 %v8672, %v8673
        %v8675 = vrot.slane %v8674, 2
        %v8676 = vadd.f32 %v8674, %v8675
        %v8677 = vrot.slane %v8676, 1
        %v8678 = vadd.f32 %v8676, %v8677
        %v8679 = vadd.f32 %v8283, %v8284
        %v8680 = vrot.slane %v8679, 4
        %v8681 = vadd.f32 %v8679, %v8680
        %v8682 = vrot.slane %v8681, 2
        %v8683 = vadd.f32 %v8681, %v8682
        %v8684 = vrot.slane %v8683, 1
        %v8685 = vadd.f32 %v8683, %v8684
        %v8686 = vadd.f32 %v8285, %v8286
        %v8687 = vrot.slane %v8686, 4
        %v8688 = vadd.f32 %v8686, %v8687
        %v8689 = vrot.slane %v8688, 2
        %v8690 = vadd.f32 %v8688, %v8689
        %v8691 = vrot.slane %v8690, 1
        %v8692 = vadd.f32 %v8690, %v8691
        %v8693 = vadd.f32 %v8287, %v8288
        %v8694 = vrot.slane %v8693, 4
        %v8695 = vadd.f32 %v8693, %v8694
        %v8696 = vrot.slane %v8695, 2
        %v8697 = vadd.f32 %v8695, %v8696
        %v8698 = vrot.slane %v8697, 1
        %v8699 = vadd.f32 %v8697, %v8698
        %v8700 = vadd.f32 %v8289, %v8290
        %v8701 = vrot.slane %v8700, 4
        %v8702 = vadd.f32 %v8700, %v8701
        %v8703 = vrot.slane %v8702, 2
        %v8704 = vadd.f32 %v8702, %v8703
        %v8705 = vrot.slane %v8704, 1
        %v8706 = vadd.f32 %v8704, %v8705
        %v8707 = vadd.f32 %v8291, %v8292
        %v8708 = vrot.slane %v8707, 4
        %v8709 = vadd.f32 %v8707, %v8708
        %v8710 = vrot.slane %v8709, 2
        %v8711 = vadd.f32 %v8709, %v8710
        %v8712 = vrot.slane %v8711, 1
        %v8713 = vadd.f32 %v8711, %v8712
        %v8714 = vadd.f32 %v8293, %v8294
        %v8715 = vrot.slane %v8714, 4
        %v8716 = vadd.f32 %v8714, %v8715
        %v8717 = vrot.slane %v8716, 2
        %v8718 = vadd.f32 %v8716, %v8717
        %v8719 = vrot.slane %v8718, 1
        %v8720 = vadd.f32 %v8718, %v8719
        %v8721 = vadd.f32 %v8295, %v8296
        %v8722 = vrot.slane %v8721, 4
        %v8723 = vadd.f32 %v8721, %v8722
        %v8724 = vrot.slane %v8723, 2
        %v8725 = vadd.f32 %v8723, %v8724
        %v8726 = vrot.slane %v8725, 1
        %v8727 = vadd.f32 %v8725, %v8726
        %v8728 = vadd.f32 %v8297, %v8298
        %v8729 = vrot.slane %v8728, 4
        %v8730 = vadd.f32 %v8728, %v8729
        %v8731 = vrot.slane %v8730, 2
        %v8732 = vadd.f32 %v8730, %v8731
        %v8733 = vrot.slane %v8732, 1
        %v8734 = vadd.f32 %v8732, %v8733
        %v8735 = vadd.f32 %v8299, %v8300
        %v8736 = vrot.slane %v8735, 4
        %v8737 = vadd.f32 %v8735, %v8736
        %v8738 = vrot.slane %v8737, 2
        %v8739 = vadd.f32 %v8737, %v8738
        %v8740 = vrot.slane %v8739, 1
        %v8741 = vadd.f32 %v8739, %v8740
        %v8742 = vadd.f32 %v8301, %v8302
        %v8743 = vrot.slane %v8742, 4
        %v8744 = vadd.f32 %v8742, %v8743
        %v8745 = vrot.slane %v8744, 2
        %v8746 = vadd.f32 %v8744, %v8745
        %v8747 = vrot.slane %v8746, 1
        %v8748 = vadd.f32 %v8746, %v8747
        %v8749 = vadd.f32 %v8303, %v8304
        %v8750 = vrot.slane %v8749, 4
        %v8751 = vadd.f32 %v8749, %v8750
        %v8752 = vrot.slane %v8751, 2
        %v8753 = vadd.f32 %v8751, %v8752
        %v8754 = vrot.slane %v8753, 1
        %v8755 = vadd.f32 %v8753, %v8754
        %v8756 = vadd.f32 %v8305, %v8306
        %v8757 = vrot.slane %v8756, 4
        %v8758 = vadd.f32 %v8756, %v8757
        %v8759 = vrot.slane %v8758, 2
        %v8760 = vadd.f32 %v8758, %v8759
        %v8761 = vrot.slane %v8760, 1
        %v8762 = vadd.f32 %v8760, %v8761
        %v8763 = vadd.f32 %v8307, %v8308
        %v8764 = vrot.slane %v8763, 4
        %v8765 = vadd.f32 %v8763, %v8764
        %v8766 = vrot.slane %v8765, 2
        %v8767 = vadd.f32 %v8765, %v8766
        %v8768 = vrot.slane %v8767, 1
        %v8769 = vadd.f32 %v8767, %v8768
        %v8770 = vadd.f32 %v8309, %v8310
        %v8771 = vrot.slane %v8770, 4
        %v8772 = vadd.f32 %v8770, %v8771
        %v8773 = vrot.slane %v8772, 2
        %v8774 = vadd.f32 %v8772, %v8773
        %v8775 = vrot.slane %v8774, 1
        %v8776 = vadd.f32 %v8774, %v8775
        %v8777 = vadd.f32 %v8311, %v8312
        %v8778 = vrot.slane %v8777, 4
        %v8779 = vadd.f32 %v8777, %v8778
        %v8780 = vrot.slane %v8779, 2
        %v8781 = vadd.f32 %v8779, %v8780
        %v8782 = vrot.slane %v8781, 1
        %v8783 = vadd.f32 %v8781, %v8782
        %v8784 = vadd.f32 %v8313, %v8314
        %v8785 = vrot.slane %v8784, 4
        %v8786 = vadd.f32 %v8784, %v8785
        %v8787 = vrot.slane %v8786, 2
        %v8788 = vadd.f32 %v8786, %v8787
        %v8789 = vrot.slane %v8788, 1
        %v8790 = vadd.f32 %v8788, %v8789
        %v8791 = vadd.f32 %v8315, %v8316
        %v8792 = vrot.slane %v8791, 4
        %v8793 = vadd.f32 %v8791, %v8792
        %v8794 = vrot.slane %v8793, 2
        %v8795 = vadd.f32 %v8793, %v8794
        %v8796 = vrot.slane %v8795, 1
        %v8797 = vadd.f32 %v8795, %v8796
        %v8798 = vadd.f32 %v8317, %v8318
        %v8799 = vrot.slane %v8798, 4
        %v8800 = vadd.f32 %v8798, %v8799
        %v8801 = vrot.slane %v8800, 2
        %v8802 = vadd.f32 %v8800, %v8801
        %v8803 = vrot.slane %v8802, 1
        %v8804 = vadd.f32 %v8802, %v8803
        %v8805 = vadd.f32 %v8319, %v8320
        %v8806 = vrot.slane %v8805, 4
        %v8807 = vadd.f32 %v8805, %v8806
        %v8808 = vrot.slane %v8807, 2
        %v8809 = vadd.f32 %v8807, %v8808
        %v8810 = vrot.slane %v8809, 1
        %v8811 = vadd.f32 %v8809, %v8810
        %v8812 = vadd.f32 %v8321, %v8322
        %v8813 = vrot.slane %v8812, 4
        %v8814 = vadd.f32 %v8812, %v8813
        %v8815 = vrot.slane %v8814, 2
        %v8816 = vadd.f32 %v8814, %v8815
        %v8817 = vrot.slane %v8816, 1
        %v8818 = vadd.f32 %v8816, %v8817
        %v8819 = vadd.f32 %v8323, %v8324
        %v8820 = vrot.slane %v8819, 4
        %v8821 = vadd.f32 %v8819, %v8820
        %v8822 = vrot.slane %v8821, 2
        %v8823 = vadd.f32 %v8821, %v8822
        %v8824 = vrot.slane %v8823, 1
        %v8825 = vadd.f32 %v8823, %v8824
        %v8826 = vadd.f32 %v8325, %v8326
        %v8827 = vrot.slane %v8826, 4
        %v8828 = vadd.f32 %v8826, %v8827
        %v8829 = vrot.slane %v8828, 2
        %v8830 = vadd.f32 %v8828, %v8829
        %v8831 = vrot.slane %v8830, 1
        %v8832 = vadd.f32 %v8830, %v8831
        %v8833 = vadd.f32 %v8327, %v8328
        %v8834 = vrot.slane %v8833, 4
        %v8835 = vadd.f32 %v8833, %v8834
        %v8836 = vrot.slane %v8835, 2
        %v8837 = vadd.f32 %v8835, %v8836
        %v8838 = vrot.slane %v8837, 1
        %v8839 = vadd.f32 %v8837, %v8838
        %v8840 = vadd.f32 %v8329, %v8330
        %v8841 = vrot.slane %v8840, 4
        %v8842 = vadd.f32 %v8840, %v8841
        %v8843 = vrot.slane %v8842, 2
        %v8844 = vadd.f32 %v8842, %v8843
        %v8845 = vrot.slane %v8844, 1
        %v8846 = vadd.f32 %v8844, %v8845
        %v8847 = vadd.f32 %v8331, %v8332
        %v8848 = vrot.slane %v8847, 4
        %v8849 = vadd.f32 %v8847, %v8848
        %v8850 = vrot.slane %v8849, 2
        %v8851 = vadd.f32 %v8849, %v8850
        %v8852 = vrot.slane %v8851, 1
        %v8853 = vadd.f32 %v8851, %v8852
        %v8854 = vadd.f32 %v8333, %v8334
        %v8855 = vrot.slane %v8854, 4
        %v8856 = vadd.f32 %v8854, %v8855
        %v8857 = vrot.slane %v8856, 2
        %v8858 = vadd.f32 %v8856, %v8857
        %v8859 = vrot.slane %v8858, 1
        %v8860 = vadd.f32 %v8858, %v8859
        %v8861 = vadd.f32 %v8335, %v8336
        %v8862 = vrot.slane %v8861, 4
        %v8863 = vadd.f32 %v8861, %v8862
        %v8864 = vrot.slane %v8863, 2
        %v8865 = vadd.f32 %v8863, %v8864
        %v8866 = vrot.slane %v8865, 1
        %v8867 = vadd.f32 %v8865, %v8866
        %v8868 = vadd.f32 %v8337, %v8338
        %v8869 = vrot.slane %v8868, 4
        %v8870 = vadd.f32 %v8868, %v8869
        %v8871 = vrot.slane %v8870, 2
        %v8872 = vadd.f32 %v8870, %v8871
        %v8873 = vrot.slane %v8872, 1
        %v8874 = vadd.f32 %v8872, %v8873
        %v8875 = vadd.f32 %v8339, %v8340
        %v8876 = vrot.slane %v8875, 4
        %v8877 = vadd.f32 %v8875, %v8876
        %v8878 = vrot.slane %v8877, 2
        %v8879 = vadd.f32 %v8877, %v8878
        %v8880 = vrot.slane %v8879, 1
        %v8881 = vadd.f32 %v8879, %v8880
        %v8882 = vadd.f32 %v8341, %v8342
        %v8883 = vrot.slane %v8882, 4
        %v8884 = vadd.f32 %v8882, %v8883
        %v8885 = vrot.slane %v8884, 2
        %v8886 = vadd.f32 %v8884, %v8885
        %v8887 = vrot.slane %v8886, 1
        %v8888 = vadd.f32 %v8886, %v8887
        %v8889 = vadd.f32 %v8343, %v8344
        %v8890 = vrot.slane %v8889, 4
        %v8891 = vadd.f32 %v8889, %v8890
        %v8892 = vrot.slane %v8891, 2
        %v8893 = vadd.f32 %v8891, %v8892
        %v8894 = vrot.slane %v8893, 1
        %v8895 = vadd.f32 %v8893, %v8894
        %v8896 = vadd.f32 %v8345, %v8346
        %v8897 = vrot.slane %v8896, 4
        %v8898 = vadd.f32 %v8896, %v8897
        %v8899 = vrot.slane %v8898, 2
        %v8900 = vadd.f32 %v8898, %v8899
        %v8901 = vrot.slane %v8900, 1
        %v8902 = vadd.f32 %v8900, %v8901
        %v8903 = vadd.f32 %v8347, %v8348
        %v8904 = vrot.slane %v8903, 4
        %v8905 = vadd.f32 %v8903, %v8904
        %v8906 = vrot.slane %v8905, 2
        %v8907 = vadd.f32 %v8905, %v8906
        %v8908 = vrot.slane %v8907, 1
        %v8909 = vadd.f32 %v8907, %v8908
        %v8910 = vadd.f32 %v8349, %v8350
        %v8911 = vrot.slane %v8910, 4
        %v8912 = vadd.f32 %v8910, %v8911
        %v8913 = vrot.slane %v8912, 2
        %v8914 = vadd.f32 %v8912, %v8913
        %v8915 = vrot.slane %v8914, 1
        %v8916 = vadd.f32 %v8914, %v8915
        %v8917 = vadd.f32 %v8351, %v8352
        %v8918 = vrot.slane %v8917, 4
        %v8919 = vadd.f32 %v8917, %v8918
        %v8920 = vrot.slane %v8919, 2
        %v8921 = vadd.f32 %v8919, %v8920
        %v8922 = vrot.slane %v8921, 1
        %v8923 = vadd.f32 %v8921, %v8922
        %v8924 = vadd.f32 %v8353, %v8354
        %v8925 = vrot.slane %v8924, 4
        %v8926 = vadd.f32 %v8924, %v8925
        %v8927 = vrot.slane %v8926, 2
        %v8928 = vadd.f32 %v8926, %v8927
        %v8929 = vrot.slane %v8928, 1
        %v8930 = vadd.f32 %v8928, %v8929
        %v8931 = vadd.f32 %v8355, %v8356
        %v8932 = vrot.slane %v8931, 4
        %v8933 = vadd.f32 %v8931, %v8932
        %v8934 = vrot.slane %v8933, 2
        %v8935 = vadd.f32 %v8933, %v8934
        %v8936 = vrot.slane %v8935, 1
        %v8937 = vadd.f32 %v8935, %v8936
        %v8938 = vadd.f32 %v8357, %v8358
        %v8939 = vrot.slane %v8938, 4
        %v8940 = vadd.f32 %v8938, %v8939
        %v8941 = vrot.slane %v8940, 2
        %v8942 = vadd.f32 %v8940, %v8941
        %v8943 = vrot.slane %v8942, 1
        %v8944 = vadd.f32 %v8942, %v8943
        %v8945 = vadd.f32 %v8359, %v8360
        %v8946 = vrot.slane %v8945, 4
        %v8947 = vadd.f32 %v8945, %v8946
        %v8948 = vrot.slane %v8947, 2
        %v8949 = vadd.f32 %v8947, %v8948
        %v8950 = vrot.slane %v8949, 1
        %v8951 = vadd.f32 %v8949, %v8950
        %v8952 = vadd.f32 %v8361, %v8362
        %v8953 = vrot.slane %v8952, 4
        %v8954 = vadd.f32 %v8952, %v8953
        %v8955 = vrot.slane %v8954, 2
        %v8956 = vadd.f32 %v8954, %v8955
        %v8957 = vrot.slane %v8956, 1
        %v8958 = vadd.f32 %v8956, %v8957
        %v8959 = vadd.f32 %v8363, %v8364
        %v8960 = vrot.slane %v8959, 4
        %v8961 = vadd.f32 %v8959, %v8960
        %v8962 = vrot.slane %v8961, 2
        %v8963 = vadd.f32 %v8961, %v8962
        %v8964 = vrot.slane %v8963, 1
        %v8965 = vadd.f32 %v8963, %v8964
        %v8966 = vadd.f32 %v8365, %v8366
        %v8967 = vrot.slane %v8966, 4
        %v8968 = vadd.f32 %v8966, %v8967
        %v8969 = vrot.slane %v8968, 2
        %v8970 = vadd.f32 %v8968, %v8969
        %v8971 = vrot.slane %v8970, 1
        %v8972 = vadd.f32 %v8970, %v8971
        %v8973 = vadd.f32 %v8367, %v8368
        %v8974 = vrot.slane %v8973, 4
        %v8975 = vadd.f32 %v8973, %v8974
        %v8976 = vrot.slane %v8975, 2
        %v8977 = vadd.f32 %v8975, %v8976
        %v8978 = vrot.slane %v8977, 1
        %v8979 = vadd.f32 %v8977, %v8978
        %v8980 = vadd.f32 %v8369, %v8370
        %v8981 = vrot.slane %v8980, 4
        %v8982 = vadd.f32 %v8980, %v8981
        %v8983 = vrot.slane %v8982, 2
        %v8984 = vadd.f32 %v8982, %v8983
        %v8985 = vrot.slane %v8984, 1
        %v8986 = vadd.f32 %v8984, %v8985
        %v8987 = vadd.f32 %v8371, %v8372
        %v8988 = vrot.slane %v8987, 4
        %v8989 = vadd.f32 %v8987, %v8988
        %v8990 = vrot.slane %v8989, 2
        %v8991 = vadd.f32 %v8989, %v8990
        %v8992 = vrot.slane %v8991, 1
        %v8993 = vadd.f32 %v8991, %v8992
        %v8994 = vadd.f32 %v8373, %v8374
        %v8995 = vrot.slane %v8994, 4
        %v8996 = vadd.f32 %v8994, %v8995
        %v8997 = vrot.slane %v8996, 2
        %v8998 = vadd.f32 %v8996, %v8997
        %v8999 = vrot.slane %v8998, 1
        %v9000 = vadd.f32 %v8998, %v8999
        %v9001 = vadd.f32 %v8375, %v8376
        %v9002 = vrot.slane %v9001, 4
        %v9003 = vadd.f32 %v9001, %v9002
        %v9004 = vrot.slane %v9003, 2
        %v9005 = vadd.f32 %v9003, %v9004
        %v9006 = vrot.slane %v9005, 1
        %v9007 = vadd.f32 %v9005, %v9006
        %v9008 = vadd.f32 %v8377, %v8378
        %v9009 = vrot.slane %v9008, 4
        %v9010 = vadd.f32 %v9008, %v9009
        %v9011 = vrot.slane %v9010, 2
        %v9012 = vadd.f32 %v9010, %v9011
        %v9013 = vrot.slane %v9012, 1
        %v9014 = vadd.f32 %v9012, %v9013
        %v9015 = vadd.f32 %v8379, %v8380
        %v9016 = vrot.slane %v9015, 4
        %v9017 = vadd.f32 %v9015, %v9016
        %v9018 = vrot.slane %v9017, 2
        %v9019 = vadd.f32 %v9017, %v9018
        %v9020 = vrot.slane %v9019, 1
        %v9021 = vadd.f32 %v9019, %v9020
        %v9022 = vadd.f32 %v8381, %v8382
        %v9023 = vrot.slane %v9022, 4
        %v9024 = vadd.f32 %v9022, %v9023
        %v9025 = vrot.slane %v9024, 2
        %v9026 = vadd.f32 %v9024, %v9025
        %v9027 = vrot.slane %v9026, 1
        %v9028 = vadd.f32 %v9026, %v9027
        %v9029 = vadd.f32 %v8383, %v8384
        %v9030 = vrot.slane %v9029, 4
        %v9031 = vadd.f32 %v9029, %v9030
        %v9032 = vrot.slane %v9031, 2
        %v9033 = vadd.f32 %v9031, %v9032
        %v9034 = vrot.slane %v9033, 1
        %v9035 = vadd.f32 %v9033, %v9034
        %v9036 = vadd.f32 %v8385, %v8386
        %v9037 = vrot.slane %v9036, 4
        %v9038 = vadd.f32 %v9036, %v9037
        %v9039 = vrot.slane %v9038, 2
        %v9040 = vadd.f32 %v9038, %v9039
        %v9041 = vrot.slane %v9040, 1
        %v9042 = vadd.f32 %v9040, %v9041
        %v9043 = vadd.f32 %v8387, %v8388
        %v9044 = vrot.slane %v9043, 4
        %v9045 = vadd.f32 %v9043, %v9044
        %v9046 = vrot.slane %v9045, 2
        %v9047 = vadd.f32 %v9045, %v9046
        %v9048 = vrot.slane %v9047, 1
        %v9049 = vadd.f32 %v9047, %v9048
        %v9050 = vadd.f32 %v8389, %v8390
        %v9051 = vrot.slane %v9050, 4
        %v9052 = vadd.f32 %v9050, %v9051
        %v9053 = vrot.slane %v9052, 2
        %v9054 = vadd.f32 %v9052, %v9053
        %v9055 = vrot.slane %v9054, 1
        %v9056 = vadd.f32 %v9054, %v9055
        %v9057 = vadd.f32 %v8391, %v8392
        %v9058 = vrot.slane %v9057, 4
        %v9059 = vadd.f32 %v9057, %v9058
        %v9060 = vrot.slane %v9059, 2
        %v9061 = vadd.f32 %v9059, %v9060
        %v9062 = vrot.slane %v9061, 1
        %v9063 = vadd.f32 %v9061, %v9062
        %v9064 = vadd.f32 %v8393, %v8394
        %v9065 = vrot.slane %v9064, 4
        %v9066 = vadd.f32 %v9064, %v9065
        %v9067 = vrot.slane %v9066, 2
        %v9068 = vadd.f32 %v9066, %v9067
        %v9069 = vrot.slane %v9068, 1
        %v9070 = vadd.f32 %v9068, %v9069
        %v9071 = vadd.f32 %v8395, %v8396
        %v9072 = vrot.slane %v9071, 4
        %v9073 = vadd.f32 %v9071, %v9072
        %v9074 = vrot.slane %v9073, 2
        %v9075 = vadd.f32 %v9073, %v9074
        %v9076 = vrot.slane %v9075, 1
        %v9077 = vadd.f32 %v9075, %v9076
        %v9078 = vadd.f32 %v8397, %v8398
        %v9079 = vrot.slane %v9078, 4
        %v9080 = vadd.f32 %v9078, %v9079
        %v9081 = vrot.slane %v9080, 2
        %v9082 = vadd.f32 %v9080, %v9081
        %v9083 = vrot.slane %v9082, 1
        %v9084 = vadd.f32 %v9082, %v9083
        %v9085 = vadd.f32 %v8399, %v8400
        %v9086 = vrot.slane %v9085, 4
        %v9087 = vadd.f32 %v9085, %v9086
        %v9088 = vrot.slane %v9087, 2
        %v9089 = vadd.f32 %v9087, %v9088
        %v9090 = vrot.slane %v9089, 1
        %v9091 = vadd.f32 %v9089, %v9090
        %v9092 = vadd.f32 %v8401, %v8402
        %v9093 = vrot.slane %v9092, 4
        %v9094 = vadd.f32 %v9092, %v9093
        %v9095 = vrot.slane %v9094, 2
        %v9096 = vadd.f32 %v9094, %v9095
        %v9097 = vrot.slane %v9096, 1
        %v9098 = vadd.f32 %v9096, %v9097
        %v9099 = vadd.f32 %v8403, %v8404
        %v9100 = vrot.slane %v9099, 4
        %v9101 = vadd.f32 %v9099, %v9100
        %v9102 = vrot.slane %v9101, 2
        %v9103 = vadd.f32 %v9101, %v9102
        %v9104 = vrot.slane %v9103, 1
        %v9105 = vadd.f32 %v9103, %v9104
        %v9106 = vadd.f32 %v8405, %v8406
        %v9107 = vrot.slane %v9106, 4
        %v9108 = vadd.f32 %v9106, %v9107
        %v9109 = vrot.slane %v9108, 2
        %v9110 = vadd.f32 %v9108, %v9109
        %v9111 = vrot.slane %v9110, 1
        %v9112 = vadd.f32 %v9110, %v9111
        %v9113 = vadd.f32 %v8407, %v8408
        %v9114 = vrot.slane %v9113, 4
        %v9115 = vadd.f32 %v9113, %v9114
        %v9116 = vrot.slane %v9115, 2
        %v9117 = vadd.f32 %v9115, %v9116
        %v9118 = vrot.slane %v9117, 1
        %v9119 = vadd.f32 %v9117, %v9118
        %v9120 = vadd.f32 %v8409, %v8410
        %v9121 = vrot.slane %v9120, 4
        %v9122 = vadd.f32 %v9120, %v9121
        %v9123 = vrot.slane %v9122, 2
        %v9124 = vadd.f32 %v9122, %v9123
        %v9125 = vrot.slane %v9124, 1
        %v9126 = vadd.f32 %v9124, %v9125
        %v9127 = vadd.f32 %v8411, %v8412
        %v9128 = vrot.slane %v9127, 4
        %v9129 = vadd.f32 %v9127, %v9128
        %v9130 = vrot.slane %v9129, 2
        %v9131 = vadd.f32 %v9129, %v9130
        %v9132 = vrot.slane %v9131, 1
        %v9133 = vadd.f32 %v9131, %v9132
        %v9134 = vadd.f32 %v8413, %v8414
        %v9135 = vrot.slane %v9134, 4
        %v9136 = vadd.f32 %v9134, %v9135
        %v9137 = vrot.slane %v9136, 2
        %v9138 = vadd.f32 %v9136, %v9137
        %v9139 = vrot.slane %v9138, 1
        %v9140 = vadd.f32 %v9138, %v9139
        %v9141 = vadd.f32 %v8415, %v8416
        %v9142 = vrot.slane %v9141, 4
        %v9143 = vadd.f32 %v9141, %v9142
        %v9144 = vrot.slane %v9143, 2
        %v9145 = vadd.f32 %v9143, %v9144
        %v9146 = vrot.slane %v9145, 1
        %v9147 = vadd.f32 %v9145, %v9146
        %v9148 = vadd.f32 %v8417, %v8418
        %v9149 = vrot.slane %v9148, 4
        %v9150 = vadd.f32 %v9148, %v9149
        %v9151 = vrot.slane %v9150, 2
        %v9152 = vadd.f32 %v9150, %v9151
        %v9153 = vrot.slane %v9152, 1
        %v9154 = vadd.f32 %v9152, %v9153
        %v9155 = vadd.f32 %v8419, %v8420
        %v9156 = vrot.slane %v9155, 4
        %v9157 = vadd.f32 %v9155, %v9156
        %v9158 = vrot.slane %v9157, 2
        %v9159 = vadd.f32 %v9157, %v9158
        %v9160 = vrot.slane %v9159, 1
        %v9161 = vadd.f32 %v9159, %v9160
        %v9162 = vadd.f32 %v8421, %v8422
        %v9163 = vrot.slane %v9162, 4
        %v9164 = vadd.f32 %v9162, %v9163
        %v9165 = vrot.slane %v9164, 2
        %v9166 = vadd.f32 %v9164, %v9165
        %v9167 = vrot.slane %v9166, 1
        %v9168 = vadd.f32 %v9166, %v9167
        %v9169 = vadd.f32 %v8423, %v8424
        %v9170 = vrot.slane %v9169, 4
        %v9171 = vadd.f32 %v9169, %v9170
        %v9172 = vrot.slane %v9171, 2
        %v9173 = vadd.f32 %v9171, %v9172
        %v9174 = vrot.slane %v9173, 1
        %v9175 = vadd.f32 %v9173, %v9174
        %v9176 = vadd.f32 %v8425, %v8426
        %v9177 = vrot.slane %v9176, 4
        %v9178 = vadd.f32 %v9176, %v9177
        %v9179 = vrot.slane %v9178, 2
        %v9180 = vadd.f32 %v9178, %v9179
        %v9181 = vrot.slane %v9180, 1
        %v9182 = vadd.f32 %v9180, %v9181
        %v9183 = vadd.f32 %v8427, %v8428
        %v9184 = vrot.slane %v9183, 4
        %v9185 = vadd.f32 %v9183, %v9184
        %v9186 = vrot.slane %v9185, 2
        %v9187 = vadd.f32 %v9185, %v9186
        %v9188 = vrot.slane %v9187, 1
        %v9189 = vadd.f32 %v9187, %v9188
        %v9190 = vadd.f32 %v8429, %v8430
        %v9191 = vrot.slane %v9190, 4
        %v9192 = vadd.f32 %v9190, %v9191
        %v9193 = vrot.slane %v9192, 2
        %v9194 = vadd.f32 %v9192, %v9193
        %v9195 = vrot.slane %v9194, 1
        %v9196 = vadd.f32 %v9194, %v9195
        %v9197 = vadd.f32 %v8431, %v8432
        %v9198 = vrot.slane %v9197, 4
        %v9199 = vadd.f32 %v9197, %v9198
        %v9200 = vrot.slane %v9199, 2
        %v9201 = vadd.f32 %v9199, %v9200
        %v9202 = vrot.slane %v9201, 1
        %v9203 = vadd.f32 %v9201, %v9202
        %v9204 = vadd.f32 %v8433, %v8434
        %v9205 = vrot.slane %v9204, 4
        %v9206 = vadd.f32 %v9204, %v9205
        %v9207 = vrot.slane %v9206, 2
        %v9208 = vadd.f32 %v9206, %v9207
        %v9209 = vrot.slane %v9208, 1
        %v9210 = vadd.f32 %v9208, %v9209
        %v9211 = vadd.f32 %v8435, %v8436
        %v9212 = vrot.slane %v9211, 4
        %v9213 = vadd.f32 %v9211, %v9212
        %v9214 = vrot.slane %v9213, 2
        %v9215 = vadd.f32 %v9213, %v9214
        %v9216 = vrot.slane %v9215, 1
        %v9217 = vadd.f32 %v9215, %v9216
        %v9218 = vadd.f32 %v8437, %v8438
        %v9219 = vrot.slane %v9218, 4
        %v9220 = vadd.f32 %v9218, %v9219
        %v9221 = vrot.slane %v9220, 2
        %v9222 = vadd.f32 %v9220, %v9221
        %v9223 = vrot.slane %v9222, 1
        %v9224 = vadd.f32 %v9222, %v9223
        %v9225 = vadd.f32 %v8439, %v8440
        %v9226 = vrot.slane %v9225, 4
        %v9227 = vadd.f32 %v9225, %v9226
        %v9228 = vrot.slane %v9227, 2
        %v9229 = vadd.f32 %v9227, %v9228
        %v9230 = vrot.slane %v9229, 1
        %v9231 = vadd.f32 %v9229, %v9230
        %v9232 = vadd.f32 %v8441, %v8442
        %v9233 = vrot.slane %v9232, 4
        %v9234 = vadd.f32 %v9232, %v9233
        %v9235 = vrot.slane %v9234, 2
        %v9236 = vadd.f32 %v9234, %v9235
        %v9237 = vrot.slane %v9236, 1
        %v9238 = vadd.f32 %v9236, %v9237
        %v9239 = vadd.f32 %v8443, %v8444
        %v9240 = vrot.slane %v9239, 4
        %v9241 = vadd.f32 %v9239, %v9240
        %v9242 = vrot.slane %v9241, 2
        %v9243 = vadd.f32 %v9241, %v9242
        %v9244 = vrot.slane %v9243, 1
        %v9245 = vadd.f32 %v9243, %v9244
        %v9246 = vadd.f32 %v8445, %v8446
        %v9247 = vrot.slane %v9246, 4
        %v9248 = vadd.f32 %v9246, %v9247
        %v9249 = vrot.slane %v9248, 2
        %v9250 = vadd.f32 %v9248, %v9249
        %v9251 = vrot.slane %v9250, 1
        %v9252 = vadd.f32 %v9250, %v9251
        %v9253 = vadd.f32 %v8447, %v8448
        %v9254 = vrot.slane %v9253, 4
        %v9255 = vadd.f32 %v9253, %v9254
        %v9256 = vrot.slane %v9255, 2
        %v9257 = vadd.f32 %v9255, %v9256
        %v9258 = vrot.slane %v9257, 1
        %v9259 = vadd.f32 %v9257, %v9258
        %v9260 = vadd.f32 %v8449, %v8450
        %v9261 = vrot.slane %v9260, 4
        %v9262 = vadd.f32 %v9260, %v9261
        %v9263 = vrot.slane %v9262, 2
        %v9264 = vadd.f32 %v9262, %v9263
        %v9265 = vrot.slane %v9264, 1
        %v9266 = vadd.f32 %v9264, %v9265
        %v9267 = vadd.f32 %v8451, %v8452
        %v9268 = vrot.slane %v9267, 4
        %v9269 = vadd.f32 %v9267, %v9268
        %v9270 = vrot.slane %v9269, 2
        %v9271 = vadd.f32 %v9269, %v9270
        %v9272 = vrot.slane %v9271, 1
        %v9273 = vadd.f32 %v9271, %v9272
        %v9274 = vadd.f32 %v8453, %v8454
        %v9275 = vrot.slane %v9274, 4
        %v9276 = vadd.f32 %v9274, %v9275
        %v9277 = vrot.slane %v9276, 2
        %v9278 = vadd.f32 %v9276, %v9277
        %v9279 = vrot.slane %v9278, 1
        %v9280 = vadd.f32 %v9278, %v9279
        %v9281 = vadd.f32 %v8455, %v8456
        %v9282 = vrot.slane %v9281, 4
        %v9283 = vadd.f32 %v9281, %v9282
        %v9284 = vrot.slane %v9283, 2
        %v9285 = vadd.f32 %v9283, %v9284
        %v9286 = vrot.slane %v9285, 1
        %v9287 = vadd.f32 %v9285, %v9286
        %v9288 = vadd.f32 %v8457, %v8458
        %v9289 = vrot.slane %v9288, 4
        %v9290 = vadd.f32 %v9288, %v9289
        %v9291 = vrot.slane %v9290, 2
        %v9292 = vadd.f32 %v9290, %v9291
        %v9293 = vrot.slane %v9292, 1
        %v9294 = vadd.f32 %v9292, %v9293
        %v9295 = vadd.f32 %v8459, %v8460
        %v9296 = vrot.slane %v9295, 4
        %v9297 = vadd.f32 %v9295, %v9296
        %v9298 = vrot.slane %v9297, 2
        %v9299 = vadd.f32 %v9297, %v9298
        %v9300 = vrot.slane %v9299, 1
        %v9301 = vadd.f32 %v9299, %v9300
        %v9302 = vadd.f32 %v8461, %v8462
        %v9303 = vrot.slane %v9302, 4
        %v9304 = vadd.f32 %v9302, %v9303
        %v9305 = vrot.slane %v9304, 2
        %v9306 = vadd.f32 %v9304, %v9305
        %v9307 = vrot.slane %v9306, 1
        %v9308 = vadd.f32 %v9306, %v9307
        %v9309 = vadd.f32 %v8463, %v8464
        %v9310 = vrot.slane %v9309, 4
        %v9311 = vadd.f32 %v9309, %v9310
        %v9312 = vrot.slane %v9311, 2
        %v9313 = vadd.f32 %v9311, %v9312
        %v9314 = vrot.slane %v9313, 1
        %v9315 = vadd.f32 %v9313, %v9314
        %v9316 = vadd.f32 %v8465, %v8466
        %v9317 = vrot.slane %v9316, 4
        %v9318 = vadd.f32 %v9316, %v9317
        %v9319 = vrot.slane %v9318, 2
        %v9320 = vadd.f32 %v9318, %v9319
        %v9321 = vrot.slane %v9320, 1
        %v9322 = vadd.f32 %v9320, %v9321
        %v9323 = vadd.f32 %v8467, %v8468
        %v9324 = vrot.slane %v9323, 4
        %v9325 = vadd.f32 %v9323, %v9324
        %v9326 = vrot.slane %v9325, 2
        %v9327 = vadd.f32 %v9325, %v9326
        %v9328 = vrot.slane %v9327, 1
        %v9329 = vadd.f32 %v9327, %v9328
        %v9330 = vadd.f32 %v8469, %v8470
        %v9331 = vrot.slane %v9330, 4
        %v9332 = vadd.f32 %v9330, %v9331
        %v9333 = vrot.slane %v9332, 2
        %v9334 = vadd.f32 %v9332, %v9333
        %v9335 = vrot.slane %v9334, 1
        %v9336 = vadd.f32 %v9334, %v9335
        %v9337 = vadd.f32 %v8471, %v8472
        %v9338 = vrot.slane %v9337, 4
        %v9339 = vadd.f32 %v9337, %v9338
        %v9340 = vrot.slane %v9339, 2
        %v9341 = vadd.f32 %v9339, %v9340
        %v9342 = vrot.slane %v9341, 1
        %v9343 = vadd.f32 %v9341, %v9342
        %v9344 = vadd.f32 %v8473, %v8474
        %v9345 = vrot.slane %v9344, 4
        %v9346 = vadd.f32 %v9344, %v9345
        %v9347 = vrot.slane %v9346, 2
        %v9348 = vadd.f32 %v9346, %v9347
        %v9349 = vrot.slane %v9348, 1
        %v9350 = vadd.f32 %v9348, %v9349
        %v9351 = vadd.f32 %v8475, %v8476
        %v9352 = vrot.slane %v9351, 4
        %v9353 = vadd.f32 %v9351, %v9352
        %v9354 = vrot.slane %v9353, 2
        %v9355 = vadd.f32 %v9353, %v9354
        %v9356 = vrot.slane %v9355, 1
        %v9357 = vadd.f32 %v9355, %v9356
        %v9358 = vadd.f32 %v8477, %v8478
        %v9359 = vrot.slane %v9358, 4
        %v9360 = vadd.f32 %v9358, %v9359
        %v9361 = vrot.slane %v9360, 2
        %v9362 = vadd.f32 %v9360, %v9361
        %v9363 = vrot.slane %v9362, 1
        %v9364 = vadd.f32 %v9362, %v9363
        %v9365 = vadd.f32 %v8479, %v8480
        %v9366 = vrot.slane %v9365, 4
        %v9367 = vadd.f32 %v9365, %v9366
        %v9368 = vrot.slane %v9367, 2
        %v9369 = vadd.f32 %v9367, %v9368
        %v9370 = vrot.slane %v9369, 1
        %v9371 = vadd.f32 %v9369, %v9370
        %v9372 = vadd.f32 %v8481, %v8482
        %v9373 = vrot.slane %v9372, 4
        %v9374 = vadd.f32 %v9372, %v9373
        %v9375 = vrot.slane %v9374, 2
        %v9376 = vadd.f32 %v9374, %v9375
        %v9377 = vrot.slane %v9376, 1
        %v9378 = vadd.f32 %v9376, %v9377
        %v9379 = vld [vmem:[#allocation13] sm:$0xff]
        %v9380 = vld [vmem:[#allocation13 + $0x8] sm:$0xff]
        %v9381 = vld [vmem:[#allocation13 + $0x10] sm:$0xff]
        %v9382 = vld [vmem:[#allocation13 + $0x18] sm:$0xff]
        %v9383 = vld [vmem:[#allocation13 + $0x20] sm:$0xff]
        %v9384 = vld [vmem:[#allocation13 + $0x28] sm:$0xff]
        %v9385 = vld [vmem:[#allocation13 + $0x30] sm:$0xff]
        %v9386 = vld [vmem:[#allocation13 + $0x38] sm:$0xff]
        %v9387 = vld [vmem:[#allocation13 + $0x40] sm:$0xff]
        %v9388 = vld [vmem:[#allocation13 + $0x48] sm:$0xff]
        %v9389 = vld [vmem:[#allocation13 + $0x50] sm:$0xff]
        %v9390 = vld [vmem:[#allocation13 + $0x58] sm:$0xff]
        %v9391 = vld [vmem:[#allocation13 + $0x60] sm:$0xff]
        %v9392 = vld [vmem:[#allocation13 + $0x68] sm:$0xff]
        %v9393 = vld [vmem:[#allocation13 + $0x70] sm:$0xff]
        %v9394 = vld [vmem:[#allocation13 + $0x78] sm:$0xff]
        %v9395 = vld [vmem:[#allocation14] sm:$0x1]
        %v9397 = vlaneseq
        %v9398 = vshrl.u32 %v9397, 7
        %v9399 = vsub.s32 0, %v9398
        %v9400 = vrot.slane %v9395, %v9399
        %v9530 = vsel %vm6491, %v8496, %v8489
        %v9531 = vsel %vm6493, %v8503, %v9530
        %v9532 = vsel %vm6495, %v8510, %v9531
        %v9533 = vsel %vm6497, %v8517, %v9532
        %v9534 = vsel %vm6499, %v8524, %v9533
        %v9535 = vsel %vm6501, %v8531, %v9534
        %v9536 = vsel %vm6503, %v8538, %v9535
        %v9537 = vsel %vm6491, %v8552, %v8545
        %v9538 = vsel %vm6493, %v8559, %v9537
        %v9539 = vsel %vm6495, %v8566, %v9538
        %v9540 = vsel %vm6497, %v8573, %v9539
        %v9541 = vsel %vm6499, %v8580, %v9540
        %v9542 = vsel %vm6501, %v8587, %v9541
        %v9543 = vsel %vm6503, %v8594, %v9542
        %v9544 = vsel %vm6491, %v8608, %v8601
        %v9545 = vsel %vm6493, %v8615, %v9544
        %v9546 = vsel %vm6495, %v8622, %v9545
        %v9547 = vsel %vm6497, %v8629, %v9546
        %v9548 = vsel %vm6499, %v8636, %v9547
        %v9549 = vsel %vm6501, %v8643, %v9548
        %v9550 = vsel %vm6503, %v8650, %v9549
        %v9551 = vsel %vm6491, %v8664, %v8657
        %v9552 = vsel %vm6493, %v8671, %v9551
        %v9553 = vsel %vm6495, %v8678, %v9552
        %v9554 = vsel %vm6497, %v8685, %v9553
        %v9555 = vsel %vm6499, %v8692, %v9554
        %v9556 = vsel %vm6501, %v8699, %v9555
        %v9557 = vsel %vm6503, %v8706, %v9556
        %v9558 = vsel %vm6491, %v8720, %v8713
        %v9559 = vsel %vm6493, %v8727, %v9558
        %v9560 = vsel %vm6495, %v8734, %v9559
        %v9561 = vsel %vm6497, %v8741, %v9560
        %v9562 = vsel %vm6499, %v8748, %v9561
        %v9563 = vsel %vm6501, %v8755, %v9562
        %v9564 = vsel %vm6503, %v8762, %v9563
        %v9565 = vsel %vm6491, %v8776, %v8769
        %v9566 = vsel %vm6493, %v8783, %v9565
        %v9567 = vsel %vm6495, %v8790, %v9566
        %v9568 = vsel %vm6497, %v8797, %v9567
        %v9569 = vsel %vm6499, %v8804, %v9568
        %v9570 = vsel %vm6501, %v8811, %v9569
        %v9571 = vsel %vm6503, %v8818, %v9570
        %v9572 = vsel %vm6491, %v8832, %v8825
        %v9573 = vsel %vm6493, %v8839, %v9572
        %v9574 = vsel %vm6495, %v8846, %v9573
        %v9575 = vsel %vm6497, %v8853, %v9574
        %v9576 = vsel %vm6499, %v8860, %v9575
        %v9577 = vsel %vm6501, %v8867, %v9576
        %v9578 = vsel %vm6503, %v8874, %v9577
        %v9579 = vsel %vm6491, %v8888, %v8881
        %v9580 = vsel %vm6493, %v8895, %v9579
        %v9581 = vsel %vm6495, %v8902, %v9580
        %v9582 = vsel %vm6497, %v8909, %v9581
        %v9583 = vsel %vm6499, %v8916, %v9582
        %v9584 = vsel %vm6501, %v8923, %v9583
        %v9585 = vsel %vm6503, %v8930, %v9584
        %v9586 = vsel %vm6491, %v8944, %v8937
        %v9587 = vsel %vm6493, %v8951, %v9586
        %v9588 = vsel %vm6495, %v8958, %v9587
        %v9589 = vsel %vm6497, %v8965, %v9588
        %v9590 = vsel %vm6499, %v8972, %v9589
        %v9591 = vsel %vm6501, %v8979, %v9590
        %v9592 = vsel %vm6503, %v8986, %v9591
        %v9593 = vsel %vm6491, %v9000, %v8993
        %v9594 = vsel %vm6493, %v9007, %v9593
        %v9595 = vsel %vm6495, %v9014, %v9594
        %v9596 = vsel %vm6497, %v9021, %v9595
        %v9597 = vsel %vm6499, %v9028, %v9596
        %v9598 = vsel %vm6501, %v9035, %v9597
        %v9599 = vsel %vm6503, %v9042, %v9598
        %v9600 = vsel %vm6491, %v9056, %v9049
        %v9601 = vsel %vm6493, %v9063, %v9600
        %v9602 = vsel %vm6495, %v9070, %v9601
        %v9603 = vsel %vm6497, %v9077, %v9602
        %v9604 = vsel %vm6499, %v9084, %v9603
        %v9605 = vsel %vm6501, %v9091, %v9604
        %v9606 = vsel %vm6503, %v9098, %v9605
        %v9607 = vsel %vm6491, %v9112, %v9105
        %v9608 = vsel %vm6493, %v9119, %v9607
        %v9609 = vsel %vm6495, %v9126, %v9608
        %v9610 = vsel %vm6497, %v9133, %v9609
        %v9611 = vsel %vm6499, %v9140, %v9610
        %v9612 = vsel %vm6501, %v9147, %v9611
        %v9613 = vsel %vm6503, %v9154, %v9612
        %v9614 = vsel %vm6491, %v9168, %v9161
        %v9615 = vsel %vm6493, %v9175, %v9614
        %v9616 = vsel %vm6495, %v9182, %v9615
        %v9617 = vsel %vm6497, %v9189, %v9616
        %v9618 = vsel %vm6499, %v9196, %v9617
        %v9619 = vsel %vm6501, %v9203, %v9618
        %v9620 = vsel %vm6503, %v9210, %v9619
        %v9621 = vsel %vm6491, %v9224, %v9217
        %v9622 = vsel %vm6493, %v9231, %v9621
        %v9623 = vsel %vm6495, %v9238, %v9622
        %v9624 = vsel %vm6497, %v9245, %v9623
        %v9625 = vsel %vm6499, %v9252, %v9624
        %v9626 = vsel %vm6501, %v9259, %v9625
        %v9627 = vsel %vm6503, %v9266, %v9626
        %v9628 = vsel %vm6491, %v9280, %v9273
        %v9629 = vsel %vm6493, %v9287, %v9628
        %v9630 = vsel %vm6495, %v9294, %v9629
        %v9631 = vsel %vm6497, %v9301, %v9630
        %v9632 = vsel %vm6499, %v9308, %v9631
        %v9633 = vsel %vm6501, %v9315, %v9632
        %v9634 = vsel %vm6503, %v9322, %v9633
        %v9635 = vsel %vm6491, %v9336, %v9329
        %v9636 = vsel %vm6493, %v9343, %v9635
        %v9637 = vsel %vm6495, %v9350, %v9636
        %v9638 = vsel %vm6497, %v9357, %v9637
        %v9639 = vsel %vm6499, %v9364, %v9638
        %v9640 = vsel %vm6501, %v9371, %v9639
        %v9641 = vsel %vm6503, %v9378, %v9640
        %9658 = vmatprep.subr.mxu0 0.0
        %9659 = vmatpush1.msra.mxu0 %v9379
        %9660 = vmatprep.subr.mxu0 0.0
        %9661 = vmatpush1.msra.mxu0 %v9380
        %9662 = vmatprep.subr.mxu0 0.0
        %9663 = vmatpush1.msra.mxu0 %v9381
        %9664 = vmatprep.subr.mxu0 0.0
        %9665 = vmatpush1.msra.mxu0 %v9382
        %9666 = vmatprep.subr.mxu0 0.0
        %9667 = vmatpush1.msra.mxu0 %v9383
        %9668 = vmatprep.subr.mxu0 0.0
        %9669 = vmatpush1.msra.mxu0 %v9384
        %9670 = vmatprep.subr.mxu0 0.0
        %9671 = vmatpush1.msra.mxu0 %v9385
        %9672 = vmatprep.subr.mxu0 0.0
        %9673 = vmatpush1.msra.mxu0 %v9386
        %9674 = vmatprep.subr.mxu0 0.0
        %9675 = vmatpush1.msra.mxu0 %v9387
        %9676 = vmatprep.subr.mxu0 0.0
        %9677 = vmatpush1.msra.mxu0 %v9388
        %9678 = vmatprep.subr.mxu0 0.0
        %9679 = vmatpush1.msra.mxu0 %v9389
        %9680 = vmatprep.subr.mxu0 0.0
        %9681 = vmatpush1.msra.mxu0 %v9390
        %9682 = vmatprep.subr.mxu0 0.0
        %9683 = vmatpush1.msra.mxu0 %v9391
        %9684 = vmatprep.subr.mxu0 0.0
        %9685 = vmatpush1.msra.mxu0 %v9392
        %9686 = vmatprep.subr.mxu0 0.0
        %9687 = vmatpush1.msra.mxu0 %v9393
        %9688 = vmatprep.subr.mxu0 0.0
        %9689 = vmatpush1.msra.mxu0 %v9394
        %9690 = vmatprep.subr.mxu0 0.0
        %9691 = vmatpush1.msra.mxu0 0.0
        %9692 = vmatprep.subr.mxu0 0.0
        %9693 = vmatpush1.msra.mxu0 0.0
        %9694 = vmatprep.subr.mxu0 0.0
        %9695 = vmatpush1.msra.mxu0 0.0
        %9696 = vmatprep.subr.mxu0 0.0
        %9697 = vmatpush1.msra.mxu0 0.0
        %9698 = vmatprep.subr.mxu0 0.0
        %9699 = vmatpush1.msra.mxu0 0.0
        %9700 = vmatprep.subr.mxu0 0.0
        %9701 = vmatpush1.msra.mxu0 0.0
        %9702 = vmatprep.subr.mxu0 0.0
        %9703 = vmatpush1.msra.mxu0 0.0
        %9704 = vmatprep.subr.mxu0 0.0
        %9705 = vmatpush1.msra.mxu0 0.0
        %9706 = vmatprep.subr.mxu0 0.0
        %9707 = vmatpush1.msra.mxu0 0.0
        %9708 = vmatprep.subr.mxu0 0.0
        %9709 = vmatpush1.msra.mxu0 0.0
        %9710 = vmatprep.subr.mxu0 0.0
        %9711 = vmatpush1.msra.mxu0 0.0
        %9712 = vmatprep.subr.mxu0 0.0
        %9713 = vmatpush1.msra.mxu0 0.0
        %9714 = vmatprep.subr.mxu0 0.0
        %9715 = vmatpush1.msra.mxu0 0.0
        %9716 = vmatprep.subr.mxu0 0.0
        %9717 = vmatpush1.msra.mxu0 0.0
        %9718 = vmatprep.subr.mxu0 0.0
        %9719 = vmatpush1.msra.mxu0 0.0
        %9720 = vmatprep.subr.mxu0 0.0
        %9721 = vmatpush1.msra.mxu0 0.0
        %9722 = vmatprep.mubr.f32.mxu0 0.0
        %9723 = vmatmul.mubr.f32.gmra.mrb[0].mxu0 %v9536
        %v9724 = vpop.f32.mrb[0].mxu0
        %v9725 = vadd.f32 %v9400, %v9724
        %v9726 = vpop.f32.mrb[0].mxu0
        %9727 = vmatprep.mubr.f32.mxu0 0.0
        %9728 = vmatmul.mubr.f32.gmra.mrb[0].mxu0 %v9543
        %v9729 = vpop.f32.mrb[0].mxu0
        %v9730 = vadd.f32 %v9400, %v9729
        %v9731 = vpop.f32.mrb[0].mxu0
        %9732 = vmatprep.mubr.f32.mxu0 0.0
        %9733 = vmatmul.mubr.f32.gmra.mrb[0].mxu0 %v9550
        %v9734 = vpop.f32.mrb[0].mxu0
        %v9735 = vadd.f32 %v9400, %v9734
        %v9736 = vpop.f32.mrb[0].mxu0
        %9737 = vmatprep.mubr.f32.mxu0 0.0
        %9738 = vmatmul.mubr.f32.gmra.mrb[0].mxu0 %v9557
        %v9739 = vpop.f32.mrb[0].mxu0
        %v9740 = vadd.f32 %v9400, %v9739
        %v9741 = vpop.f32.mrb[0].mxu0
        %9742 = vmatprep.mubr.f32.mxu0 0.0
        %9743 = vmatmul.mubr.f32.gmra.mrb[0].mxu0 %v9564
        %v9744 = vpop.f32.mrb[0].mxu0
        %v9745 = vadd.f32 %v9400, %v9744
        %v9746 = vpop.f32.mrb[0].mxu0
        %9747 = vmatprep.mubr.f32.mxu0 0.0
        %9748 = vmatmul.mubr.f32.gmra.mrb[0].mxu0 %v9571
        %v9749 = vpop.f32.mrb[0].mxu0
        %v9750 = vadd.f32 %v9400, %v9749
        %v9751 = vpop.f32.mrb[0].mxu0
        %9752 = vmatprep.mubr.f32.mxu0 0.0
        %9753 = vmatmul.mubr.f32.gmra.mrb[0].mxu0 %v9578
        %v9754 = vpop.f32.mrb[0].mxu0
        %v9755 = vadd.f32 %v9400, %v9754
        %v9756 = vpop.f32.mrb[0].mxu0
        %9757 = vmatprep.mubr.f32.mxu0 0.0
        %9758 = vmatmul.mubr.f32.gmra.mrb[0].mxu0 %v9585
        %v9759 = vpop.f32.mrb[0].mxu0
        %v9760 = vadd.f32 %v9400, %v9759
        %v9761 = vpop.f32.mrb[0].mxu0
        %9762 = vmatprep.mubr.f32.mxu0 0.0
        %9763 = vmatmul.mubr.f32.gmra.mrb[0].mxu0 %v9592
        %v9764 = vpop.f32.mrb[0].mxu0
        %v9765 = vadd.f32 %v9400, %v9764
        %v9766 = vpop.f32.mrb[0].mxu0
        %9767 = vmatprep.mubr.f32.mxu0 0.0
        %9768 = vmatmul.mubr.f32.gmra.mrb[0].mxu0 %v9599
        %v9769 = vpop.f32.mrb[0].mxu0
        %v9770 = vadd.f32 %v9400, %v9769
        %v9771 = vpop.f32.mrb[0].mxu0
        %9772 = vmatprep.mubr.f32.mxu0 0.0
        %9773 = vmatmul.mubr.f32.gmra.mrb[0].mxu0 %v9606
        %v9774 = vpop.f32.mrb[0].mxu0
        %v9775 = vadd.f32 %v9400, %v9774
        %v9776 = vpop.f32.mrb[0].mxu0
        %9777 = vmatprep.mubr.f32.mxu0 0.0
        %9778 = vmatmul.mubr.f32.gmra.mrb[0].mxu0 %v9613
        %v9779 = vpop.f32.mrb[0].mxu0
        %v9780 = vadd.f32 %v9400, %v9779
        %v9781 = vpop.f32.mrb[0].mxu0
        %9782 = vmatprep.mubr.f32.mxu0 0.0
        %9783 = vmatmul.mubr.f32.gmra.mrb[0].mxu0 %v9620
        %v9784 = vpop.f32.mrb[0].mxu0
        %v9785 = vadd.f32 %v9400, %v9784
        %v9786 = vpop.f32.mrb[0].mxu0
        %9787 = vmatprep.mubr.f32.mxu0 0.0
        %9788 = vmatmul.mubr.f32.gmra.mrb[0].mxu0 %v9627
        %v9789 = vpop.f32.mrb[0].mxu0
        %v9790 = vadd.f32 %v9400, %v9789
        %v9791 = vpop.f32.mrb[0].mxu0
        %9792 = vmatprep.mubr.f32.mxu0 0.0
        %9793 = vmatmul.mubr.f32.gmra.mrb[0].mxu0 %v9634
        %v9794 = vpop.f32.mrb[0].mxu0
        %v9795 = vadd.f32 %v9400, %v9794
        %v9796 = vpop.f32.mrb[0].mxu0
        %9797 = vmatprep.mubr.f32.mxu0 0.0
        %9798 = vmatmul.mubr.f32.gmra.mrb[0].mxu0 %v9641
        %v9799 = vpop.f32.mrb[0].mxu0
        %v9800 = vadd.f32 %v9400, %v9799
        %v9801 = vpop.f32.mrb[0].mxu0
        %9802 = vdwg.mxu0
        %v9803 = vsel %vm6642, %v770, 0.0
        %9804 = vadd.xlane.f32.xlu0 %v9803
        %v9805 = vpop.xlane.xlu0 %9804
        %v9806 = vsel %vm6642, %v771, 0.0
        %9807 = vadd.xlane.f32.xlu0 %v9806
        %v9808 = vpop.xlane.xlu0 %9807
        %v9809 = vsel %vm6642, %v772, 0.0
        %9810 = vadd.xlane.f32.xlu0 %v9809
        %v9811 = vpop.xlane.xlu0 %9810
        %v9812 = vsel %vm6642, %v773, 0.0
        %9813 = vadd.xlane.f32.xlu0 %v9812
        %v9814 = vpop.xlane.xlu0 %9813
        %v9815 = vsel %vm6642, %v774, 0.0
        %9816 = vadd.xlane.f32.xlu0 %v9815
        %v9817 = vpop.xlane.xlu0 %9816
        %v9818 = vsel %vm6642, %v775, 0.0
        %9819 = vadd.xlane.f32.xlu0 %v9818
        %v9820 = vpop.xlane.xlu0 %9819
        %v9821 = vsel %vm6642, %v776, 0.0
        %9822 = vadd.xlane.f32.xlu0 %v9821
        %v9823 = vpop.xlane.xlu0 %9822
        %v9824 = vsel %vm6642, %v777, 0.0
        %9825 = vadd.xlane.f32.xlu0 %v9824
        %v9826 = vpop.xlane.xlu0 %9825
        %v9827 = vsel %vm6642, %v778, 0.0
        %9828 = vadd.xlane.f32.xlu0 %v9827
        %v9829 = vpop.xlane.xlu0 %9828
        %v9830 = vsel %vm6642, %v779, 0.0
        %9831 = vadd.xlane.f32.xlu0 %v9830
        %v9832 = vpop.xlane.xlu0 %9831
        %v9833 = vsel %vm6642, %v780, 0.0
        %9834 = vadd.xlane.f32.xlu0 %v9833
        %v9835 = vpop.xlane.xlu0 %9834
        %v9836 = vsel %vm6642, %v781, 0.0
        %9837 = vadd.xlane.f32.xlu0 %v9836
        %v9838 = vpop.xlane.xlu0 %9837
        %v9839 = vsel %vm6642, %v782, 0.0
        %9840 = vadd.xlane.f32.xlu0 %v9839
        %v9841 = vpop.xlane.xlu0 %9840
        %v9842 = vsel %vm6642, %v783, 0.0
        %9843 = vadd.xlane.f32.xlu0 %v9842
        %v9844 = vpop.xlane.xlu0 %9843
        %v9845 = vsel %vm6642, %v784, 0.0
        %9846 = vadd.xlane.f32.xlu0 %v9845
        %v9847 = vpop.xlane.xlu0 %9846
        %v9848 = vsel %vm6642, %v785, 0.0
        %9849 = vadd.xlane.f32.xlu0 %v9848
        %v9850 = vpop.xlane.xlu0 %9849
        %vm9851 = vcmp.gt.f32.partialorder %v9805, 0.0
        %vm9852 = vcmp.gt.f32.partialorder %v9808, 0.0
        %vm9853 = vcmp.gt.f32.partialorder %v9811, 0.0
        %vm9854 = vcmp.gt.f32.partialorder %v9814, 0.0
        %vm9855 = vcmp.gt.f32.partialorder %v9817, 0.0
        %vm9856 = vcmp.gt.f32.partialorder %v9820, 0.0
        %vm9857 = vcmp.gt.f32.partialorder %v9823, 0.0
        %vm9858 = vcmp.gt.f32.partialorder %v9826, 0.0
        %vm9859 = vcmp.gt.f32.partialorder %v9829, 0.0
        %vm9860 = vcmp.gt.f32.partialorder %v9832, 0.0
        %vm9861 = vcmp.gt.f32.partialorder %v9835, 0.0
        %vm9862 = vcmp.gt.f32.partialorder %v9838, 0.0
        %vm9863 = vcmp.gt.f32.partialorder %v9841, 0.0
        %vm9864 = vcmp.gt.f32.partialorder %v9844, 0.0
        %vm9865 = vcmp.gt.f32.partialorder %v9847, 0.0
        %vm9866 = vcmp.gt.f32.partialorder %v9850, 0.0
        %v9867 = vsel %vm9851, 1, 0
        %v9868 = vsel %vm9852, 1, 0
        %v9869 = vsel %vm9853, 1, 0
        %v9870 = vsel %vm9854, 1, 0
        %v9871 = vsel %vm9855, 1, 0
        %v9872 = vsel %vm9856, 1, 0
        %v9873 = vsel %vm9857, 1, 0
        %v9874 = vsel %vm9858, 1, 0
        %v9875 = vsel %vm9859, 1, 0
        %v9876 = vsel %vm9860, 1, 0
        %v9877 = vsel %vm9861, 1, 0
        %v9878 = vsel %vm9862, 1, 0
        %v9879 = vsel %vm9863, 1, 0
        %v9880 = vsel %vm9864, 1, 0
        %v9881 = vsel %vm9865, 1, 0
        %v9882 = vsel %vm9866, 1, 0
        %v9883 = vcvt.s32.f32 %v9867
        %v9884 = vcvt.s32.f32 %v9868
        %v9885 = vcvt.s32.f32 %v9869
        %v9886 = vcvt.s32.f32 %v9870
        %v9887 = vcvt.s32.f32 %v9871
        %v9888 = vcvt.s32.f32 %v9872
        %v9889 = vcvt.s32.f32 %v9873
        %v9890 = vcvt.s32.f32 %v9874
        %v9891 = vcvt.s32.f32 %v9875
        %v9892 = vcvt.s32.f32 %v9876
        %v9893 = vcvt.s32.f32 %v9877
        %v9894 = vcvt.s32.f32 %v9878
        %v9895 = vcvt.s32.f32 %v9879
        %v9896 = vcvt.s32.f32 %v9880
        %v9897 = vcvt.s32.f32 %v9881
        %v9898 = vcvt.s32.f32 %v9882
        %v9899 = vmul.f32 %v9725, %v9883
        %v9900 = vmul.f32 %v9730, %v9884
        %v9901 = vmul.f32 %v9735, %v9885
        %v9902 = vmul.f32 %v9740, %v9886
        %v9903 = vmul.f32 %v9745, %v9887
        %v9904 = vmul.f32 %v9750, %v9888
        %v9905 = vmul.f32 %v9755, %v9889
        %v9906 = vmul.f32 %v9760, %v9890
        %v9907 = vmul.f32 %v9765, %v9891
        %v9908 = vmul.f32 %v9770, %v9892
        %v9909 = vmul.f32 %v9775, %v9893
        %v9910 = vmul.f32 %v9780, %v9894
        %v9911 = vmul.f32 %v9785, %v9895
        %v9912 = vmul.f32 %v9790, %v9896
        %v9913 = vmul.f32 %v9795, %v9897
        %v9914 = vmul.f32 %v9800, %v9898
        %9915 = vst [vmem:[%s488] sm:$0xff] %v9899
        %9916 = vst [vmem:[%s488 + $0x8] sm:$0xff] %v9900
        %9917 = vst [vmem:[%s488 + $0x10] sm:$0xff] %v9901
        %9918 = vst [vmem:[%s488 + $0x18] sm:$0xff] %v9902
        %9919 = vst [vmem:[%s488 + $0x20] sm:$0xff] %v9903
        %9920 = vst [vmem:[%s488 + $0x28] sm:$0xff] %v9904
        %9921 = vst [vmem:[%s488 + $0x30] sm:$0xff] %v9905
        %9922 = vst [vmem:[%s488 + $0x38] sm:$0xff] %v9906
        %9923 = vst [vmem:[%s488 + $0x40] sm:$0xff] %v9907
        %9924 = vst [vmem:[%s488 + $0x48] sm:$0xff] %v9908
        %9925 = vst [vmem:[%s488 + $0x50] sm:$0xff] %v9909
        %9926 = vst [vmem:[%s488 + $0x58] sm:$0xff] %v9910
        %9927 = vst [vmem:[%s488 + $0x60] sm:$0xff] %v9911
        %9928 = vst [vmem:[%s488 + $0x68] sm:$0xff] %v9912
        %9929 = vst [vmem:[%s488 + $0x70] sm:$0xff] %v9913
        %9930 = vst [vmem:[%s488 + $0x78] sm:$0xff] %v9914
        %s9931 = sand.u32 %s244, 1
        %s9932 = scalar_lea.sflag [#allocation4], %s9931
        %s9933 = sand.u32 %s244, 1
        %s9934 = smul.addr %s9933, 128
        %s9935 = scalar_lea.vmem [#allocation16], %s9934
        // Predicated region
        $region89: #{tpu_custom_call.1} parent=55 // pred_check
          %p9936 = pneg %p254
        $region90: #{tpu_custom_call.1} parent=55 // pred_check_branch
          %9938 = sbr.rel (%p9936) target = $region92
        $region91: #{tpu_custom_call.1} parent=55 // pred_region
          %s9939 = smul.u32 16, %s32
          %s9941 = ssub.s32 2048, 2048
          %9942 = vsyncadd %s9932, %s9941
          %s9943 = smul.addr %s9939, 128
          %s9944 = scalar_lea.hbm %s9, %s9943
          %s9945 = sshll.u32 %s9935, 4
          %s9946 = int_to_ptr.vmem [resolvable:$true] %s9945
          %9951 = dma.vmem_to_hbm [thread:$0]  %s9946, 2048, %s9944, %s9932, 128, 128, 8
        $region92: #{tpu_custom_call.1} parent=55 // pred_fallthru
          _
      $region56: #{tpu_custom_call.1} parent=5 // pred_fallthru
        _
      %p9952 = scmp.le.s32.totalorder 2, %s27
      // Predicated region
      $region93: #{tpu_custom_call.1} parent=5 // pred_check
        %p9953 = pneg %p9952
      $region94: #{tpu_custom_call.1} parent=5 // pred_check_branch
        %9955 = sbr.rel (%p9953) target = $region96
      $region95: #{tpu_custom_call.1} parent=5 // pred_region
        %s9956 = ssub.s32 %s27, 2
        // Predicated region
        $region97: #{tpu_custom_call.1} parent=95 // pred_check
          %p9957 = pneg %p260
        $region98: #{tpu_custom_call.1} parent=95 // pred_check_branch
          %9959 = sbr.rel (%p9957) target = $region100
        $region99: #{tpu_custom_call.1} parent=95 // pred_region
          %s9960 = sand.u32 %s245, 1
          %s9961 = scalar_lea.sflag [#allocation4], %s9960
          %s9962 = sand.u32 %s245, 1
          %s9963 = smul.addr %s9962, 128
          %s9964 = scalar_lea.vmem [#allocation16], %s9963
          %9965 = dma.done %s9961, 2048
        $region100: #{tpu_custom_call.1} parent=95 // pred_fallthru
          _
      $region96: #{tpu_custom_call.1} parent=5 // pred_fallthru
        _
    $region6: #{tpu_custom_call.1} parent=1 // loop_footer
      %s31 = sadd.s32 1, %s27
    $region7: #{tpu_custom_call.1} parent=1 // loop_footer_branch
      %26 = sbr.rel target = $region3
    $region8: #{tpu_custom_call.1} parent=1 // loop_exit
      _
    %9966 = vsyncpa [#allocation3], 1
    %s9967 = scalar_lea.sflag [#allocation3], 1
    %9968 = vsyncpa %s9967, 1
    %9969 = vsyncpa [#allocation6], 1
    %s9970 = scalar_lea.sflag [#allocation6], 1
    %9971 = vsyncpa %s9970, 1
    %9972 = vsyncpa [#allocation9], 1
    %9973 = vsyncpa [#allocation12], 1
    %9974 = vsyncpa [#allocation15], 1
    %9975 = vsyncpa [#allocation4], 1
    %s9976 = scalar_lea.sflag [#allocation4], 1
    %9977 = vsyncpa %s9976, 1

</llo_original>
